<compile_context>
chip_gen: v6e
topology: v6e:2x2x1
jax: 0.10.0
libtpu: 0.0.40
codegen_flags: <defaults>
</compile_context>

<pallas_src>
import functools

import jax
import jax.numpy as jnp
from jax import lax
from jax.experimental import pallas as pl
from jax.experimental.pallas import tpu as pltpu

NEG_SLOPE = 0.2
RES_SCALE = 0.2
N_RDB = 3     # dense blocks per RRDB
N_CONV = 5    # convs per dense block


# ---------------------------------------------------------------------------
# Fused RRDB kernel (one batch element per grid step)
# ---------------------------------------------------------------------------
def _rrdb_kernel(x_ref, m_ref, *refs, nf, gc, H, W):
    n_wb = N_RDB * N_CONV
    w_refs = refs[:n_wb]                  # 15 x (Cout, 9*Cin) matmul weights
    b_refs = refs[n_wb:2 * n_wb]          # 15 x (Cout, 1) biases
    out_ref = refs[2 * n_wb]              # (nf, H*W)
    xcol_ref = refs[2 * n_wb + 1]         # (9*(nf+4*gc), H*W) im2col scratch

    HW = H * W
    # Tap t = ky*3 + kx reads input pixel (y+ky-1, x+kx-1): in the flattened
    # lane index that is a constant offset d, realised as a lane roll.
    taps = [(ky, kx) for ky in range(3) for kx in range(3)]
    # 0/1 halo masks (one (1, HW) row per tap), loaded once and reused.
    masks = [m_ref[pl.ds(t, 1), :] for t in range(9)]

    def write_source(src, base_row):
        """Scatter the 9 rolled+masked copies of `src` (C, HW) into the
        im2col scratch rows [base_row, base_row + 9*C)."""
        C = src.shape[0]
        for t, (ky, kx) in enumerate(taps):
            d = (ky - 1) * W + (kx - 1)
            shift = (-d) % HW
            rolled = pltpu.roll(src, shift, 1) if shift else src  # rolled[p]=src[p+d]
            val = rolled if t == 4 else rolled * masks[t]         # centre tap: all valid
            xcol_ref[pl.ds(base_row + t * C, C), :] = val

    def conv(idx, cin):
        """3x3 conv over the first `cin` concatenated channels -> (Cout, HW)."""
        patches = xcol_ref[pl.ds(0, 9 * cin), :]                  # (9*Cin, HW)
        acc = jnp.dot(w_refs[idx][...], patches,
                      preferred_element_type=jnp.float32)         # one MXU matmul
        return acc + b_refs[idx][...]                             # bias (Cout, 1)

    def lrelu(a):
        return jnp.where(a >= 0, a, a * NEG_SLOPE)

    x_in = x_ref[...]                                             # (nf, HW) f32
    x_cur = x_in
    for r in range(N_RDB):
        base = r * N_CONV
        write_source(x_cur, 0)                                    # rows [0, 9*nf)
        for i in range(4):                                        # conv1..conv4 + lrelu
            cin = nf + i * gc
            h = lrelu(conv(base + i, cin))
            write_source(h, 9 * cin)                              # append new source
        h5 = conv(base + 4, nf + 4 * gc)                          # conv5 (no lrelu)
        x_cur = h5 * RES_SCALE + x_cur                            # dense-block residual
    out_ref[...] = (x_cur * RES_SCALE + x_in).astype(out_ref.dtype)   # RRDB residual


# ---------------------------------------------------------------------------
# Host-side helpers (tiny) + forward wrapper
# ---------------------------------------------------------------------------
def _build_wcol(w_hwio, source_sizes):
    """HWIO (3,3,Cin,Cout) conv weight -> (Cout, 9*Cin) matmul weight whose
    column order ([source][tap][channel]) matches the im2col scratch rows."""
    cout = w_hwio.shape[-1]
    parts, off = [], 0
    for cs in source_sizes:
        ws = w_hwio[:, :, off:off + cs, :]                        # (3,3,cs,cout)
        parts.append(jnp.transpose(ws, (3, 0, 1, 2)).reshape(cout, 9 * cs))
        off += cs
    return jnp.concatenate(parts, axis=1)


def _build_tap_masks(H, W):
    """(9, H*W) 0/1 masks; mask[t, p] == 1 iff tap t of output pixel p reads
    inside the image (i.e. not the implicit 'same' zero padding)."""
    yy, xx = jnp.meshgrid(jnp.arange(H), jnp.arange(W), indexing="ij")
    rows = []
    for ky in range(3):
        for kx in range(3):
            valid = ((yy + ky - 1 >= 0) & (yy + ky - 1 < H) &
                     (xx + kx - 1 >= 0) & (xx + kx - 1 < W))
            rows.append(valid.reshape(-1))
    return jnp.stack(rows, axis=0).astype(jnp.float32)


@jax.jit
def rrdb_forward_nchw(x_nchw, params):
    """RRDB forward; input/output are PyTorch-style NCHW float32."""
    N, nf, H, W = x_nchw.shape
    gc = params["RDB1"]["conv1"][0].shape[-1]
    HW = H * W

    # NCHW -> (N, C, H*W): channels on sublanes, spatial on lanes (pure reshape).
    x_flat = x_nchw.reshape(N, nf, HW).astype(jnp.float32)
    tap_masks = _build_tap_masks(H, W)

    # Weight repack into im2col column order (per conv: (Cout, 9*Cin) + (Cout,1)).
    src_sizes = [[nf] + [gc] * i for i in range(N_CONV)]
    ws, bs = [], []
    for rdb_name in ("RDB1", "RDB2", "RDB3"):
        p = params[rdb_name]
        for i in range(1, N_CONV + 1):
            w, b = p[f"conv{i}"]
            ws.append(_build_wcol(w.astype(jnp.float32), src_sizes[i - 1]))
            bs.append(b.astype(jnp.float32).reshape(-1, 1))

    in_specs = [pl.BlockSpec((None, nf, HW), lambda n: (n, 0, 0)),   # x (per batch)
                pl.BlockSpec((9, HW), lambda n: (0, 0))]             # tap masks
    in_specs += [pl.BlockSpec(a.shape, lambda n: (0, 0)) for a in ws + bs]

    kernel = functools.partial(_rrdb_kernel, nf=nf, gc=gc, H=H, W=W)
    out = pl.pallas_call(
        kernel,
        out_shape=jax.ShapeDtypeStruct((N, nf, HW), jnp.float32),
        grid=(N,),
        in_specs=in_specs,
        out_specs=pl.BlockSpec((None, nf, HW), lambda n: (n, 0, 0)),
        scratch_shapes=[pltpu.VMEM((9 * (nf + 4 * gc), HW), jnp.float32)],
        compiler_params=pltpu.CompilerParams(
            dimension_semantics=("parallel",)),
    )(x_flat, tap_masks, *ws, *bs)
    return out.reshape(N, nf, H, W)


# ---------------------------------------------------------------------------
# Parameter init (mirrors kaiming-normal * 0.1; small random bias)
# ---------------------------------------------------------------------------
def init_rrdb_params(key, nf, gc):
    params = {}
    for rdb_name in ("RDB1", "RDB2", "RDB3"):
        p = {}
        cins = [nf, nf + gc, nf + 2 * gc, nf + 3 * gc, nf + 4 * gc]
        couts = [gc, gc, gc, gc, nf]
        for i, (cin, cout) in enumerate(zip(cins, couts), start=1):
            key, wk, bk = jax.random.split(key, 3)
            std = 0.1 * (2.0 / (9 * cin)) ** 0.5
            w = std * jax.random.normal(wk, (3, 3, cin, cout), dtype=jnp.float32)  # HWIO
            b = 0.01 * jax.random.normal(bk, (cout,), dtype=jnp.float32)
            p[f"conv{i}"] = (w, b)
        params[rdb_name] = p
    return params


# ---------------------------------------------------------------------------
# Pure-JAX reference (lax.conv) for the correctness check
# ---------------------------------------------------------------------------
def _ref_conv(x, w, b):
    y = lax.conv_general_dilated(x, w, (1, 1), "SAME",
                                 dimension_numbers=("NHWC", "HWIO", "NHWC"),
                                 precision=lax.Precision.HIGHEST)
    return y + b[None, None, None, :]


def _ref_lrelu(x):
    return jnp.where(x >= 0, x, x * NEG_SLOPE)


def _ref_rdb(x, p):
    x1 = _ref_lrelu(_ref_conv(x, *p["conv1"]))
    x2 = _ref_lrelu(_ref_conv(jnp.concatenate([x, x1], -1), *p["conv2"]))
    x3 = _ref_lrelu(_ref_conv(jnp.concatenate([x, x1, x2], -1), *p["conv3"]))
    x4 = _ref_lrelu(_ref_conv(jnp.concatenate([x, x1, x2, x3], -1), *p["conv4"]))
    x5 = _ref_conv(jnp.concatenate([x, x1, x2, x3, x4], -1), *p["conv5"])
    return x5 * RES_SCALE + x


def _ref_rrdb_nchw(x_nchw, params):
    x = jnp.transpose(x_nchw, (0, 2, 3, 1))
    out = _ref_rdb(x, params["RDB1"])
    out = _ref_rdb(out, params["RDB2"])
    out = _ref_rdb(out, params["RDB3"])
    out = out * RES_SCALE + x
    return jnp.transpose(out, (0, 3, 1, 2))


# ---------------------------------------------------------------------------
if __name__ == "__main__":
    N, NF, GC, H, W = 2, 8, 8, 16, 16

    key = jax.random.PRNGKey(0)
    key, xk = jax.random.split(key)
    x = jax.random.normal(xk, (N, NF, H, W), dtype=jnp.float32)   # NCHW like PyTorch
    params = init_rrdb_params(key, NF, GC)

    out = rrdb_forward_nchw(x, params)
    out = jax.block_until_ready(out)

    ref = _ref_rrdb_nchw(x, params)
    assert out.shape == (N, NF, H, W)
    max_err = float(jnp.max(jnp.abs(out - ref)))
    assert jnp.allclose(out, ref, atol=1e-3, rtol=1e-3), f"mismatch (max abs err {max_err})"

    print("KERNEL_OK")
</pallas_src>

<mosaic_0001>
module attributes {stable_mosaic.version = 11 : i64} {
  func.func @_rrdb_kernel(%arg0: i32, %arg1: memref<1x8x256xf32, #tpu.memory_space<vmem>>, %arg2: memref<9x256xf32, #tpu.memory_space<vmem>>, %arg3: memref<8x72xf32, #tpu.memory_space<vmem>>, %arg4: memref<8x144xf32, #tpu.memory_space<vmem>>, %arg5: memref<8x216xf32, #tpu.memory_space<vmem>>, %arg6: memref<8x288xf32, #tpu.memory_space<vmem>>, %arg7: memref<8x360xf32, #tpu.memory_space<vmem>>, %arg8: memref<8x72xf32, #tpu.memory_space<vmem>>, %arg9: memref<8x144xf32, #tpu.memory_space<vmem>>, %arg10: memref<8x216xf32, #tpu.memory_space<vmem>>, %arg11: memref<8x288xf32, #tpu.memory_space<vmem>>, %arg12: memref<8x360xf32, #tpu.memory_space<vmem>>, %arg13: memref<8x72xf32, #tpu.memory_space<vmem>>, %arg14: memref<8x144xf32, #tpu.memory_space<vmem>>, %arg15: memref<8x216xf32, #tpu.memory_space<vmem>>, %arg16: memref<8x288xf32, #tpu.memory_space<vmem>>, %arg17: memref<8x360xf32, #tpu.memory_space<vmem>>, %arg18: memref<8x1xf32, #tpu.memory_space<vmem>>, %arg19: memref<8x1xf32, #tpu.memory_space<vmem>>, %arg20: memref<8x1xf32, #tpu.memory_space<vmem>>, %arg21: memref<8x1xf32, #tpu.memory_space<vmem>>, %arg22: memref<8x1xf32, #tpu.memory_space<vmem>>, %arg23: memref<8x1xf32, #tpu.memory_space<vmem>>, %arg24: memref<8x1xf32, #tpu.memory_space<vmem>>, %arg25: memref<8x1xf32, #tpu.memory_space<vmem>>, %arg26: memref<8x1xf32, #tpu.memory_space<vmem>>, %arg27: memref<8x1xf32, #tpu.memory_space<vmem>>, %arg28: memref<8x1xf32, #tpu.memory_space<vmem>>, %arg29: memref<8x1xf32, #tpu.memory_space<vmem>>, %arg30: memref<8x1xf32, #tpu.memory_space<vmem>>, %arg31: memref<8x1xf32, #tpu.memory_space<vmem>>, %arg32: memref<8x1xf32, #tpu.memory_space<vmem>>, %arg33: memref<1x8x256xf32, #tpu.memory_space<vmem>>, %arg34: memref<360x256xf32, #tpu.memory_space<vmem>>) attributes {dimension_semantics = [#tpu.dimension_semantics<parallel>], iteration_bounds = array<i64: 2>, scalar_prefetch = 0 : i64, scratch_operands = 1 : i64, tpu.core_type = #tpu.core_type<tc>, window_params = [{transform_indices = @transform_0, window_bounds = array<i64: 1, 8, 256>}, {pipeline_mode = #tpu.pipeline_mode<synchronous>, transform_indices = @transform_1, window_bounds = array<i64: 9, 256>}, {pipeline_mode = #tpu.pipeline_mode<synchronous>, transform_indices = @transform_2, window_bounds = array<i64: 8, 72>}, {pipeline_mode = #tpu.pipeline_mode<synchronous>, transform_indices = @transform_3, window_bounds = array<i64: 8, 144>}, {pipeline_mode = #tpu.pipeline_mode<synchronous>, transform_indices = @transform_4, window_bounds = array<i64: 8, 216>}, {pipeline_mode = #tpu.pipeline_mode<synchronous>, transform_indices = @transform_5, window_bounds = array<i64: 8, 288>}, {pipeline_mode = #tpu.pipeline_mode<synchronous>, transform_indices = @transform_6, window_bounds = array<i64: 8, 360>}, {pipeline_mode = #tpu.pipeline_mode<synchronous>, transform_indices = @transform_7, window_bounds = array<i64: 8, 72>}, {pipeline_mode = #tpu.pipeline_mode<synchronous>, transform_indices = @transform_8, window_bounds = array<i64: 8, 144>}, {pipeline_mode = #tpu.pipeline_mode<synchronous>, transform_indices = @transform_9, window_bounds = array<i64: 8, 216>}, {pipeline_mode = #tpu.pipeline_mode<synchronous>, transform_indices = @transform_10, window_bounds = array<i64: 8, 288>}, {pipeline_mode = #tpu.pipeline_mode<synchronous>, transform_indices = @transform_11, window_bounds = array<i64: 8, 360>}, {pipeline_mode = #tpu.pipeline_mode<synchronous>, transform_indices = @transform_12, window_bounds = array<i64: 8, 72>}, {pipeline_mode = #tpu.pipeline_mode<synchronous>, transform_indices = @transform_13, window_bounds = array<i64: 8, 144>}, {pipeline_mode = #tpu.pipeline_mode<synchronous>, transform_indices = @transform_14, window_bounds = array<i64: 8, 216>}, {pipeline_mode = #tpu.pipeline_mode<synchronous>, transform_indices = @transform_15, window_bounds = array<i64: 8, 288>}, {pipeline_mode = #tpu.pipeline_mode<synchronous>, transform_indices = @transform_16, window_bounds = array<i64: 8, 360>}, {pipeline_mode = #tpu.pipeline_mode<synchronous>, transform_indices = @transform_17, window_bounds = array<i64: 8, 1>}, {pipeline_mode = #tpu.pipeline_mode<synchronous>, transform_indices = @transform_18, window_bounds = array<i64: 8, 1>}, {pipeline_mode = #tpu.pipeline_mode<synchronous>, transform_indices = @transform_19, window_bounds = array<i64: 8, 1>}, {pipeline_mode = #tpu.pipeline_mode<synchronous>, transform_indices = @transform_20, window_bounds = array<i64: 8, 1>}, {pipeline_mode = #tpu.pipeline_mode<synchronous>, transform_indices = @transform_21, window_bounds = array<i64: 8, 1>}, {pipeline_mode = #tpu.pipeline_mode<synchronous>, transform_indices = @transform_22, window_bounds = array<i64: 8, 1>}, {pipeline_mode = #tpu.pipeline_mode<synchronous>, transform_indices = @transform_23, window_bounds = array<i64: 8, 1>}, {pipeline_mode = #tpu.pipeline_mode<synchronous>, transform_indices = @transform_24, window_bounds = array<i64: 8, 1>}, {pipeline_mode = #tpu.pipeline_mode<synchronous>, transform_indices = @transform_25, window_bounds = array<i64: 8, 1>}, {pipeline_mode = #tpu.pipeline_mode<synchronous>, transform_indices = @transform_26, window_bounds = array<i64: 8, 1>}, {pipeline_mode = #tpu.pipeline_mode<synchronous>, transform_indices = @transform_27, window_bounds = array<i64: 8, 1>}, {pipeline_mode = #tpu.pipeline_mode<synchronous>, transform_indices = @transform_28, window_bounds = array<i64: 8, 1>}, {pipeline_mode = #tpu.pipeline_mode<synchronous>, transform_indices = @transform_29, window_bounds = array<i64: 8, 1>}, {pipeline_mode = #tpu.pipeline_mode<synchronous>, transform_indices = @transform_30, window_bounds = array<i64: 8, 1>}, {pipeline_mode = #tpu.pipeline_mode<synchronous>, transform_indices = @transform_31, window_bounds = array<i64: 8, 1>}, {transform_indices = @transform_32, window_bounds = array<i64: 1, 8, 256>}]} {
    %c0 = arith.constant 0 : index
    %c0_0 = arith.constant 0 : index
    %0 = vector.load %arg2[%c0, %c0_0] : memref<9x256xf32, #tpu.memory_space<vmem>>, vector<1x256xf32>
    %c1 = arith.constant 1 : index
    %c0_1 = arith.constant 0 : index
    %1 = vector.load %arg2[%c1, %c0_1] : memref<9x256xf32, #tpu.memory_space<vmem>>, vector<1x256xf32>
    %c2 = arith.constant 2 : index
    %c0_2 = arith.constant 0 : index
    %2 = vector.load %arg2[%c2, %c0_2] : memref<9x256xf32, #tpu.memory_space<vmem>>, vector<1x256xf32>
    %c3 = arith.constant 3 : index
    %c0_3 = arith.constant 0 : index
    %3 = vector.load %arg2[%c3, %c0_3] : memref<9x256xf32, #tpu.memory_space<vmem>>, vector<1x256xf32>
    %c5 = arith.constant 5 : index
    %c0_4 = arith.constant 0 : index
    %4 = vector.load %arg2[%c5, %c0_4] : memref<9x256xf32, #tpu.memory_space<vmem>>, vector<1x256xf32>
    %c6 = arith.constant 6 : index
    %c0_5 = arith.constant 0 : index
    %5 = vector.load %arg2[%c6, %c0_5] : memref<9x256xf32, #tpu.memory_space<vmem>>, vector<1x256xf32>
    %c7 = arith.constant 7 : index
    %c0_6 = arith.constant 0 : index
    %6 = vector.load %arg2[%c7, %c0_6] : memref<9x256xf32, #tpu.memory_space<vmem>>, vector<1x256xf32>
    %c8 = arith.constant 8 : index
    %c0_7 = arith.constant 0 : index
    %7 = vector.load %arg2[%c8, %c0_7] : memref<9x256xf32, #tpu.memory_space<vmem>>, vector<1x256xf32>
    %c0_8 = arith.constant 0 : index
    %c0_9 = arith.constant 0 : index
    %c0_10 = arith.constant 0 : index
    %8 = vector.load %arg1[%c0_8, %c0_9, %c0_10] : memref<1x8x256xf32, #tpu.memory_space<vmem>>, vector<1x8x256xf32>
    %9 = vector.shape_cast %8 : vector<1x8x256xf32> to vector<8x256xf32>
    %c17_i32 = arith.constant 17 : i32
    %10 = tpu.dynamic_rotate %9 by %c17_i32 dim 1 : vector<8x256xf32>, i32 -> vector<8x256xf32>
    %11 = vector.broadcast %0 : vector<1x256xf32> to vector<8x256xf32>
    %12 = arith.mulf %10, %11 : vector<8x256xf32>
    %c0_11 = arith.constant 0 : index
    %c0_12 = arith.constant 0 : index
    %13 = vector.load %arg34[%c0_11, %c0_12] : memref<360x256xf32, #tpu.memory_space<vmem>>, vector<8x256xf32>
    tpu.vector_store %arg34[%c0_11, %c0_12], %12 {strides = array<i32>} : memref<360x256xf32, #tpu.memory_space<vmem>>, vector<8x256xf32>,
    %c16_i32 = arith.constant 16 : i32
    %14 = tpu.dynamic_rotate %9 by %c16_i32 dim 1 : vector<8x256xf32>, i32 -> vector<8x256xf32>
    %15 = vector.broadcast %1 : vector<1x256xf32> to vector<8x256xf32>
    %16 = arith.mulf %14, %15 : vector<8x256xf32>
    %c8_13 = arith.constant 8 : index
    %c0_14 = arith.constant 0 : index
    %17 = vector.load %arg34[%c8_13, %c0_14] : memref<360x256xf32, #tpu.memory_space<vmem>>, vector<8x256xf32>
    tpu.vector_store %arg34[%c8_13, %c0_14], %16 {strides = array<i32>} : memref<360x256xf32, #tpu.memory_space<vmem>>, vector<8x256xf32>,
    %c15_i32 = arith.constant 15 : i32
    %18 = tpu.dynamic_rotate %9 by %c15_i32 dim 1 : vector<8x256xf32>, i32 -> vector<8x256xf32>
    %19 = vector.broadcast %2 : vector<1x256xf32> to vector<8x256xf32>
    %20 = arith.mulf %18, %19 : vector<8x256xf32>
    %c16 = arith.constant 16 : index
    %c0_15 = arith.constant 0 : index
    %21 = vector.load %arg34[%c16, %c0_15] : memref<360x256xf32, #tpu.memory_space<vmem>>, vector<8x256xf32>
    tpu.vector_store %arg34[%c16, %c0_15], %20 {strides = array<i32>} : memref<360x256xf32, #tpu.memory_space<vmem>>, vector<8x256xf32>,
    %c1_i32 = arith.constant 1 : i32
    %22 = tpu.dynamic_rotate %9 by %c1_i32 dim 1 : vector<8x256xf32>, i32 -> vector<8x256xf32>
    %23 = vector.broadcast %3 : vector<1x256xf32> to vector<8x256xf32>
    %24 = arith.mulf %22, %23 : vector<8x256xf32>
    %c24 = arith.constant 24 : index
    %c0_16 = arith.constant 0 : index
    %25 = vector.load %arg34[%c24, %c0_16] : memref<360x256xf32, #tpu.memory_space<vmem>>, vector<8x256xf32>
    tpu.vector_store %arg34[%c24, %c0_16], %24 {strides = array<i32>} : memref<360x256xf32, #tpu.memory_space<vmem>>, vector<8x256xf32>,
    %c32 = arith.constant 32 : index
    %c0_17 = arith.constant 0 : index
    %26 = vector.load %arg34[%c32, %c0_17] : memref<360x256xf32, #tpu.memory_space<vmem>>, vector<8x256xf32>
    tpu.vector_store %arg34[%c32, %c0_17], %9 {strides = array<i32>} : memref<360x256xf32, #tpu.memory_space<vmem>>, vector<8x256xf32>,
    %c255_i32 = arith.constant 255 : i32
    %27 = tpu.dynamic_rotate %9 by %c255_i32 dim 1 : vector<8x256xf32>, i32 -> vector<8x256xf32>
    %28 = vector.broadcast %4 : vector<1x256xf32> to vector<8x256xf32>
    %29 = arith.mulf %27, %28 : vector<8x256xf32>
    %c40 = arith.constant 40 : index
    %c0_18 = arith.constant 0 : index
    %30 = vector.load %arg34[%c40, %c0_18] : memref<360x256xf32, #tpu.memory_space<vmem>>, vector<8x256xf32>
    tpu.vector_store %arg34[%c40, %c0_18], %29 {strides = array<i32>} : memref<360x256xf32, #tpu.memory_space<vmem>>, vector<8x256xf32>,
    %c241_i32 = arith.constant 241 : i32
    %31 = tpu.dynamic_rotate %9 by %c241_i32 dim 1 : vector<8x256xf32>, i32 -> vector<8x256xf32>
    %32 = vector.broadcast %5 : vector<1x256xf32> to vector<8x256xf32>
    %33 = arith.mulf %31, %32 : vector<8x256xf32>
    %c48 = arith.constant 48 : index
    %c0_19 = arith.constant 0 : index
    %34 = vector.load %arg34[%c48, %c0_19] : memref<360x256xf32, #tpu.memory_space<vmem>>, vector<8x256xf32>
    tpu.vector_store %arg34[%c48, %c0_19], %33 {strides = array<i32>} : memref<360x256xf32, #tpu.memory_space<vmem>>, vector<8x256xf32>,
    %c240_i32 = arith.constant 240 : i32
    %35 = tpu.dynamic_rotate %9 by %c240_i32 dim 1 : vector<8x256xf32>, i32 -> vector<8x256xf32>
    %36 = vector.broadcast %6 : vector<1x256xf32> to vector<8x256xf32>
    %37 = arith.mulf %35, %36 : vector<8x256xf32>
    %c56 = arith.constant 56 : index
    %c0_20 = arith.constant 0 : index
    %38 = vector.load %arg34[%c56, %c0_20] : memref<360x256xf32, #tpu.memory_space<vmem>>, vector<8x256xf32>
    tpu.vector_store %arg34[%c56, %c0_20], %37 {strides = array<i32>} : memref<360x256xf32, #tpu.memory_space<vmem>>, vector<8x256xf32>,
    %c239_i32 = arith.constant 239 : i32
    %39 = tpu.dynamic_rotate %9 by %c239_i32 dim 1 : vector<8x256xf32>, i32 -> vector<8x256xf32>
    %40 = vector.broadcast %7 : vector<1x256xf32> to vector<8x256xf32>
    %41 = arith.mulf %39, %40 : vector<8x256xf32>
    %c64 = arith.constant 64 : index
    %c0_21 = arith.constant 0 : index
    %42 = vector.load %arg34[%c64, %c0_21] : memref<360x256xf32, #tpu.memory_space<vmem>>, vector<8x256xf32>
    tpu.vector_store %arg34[%c64, %c0_21], %41 {strides = array<i32>} : memref<360x256xf32, #tpu.memory_space<vmem>>, vector<8x256xf32>,
    %c0_22 = arith.constant 0 : index
    %c0_23 = arith.constant 0 : index
    %43 = vector.load %arg34[%c0_22, %c0_23] : memref<360x256xf32, #tpu.memory_space<vmem>>, vector<72x256xf32>
    %c0_24 = arith.constant 0 : index
    %c0_25 = arith.constant 0 : index
    %44 = vector.load %arg3[%c0_24, %c0_25] : memref<8x72xf32, #tpu.memory_space<vmem>>, vector<8x72xf32>
    %cst = arith.constant dense<0.000000e+00> : vector<8x256xf32>
    %45 = tpu.matmul %44, %43, %cst {dimension_numbers = #tpu.dot_dimension_numbers<[1], [0], [0], [1], [0, 0, 1, 1], [], []>} : vector<8x72xf32>, vector<72x256xf32>, vector<8x256xf32> -> vector<8x256xf32>
    %c0_26 = arith.constant 0 : index
    %c0_27 = arith.constant 0 : index
    %46 = vector.load %arg18[%c0_26, %c0_27] : memref<8x1xf32, #tpu.memory_space<vmem>>, vector<8x1xf32>
    %47 = vector.broadcast %46 : vector<8x1xf32> to vector<8x256xf32>
    %48 = arith.addf %45, %47 : vector<8x256xf32>
    %cst_28 = arith.constant 0.000000e+00 : f32
    %49 = vector.broadcast %cst_28 : f32 to vector<8x256xf32>
    %50 = arith.cmpf oge, %48, %49 : vector<8x256xf32>
    %cst_29 = arith.constant 2.000000e-01 : f32
    %51 = vector.broadcast %cst_29 : f32 to vector<8x256xf32>
    %52 = arith.mulf %48, %51 : vector<8x256xf32>
    %53 = arith.select %50, %48, %52 : vector<8x256xi1>, vector<8x256xf32>
    %c17_i32_30 = arith.constant 17 : i32
    %54 = tpu.dynamic_rotate %53 by %c17_i32_30 dim 1 : vector<8x256xf32>, i32 -> vector<8x256xf32>
    %55 = vector.broadcast %0 : vector<1x256xf32> to vector<8x256xf32>
    %56 = arith.mulf %54, %55 : vector<8x256xf32>
    %c72 = arith.constant 72 : index
    %c0_31 = arith.constant 0 : index
    %57 = vector.load %arg34[%c72, %c0_31] : memref<360x256xf32, #tpu.memory_space<vmem>>, vector<8x256xf32>
    tpu.vector_store %arg34[%c72, %c0_31], %56 {strides = array<i32>} : memref<360x256xf32, #tpu.memory_space<vmem>>, vector<8x256xf32>,
    %c16_i32_32 = arith.constant 16 : i32
    %58 = tpu.dynamic_rotate %53 by %c16_i32_32 dim 1 : vector<8x256xf32>, i32 -> vector<8x256xf32>
    %59 = vector.broadcast %1 : vector<1x256xf32> to vector<8x256xf32>
    %60 = arith.mulf %58, %59 : vector<8x256xf32>
    %c80 = arith.constant 80 : index
    %c0_33 = arith.constant 0 : index
    %61 = vector.load %arg34[%c80, %c0_33] : memref<360x256xf32, #tpu.memory_space<vmem>>, vector<8x256xf32>
    tpu.vector_store %arg34[%c80, %c0_33], %60 {strides = array<i32>} : memref<360x256xf32, #tpu.memory_space<vmem>>, vector<8x256xf32>,
    %c15_i32_34 = arith.constant 15 : i32
    %62 = tpu.dynamic_rotate %53 by %c15_i32_34 dim 1 : vector<8x256xf32>, i32 -> vector<8x256xf32>
    %63 = vector.broadcast %2 : vector<1x256xf32> to vector<8x256xf32>
    %64 = arith.mulf %62, %63 : vector<8x256xf32>
    %c88 = arith.constant 88 : index
    %c0_35 = arith.constant 0 : index
    %65 = vector.load %arg34[%c88, %c0_35] : memref<360x256xf32, #tpu.memory_space<vmem>>, vector<8x256xf32>
    tpu.vector_store %arg34[%c88, %c0_35], %64 {strides = array<i32>} : memref<360x256xf32, #tpu.memory_space<vmem>>, vector<8x256xf32>,
    %c1_i32_36 = arith.constant 1 : i32
    %66 = tpu.dynamic_rotate %53 by %c1_i32_36 dim 1 : vector<8x256xf32>, i32 -> vector<8x256xf32>
    %67 = vector.broadcast %3 : vector<1x256xf32> to vector<8x256xf32>
    %68 = arith.mulf %66, %67 : vector<8x256xf32>
    %c96 = arith.constant 96 : index
    %c0_37 = arith.constant 0 : index
    %69 = vector.load %arg34[%c96, %c0_37] : memref<360x256xf32, #tpu.memory_space<vmem>>, vector<8x256xf32>
    tpu.vector_store %arg34[%c96, %c0_37], %68 {strides = array<i32>} : memref<360x256xf32, #tpu.memory_space<vmem>>, vector<8x256xf32>,
    %c104 = arith.constant 104 : index
    %c0_38 = arith.constant 0 : index
    %70 = vector.load %arg34[%c104, %c0_38] : memref<360x256xf32, #tpu.memory_space<vmem>>, vector<8x256xf32>
    tpu.vector_store %arg34[%c104, %c0_38], %53 {strides = array<i32>} : memref<360x256xf32, #tpu.memory_space<vmem>>, vector<8x256xf32>,
    %c255_i32_39 = arith.constant 255 : i32
    %71 = tpu.dynamic_rotate %53 by %c255_i32_39 dim 1 : vector<8x256xf32>, i32 -> vector<8x256xf32>
    %72 = vector.broadcast %4 : vector<1x256xf32> to vector<8x256xf32>
    %73 = arith.mulf %71, %72 : vector<8x256xf32>
    %c112 = arith.constant 112 : index
    %c0_40 = arith.constant 0 : index
    %74 = vector.load %arg34[%c112, %c0_40] : memref<360x256xf32, #tpu.memory_space<vmem>>, vector<8x256xf32>
    tpu.vector_store %arg34[%c112, %c0_40], %73 {strides = array<i32>} : memref<360x256xf32, #tpu.memory_space<vmem>>, vector<8x256xf32>,
    %c241_i32_41 = arith.constant 241 : i32
    %75 = tpu.dynamic_rotate %53 by %c241_i32_41 dim 1 : vector<8x256xf32>, i32 -> vector<8x256xf32>
    %76 = vector.broadcast %5 : vector<1x256xf32> to vector<8x256xf32>
    %77 = arith.mulf %75, %76 : vector<8x256xf32>
    %c120 = arith.constant 120 : index
    %c0_42 = arith.constant 0 : index
    %78 = vector.load %arg34[%c120, %c0_42] : memref<360x256xf32, #tpu.memory_space<vmem>>, vector<8x256xf32>
    tpu.vector_store %arg34[%c120, %c0_42], %77 {strides = array<i32>} : memref<360x256xf32, #tpu.memory_space<vmem>>, vector<8x256xf32>,
    %c240_i32_43 = arith.constant 240 : i32
    %79 = tpu.dynamic_rotate %53 by %c240_i32_43 dim 1 : vector<8x256xf32>, i32 -> vector<8x256xf32>
    %80 = vector.broadcast %6 : vector<1x256xf32> to vector<8x256xf32>
    %81 = arith.mulf %79, %80 : vector<8x256xf32>
    %c128 = arith.constant 128 : index
    %c0_44 = arith.constant 0 : index
    %82 = vector.load %arg34[%c128, %c0_44] : memref<360x256xf32, #tpu.memory_space<vmem>>, vector<8x256xf32>
    tpu.vector_store %arg34[%c128, %c0_44], %81 {strides = array<i32>} : memref<360x256xf32, #tpu.memory_space<vmem>>, vector<8x256xf32>,
    %c239_i32_45 = arith.constant 239 : i32
    %83 = tpu.dynamic_rotate %53 by %c239_i32_45 dim 1 : vector<8x256xf32>, i32 -> vector<8x256xf32>
    %84 = vector.broadcast %7 : vector<1x256xf32> to vector<8x256xf32>
    %85 = arith.mulf %83, %84 : vector<8x256xf32>
    %c136 = arith.constant 136 : index
    %c0_46 = arith.constant 0 : index
    %86 = vector.load %arg34[%c136, %c0_46] : memref<360x256xf32, #tpu.memory_space<vmem>>, vector<8x256xf32>
    tpu.vector_store %arg34[%c136, %c0_46], %85 {strides = array<i32>} : memref<360x256xf32, #tpu.memory_space<vmem>>, vector<8x256xf32>,
    %c0_47 = arith.constant 0 : index
    %c0_48 = arith.constant 0 : index
    %87 = vector.load %arg34[%c0_47, %c0_48] : memref<360x256xf32, #tpu.memory_space<vmem>>, vector<144x256xf32>
    %c0_49 = arith.constant 0 : index
    %c0_50 = arith.constant 0 : index
    %88 = vector.load %arg4[%c0_49, %c0_50] : memref<8x144xf32, #tpu.memory_space<vmem>>, vector<8x144xf32>
    %cst_51 = arith.constant dense<0.000000e+00> : vector<8x256xf32>
    %89 = tpu.matmul %88, %87, %cst_51 {dimension_numbers = #tpu.dot_dimension_numbers<[1], [0], [0], [1], [0, 0, 1, 1], [], []>} : vector<8x144xf32>, vector<144x256xf32>, vector<8x256xf32> -> vector<8x256xf32>
    %c0_52 = arith.constant 0 : index
    %c0_53 = arith.constant 0 : index
    %90 = vector.load %arg19[%c0_52, %c0_53] : memref<8x1xf32, #tpu.memory_space<vmem>>, vector<8x1xf32>
    %91 = vector.broadcast %90 : vector<8x1xf32> to vector<8x256xf32>
    %92 = arith.addf %89, %91 : vector<8x256xf32>
    %cst_54 = arith.constant 0.000000e+00 : f32
    %93 = vector.broadcast %cst_54 : f32 to vector<8x256xf32>
    %94 = arith.cmpf oge, %92, %93 : vector<8x256xf32>
    %cst_55 = arith.constant 2.000000e-01 : f32
    %95 = vector.broadcast %cst_55 : f32 to vector<8x256xf32>
    %96 = arith.mulf %92, %95 : vector<8x256xf32>
    %97 = arith.select %94, %92, %96 : vector<8x256xi1>, vector<8x256xf32>
    %c17_i32_56 = arith.constant 17 : i32
    %98 = tpu.dynamic_rotate %97 by %c17_i32_56 dim 1 : vector<8x256xf32>, i32 -> vector<8x256xf32>
    %99 = vector.broadcast %0 : vector<1x256xf32> to vector<8x256xf32>
    %100 = arith.mulf %98, %99 : vector<8x256xf32>
    %c144 = arith.constant 144 : index
    %c0_57 = arith.constant 0 : index
    %101 = vector.load %arg34[%c144, %c0_57] : memref<360x256xf32, #tpu.memory_space<vmem>>, vector<8x256xf32>
    tpu.vector_store %arg34[%c144, %c0_57], %100 {strides = array<i32>} : memref<360x256xf32, #tpu.memory_space<vmem>>, vector<8x256xf32>,
    %c16_i32_58 = arith.constant 16 : i32
    %102 = tpu.dynamic_rotate %97 by %c16_i32_58 dim 1 : vector<8x256xf32>, i32 -> vector<8x256xf32>
    %103 = vector.broadcast %1 : vector<1x256xf32> to vector<8x256xf32>
    %104 = arith.mulf %102, %103 : vector<8x256xf32>
    %c152 = arith.constant 152 : index
    %c0_59 = arith.constant 0 : index
    %105 = vector.load %arg34[%c152, %c0_59] : memref<360x256xf32, #tpu.memory_space<vmem>>, vector<8x256xf32>
    tpu.vector_store %arg34[%c152, %c0_59], %104 {strides = array<i32>} : memref<360x256xf32, #tpu.memory_space<vmem>>, vector<8x256xf32>,
    %c15_i32_60 = arith.constant 15 : i32
    %106 = tpu.dynamic_rotate %97 by %c15_i32_60 dim 1 : vector<8x256xf32>, i32 -> vector<8x256xf32>
    %107 = vector.broadcast %2 : vector<1x256xf32> to vector<8x256xf32>
    %108 = arith.mulf %106, %107 : vector<8x256xf32>
    %c160 = arith.constant 160 : index
    %c0_61 = arith.constant 0 : index
    %109 = vector.load %arg34[%c160, %c0_61] : memref<360x256xf32, #tpu.memory_space<vmem>>, vector<8x256xf32>
    tpu.vector_store %arg34[%c160, %c0_61], %108 {strides = array<i32>} : memref<360x256xf32, #tpu.memory_space<vmem>>, vector<8x256xf32>,
    %c1_i32_62 = arith.constant 1 : i32
    %110 = tpu.dynamic_rotate %97 by %c1_i32_62 dim 1 : vector<8x256xf32>, i32 -> vector<8x256xf32>
    %111 = vector.broadcast %3 : vector<1x256xf32> to vector<8x256xf32>
    %112 = arith.mulf %110, %111 : vector<8x256xf32>
    %c168 = arith.constant 168 : index
    %c0_63 = arith.constant 0 : index
    %113 = vector.load %arg34[%c168, %c0_63] : memref<360x256xf32, #tpu.memory_space<vmem>>, vector<8x256xf32>
    tpu.vector_store %arg34[%c168, %c0_63], %112 {strides = array<i32>} : memref<360x256xf32, #tpu.memory_space<vmem>>, vector<8x256xf32>,
    %c176 = arith.constant 176 : index
    %c0_64 = arith.constant 0 : index
    %114 = vector.load %arg34[%c176, %c0_64] : memref<360x256xf32, #tpu.memory_space<vmem>>, vector<8x256xf32>
    tpu.vector_store %arg34[%c176, %c0_64], %97 {strides = array<i32>} : memref<360x256xf32, #tpu.memory_space<vmem>>, vector<8x256xf32>,
    %c255_i32_65 = arith.constant 255 : i32
    %115 = tpu.dynamic_rotate %97 by %c255_i32_65 dim 1 : vector<8x256xf32>, i32 -> vector<8x256xf32>
    %116 = vector.broadcast %4 : vector<1x256xf32> to vector<8x256xf32>
    %117 = arith.mulf %115, %116 : vector<8x256xf32>
    %c184 = arith.constant 184 : index
    %c0_66 = arith.constant 0 : index
    %118 = vector.load %arg34[%c184, %c0_66] : memref<360x256xf32, #tpu.memory_space<vmem>>, vector<8x256xf32>
    tpu.vector_store %arg34[%c184, %c0_66], %117 {strides = array<i32>} : memref<360x256xf32, #tpu.memory_space<vmem>>, vector<8x256xf32>,
    %c241_i32_67 = arith.constant 241 : i32
    %119 = tpu.dynamic_rotate %97 by %c241_i32_67 dim 1 : vector<8x256xf32>, i32 -> vector<8x256xf32>
    %120 = vector.broadcast %5 : vector<1x256xf32> to vector<8x256xf32>
    %121 = arith.mulf %119, %120 : vector<8x256xf32>
    %c192 = arith.constant 192 : index
    %c0_68 = arith.constant 0 : index
    %122 = vector.load %arg34[%c192, %c0_68] : memref<360x256xf32, #tpu.memory_space<vmem>>, vector<8x256xf32>
    tpu.vector_store %arg34[%c192, %c0_68], %121 {strides = array<i32>} : memref<360x256xf32, #tpu.memory_space<vmem>>, vector<8x256xf32>,
    %c240_i32_69 = arith.constant 240 : i32
    %123 = tpu.dynamic_rotate %97 by %c240_i32_69 dim 1 : vector<8x256xf32>, i32 -> vector<8x256xf32>
    %124 = vector.broadcast %6 : vector<1x256xf32> to vector<8x256xf32>
    %125 = arith.mulf %123, %124 : vector<8x256xf32>
    %c200 = arith.constant 200 : index
    %c0_70 = arith.constant 0 : index
    %126 = vector.load %arg34[%c200, %c0_70] : memref<360x256xf32, #tpu.memory_space<vmem>>, vector<8x256xf32>
    tpu.vector_store %arg34[%c200, %c0_70], %125 {strides = array<i32>} : memref<360x256xf32, #tpu.memory_space<vmem>>, vector<8x256xf32>,
    %c239_i32_71 = arith.constant 239 : i32
    %127 = tpu.dynamic_rotate %97 by %c239_i32_71 dim 1 : vector<8x256xf32>, i32 -> vector<8x256xf32>
    %128 = vector.broadcast %7 : vector<1x256xf32> to vector<8x256xf32>
    %129 = arith.mulf %127, %128 : vector<8x256xf32>
    %c208 = arith.constant 208 : index
    %c0_72 = arith.constant 0 : index
    %130 = vector.load %arg34[%c208, %c0_72] : memref<360x256xf32, #tpu.memory_space<vmem>>, vector<8x256xf32>
    tpu.vector_store %arg34[%c208, %c0_72], %129 {strides = array<i32>} : memref<360x256xf32, #tpu.memory_space<vmem>>, vector<8x256xf32>,
    %c0_73 = arith.constant 0 : index
    %c0_74 = arith.constant 0 : index
    %131 = vector.load %arg34[%c0_73, %c0_74] : memref<360x256xf32, #tpu.memory_space<vmem>>, vector<216x256xf32>
    %c0_75 = arith.constant 0 : index
    %c0_76 = arith.constant 0 : index
    %132 = vector.load %arg5[%c0_75, %c0_76] : memref<8x216xf32, #tpu.memory_space<vmem>>, vector<8x216xf32>
    %cst_77 = arith.constant dense<0.000000e+00> : vector<8x256xf32>
    %133 = tpu.matmul %132, %131, %cst_77 {dimension_numbers = #tpu.dot_dimension_numbers<[1], [0], [0], [1], [0, 0, 1, 1], [], []>} : vector<8x216xf32>, vector<216x256xf32>, vector<8x256xf32> -> vector<8x256xf32>
    %c0_78 = arith.constant 0 : index
    %c0_79 = arith.constant 0 : index
    %134 = vector.load %arg20[%c0_78, %c0_79] : memref<8x1xf32, #tpu.memory_space<vmem>>, vector<8x1xf32>
    %135 = vector.broadcast %134 : vector<8x1xf32> to vector<8x256xf32>
    %136 = arith.addf %133, %135 : vector<8x256xf32>
    %cst_80 = arith.constant 0.000000e+00 : f32
    %137 = vector.broadcast %cst_80 : f32 to vector<8x256xf32>
    %138 = arith.cmpf oge, %136, %137 : vector<8x256xf32>
    %cst_81 = arith.constant 2.000000e-01 : f32
    %139 = vector.broadcast %cst_81 : f32 to vector<8x256xf32>
    %140 = arith.mulf %136, %139 : vector<8x256xf32>
    %141 = arith.select %138, %136, %140 : vector<8x256xi1>, vector<8x256xf32>
    %c17_i32_82 = arith.constant 17 : i32
    %142 = tpu.dynamic_rotate %141 by %c17_i32_82 dim 1 : vector<8x256xf32>, i32 -> vector<8x256xf32>
    %143 = vector.broadcast %0 : vector<1x256xf32> to vector<8x256xf32>
    %144 = arith.mulf %142, %143 : vector<8x256xf32>
    %c216 = arith.constant 216 : index
    %c0_83 = arith.constant 0 : index
    %145 = vector.load %arg34[%c216, %c0_83] : memref<360x256xf32, #tpu.memory_space<vmem>>, vector<8x256xf32>
    tpu.vector_store %arg34[%c216, %c0_83], %144 {strides = array<i32>} : memref<360x256xf32, #tpu.memory_space<vmem>>, vector<8x256xf32>,
    %c16_i32_84 = arith.constant 16 : i32
    %146 = tpu.dynamic_rotate %141 by %c16_i32_84 dim 1 : vector<8x256xf32>, i32 -> vector<8x256xf32>
    %147 = vector.broadcast %1 : vector<1x256xf32> to vector<8x256xf32>
    %148 = arith.mulf %146, %147 : vector<8x256xf32>
    %c224 = arith.constant 224 : index
    %c0_85 = arith.constant 0 : index
    %149 = vector.load %arg34[%c224, %c0_85] : memref<360x256xf32, #tpu.memory_space<vmem>>, vector<8x256xf32>
    tpu.vector_store %arg34[%c224, %c0_85], %148 {strides = array<i32>} : memref<360x256xf32, #tpu.memory_space<vmem>>, vector<8x256xf32>,
    %c15_i32_86 = arith.constant 15 : i32
    %150 = tpu.dynamic_rotate %141 by %c15_i32_86 dim 1 : vector<8x256xf32>, i32 -> vector<8x256xf32>
    %151 = vector.broadcast %2 : vector<1x256xf32> to vector<8x256xf32>
    %152 = arith.mulf %150, %151 : vector<8x256xf32>
    %c232 = arith.constant 232 : index
    %c0_87 = arith.constant 0 : index
    %153 = vector.load %arg34[%c232, %c0_87] : memref<360x256xf32, #tpu.memory_space<vmem>>, vector<8x256xf32>
    tpu.vector_store %arg34[%c232, %c0_87], %152 {strides = array<i32>} : memref<360x256xf32, #tpu.memory_space<vmem>>, vector<8x256xf32>,
    %c1_i32_88 = arith.constant 1 : i32
    %154 = tpu.dynamic_rotate %141 by %c1_i32_88 dim 1 : vector<8x256xf32>, i32 -> vector<8x256xf32>
    %155 = vector.broadcast %3 : vector<1x256xf32> to vector<8x256xf32>
    %156 = arith.mulf %154, %155 : vector<8x256xf32>
    %c240 = arith.constant 240 : index
    %c0_89 = arith.constant 0 : index
    %157 = vector.load %arg34[%c240, %c0_89] : memref<360x256xf32, #tpu.memory_space<vmem>>, vector<8x256xf32>
    tpu.vector_store %arg34[%c240, %c0_89], %156 {strides = array<i32>} : memref<360x256xf32, #tpu.memory_space<vmem>>, vector<8x256xf32>,
    %c248 = arith.constant 248 : index
    %c0_90 = arith.constant 0 : index
    %158 = vector.load %arg34[%c248, %c0_90] : memref<360x256xf32, #tpu.memory_space<vmem>>, vector<8x256xf32>
    tpu.vector_store %arg34[%c248, %c0_90], %141 {strides = array<i32>} : memref<360x256xf32, #tpu.memory_space<vmem>>, vector<8x256xf32>,
    %c255_i32_91 = arith.constant 255 : i32
    %159 = tpu.dynamic_rotate %141 by %c255_i32_91 dim 1 : vector<8x256xf32>, i32 -> vector<8x256xf32>
    %160 = vector.broadcast %4 : vector<1x256xf32> to vector<8x256xf32>
    %161 = arith.mulf %159, %160 : vector<8x256xf32>
    %c256 = arith.constant 256 : index
    %c0_92 = arith.constant 0 : index
    %162 = vector.load %arg34[%c256, %c0_92] : memref<360x256xf32, #tpu.memory_space<vmem>>, vector<8x256xf32>
    tpu.vector_store %arg34[%c256, %c0_92], %161 {strides = array<i32>} : memref<360x256xf32, #tpu.memory_space<vmem>>, vector<8x256xf32>,
    %c241_i32_93 = arith.constant 241 : i32
    %163 = tpu.dynamic_rotate %141 by %c241_i32_93 dim 1 : vector<8x256xf32>, i32 -> vector<8x256xf32>
    %164 = vector.broadcast %5 : vector<1x256xf32> to vector<8x256xf32>
    %165 = arith.mulf %163, %164 : vector<8x256xf32>
    %c264 = arith.constant 264 : index
    %c0_94 = arith.constant 0 : index
    %166 = vector.load %arg34[%c264, %c0_94] : memref<360x256xf32, #tpu.memory_space<vmem>>, vector<8x256xf32>
    tpu.vector_store %arg34[%c264, %c0_94], %165 {strides = array<i32>} : memref<360x256xf32, #tpu.memory_space<vmem>>, vector<8x256xf32>,
    %c240_i32_95 = arith.constant 240 : i32
    %167 = tpu.dynamic_rotate %141 by %c240_i32_95 dim 1 : vector<8x256xf32>, i32 -> vector<8x256xf32>
    %168 = vector.broadcast %6 : vector<1x256xf32> to vector<8x256xf32>
    %169 = arith.mulf %167, %168 : vector<8x256xf32>
    %c272 = arith.constant 272 : index
    %c0_96 = arith.constant 0 : index
    %170 = vector.load %arg34[%c272, %c0_96] : memref<360x256xf32, #tpu.memory_space<vmem>>, vector<8x256xf32>
    tpu.vector_store %arg34[%c272, %c0_96], %169 {strides = array<i32>} : memref<360x256xf32, #tpu.memory_space<vmem>>, vector<8x256xf32>,
    %c239_i32_97 = arith.constant 239 : i32
    %171 = tpu.dynamic_rotate %141 by %c239_i32_97 dim 1 : vector<8x256xf32>, i32 -> vector<8x256xf32>
    %172 = vector.broadcast %7 : vector<1x256xf32> to vector<8x256xf32>
    %173 = arith.mulf %171, %172 : vector<8x256xf32>
    %c280 = arith.constant 280 : index
    %c0_98 = arith.constant 0 : index
    %174 = vector.load %arg34[%c280, %c0_98] : memref<360x256xf32, #tpu.memory_space<vmem>>, vector<8x256xf32>
    tpu.vector_store %arg34[%c280, %c0_98], %173 {strides = array<i32>} : memref<360x256xf32, #tpu.memory_space<vmem>>, vector<8x256xf32>,
    %c0_99 = arith.constant 0 : index
    %c0_100 = arith.constant 0 : index
    %175 = vector.load %arg34[%c0_99, %c0_100] : memref<360x256xf32, #tpu.memory_space<vmem>>, vector<288x256xf32>
    %c0_101 = arith.constant 0 : index
    %c0_102 = arith.constant 0 : index
    %176 = vector.load %arg6[%c0_101, %c0_102] : memref<8x288xf32, #tpu.memory_space<vmem>>, vector<8x288xf32>
    %cst_103 = arith.constant dense<0.000000e+00> : vector<8x256xf32>
    %177 = tpu.matmul %176, %175, %cst_103 {dimension_numbers = #tpu.dot_dimension_numbers<[1], [0], [0], [1], [0, 0, 1, 1], [], []>} : vector<8x288xf32>, vector<288x256xf32>, vector<8x256xf32> -> vector<8x256xf32>
    %c0_104 = arith.constant 0 : index
    %c0_105 = arith.constant 0 : index
    %178 = vector.load %arg21[%c0_104, %c0_105] : memref<8x1xf32, #tpu.memory_space<vmem>>, vector<8x1xf32>
    %179 = vector.broadcast %178 : vector<8x1xf32> to vector<8x256xf32>
    %180 = arith.addf %177, %179 : vector<8x256xf32>
    %cst_106 = arith.constant 0.000000e+00 : f32
    %181 = vector.broadcast %cst_106 : f32 to vector<8x256xf32>
    %182 = arith.cmpf oge, %180, %181 : vector<8x256xf32>
    %cst_107 = arith.constant 2.000000e-01 : f32
    %183 = vector.broadcast %cst_107 : f32 to vector<8x256xf32>
    %184 = arith.mulf %180, %183 : vector<8x256xf32>
    %185 = arith.select %182, %180, %184 : vector<8x256xi1>, vector<8x256xf32>
    %c17_i32_108 = arith.constant 17 : i32
    %186 = tpu.dynamic_rotate %185 by %c17_i32_108 dim 1 : vector<8x256xf32>, i32 -> vector<8x256xf32>
    %187 = vector.broadcast %0 : vector<1x256xf32> to vector<8x256xf32>
    %188 = arith.mulf %186, %187 : vector<8x256xf32>
    %c288 = arith.constant 288 : index
    %c0_109 = arith.constant 0 : index
    %189 = vector.load %arg34[%c288, %c0_109] : memref<360x256xf32, #tpu.memory_space<vmem>>, vector<8x256xf32>
    tpu.vector_store %arg34[%c288, %c0_109], %188 {strides = array<i32>} : memref<360x256xf32, #tpu.memory_space<vmem>>, vector<8x256xf32>,
    %c16_i32_110 = arith.constant 16 : i32
    %190 = tpu.dynamic_rotate %185 by %c16_i32_110 dim 1 : vector<8x256xf32>, i32 -> vector<8x256xf32>
    %191 = vector.broadcast %1 : vector<1x256xf32> to vector<8x256xf32>
    %192 = arith.mulf %190, %191 : vector<8x256xf32>
    %c296 = arith.constant 296 : index
    %c0_111 = arith.constant 0 : index
    %193 = vector.load %arg34[%c296, %c0_111] : memref<360x256xf32, #tpu.memory_space<vmem>>, vector<8x256xf32>
    tpu.vector_store %arg34[%c296, %c0_111], %192 {strides = array<i32>} : memref<360x256xf32, #tpu.memory_space<vmem>>, vector<8x256xf32>,
    %c15_i32_112 = arith.constant 15 : i32
    %194 = tpu.dynamic_rotate %185 by %c15_i32_112 dim 1 : vector<8x256xf32>, i32 -> vector<8x256xf32>
    %195 = vector.broadcast %2 : vector<1x256xf32> to vector<8x256xf32>
    %196 = arith.mulf %194, %195 : vector<8x256xf32>
    %c304 = arith.constant 304 : index
    %c0_113 = arith.constant 0 : index
    %197 = vector.load %arg34[%c304, %c0_113] : memref<360x256xf32, #tpu.memory_space<vmem>>, vector<8x256xf32>
    tpu.vector_store %arg34[%c304, %c0_113], %196 {strides = array<i32>} : memref<360x256xf32, #tpu.memory_space<vmem>>, vector<8x256xf32>,
    %c1_i32_114 = arith.constant 1 : i32
    %198 = tpu.dynamic_rotate %185 by %c1_i32_114 dim 1 : vector<8x256xf32>, i32 -> vector<8x256xf32>
    %199 = vector.broadcast %3 : vector<1x256xf32> to vector<8x256xf32>
    %200 = arith.mulf %198, %199 : vector<8x256xf32>
    %c312 = arith.constant 312 : index
    %c0_115 = arith.constant 0 : index
    %201 = vector.load %arg34[%c312, %c0_115] : memref<360x256xf32, #tpu.memory_space<vmem>>, vector<8x256xf32>
    tpu.vector_store %arg34[%c312, %c0_115], %200 {strides = array<i32>} : memref<360x256xf32, #tpu.memory_space<vmem>>, vector<8x256xf32>,
    %c320 = arith.constant 320 : index
    %c0_116 = arith.constant 0 : index
    %202 = vector.load %arg34[%c320, %c0_116] : memref<360x256xf32, #tpu.memory_space<vmem>>, vector<8x256xf32>
    tpu.vector_store %arg34[%c320, %c0_116], %185 {strides = array<i32>} : memref<360x256xf32, #tpu.memory_space<vmem>>, vector<8x256xf32>,
    %c255_i32_117 = arith.constant 255 : i32
    %203 = tpu.dynamic_rotate %185 by %c255_i32_117 dim 1 : vector<8x256xf32>, i32 -> vector<8x256xf32>
    %204 = vector.broadcast %4 : vector<1x256xf32> to vector<8x256xf32>
    %205 = arith.mulf %203, %204 : vector<8x256xf32>
    %c328 = arith.constant 328 : index
    %c0_118 = arith.constant 0 : index
    %206 = vector.load %arg34[%c328, %c0_118] : memref<360x256xf32, #tpu.memory_space<vmem>>, vector<8x256xf32>
    tpu.vector_store %arg34[%c328, %c0_118], %205 {strides = array<i32>} : memref<360x256xf32, #tpu.memory_space<vmem>>, vector<8x256xf32>,
    %c241_i32_119 = arith.constant 241 : i32
    %207 = tpu.dynamic_rotate %185 by %c241_i32_119 dim 1 : vector<8x256xf32>, i32 -> vector<8x256xf32>
    %208 = vector.broadcast %5 : vector<1x256xf32> to vector<8x256xf32>
    %209 = arith.mulf %207, %208 : vector<8x256xf32>
    %c336 = arith.constant 336 : index
    %c0_120 = arith.constant 0 : index
    %210 = vector.load %arg34[%c336, %c0_120] : memref<360x256xf32, #tpu.memory_space<vmem>>, vector<8x256xf32>
    tpu.vector_store %arg34[%c336, %c0_120], %209 {strides = array<i32>} : memref<360x256xf32, #tpu.memory_space<vmem>>, vector<8x256xf32>,
    %c240_i32_121 = arith.constant 240 : i32
    %211 = tpu.dynamic_rotate %185 by %c240_i32_121 dim 1 : vector<8x256xf32>, i32 -> vector<8x256xf32>
    %212 = vector.broadcast %6 : vector<1x256xf32> to vector<8x256xf32>
    %213 = arith.mulf %211, %212 : vector<8x256xf32>
    %c344 = arith.constant 344 : index
    %c0_122 = arith.constant 0 : index
    %214 = vector.load %arg34[%c344, %c0_122] : memref<360x256xf32, #tpu.memory_space<vmem>>, vector<8x256xf32>
    tpu.vector_store %arg34[%c344, %c0_122], %213 {strides = array<i32>} : memref<360x256xf32, #tpu.memory_space<vmem>>, vector<8x256xf32>,
    %c239_i32_123 = arith.constant 239 : i32
    %215 = tpu.dynamic_rotate %185 by %c239_i32_123 dim 1 : vector<8x256xf32>, i32 -> vector<8x256xf32>
    %216 = vector.broadcast %7 : vector<1x256xf32> to vector<8x256xf32>
    %217 = arith.mulf %215, %216 : vector<8x256xf32>
    %c352 = arith.constant 352 : index
    %c0_124 = arith.constant 0 : index
    %218 = vector.load %arg34[%c352, %c0_124] : memref<360x256xf32, #tpu.memory_space<vmem>>, vector<8x256xf32>
    tpu.vector_store %arg34[%c352, %c0_124], %217 {strides = array<i32>} : memref<360x256xf32, #tpu.memory_space<vmem>>, vector<8x256xf32>,
    %c0_125 = arith.constant 0 : index
    %c0_126 = arith.constant 0 : index
    %219 = vector.load %arg34[%c0_125, %c0_126] : memref<360x256xf32, #tpu.memory_space<vmem>>, vector<360x256xf32>
    %c0_127 = arith.constant 0 : index
    %c0_128 = arith.constant 0 : index
    %220 = vector.load %arg7[%c0_127, %c0_128] : memref<8x360xf32, #tpu.memory_space<vmem>>, vector<8x360xf32>
    %cst_129 = arith.constant dense<0.000000e+00> : vector<8x256xf32>
    %221 = tpu.matmul %220, %219, %cst_129 {dimension_numbers = #tpu.dot_dimension_numbers<[1], [0], [0], [1], [0, 0, 1, 1], [], []>} : vector<8x360xf32>, vector<360x256xf32>, vector<8x256xf32> -> vector<8x256xf32>
    %c0_130 = arith.constant 0 : index
    %c0_131 = arith.constant 0 : index
    %222 = vector.load %arg22[%c0_130, %c0_131] : memref<8x1xf32, #tpu.memory_space<vmem>>, vector<8x1xf32>
    %223 = vector.broadcast %222 : vector<8x1xf32> to vector<8x256xf32>
    %224 = arith.addf %221, %223 : vector<8x256xf32>
    %cst_132 = arith.constant 2.000000e-01 : f32
    %225 = vector.broadcast %cst_132 : f32 to vector<8x256xf32>
    %226 = arith.mulf %224, %225 : vector<8x256xf32>
    %227 = arith.addf %226, %9 : vector<8x256xf32>
    %c17_i32_133 = arith.constant 17 : i32
    %228 = tpu.dynamic_rotate %227 by %c17_i32_133 dim 1 : vector<8x256xf32>, i32 -> vector<8x256xf32>
    %229 = vector.broadcast %0 : vector<1x256xf32> to vector<8x256xf32>
    %230 = arith.mulf %228, %229 : vector<8x256xf32>
    %c0_134 = arith.constant 0 : index
    %c0_135 = arith.constant 0 : index
    %231 = vector.load %arg34[%c0_134, %c0_135] : memref<360x256xf32, #tpu.memory_space<vmem>>, vector<8x256xf32>
    tpu.vector_store %arg34[%c0_134, %c0_135], %230 {strides = array<i32>} : memref<360x256xf32, #tpu.memory_space<vmem>>, vector<8x256xf32>,
    %c16_i32_136 = arith.constant 16 : i32
    %232 = tpu.dynamic_rotate %227 by %c16_i32_136 dim 1 : vector<8x256xf32>, i32 -> vector<8x256xf32>
    %233 = vector.broadcast %1 : vector<1x256xf32> to vector<8x256xf32>
    %234 = arith.mulf %232, %233 : vector<8x256xf32>
    %c8_137 = arith.constant 8 : index
    %c0_138 = arith.constant 0 : index
    %235 = vector.load %arg34[%c8_137, %c0_138] : memref<360x256xf32, #tpu.memory_space<vmem>>, vector<8x256xf32>
    tpu.vector_store %arg34[%c8_137, %c0_138], %234 {strides = array<i32>} : memref<360x256xf32, #tpu.memory_space<vmem>>, vector<8x256xf32>,
    %c15_i32_139 = arith.constant 15 : i32
    %236 = tpu.dynamic_rotate %227 by %c15_i32_139 dim 1 : vector<8x256xf32>, i32 -> vector<8x256xf32>
    %237 = vector.broadcast %2 : vector<1x256xf32> to vector<8x256xf32>
    %238 = arith.mulf %236, %237 : vector<8x256xf32>
    %c16_140 = arith.constant 16 : index
    %c0_141 = arith.constant 0 : index
    %239 = vector.load %arg34[%c16_140, %c0_141] : memref<360x256xf32, #tpu.memory_space<vmem>>, vector<8x256xf32>
    tpu.vector_store %arg34[%c16_140, %c0_141], %238 {strides = array<i32>} : memref<360x256xf32, #tpu.memory_space<vmem>>, vector<8x256xf32>,
    %c1_i32_142 = arith.constant 1 : i32
    %240 = tpu.dynamic_rotate %227 by %c1_i32_142 dim 1 : vector<8x256xf32>, i32 -> vector<8x256xf32>
    %241 = vector.broadcast %3 : vector<1x256xf32> to vector<8x256xf32>
    %242 = arith.mulf %240, %241 : vector<8x256xf32>
    %c24_143 = arith.constant 24 : index
    %c0_144 = arith.constant 0 : index
    %243 = vector.load %arg34[%c24_143, %c0_144] : memref<360x256xf32, #tpu.memory_space<vmem>>, vector<8x256xf32>
    tpu.vector_store %arg34[%c24_143, %c0_144], %242 {strides = array<i32>} : memref<360x256xf32, #tpu.memory_space<vmem>>, vector<8x256xf32>,
    %c32_145 = arith.constant 32 : index
    %c0_146 = arith.constant 0 : index
    %244 = vector.load %arg34[%c32_145, %c0_146] : memref<360x256xf32, #tpu.memory_space<vmem>>, vector<8x256xf32>
    tpu.vector_store %arg34[%c32_145, %c0_146], %227 {strides = array<i32>} : memref<360x256xf32, #tpu.memory_space<vmem>>, vector<8x256xf32>,
    %c255_i32_147 = arith.constant 255 : i32
    %245 = tpu.dynamic_rotate %227 by %c255_i32_147 dim 1 : vector<8x256xf32>, i32 -> vector<8x256xf32>
    %246 = vector.broadcast %4 : vector<1x256xf32> to vector<8x256xf32>
    %247 = arith.mulf %245, %246 : vector<8x256xf32>
    %c40_148 = arith.constant 40 : index
    %c0_149 = arith.constant 0 : index
    %248 = vector.load %arg34[%c40_148, %c0_149] : memref<360x256xf32, #tpu.memory_space<vmem>>, vector<8x256xf32>
    tpu.vector_store %arg34[%c40_148, %c0_149], %247 {strides = array<i32>} : memref<360x256xf32, #tpu.memory_space<vmem>>, vector<8x256xf32>,
    %c241_i32_150 = arith.constant 241 : i32
    %249 = tpu.dynamic_rotate %227 by %c241_i32_150 dim 1 : vector<8x256xf32>, i32 -> vector<8x256xf32>
    %250 = vector.broadcast %5 : vector<1x256xf32> to vector<8x256xf32>
    %251 = arith.mulf %249, %250 : vector<8x256xf32>
    %c48_151 = arith.constant 48 : index
    %c0_152 = arith.constant 0 : index
    %252 = vector.load %arg34[%c48_151, %c0_152] : memref<360x256xf32, #tpu.memory_space<vmem>>, vector<8x256xf32>
    tpu.vector_store %arg34[%c48_151, %c0_152], %251 {strides = array<i32>} : memref<360x256xf32, #tpu.memory_space<vmem>>, vector<8x256xf32>,
    %c240_i32_153 = arith.constant 240 : i32
    %253 = tpu.dynamic_rotate %227 by %c240_i32_153 dim 1 : vector<8x256xf32>, i32 -> vector<8x256xf32>
    %254 = vector.broadcast %6 : vector<1x256xf32> to vector<8x256xf32>
    %255 = arith.mulf %253, %254 : vector<8x256xf32>
    %c56_154 = arith.constant 56 : index
    %c0_155 = arith.constant 0 : index
    %256 = vector.load %arg34[%c56_154, %c0_155] : memref<360x256xf32, #tpu.memory_space<vmem>>, vector<8x256xf32>
    tpu.vector_store %arg34[%c56_154, %c0_155], %255 {strides = array<i32>} : memref<360x256xf32, #tpu.memory_space<vmem>>, vector<8x256xf32>,
    %c239_i32_156 = arith.constant 239 : i32
    %257 = tpu.dynamic_rotate %227 by %c239_i32_156 dim 1 : vector<8x256xf32>, i32 -> vector<8x256xf32>
    %258 = vector.broadcast %7 : vector<1x256xf32> to vector<8x256xf32>
    %259 = arith.mulf %257, %258 : vector<8x256xf32>
    %c64_157 = arith.constant 64 : index
    %c0_158 = arith.constant 0 : index
    %260 = vector.load %arg34[%c64_157, %c0_158] : memref<360x256xf32, #tpu.memory_space<vmem>>, vector<8x256xf32>
    tpu.vector_store %arg34[%c64_157, %c0_158], %259 {strides = array<i32>} : memref<360x256xf32, #tpu.memory_space<vmem>>, vector<8x256xf32>,
    %c0_159 = arith.constant 0 : index
    %c0_160 = arith.constant 0 : index
    %261 = vector.load %arg34[%c0_159, %c0_160] : memref<360x256xf32, #tpu.memory_space<vmem>>, vector<72x256xf32>
    %c0_161 = arith.constant 0 : index
    %c0_162 = arith.constant 0 : index
    %262 = vector.load %arg8[%c0_161, %c0_162] : memref<8x72xf32, #tpu.memory_space<vmem>>, vector<8x72xf32>
    %cst_163 = arith.constant dense<0.000000e+00> : vector<8x256xf32>
    %263 = tpu.matmul %262, %261, %cst_163 {dimension_numbers = #tpu.dot_dimension_numbers<[1], [0], [0], [1], [0, 0, 1, 1], [], []>} : vector<8x72xf32>, vector<72x256xf32>, vector<8x256xf32> -> vector<8x256xf32>
    %c0_164 = arith.constant 0 : index
    %c0_165 = arith.constant 0 : index
    %264 = vector.load %arg23[%c0_164, %c0_165] : memref<8x1xf32, #tpu.memory_space<vmem>>, vector<8x1xf32>
    %265 = vector.broadcast %264 : vector<8x1xf32> to vector<8x256xf32>
    %266 = arith.addf %263, %265 : vector<8x256xf32>
    %cst_166 = arith.constant 0.000000e+00 : f32
    %267 = vector.broadcast %cst_166 : f32 to vector<8x256xf32>
    %268 = arith.cmpf oge, %266, %267 : vector<8x256xf32>
    %cst_167 = arith.constant 2.000000e-01 : f32
    %269 = vector.broadcast %cst_167 : f32 to vector<8x256xf32>
    %270 = arith.mulf %266, %269 : vector<8x256xf32>
    %271 = arith.select %268, %266, %270 : vector<8x256xi1>, vector<8x256xf32>
    %c17_i32_168 = arith.constant 17 : i32
    %272 = tpu.dynamic_rotate %271 by %c17_i32_168 dim 1 : vector<8x256xf32>, i32 -> vector<8x256xf32>
    %273 = vector.broadcast %0 : vector<1x256xf32> to vector<8x256xf32>
    %274 = arith.mulf %272, %273 : vector<8x256xf32>
    %c72_169 = arith.constant 72 : index
    %c0_170 = arith.constant 0 : index
    %275 = vector.load %arg34[%c72_169, %c0_170] : memref<360x256xf32, #tpu.memory_space<vmem>>, vector<8x256xf32>
    tpu.vector_store %arg34[%c72_169, %c0_170], %274 {strides = array<i32>} : memref<360x256xf32, #tpu.memory_space<vmem>>, vector<8x256xf32>,
    %c16_i32_171 = arith.constant 16 : i32
    %276 = tpu.dynamic_rotate %271 by %c16_i32_171 dim 1 : vector<8x256xf32>, i32 -> vector<8x256xf32>
    %277 = vector.broadcast %1 : vector<1x256xf32> to vector<8x256xf32>
    %278 = arith.mulf %276, %277 : vector<8x256xf32>
    %c80_172 = arith.constant 80 : index
    %c0_173 = arith.constant 0 : index
    %279 = vector.load %arg34[%c80_172, %c0_173] : memref<360x256xf32, #tpu.memory_space<vmem>>, vector<8x256xf32>
    tpu.vector_store %arg34[%c80_172, %c0_173], %278 {strides = array<i32>} : memref<360x256xf32, #tpu.memory_space<vmem>>, vector<8x256xf32>,
    %c15_i32_174 = arith.constant 15 : i32
    %280 = tpu.dynamic_rotate %271 by %c15_i32_174 dim 1 : vector<8x256xf32>, i32 -> vector<8x256xf32>
    %281 = vector.broadcast %2 : vector<1x256xf32> to vector<8x256xf32>
    %282 = arith.mulf %280, %281 : vector<8x256xf32>
    %c88_175 = arith.constant 88 : index
    %c0_176 = arith.constant 0 : index
    %283 = vector.load %arg34[%c88_175, %c0_176] : memref<360x256xf32, #tpu.memory_space<vmem>>, vector<8x256xf32>
    tpu.vector_store %arg34[%c88_175, %c0_176], %282 {strides = array<i32>} : memref<360x256xf32, #tpu.memory_space<vmem>>, vector<8x256xf32>,
    %c1_i32_177 = arith.constant 1 : i32
    %284 = tpu.dynamic_rotate %271 by %c1_i32_177 dim 1 : vector<8x256xf32>, i32 -> vector<8x256xf32>
    %285 = vector.broadcast %3 : vector<1x256xf32> to vector<8x256xf32>
    %286 = arith.mulf %284, %285 : vector<8x256xf32>
    %c96_178 = arith.constant 96 : index
    %c0_179 = arith.constant 0 : index
    %287 = vector.load %arg34[%c96_178, %c0_179] : memref<360x256xf32, #tpu.memory_space<vmem>>, vector<8x256xf32>
    tpu.vector_store %arg34[%c96_178, %c0_179], %286 {strides = array<i32>} : memref<360x256xf32, #tpu.memory_space<vmem>>, vector<8x256xf32>,
    %c104_180 = arith.constant 104 : index
    %c0_181 = arith.constant 0 : index
    %288 = vector.load %arg34[%c104_180, %c0_181] : memref<360x256xf32, #tpu.memory_space<vmem>>, vector<8x256xf32>
    tpu.vector_store %arg34[%c104_180, %c0_181], %271 {strides = array<i32>} : memref<360x256xf32, #tpu.memory_space<vmem>>, vector<8x256xf32>,
    %c255_i32_182 = arith.constant 255 : i32
    %289 = tpu.dynamic_rotate %271 by %c255_i32_182 dim 1 : vector<8x256xf32>, i32 -> vector<8x256xf32>
    %290 = vector.broadcast %4 : vector<1x256xf32> to vector<8x256xf32>
    %291 = arith.mulf %289, %290 : vector<8x256xf32>
    %c112_183 = arith.constant 112 : index
    %c0_184 = arith.constant 0 : index
    %292 = vector.load %arg34[%c112_183, %c0_184] : memref<360x256xf32, #tpu.memory_space<vmem>>, vector<8x256xf32>
    tpu.vector_store %arg34[%c112_183, %c0_184], %291 {strides = array<i32>} : memref<360x256xf32, #tpu.memory_space<vmem>>, vector<8x256xf32>,
    %c241_i32_185 = arith.constant 241 : i32
    %293 = tpu.dynamic_rotate %271 by %c241_i32_185 dim 1 : vector<8x256xf32>, i32 -> vector<8x256xf32>
    %294 = vector.broadcast %5 : vector<1x256xf32> to vector<8x256xf32>
    %295 = arith.mulf %293, %294 : vector<8x256xf32>
    %c120_186 = arith.constant 120 : index
    %c0_187 = arith.constant 0 : index
    %296 = vector.load %arg34[%c120_186, %c0_187] : memref<360x256xf32, #tpu.memory_space<vmem>>, vector<8x256xf32>
    tpu.vector_store %arg34[%c120_186, %c0_187], %295 {strides = array<i32>} : memref<360x256xf32, #tpu.memory_space<vmem>>, vector<8x256xf32>,
    %c240_i32_188 = arith.constant 240 : i32
    %297 = tpu.dynamic_rotate %271 by %c240_i32_188 dim 1 : vector<8x256xf32>, i32 -> vector<8x256xf32>
    %298 = vector.broadcast %6 : vector<1x256xf32> to vector<8x256xf32>
    %299 = arith.mulf %297, %298 : vector<8x256xf32>
    %c128_189 = arith.constant 128 : index
    %c0_190 = arith.constant 0 : index
    %300 = vector.load %arg34[%c128_189, %c0_190] : memref<360x256xf32, #tpu.memory_space<vmem>>, vector<8x256xf32>
    tpu.vector_store %arg34[%c128_189, %c0_190], %299 {strides = array<i32>} : memref<360x256xf32, #tpu.memory_space<vmem>>, vector<8x256xf32>,
    %c239_i32_191 = arith.constant 239 : i32
    %301 = tpu.dynamic_rotate %271 by %c239_i32_191 dim 1 : vector<8x256xf32>, i32 -> vector<8x256xf32>
    %302 = vector.broadcast %7 : vector<1x256xf32> to vector<8x256xf32>
    %303 = arith.mulf %301, %302 : vector<8x256xf32>
    %c136_192 = arith.constant 136 : index
    %c0_193 = arith.constant 0 : index
    %304 = vector.load %arg34[%c136_192, %c0_193] : memref<360x256xf32, #tpu.memory_space<vmem>>, vector<8x256xf32>
    tpu.vector_store %arg34[%c136_192, %c0_193], %303 {strides = array<i32>} : memref<360x256xf32, #tpu.memory_space<vmem>>, vector<8x256xf32>,
    %c0_194 = arith.constant 0 : index
    %c0_195 = arith.constant 0 : index
    %305 = vector.load %arg34[%c0_194, %c0_195] : memref<360x256xf32, #tpu.memory_space<vmem>>, vector<144x256xf32>
    %c0_196 = arith.constant 0 : index
    %c0_197 = arith.constant 0 : index
    %306 = vector.load %arg9[%c0_196, %c0_197] : memref<8x144xf32, #tpu.memory_space<vmem>>, vector<8x144xf32>
    %cst_198 = arith.constant dense<0.000000e+00> : vector<8x256xf32>
    %307 = tpu.matmul %306, %305, %cst_198 {dimension_numbers = #tpu.dot_dimension_numbers<[1], [0], [0], [1], [0, 0, 1, 1], [], []>} : vector<8x144xf32>, vector<144x256xf32>, vector<8x256xf32> -> vector<8x256xf32>
    %c0_199 = arith.constant 0 : index
    %c0_200 = arith.constant 0 : index
    %308 = vector.load %arg24[%c0_199, %c0_200] : memref<8x1xf32, #tpu.memory_space<vmem>>, vector<8x1xf32>
    %309 = vector.broadcast %308 : vector<8x1xf32> to vector<8x256xf32>
    %310 = arith.addf %307, %309 : vector<8x256xf32>
    %cst_201 = arith.constant 0.000000e+00 : f32
    %311 = vector.broadcast %cst_201 : f32 to vector<8x256xf32>
    %312 = arith.cmpf oge, %310, %311 : vector<8x256xf32>
    %cst_202 = arith.constant 2.000000e-01 : f32
    %313 = vector.broadcast %cst_202 : f32 to vector<8x256xf32>
    %314 = arith.mulf %310, %313 : vector<8x256xf32>
    %315 = arith.select %312, %310, %314 : vector<8x256xi1>, vector<8x256xf32>
    %c17_i32_203 = arith.constant 17 : i32
    %316 = tpu.dynamic_rotate %315 by %c17_i32_203 dim 1 : vector<8x256xf32>, i32 -> vector<8x256xf32>
    %317 = vector.broadcast %0 : vector<1x256xf32> to vector<8x256xf32>
    %318 = arith.mulf %316, %317 : vector<8x256xf32>
    %c144_204 = arith.constant 144 : index
    %c0_205 = arith.constant 0 : index
    %319 = vector.load %arg34[%c144_204, %c0_205] : memref<360x256xf32, #tpu.memory_space<vmem>>, vector<8x256xf32>
    tpu.vector_store %arg34[%c144_204, %c0_205], %318 {strides = array<i32>} : memref<360x256xf32, #tpu.memory_space<vmem>>, vector<8x256xf32>,
    %c16_i32_206 = arith.constant 16 : i32
    %320 = tpu.dynamic_rotate %315 by %c16_i32_206 dim 1 : vector<8x256xf32>, i32 -> vector<8x256xf32>
    %321 = vector.broadcast %1 : vector<1x256xf32> to vector<8x256xf32>
    %322 = arith.mulf %320, %321 : vector<8x256xf32>
    %c152_207 = arith.constant 152 : index
    %c0_208 = arith.constant 0 : index
    %323 = vector.load %arg34[%c152_207, %c0_208] : memref<360x256xf32, #tpu.memory_space<vmem>>, vector<8x256xf32>
    tpu.vector_store %arg34[%c152_207, %c0_208], %322 {strides = array<i32>} : memref<360x256xf32, #tpu.memory_space<vmem>>, vector<8x256xf32>,
    %c15_i32_209 = arith.constant 15 : i32
    %324 = tpu.dynamic_rotate %315 by %c15_i32_209 dim 1 : vector<8x256xf32>, i32 -> vector<8x256xf32>
    %325 = vector.broadcast %2 : vector<1x256xf32> to vector<8x256xf32>
    %326 = arith.mulf %324, %325 : vector<8x256xf32>
    %c160_210 = arith.constant 160 : index
    %c0_211 = arith.constant 0 : index
    %327 = vector.load %arg34[%c160_210, %c0_211] : memref<360x256xf32, #tpu.memory_space<vmem>>, vector<8x256xf32>
    tpu.vector_store %arg34[%c160_210, %c0_211], %326 {strides = array<i32>} : memref<360x256xf32, #tpu.memory_space<vmem>>, vector<8x256xf32>,
    %c1_i32_212 = arith.constant 1 : i32
    %328 = tpu.dynamic_rotate %315 by %c1_i32_212 dim 1 : vector<8x256xf32>, i32 -> vector<8x256xf32>
    %329 = vector.broadcast %3 : vector<1x256xf32> to vector<8x256xf32>
    %330 = arith.mulf %328, %329 : vector<8x256xf32>
    %c168_213 = arith.constant 168 : index
    %c0_214 = arith.constant 0 : index
    %331 = vector.load %arg34[%c168_213, %c0_214] : memref<360x256xf32, #tpu.memory_space<vmem>>, vector<8x256xf32>
    tpu.vector_store %arg34[%c168_213, %c0_214], %330 {strides = array<i32>} : memref<360x256xf32, #tpu.memory_space<vmem>>, vector<8x256xf32>,
    %c176_215 = arith.constant 176 : index
    %c0_216 = arith.constant 0 : index
    %332 = vector.load %arg34[%c176_215, %c0_216] : memref<360x256xf32, #tpu.memory_space<vmem>>, vector<8x256xf32>
    tpu.vector_store %arg34[%c176_215, %c0_216], %315 {strides = array<i32>} : memref<360x256xf32, #tpu.memory_space<vmem>>, vector<8x256xf32>,
    %c255_i32_217 = arith.constant 255 : i32
    %333 = tpu.dynamic_rotate %315 by %c255_i32_217 dim 1 : vector<8x256xf32>, i32 -> vector<8x256xf32>
    %334 = vector.broadcast %4 : vector<1x256xf32> to vector<8x256xf32>
    %335 = arith.mulf %333, %334 : vector<8x256xf32>
    %c184_218 = arith.constant 184 : index
    %c0_219 = arith.constant 0 : index
    %336 = vector.load %arg34[%c184_218, %c0_219] : memref<360x256xf32, #tpu.memory_space<vmem>>, vector<8x256xf32>
    tpu.vector_store %arg34[%c184_218, %c0_219], %335 {strides = array<i32>} : memref<360x256xf32, #tpu.memory_space<vmem>>, vector<8x256xf32>,
    %c241_i32_220 = arith.constant 241 : i32
    %337 = tpu.dynamic_rotate %315 by %c241_i32_220 dim 1 : vector<8x256xf32>, i32 -> vector<8x256xf32>
    %338 = vector.broadcast %5 : vector<1x256xf32> to vector<8x256xf32>
    %339 = arith.mulf %337, %338 : vector<8x256xf32>
    %c192_221 = arith.constant 192 : index
    %c0_222 = arith.constant 0 : index
    %340 = vector.load %arg34[%c192_221, %c0_222] : memref<360x256xf32, #tpu.memory_space<vmem>>, vector<8x256xf32>
    tpu.vector_store %arg34[%c192_221, %c0_222], %339 {strides = array<i32>} : memref<360x256xf32, #tpu.memory_space<vmem>>, vector<8x256xf32>,
    %c240_i32_223 = arith.constant 240 : i32
    %341 = tpu.dynamic_rotate %315 by %c240_i32_223 dim 1 : vector<8x256xf32>, i32 -> vector<8x256xf32>
    %342 = vector.broadcast %6 : vector<1x256xf32> to vector<8x256xf32>
    %343 = arith.mulf %341, %342 : vector<8x256xf32>
    %c200_224 = arith.constant 200 : index
    %c0_225 = arith.constant 0 : index
    %344 = vector.load %arg34[%c200_224, %c0_225] : memref<360x256xf32, #tpu.memory_space<vmem>>, vector<8x256xf32>
    tpu.vector_store %arg34[%c200_224, %c0_225], %343 {strides = array<i32>} : memref<360x256xf32, #tpu.memory_space<vmem>>, vector<8x256xf32>,
    %c239_i32_226 = arith.constant 239 : i32
    %345 = tpu.dynamic_rotate %315 by %c239_i32_226 dim 1 : vector<8x256xf32>, i32 -> vector<8x256xf32>
    %346 = vector.broadcast %7 : vector<1x256xf32> to vector<8x256xf32>
    %347 = arith.mulf %345, %346 : vector<8x256xf32>
    %c208_227 = arith.constant 208 : index
    %c0_228 = arith.constant 0 : index
    %348 = vector.load %arg34[%c208_227, %c0_228] : memref<360x256xf32, #tpu.memory_space<vmem>>, vector<8x256xf32>
    tpu.vector_store %arg34[%c208_227, %c0_228], %347 {strides = array<i32>} : memref<360x256xf32, #tpu.memory_space<vmem>>, vector<8x256xf32>,
    %c0_229 = arith.constant 0 : index
    %c0_230 = arith.constant 0 : index
    %349 = vector.load %arg34[%c0_229, %c0_230] : memref<360x256xf32, #tpu.memory_space<vmem>>, vector<216x256xf32>
    %c0_231 = arith.constant 0 : index
    %c0_232 = arith.constant 0 : index
    %350 = vector.load %arg10[%c0_231, %c0_232] : memref<8x216xf32, #tpu.memory_space<vmem>>, vector<8x216xf32>
    %cst_233 = arith.constant dense<0.000000e+00> : vector<8x256xf32>
    %351 = tpu.matmul %350, %349, %cst_233 {dimension_numbers = #tpu.dot_dimension_numbers<[1], [0], [0], [1], [0, 0, 1, 1], [], []>} : vector<8x216xf32>, vector<216x256xf32>, vector<8x256xf32> -> vector<8x256xf32>
    %c0_234 = arith.constant 0 : index
    %c0_235 = arith.constant 0 : index
    %352 = vector.load %arg25[%c0_234, %c0_235] : memref<8x1xf32, #tpu.memory_space<vmem>>, vector<8x1xf32>
    %353 = vector.broadcast %352 : vector<8x1xf32> to vector<8x256xf32>
    %354 = arith.addf %351, %353 : vector<8x256xf32>
    %cst_236 = arith.constant 0.000000e+00 : f32
    %355 = vector.broadcast %cst_236 : f32 to vector<8x256xf32>
    %356 = arith.cmpf oge, %354, %355 : vector<8x256xf32>
    %cst_237 = arith.constant 2.000000e-01 : f32
    %357 = vector.broadcast %cst_237 : f32 to vector<8x256xf32>
    %358 = arith.mulf %354, %357 : vector<8x256xf32>
    %359 = arith.select %356, %354, %358 : vector<8x256xi1>, vector<8x256xf32>
    %c17_i32_238 = arith.constant 17 : i32
    %360 = tpu.dynamic_rotate %359 by %c17_i32_238 dim 1 : vector<8x256xf32>, i32 -> vector<8x256xf32>
    %361 = vector.broadcast %0 : vector<1x256xf32> to vector<8x256xf32>
    %362 = arith.mulf %360, %361 : vector<8x256xf32>
    %c216_239 = arith.constant 216 : index
    %c0_240 = arith.constant 0 : index
    %363 = vector.load %arg34[%c216_239, %c0_240] : memref<360x256xf32, #tpu.memory_space<vmem>>, vector<8x256xf32>
    tpu.vector_store %arg34[%c216_239, %c0_240], %362 {strides = array<i32>} : memref<360x256xf32, #tpu.memory_space<vmem>>, vector<8x256xf32>,
    %c16_i32_241 = arith.constant 16 : i32
    %364 = tpu.dynamic_rotate %359 by %c16_i32_241 dim 1 : vector<8x256xf32>, i32 -> vector<8x256xf32>
    %365 = vector.broadcast %1 : vector<1x256xf32> to vector<8x256xf32>
    %366 = arith.mulf %364, %365 : vector<8x256xf32>
    %c224_242 = arith.constant 224 : index
    %c0_243 = arith.constant 0 : index
    %367 = vector.load %arg34[%c224_242, %c0_243] : memref<360x256xf32, #tpu.memory_space<vmem>>, vector<8x256xf32>
    tpu.vector_store %arg34[%c224_242, %c0_243], %366 {strides = array<i32>} : memref<360x256xf32, #tpu.memory_space<vmem>>, vector<8x256xf32>,
    %c15_i32_244 = arith.constant 15 : i32
    %368 = tpu.dynamic_rotate %359 by %c15_i32_244 dim 1 : vector<8x256xf32>, i32 -> vector<8x256xf32>
    %369 = vector.broadcast %2 : vector<1x256xf32> to vector<8x256xf32>
    %370 = arith.mulf %368, %369 : vector<8x256xf32>
    %c232_245 = arith.constant 232 : index
    %c0_246 = arith.constant 0 : index
    %371 = vector.load %arg34[%c232_245, %c0_246] : memref<360x256xf32, #tpu.memory_space<vmem>>, vector<8x256xf32>
    tpu.vector_store %arg34[%c232_245, %c0_246], %370 {strides = array<i32>} : memref<360x256xf32, #tpu.memory_space<vmem>>, vector<8x256xf32>,
    %c1_i32_247 = arith.constant 1 : i32
    %372 = tpu.dynamic_rotate %359 by %c1_i32_247 dim 1 : vector<8x256xf32>, i32 -> vector<8x256xf32>
    %373 = vector.broadcast %3 : vector<1x256xf32> to vector<8x256xf32>
    %374 = arith.mulf %372, %373 : vector<8x256xf32>
    %c240_248 = arith.constant 240 : index
    %c0_249 = arith.constant 0 : index
    %375 = vector.load %arg34[%c240_248, %c0_249] : memref<360x256xf32, #tpu.memory_space<vmem>>, vector<8x256xf32>
    tpu.vector_store %arg34[%c240_248, %c0_249], %374 {strides = array<i32>} : memref<360x256xf32, #tpu.memory_space<vmem>>, vector<8x256xf32>,
    %c248_250 = arith.constant 248 : index
    %c0_251 = arith.constant 0 : index
    %376 = vector.load %arg34[%c248_250, %c0_251] : memref<360x256xf32, #tpu.memory_space<vmem>>, vector<8x256xf32>
    tpu.vector_store %arg34[%c248_250, %c0_251], %359 {strides = array<i32>} : memref<360x256xf32, #tpu.memory_space<vmem>>, vector<8x256xf32>,
    %c255_i32_252 = arith.constant 255 : i32
    %377 = tpu.dynamic_rotate %359 by %c255_i32_252 dim 1 : vector<8x256xf32>, i32 -> vector<8x256xf32>
    %378 = vector.broadcast %4 : vector<1x256xf32> to vector<8x256xf32>
    %379 = arith.mulf %377, %378 : vector<8x256xf32>
    %c256_253 = arith.constant 256 : index
    %c0_254 = arith.constant 0 : index
    %380 = vector.load %arg34[%c256_253, %c0_254] : memref<360x256xf32, #tpu.memory_space<vmem>>, vector<8x256xf32>
    tpu.vector_store %arg34[%c256_253, %c0_254], %379 {strides = array<i32>} : memref<360x256xf32, #tpu.memory_space<vmem>>, vector<8x256xf32>,
    %c241_i32_255 = arith.constant 241 : i32
    %381 = tpu.dynamic_rotate %359 by %c241_i32_255 dim 1 : vector<8x256xf32>, i32 -> vector<8x256xf32>
    %382 = vector.broadcast %5 : vector<1x256xf32> to vector<8x256xf32>
    %383 = arith.mulf %381, %382 : vector<8x256xf32>
    %c264_256 = arith.constant 264 : index
    %c0_257 = arith.constant 0 : index
    %384 = vector.load %arg34[%c264_256, %c0_257] : memref<360x256xf32, #tpu.memory_space<vmem>>, vector<8x256xf32>
    tpu.vector_store %arg34[%c264_256, %c0_257], %383 {strides = array<i32>} : memref<360x256xf32, #tpu.memory_space<vmem>>, vector<8x256xf32>,
    %c240_i32_258 = arith.constant 240 : i32
    %385 = tpu.dynamic_rotate %359 by %c240_i32_258 dim 1 : vector<8x256xf32>, i32 -> vector<8x256xf32>
    %386 = vector.broadcast %6 : vector<1x256xf32> to vector<8x256xf32>
    %387 = arith.mulf %385, %386 : vector<8x256xf32>
    %c272_259 = arith.constant 272 : index
    %c0_260 = arith.constant 0 : index
    %388 = vector.load %arg34[%c272_259, %c0_260] : memref<360x256xf32, #tpu.memory_space<vmem>>, vector<8x256xf32>
    tpu.vector_store %arg34[%c272_259, %c0_260], %387 {strides = array<i32>} : memref<360x256xf32, #tpu.memory_space<vmem>>, vector<8x256xf32>,
    %c239_i32_261 = arith.constant 239 : i32
    %389 = tpu.dynamic_rotate %359 by %c239_i32_261 dim 1 : vector<8x256xf32>, i32 -> vector<8x256xf32>
    %390 = vector.broadcast %7 : vector<1x256xf32> to vector<8x256xf32>
    %391 = arith.mulf %389, %390 : vector<8x256xf32>
    %c280_262 = arith.constant 280 : index
    %c0_263 = arith.constant 0 : index
    %392 = vector.load %arg34[%c280_262, %c0_263] : memref<360x256xf32, #tpu.memory_space<vmem>>, vector<8x256xf32>
    tpu.vector_store %arg34[%c280_262, %c0_263], %391 {strides = array<i32>} : memref<360x256xf32, #tpu.memory_space<vmem>>, vector<8x256xf32>,
    %c0_264 = arith.constant 0 : index
    %c0_265 = arith.constant 0 : index
    %393 = vector.load %arg34[%c0_264, %c0_265] : memref<360x256xf32, #tpu.memory_space<vmem>>, vector<288x256xf32>
    %c0_266 = arith.constant 0 : index
    %c0_267 = arith.constant 0 : index
    %394 = vector.load %arg11[%c0_266, %c0_267] : memref<8x288xf32, #tpu.memory_space<vmem>>, vector<8x288xf32>
    %cst_268 = arith.constant dense<0.000000e+00> : vector<8x256xf32>
    %395 = tpu.matmul %394, %393, %cst_268 {dimension_numbers = #tpu.dot_dimension_numbers<[1], [0], [0], [1], [0, 0, 1, 1], [], []>} : vector<8x288xf32>, vector<288x256xf32>, vector<8x256xf32> -> vector<8x256xf32>
    %c0_269 = arith.constant 0 : index
    %c0_270 = arith.constant 0 : index
    %396 = vector.load %arg26[%c0_269, %c0_270] : memref<8x1xf32, #tpu.memory_space<vmem>>, vector<8x1xf32>
    %397 = vector.broadcast %396 : vector<8x1xf32> to vector<8x256xf32>
    %398 = arith.addf %395, %397 : vector<8x256xf32>
    %cst_271 = arith.constant 0.000000e+00 : f32
    %399 = vector.broadcast %cst_271 : f32 to vector<8x256xf32>
    %400 = arith.cmpf oge, %398, %399 : vector<8x256xf32>
    %cst_272 = arith.constant 2.000000e-01 : f32
    %401 = vector.broadcast %cst_272 : f32 to vector<8x256xf32>
    %402 = arith.mulf %398, %401 : vector<8x256xf32>
    %403 = arith.select %400, %398, %402 : vector<8x256xi1>, vector<8x256xf32>
    %c17_i32_273 = arith.constant 17 : i32
    %404 = tpu.dynamic_rotate %403 by %c17_i32_273 dim 1 : vector<8x256xf32>, i32 -> vector<8x256xf32>
    %405 = vector.broadcast %0 : vector<1x256xf32> to vector<8x256xf32>
    %406 = arith.mulf %404, %405 : vector<8x256xf32>
    %c288_274 = arith.constant 288 : index
    %c0_275 = arith.constant 0 : index
    %407 = vector.load %arg34[%c288_274, %c0_275] : memref<360x256xf32, #tpu.memory_space<vmem>>, vector<8x256xf32>
    tpu.vector_store %arg34[%c288_274, %c0_275], %406 {strides = array<i32>} : memref<360x256xf32, #tpu.memory_space<vmem>>, vector<8x256xf32>,
    %c16_i32_276 = arith.constant 16 : i32
    %408 = tpu.dynamic_rotate %403 by %c16_i32_276 dim 1 : vector<8x256xf32>, i32 -> vector<8x256xf32>
    %409 = vector.broadcast %1 : vector<1x256xf32> to vector<8x256xf32>
    %410 = arith.mulf %408, %409 : vector<8x256xf32>
    %c296_277 = arith.constant 296 : index
    %c0_278 = arith.constant 0 : index
    %411 = vector.load %arg34[%c296_277, %c0_278] : memref<360x256xf32, #tpu.memory_space<vmem>>, vector<8x256xf32>
    tpu.vector_store %arg34[%c296_277, %c0_278], %410 {strides = array<i32>} : memref<360x256xf32, #tpu.memory_space<vmem>>, vector<8x256xf32>,
    %c15_i32_279 = arith.constant 15 : i32
    %412 = tpu.dynamic_rotate %403 by %c15_i32_279 dim 1 : vector<8x256xf32>, i32 -> vector<8x256xf32>
    %413 = vector.broadcast %2 : vector<1x256xf32> to vector<8x256xf32>
    %414 = arith.mulf %412, %413 : vector<8x256xf32>
    %c304_280 = arith.constant 304 : index
    %c0_281 = arith.constant 0 : index
    %415 = vector.load %arg34[%c304_280, %c0_281] : memref<360x256xf32, #tpu.memory_space<vmem>>, vector<8x256xf32>
    tpu.vector_store %arg34[%c304_280, %c0_281], %414 {strides = array<i32>} : memref<360x256xf32, #tpu.memory_space<vmem>>, vector<8x256xf32>,
    %c1_i32_282 = arith.constant 1 : i32
    %416 = tpu.dynamic_rotate %403 by %c1_i32_282 dim 1 : vector<8x256xf32>, i32 -> vector<8x256xf32>
    %417 = vector.broadcast %3 : vector<1x256xf32> to vector<8x256xf32>
    %418 = arith.mulf %416, %417 : vector<8x256xf32>
    %c312_283 = arith.constant 312 : index
    %c0_284 = arith.constant 0 : index
    %419 = vector.load %arg34[%c312_283, %c0_284] : memref<360x256xf32, #tpu.memory_space<vmem>>, vector<8x256xf32>
    tpu.vector_store %arg34[%c312_283, %c0_284], %418 {strides = array<i32>} : memref<360x256xf32, #tpu.memory_space<vmem>>, vector<8x256xf32>,
    %c320_285 = arith.constant 320 : index
    %c0_286 = arith.constant 0 : index
    %420 = vector.load %arg34[%c320_285, %c0_286] : memref<360x256xf32, #tpu.memory_space<vmem>>, vector<8x256xf32>
    tpu.vector_store %arg34[%c320_285, %c0_286], %403 {strides = array<i32>} : memref<360x256xf32, #tpu.memory_space<vmem>>, vector<8x256xf32>,
    %c255_i32_287 = arith.constant 255 : i32
    %421 = tpu.dynamic_rotate %403 by %c255_i32_287 dim 1 : vector<8x256xf32>, i32 -> vector<8x256xf32>
    %422 = vector.broadcast %4 : vector<1x256xf32> to vector<8x256xf32>
    %423 = arith.mulf %421, %422 : vector<8x256xf32>
    %c328_288 = arith.constant 328 : index
    %c0_289 = arith.constant 0 : index
    %424 = vector.load %arg34[%c328_288, %c0_289] : memref<360x256xf32, #tpu.memory_space<vmem>>, vector<8x256xf32>
    tpu.vector_store %arg34[%c328_288, %c0_289], %423 {strides = array<i32>} : memref<360x256xf32, #tpu.memory_space<vmem>>, vector<8x256xf32>,
    %c241_i32_290 = arith.constant 241 : i32
    %425 = tpu.dynamic_rotate %403 by %c241_i32_290 dim 1 : vector<8x256xf32>, i32 -> vector<8x256xf32>
    %426 = vector.broadcast %5 : vector<1x256xf32> to vector<8x256xf32>
    %427 = arith.mulf %425, %426 : vector<8x256xf32>
    %c336_291 = arith.constant 336 : index
    %c0_292 = arith.constant 0 : index
    %428 = vector.load %arg34[%c336_291, %c0_292] : memref<360x256xf32, #tpu.memory_space<vmem>>, vector<8x256xf32>
    tpu.vector_store %arg34[%c336_291, %c0_292], %427 {strides = array<i32>} : memref<360x256xf32, #tpu.memory_space<vmem>>, vector<8x256xf32>,
    %c240_i32_293 = arith.constant 240 : i32
    %429 = tpu.dynamic_rotate %403 by %c240_i32_293 dim 1 : vector<8x256xf32>, i32 -> vector<8x256xf32>
    %430 = vector.broadcast %6 : vector<1x256xf32> to vector<8x256xf32>
    %431 = arith.mulf %429, %430 : vector<8x256xf32>
    %c344_294 = arith.constant 344 : index
    %c0_295 = arith.constant 0 : index
    %432 = vector.load %arg34[%c344_294, %c0_295] : memref<360x256xf32, #tpu.memory_space<vmem>>, vector<8x256xf32>
    tpu.vector_store %arg34[%c344_294, %c0_295], %431 {strides = array<i32>} : memref<360x256xf32, #tpu.memory_space<vmem>>, vector<8x256xf32>,
    %c239_i32_296 = arith.constant 239 : i32
    %433 = tpu.dynamic_rotate %403 by %c239_i32_296 dim 1 : vector<8x256xf32>, i32 -> vector<8x256xf32>
    %434 = vector.broadcast %7 : vector<1x256xf32> to vector<8x256xf32>
    %435 = arith.mulf %433, %434 : vector<8x256xf32>
    %c352_297 = arith.constant 352 : index
    %c0_298 = arith.constant 0 : index
    %436 = vector.load %arg34[%c352_297, %c0_298] : memref<360x256xf32, #tpu.memory_space<vmem>>, vector<8x256xf32>
    tpu.vector_store %arg34[%c352_297, %c0_298], %435 {strides = array<i32>} : memref<360x256xf32, #tpu.memory_space<vmem>>, vector<8x256xf32>,
    %c0_299 = arith.constant 0 : index
    %c0_300 = arith.constant 0 : index
    %437 = vector.load %arg34[%c0_299, %c0_300] : memref<360x256xf32, #tpu.memory_space<vmem>>, vector<360x256xf32>
    %c0_301 = arith.constant 0 : index
    %c0_302 = arith.constant 0 : index
    %438 = vector.load %arg12[%c0_301, %c0_302] : memref<8x360xf32, #tpu.memory_space<vmem>>, vector<8x360xf32>
    %cst_303 = arith.constant dense<0.000000e+00> : vector<8x256xf32>
    %439 = tpu.matmul %438, %437, %cst_303 {dimension_numbers = #tpu.dot_dimension_numbers<[1], [0], [0], [1], [0, 0, 1, 1], [], []>} : vector<8x360xf32>, vector<360x256xf32>, vector<8x256xf32> -> vector<8x256xf32>
    %c0_304 = arith.constant 0 : index
    %c0_305 = arith.constant 0 : index
    %440 = vector.load %arg27[%c0_304, %c0_305] : memref<8x1xf32, #tpu.memory_space<vmem>>, vector<8x1xf32>
    %441 = vector.broadcast %440 : vector<8x1xf32> to vector<8x256xf32>
    %442 = arith.addf %439, %441 : vector<8x256xf32>
    %cst_306 = arith.constant 2.000000e-01 : f32
    %443 = vector.broadcast %cst_306 : f32 to vector<8x256xf32>
    %444 = arith.mulf %442, %443 : vector<8x256xf32>
    %445 = arith.addf %444, %227 : vector<8x256xf32>
    %c17_i32_307 = arith.constant 17 : i32
    %446 = tpu.dynamic_rotate %445 by %c17_i32_307 dim 1 : vector<8x256xf32>, i32 -> vector<8x256xf32>
    %447 = vector.broadcast %0 : vector<1x256xf32> to vector<8x256xf32>
    %448 = arith.mulf %446, %447 : vector<8x256xf32>
    %c0_308 = arith.constant 0 : index
    %c0_309 = arith.constant 0 : index
    %449 = vector.load %arg34[%c0_308, %c0_309] : memref<360x256xf32, #tpu.memory_space<vmem>>, vector<8x256xf32>
    tpu.vector_store %arg34[%c0_308, %c0_309], %448 {strides = array<i32>} : memref<360x256xf32, #tpu.memory_space<vmem>>, vector<8x256xf32>,
    %c16_i32_310 = arith.constant 16 : i32
    %450 = tpu.dynamic_rotate %445 by %c16_i32_310 dim 1 : vector<8x256xf32>, i32 -> vector<8x256xf32>
    %451 = vector.broadcast %1 : vector<1x256xf32> to vector<8x256xf32>
    %452 = arith.mulf %450, %451 : vector<8x256xf32>
    %c8_311 = arith.constant 8 : index
    %c0_312 = arith.constant 0 : index
    %453 = vector.load %arg34[%c8_311, %c0_312] : memref<360x256xf32, #tpu.memory_space<vmem>>, vector<8x256xf32>
    tpu.vector_store %arg34[%c8_311, %c0_312], %452 {strides = array<i32>} : memref<360x256xf32, #tpu.memory_space<vmem>>, vector<8x256xf32>,
    %c15_i32_313 = arith.constant 15 : i32
    %454 = tpu.dynamic_rotate %445 by %c15_i32_313 dim 1 : vector<8x256xf32>, i32 -> vector<8x256xf32>
    %455 = vector.broadcast %2 : vector<1x256xf32> to vector<8x256xf32>
    %456 = arith.mulf %454, %455 : vector<8x256xf32>
    %c16_314 = arith.constant 16 : index
    %c0_315 = arith.constant 0 : index
    %457 = vector.load %arg34[%c16_314, %c0_315] : memref<360x256xf32, #tpu.memory_space<vmem>>, vector<8x256xf32>
    tpu.vector_store %arg34[%c16_314, %c0_315], %456 {strides = array<i32>} : memref<360x256xf32, #tpu.memory_space<vmem>>, vector<8x256xf32>,
    %c1_i32_316 = arith.constant 1 : i32
    %458 = tpu.dynamic_rotate %445 by %c1_i32_316 dim 1 : vector<8x256xf32>, i32 -> vector<8x256xf32>
    %459 = vector.broadcast %3 : vector<1x256xf32> to vector<8x256xf32>
    %460 = arith.mulf %458, %459 : vector<8x256xf32>
    %c24_317 = arith.constant 24 : index
    %c0_318 = arith.constant 0 : index
    %461 = vector.load %arg34[%c24_317, %c0_318] : memref<360x256xf32, #tpu.memory_space<vmem>>, vector<8x256xf32>
    tpu.vector_store %arg34[%c24_317, %c0_318], %460 {strides = array<i32>} : memref<360x256xf32, #tpu.memory_space<vmem>>, vector<8x256xf32>,
    %c32_319 = arith.constant 32 : index
    %c0_320 = arith.constant 0 : index
    %462 = vector.load %arg34[%c32_319, %c0_320] : memref<360x256xf32, #tpu.memory_space<vmem>>, vector<8x256xf32>
    tpu.vector_store %arg34[%c32_319, %c0_320], %445 {strides = array<i32>} : memref<360x256xf32, #tpu.memory_space<vmem>>, vector<8x256xf32>,
    %c255_i32_321 = arith.constant 255 : i32
    %463 = tpu.dynamic_rotate %445 by %c255_i32_321 dim 1 : vector<8x256xf32>, i32 -> vector<8x256xf32>
    %464 = vector.broadcast %4 : vector<1x256xf32> to vector<8x256xf32>
    %465 = arith.mulf %463, %464 : vector<8x256xf32>
    %c40_322 = arith.constant 40 : index
    %c0_323 = arith.constant 0 : index
    %466 = vector.load %arg34[%c40_322, %c0_323] : memref<360x256xf32, #tpu.memory_space<vmem>>, vector<8x256xf32>
    tpu.vector_store %arg34[%c40_322, %c0_323], %465 {strides = array<i32>} : memref<360x256xf32, #tpu.memory_space<vmem>>, vector<8x256xf32>,
    %c241_i32_324 = arith.constant 241 : i32
    %467 = tpu.dynamic_rotate %445 by %c241_i32_324 dim 1 : vector<8x256xf32>, i32 -> vector<8x256xf32>
    %468 = vector.broadcast %5 : vector<1x256xf32> to vector<8x256xf32>
    %469 = arith.mulf %467, %468 : vector<8x256xf32>
    %c48_325 = arith.constant 48 : index
    %c0_326 = arith.constant 0 : index
    %470 = vector.load %arg34[%c48_325, %c0_326] : memref<360x256xf32, #tpu.memory_space<vmem>>, vector<8x256xf32>
    tpu.vector_store %arg34[%c48_325, %c0_326], %469 {strides = array<i32>} : memref<360x256xf32, #tpu.memory_space<vmem>>, vector<8x256xf32>,
    %c240_i32_327 = arith.constant 240 : i32
    %471 = tpu.dynamic_rotate %445 by %c240_i32_327 dim 1 : vector<8x256xf32>, i32 -> vector<8x256xf32>
    %472 = vector.broadcast %6 : vector<1x256xf32> to vector<8x256xf32>
    %473 = arith.mulf %471, %472 : vector<8x256xf32>
    %c56_328 = arith.constant 56 : index
    %c0_329 = arith.constant 0 : index
    %474 = vector.load %arg34[%c56_328, %c0_329] : memref<360x256xf32, #tpu.memory_space<vmem>>, vector<8x256xf32>
    tpu.vector_store %arg34[%c56_328, %c0_329], %473 {strides = array<i32>} : memref<360x256xf32, #tpu.memory_space<vmem>>, vector<8x256xf32>,
    %c239_i32_330 = arith.constant 239 : i32
    %475 = tpu.dynamic_rotate %445 by %c239_i32_330 dim 1 : vector<8x256xf32>, i32 -> vector<8x256xf32>
    %476 = vector.broadcast %7 : vector<1x256xf32> to vector<8x256xf32>
    %477 = arith.mulf %475, %476 : vector<8x256xf32>
    %c64_331 = arith.constant 64 : index
    %c0_332 = arith.constant 0 : index
    %478 = vector.load %arg34[%c64_331, %c0_332] : memref<360x256xf32, #tpu.memory_space<vmem>>, vector<8x256xf32>
    tpu.vector_store %arg34[%c64_331, %c0_332], %477 {strides = array<i32>} : memref<360x256xf32, #tpu.memory_space<vmem>>, vector<8x256xf32>,
    %c0_333 = arith.constant 0 : index
    %c0_334 = arith.constant 0 : index
    %479 = vector.load %arg34[%c0_333, %c0_334] : memref<360x256xf32, #tpu.memory_space<vmem>>, vector<72x256xf32>
    %c0_335 = arith.constant 0 : index
    %c0_336 = arith.constant 0 : index
    %480 = vector.load %arg13[%c0_335, %c0_336] : memref<8x72xf32, #tpu.memory_space<vmem>>, vector<8x72xf32>
    %cst_337 = arith.constant dense<0.000000e+00> : vector<8x256xf32>
    %481 = tpu.matmul %480, %479, %cst_337 {dimension_numbers = #tpu.dot_dimension_numbers<[1], [0], [0], [1], [0, 0, 1, 1], [], []>} : vector<8x72xf32>, vector<72x256xf32>, vector<8x256xf32> -> vector<8x256xf32>
    %c0_338 = arith.constant 0 : index
    %c0_339 = arith.constant 0 : index
    %482 = vector.load %arg28[%c0_338, %c0_339] : memref<8x1xf32, #tpu.memory_space<vmem>>, vector<8x1xf32>
    %483 = vector.broadcast %482 : vector<8x1xf32> to vector<8x256xf32>
    %484 = arith.addf %481, %483 : vector<8x256xf32>
    %cst_340 = arith.constant 0.000000e+00 : f32
    %485 = vector.broadcast %cst_340 : f32 to vector<8x256xf32>
    %486 = arith.cmpf oge, %484, %485 : vector<8x256xf32>
    %cst_341 = arith.constant 2.000000e-01 : f32
    %487 = vector.broadcast %cst_341 : f32 to vector<8x256xf32>
    %488 = arith.mulf %484, %487 : vector<8x256xf32>
    %489 = arith.select %486, %484, %488 : vector<8x256xi1>, vector<8x256xf32>
    %c17_i32_342 = arith.constant 17 : i32
    %490 = tpu.dynamic_rotate %489 by %c17_i32_342 dim 1 : vector<8x256xf32>, i32 -> vector<8x256xf32>
    %491 = vector.broadcast %0 : vector<1x256xf32> to vector<8x256xf32>
    %492 = arith.mulf %490, %491 : vector<8x256xf32>
    %c72_343 = arith.constant 72 : index
    %c0_344 = arith.constant 0 : index
    %493 = vector.load %arg34[%c72_343, %c0_344] : memref<360x256xf32, #tpu.memory_space<vmem>>, vector<8x256xf32>
    tpu.vector_store %arg34[%c72_343, %c0_344], %492 {strides = array<i32>} : memref<360x256xf32, #tpu.memory_space<vmem>>, vector<8x256xf32>,
    %c16_i32_345 = arith.constant 16 : i32
    %494 = tpu.dynamic_rotate %489 by %c16_i32_345 dim 1 : vector<8x256xf32>, i32 -> vector<8x256xf32>
    %495 = vector.broadcast %1 : vector<1x256xf32> to vector<8x256xf32>
    %496 = arith.mulf %494, %495 : vector<8x256xf32>
    %c80_346 = arith.constant 80 : index
    %c0_347 = arith.constant 0 : index
    %497 = vector.load %arg34[%c80_346, %c0_347] : memref<360x256xf32, #tpu.memory_space<vmem>>, vector<8x256xf32>
    tpu.vector_store %arg34[%c80_346, %c0_347], %496 {strides = array<i32>} : memref<360x256xf32, #tpu.memory_space<vmem>>, vector<8x256xf32>,
    %c15_i32_348 = arith.constant 15 : i32
    %498 = tpu.dynamic_rotate %489 by %c15_i32_348 dim 1 : vector<8x256xf32>, i32 -> vector<8x256xf32>
    %499 = vector.broadcast %2 : vector<1x256xf32> to vector<8x256xf32>
    %500 = arith.mulf %498, %499 : vector<8x256xf32>
    %c88_349 = arith.constant 88 : index
    %c0_350 = arith.constant 0 : index
    %501 = vector.load %arg34[%c88_349, %c0_350] : memref<360x256xf32, #tpu.memory_space<vmem>>, vector<8x256xf32>
    tpu.vector_store %arg34[%c88_349, %c0_350], %500 {strides = array<i32>} : memref<360x256xf32, #tpu.memory_space<vmem>>, vector<8x256xf32>,
    %c1_i32_351 = arith.constant 1 : i32
    %502 = tpu.dynamic_rotate %489 by %c1_i32_351 dim 1 : vector<8x256xf32>, i32 -> vector<8x256xf32>
    %503 = vector.broadcast %3 : vector<1x256xf32> to vector<8x256xf32>
    %504 = arith.mulf %502, %503 : vector<8x256xf32>
    %c96_352 = arith.constant 96 : index
    %c0_353 = arith.constant 0 : index
    %505 = vector.load %arg34[%c96_352, %c0_353] : memref<360x256xf32, #tpu.memory_space<vmem>>, vector<8x256xf32>
    tpu.vector_store %arg34[%c96_352, %c0_353], %504 {strides = array<i32>} : memref<360x256xf32, #tpu.memory_space<vmem>>, vector<8x256xf32>,
    %c104_354 = arith.constant 104 : index
    %c0_355 = arith.constant 0 : index
    %506 = vector.load %arg34[%c104_354, %c0_355] : memref<360x256xf32, #tpu.memory_space<vmem>>, vector<8x256xf32>
    tpu.vector_store %arg34[%c104_354, %c0_355], %489 {strides = array<i32>} : memref<360x256xf32, #tpu.memory_space<vmem>>, vector<8x256xf32>,
    %c255_i32_356 = arith.constant 255 : i32
    %507 = tpu.dynamic_rotate %489 by %c255_i32_356 dim 1 : vector<8x256xf32>, i32 -> vector<8x256xf32>
    %508 = vector.broadcast %4 : vector<1x256xf32> to vector<8x256xf32>
    %509 = arith.mulf %507, %508 : vector<8x256xf32>
    %c112_357 = arith.constant 112 : index
    %c0_358 = arith.constant 0 : index
    %510 = vector.load %arg34[%c112_357, %c0_358] : memref<360x256xf32, #tpu.memory_space<vmem>>, vector<8x256xf32>
    tpu.vector_store %arg34[%c112_357, %c0_358], %509 {strides = array<i32>} : memref<360x256xf32, #tpu.memory_space<vmem>>, vector<8x256xf32>,
    %c241_i32_359 = arith.constant 241 : i32
    %511 = tpu.dynamic_rotate %489 by %c241_i32_359 dim 1 : vector<8x256xf32>, i32 -> vector<8x256xf32>
    %512 = vector.broadcast %5 : vector<1x256xf32> to vector<8x256xf32>
    %513 = arith.mulf %511, %512 : vector<8x256xf32>
    %c120_360 = arith.constant 120 : index
    %c0_361 = arith.constant 0 : index
    %514 = vector.load %arg34[%c120_360, %c0_361] : memref<360x256xf32, #tpu.memory_space<vmem>>, vector<8x256xf32>
    tpu.vector_store %arg34[%c120_360, %c0_361], %513 {strides = array<i32>} : memref<360x256xf32, #tpu.memory_space<vmem>>, vector<8x256xf32>,
    %c240_i32_362 = arith.constant 240 : i32
    %515 = tpu.dynamic_rotate %489 by %c240_i32_362 dim 1 : vector<8x256xf32>, i32 -> vector<8x256xf32>
    %516 = vector.broadcast %6 : vector<1x256xf32> to vector<8x256xf32>
    %517 = arith.mulf %515, %516 : vector<8x256xf32>
    %c128_363 = arith.constant 128 : index
    %c0_364 = arith.constant 0 : index
    %518 = vector.load %arg34[%c128_363, %c0_364] : memref<360x256xf32, #tpu.memory_space<vmem>>, vector<8x256xf32>
    tpu.vector_store %arg34[%c128_363, %c0_364], %517 {strides = array<i32>} : memref<360x256xf32, #tpu.memory_space<vmem>>, vector<8x256xf32>,
    %c239_i32_365 = arith.constant 239 : i32
    %519 = tpu.dynamic_rotate %489 by %c239_i32_365 dim 1 : vector<8x256xf32>, i32 -> vector<8x256xf32>
    %520 = vector.broadcast %7 : vector<1x256xf32> to vector<8x256xf32>
    %521 = arith.mulf %519, %520 : vector<8x256xf32>
    %c136_366 = arith.constant 136 : index
    %c0_367 = arith.constant 0 : index
    %522 = vector.load %arg34[%c136_366, %c0_367] : memref<360x256xf32, #tpu.memory_space<vmem>>, vector<8x256xf32>
    tpu.vector_store %arg34[%c136_366, %c0_367], %521 {strides = array<i32>} : memref<360x256xf32, #tpu.memory_space<vmem>>, vector<8x256xf32>,
    %c0_368 = arith.constant 0 : index
    %c0_369 = arith.constant 0 : index
    %523 = vector.load %arg34[%c0_368, %c0_369] : memref<360x256xf32, #tpu.memory_space<vmem>>, vector<144x256xf32>
    %c0_370 = arith.constant 0 : index
    %c0_371 = arith.constant 0 : index
    %524 = vector.load %arg14[%c0_370, %c0_371] : memref<8x144xf32, #tpu.memory_space<vmem>>, vector<8x144xf32>
    %cst_372 = arith.constant dense<0.000000e+00> : vector<8x256xf32>
    %525 = tpu.matmul %524, %523, %cst_372 {dimension_numbers = #tpu.dot_dimension_numbers<[1], [0], [0], [1], [0, 0, 1, 1], [], []>} : vector<8x144xf32>, vector<144x256xf32>, vector<8x256xf32> -> vector<8x256xf32>
    %c0_373 = arith.constant 0 : index
    %c0_374 = arith.constant 0 : index
    %526 = vector.load %arg29[%c0_373, %c0_374] : memref<8x1xf32, #tpu.memory_space<vmem>>, vector<8x1xf32>
    %527 = vector.broadcast %526 : vector<8x1xf32> to vector<8x256xf32>
    %528 = arith.addf %525, %527 : vector<8x256xf32>
    %cst_375 = arith.constant 0.000000e+00 : f32
    %529 = vector.broadcast %cst_375 : f32 to vector<8x256xf32>
    %530 = arith.cmpf oge, %528, %529 : vector<8x256xf32>
    %cst_376 = arith.constant 2.000000e-01 : f32
    %531 = vector.broadcast %cst_376 : f32 to vector<8x256xf32>
    %532 = arith.mulf %528, %531 : vector<8x256xf32>
    %533 = arith.select %530, %528, %532 : vector<8x256xi1>, vector<8x256xf32>
    %c17_i32_377 = arith.constant 17 : i32
    %534 = tpu.dynamic_rotate %533 by %c17_i32_377 dim 1 : vector<8x256xf32>, i32 -> vector<8x256xf32>
    %535 = vector.broadcast %0 : vector<1x256xf32> to vector<8x256xf32>
    %536 = arith.mulf %534, %535 : vector<8x256xf32>
    %c144_378 = arith.constant 144 : index
    %c0_379 = arith.constant 0 : index
    %537 = vector.load %arg34[%c144_378, %c0_379] : memref<360x256xf32, #tpu.memory_space<vmem>>, vector<8x256xf32>
    tpu.vector_store %arg34[%c144_378, %c0_379], %536 {strides = array<i32>} : memref<360x256xf32, #tpu.memory_space<vmem>>, vector<8x256xf32>,
    %c16_i32_380 = arith.constant 16 : i32
    %538 = tpu.dynamic_rotate %533 by %c16_i32_380 dim 1 : vector<8x256xf32>, i32 -> vector<8x256xf32>
    %539 = vector.broadcast %1 : vector<1x256xf32> to vector<8x256xf32>
    %540 = arith.mulf %538, %539 : vector<8x256xf32>
    %c152_381 = arith.constant 152 : index
    %c0_382 = arith.constant 0 : index
    %541 = vector.load %arg34[%c152_381, %c0_382] : memref<360x256xf32, #tpu.memory_space<vmem>>, vector<8x256xf32>
    tpu.vector_store %arg34[%c152_381, %c0_382], %540 {strides = array<i32>} : memref<360x256xf32, #tpu.memory_space<vmem>>, vector<8x256xf32>,
    %c15_i32_383 = arith.constant 15 : i32
    %542 = tpu.dynamic_rotate %533 by %c15_i32_383 dim 1 : vector<8x256xf32>, i32 -> vector<8x256xf32>
    %543 = vector.broadcast %2 : vector<1x256xf32> to vector<8x256xf32>
    %544 = arith.mulf %542, %543 : vector<8x256xf32>
    %c160_384 = arith.constant 160 : index
    %c0_385 = arith.constant 0 : index
    %545 = vector.load %arg34[%c160_384, %c0_385] : memref<360x256xf32, #tpu.memory_space<vmem>>, vector<8x256xf32>
    tpu.vector_store %arg34[%c160_384, %c0_385], %544 {strides = array<i32>} : memref<360x256xf32, #tpu.memory_space<vmem>>, vector<8x256xf32>,
    %c1_i32_386 = arith.constant 1 : i32
    %546 = tpu.dynamic_rotate %533 by %c1_i32_386 dim 1 : vector<8x256xf32>, i32 -> vector<8x256xf32>
    %547 = vector.broadcast %3 : vector<1x256xf32> to vector<8x256xf32>
    %548 = arith.mulf %546, %547 : vector<8x256xf32>
    %c168_387 = arith.constant 168 : index
    %c0_388 = arith.constant 0 : index
    %549 = vector.load %arg34[%c168_387, %c0_388] : memref<360x256xf32, #tpu.memory_space<vmem>>, vector<8x256xf32>
    tpu.vector_store %arg34[%c168_387, %c0_388], %548 {strides = array<i32>} : memref<360x256xf32, #tpu.memory_space<vmem>>, vector<8x256xf32>,
    %c176_389 = arith.constant 176 : index
    %c0_390 = arith.constant 0 : index
    %550 = vector.load %arg34[%c176_389, %c0_390] : memref<360x256xf32, #tpu.memory_space<vmem>>, vector<8x256xf32>
    tpu.vector_store %arg34[%c176_389, %c0_390], %533 {strides = array<i32>} : memref<360x256xf32, #tpu.memory_space<vmem>>, vector<8x256xf32>,
    %c255_i32_391 = arith.constant 255 : i32
    %551 = tpu.dynamic_rotate %533 by %c255_i32_391 dim 1 : vector<8x256xf32>, i32 -> vector<8x256xf32>
    %552 = vector.broadcast %4 : vector<1x256xf32> to vector<8x256xf32>
    %553 = arith.mulf %551, %552 : vector<8x256xf32>
    %c184_392 = arith.constant 184 : index
    %c0_393 = arith.constant 0 : index
    %554 = vector.load %arg34[%c184_392, %c0_393] : memref<360x256xf32, #tpu.memory_space<vmem>>, vector<8x256xf32>
    tpu.vector_store %arg34[%c184_392, %c0_393], %553 {strides = array<i32>} : memref<360x256xf32, #tpu.memory_space<vmem>>, vector<8x256xf32>,
    %c241_i32_394 = arith.constant 241 : i32
    %555 = tpu.dynamic_rotate %533 by %c241_i32_394 dim 1 : vector<8x256xf32>, i32 -> vector<8x256xf32>
    %556 = vector.broadcast %5 : vector<1x256xf32> to vector<8x256xf32>
    %557 = arith.mulf %555, %556 : vector<8x256xf32>
    %c192_395 = arith.constant 192 : index
    %c0_396 = arith.constant 0 : index
    %558 = vector.load %arg34[%c192_395, %c0_396] : memref<360x256xf32, #tpu.memory_space<vmem>>, vector<8x256xf32>
    tpu.vector_store %arg34[%c192_395, %c0_396], %557 {strides = array<i32>} : memref<360x256xf32, #tpu.memory_space<vmem>>, vector<8x256xf32>,
    %c240_i32_397 = arith.constant 240 : i32
    %559 = tpu.dynamic_rotate %533 by %c240_i32_397 dim 1 : vector<8x256xf32>, i32 -> vector<8x256xf32>
    %560 = vector.broadcast %6 : vector<1x256xf32> to vector<8x256xf32>
    %561 = arith.mulf %559, %560 : vector<8x256xf32>
    %c200_398 = arith.constant 200 : index
    %c0_399 = arith.constant 0 : index
    %562 = vector.load %arg34[%c200_398, %c0_399] : memref<360x256xf32, #tpu.memory_space<vmem>>, vector<8x256xf32>
    tpu.vector_store %arg34[%c200_398, %c0_399], %561 {strides = array<i32>} : memref<360x256xf32, #tpu.memory_space<vmem>>, vector<8x256xf32>,
    %c239_i32_400 = arith.constant 239 : i32
    %563 = tpu.dynamic_rotate %533 by %c239_i32_400 dim 1 : vector<8x256xf32>, i32 -> vector<8x256xf32>
    %564 = vector.broadcast %7 : vector<1x256xf32> to vector<8x256xf32>
    %565 = arith.mulf %563, %564 : vector<8x256xf32>
    %c208_401 = arith.constant 208 : index
    %c0_402 = arith.constant 0 : index
    %566 = vector.load %arg34[%c208_401, %c0_402] : memref<360x256xf32, #tpu.memory_space<vmem>>, vector<8x256xf32>
    tpu.vector_store %arg34[%c208_401, %c0_402], %565 {strides = array<i32>} : memref<360x256xf32, #tpu.memory_space<vmem>>, vector<8x256xf32>,
    %c0_403 = arith.constant 0 : index
    %c0_404 = arith.constant 0 : index
    %567 = vector.load %arg34[%c0_403, %c0_404] : memref<360x256xf32, #tpu.memory_space<vmem>>, vector<216x256xf32>
    %c0_405 = arith.constant 0 : index
    %c0_406 = arith.constant 0 : index
    %568 = vector.load %arg15[%c0_405, %c0_406] : memref<8x216xf32, #tpu.memory_space<vmem>>, vector<8x216xf32>
    %cst_407 = arith.constant dense<0.000000e+00> : vector<8x256xf32>
    %569 = tpu.matmul %568, %567, %cst_407 {dimension_numbers = #tpu.dot_dimension_numbers<[1], [0], [0], [1], [0, 0, 1, 1], [], []>} : vector<8x216xf32>, vector<216x256xf32>, vector<8x256xf32> -> vector<8x256xf32>
    %c0_408 = arith.constant 0 : index
    %c0_409 = arith.constant 0 : index
    %570 = vector.load %arg30[%c0_408, %c0_409] : memref<8x1xf32, #tpu.memory_space<vmem>>, vector<8x1xf32>
    %571 = vector.broadcast %570 : vector<8x1xf32> to vector<8x256xf32>
    %572 = arith.addf %569, %571 : vector<8x256xf32>
    %cst_410 = arith.constant 0.000000e+00 : f32
    %573 = vector.broadcast %cst_410 : f32 to vector<8x256xf32>
    %574 = arith.cmpf oge, %572, %573 : vector<8x256xf32>
    %cst_411 = arith.constant 2.000000e-01 : f32
    %575 = vector.broadcast %cst_411 : f32 to vector<8x256xf32>
    %576 = arith.mulf %572, %575 : vector<8x256xf32>
    %577 = arith.select %574, %572, %576 : vector<8x256xi1>, vector<8x256xf32>
    %c17_i32_412 = arith.constant 17 : i32
    %578 = tpu.dynamic_rotate %577 by %c17_i32_412 dim 1 : vector<8x256xf32>, i32 -> vector<8x256xf32>
    %579 = vector.broadcast %0 : vector<1x256xf32> to vector<8x256xf32>
    %580 = arith.mulf %578, %579 : vector<8x256xf32>
    %c216_413 = arith.constant 216 : index
    %c0_414 = arith.constant 0 : index
    %581 = vector.load %arg34[%c216_413, %c0_414] : memref<360x256xf32, #tpu.memory_space<vmem>>, vector<8x256xf32>
    tpu.vector_store %arg34[%c216_413, %c0_414], %580 {strides = array<i32>} : memref<360x256xf32, #tpu.memory_space<vmem>>, vector<8x256xf32>,
    %c16_i32_415 = arith.constant 16 : i32
    %582 = tpu.dynamic_rotate %577 by %c16_i32_415 dim 1 : vector<8x256xf32>, i32 -> vector<8x256xf32>
    %583 = vector.broadcast %1 : vector<1x256xf32> to vector<8x256xf32>
    %584 = arith.mulf %582, %583 : vector<8x256xf32>
    %c224_416 = arith.constant 224 : index
    %c0_417 = arith.constant 0 : index
    %585 = vector.load %arg34[%c224_416, %c0_417] : memref<360x256xf32, #tpu.memory_space<vmem>>, vector<8x256xf32>
    tpu.vector_store %arg34[%c224_416, %c0_417], %584 {strides = array<i32>} : memref<360x256xf32, #tpu.memory_space<vmem>>, vector<8x256xf32>,
    %c15_i32_418 = arith.constant 15 : i32
    %586 = tpu.dynamic_rotate %577 by %c15_i32_418 dim 1 : vector<8x256xf32>, i32 -> vector<8x256xf32>
    %587 = vector.broadcast %2 : vector<1x256xf32> to vector<8x256xf32>
    %588 = arith.mulf %586, %587 : vector<8x256xf32>
    %c232_419 = arith.constant 232 : index
    %c0_420 = arith.constant 0 : index
    %589 = vector.load %arg34[%c232_419, %c0_420] : memref<360x256xf32, #tpu.memory_space<vmem>>, vector<8x256xf32>
    tpu.vector_store %arg34[%c232_419, %c0_420], %588 {strides = array<i32>} : memref<360x256xf32, #tpu.memory_space<vmem>>, vector<8x256xf32>,
    %c1_i32_421 = arith.constant 1 : i32
    %590 = tpu.dynamic_rotate %577 by %c1_i32_421 dim 1 : vector<8x256xf32>, i32 -> vector<8x256xf32>
    %591 = vector.broadcast %3 : vector<1x256xf32> to vector<8x256xf32>
    %592 = arith.mulf %590, %591 : vector<8x256xf32>
    %c240_422 = arith.constant 240 : index
    %c0_423 = arith.constant 0 : index
    %593 = vector.load %arg34[%c240_422, %c0_423] : memref<360x256xf32, #tpu.memory_space<vmem>>, vector<8x256xf32>
    tpu.vector_store %arg34[%c240_422, %c0_423], %592 {strides = array<i32>} : memref<360x256xf32, #tpu.memory_space<vmem>>, vector<8x256xf32>,
    %c248_424 = arith.constant 248 : index
    %c0_425 = arith.constant 0 : index
    %594 = vector.load %arg34[%c248_424, %c0_425] : memref<360x256xf32, #tpu.memory_space<vmem>>, vector<8x256xf32>
    tpu.vector_store %arg34[%c248_424, %c0_425], %577 {strides = array<i32>} : memref<360x256xf32, #tpu.memory_space<vmem>>, vector<8x256xf32>,
    %c255_i32_426 = arith.constant 255 : i32
    %595 = tpu.dynamic_rotate %577 by %c255_i32_426 dim 1 : vector<8x256xf32>, i32 -> vector<8x256xf32>
    %596 = vector.broadcast %4 : vector<1x256xf32> to vector<8x256xf32>
    %597 = arith.mulf %595, %596 : vector<8x256xf32>
    %c256_427 = arith.constant 256 : index
    %c0_428 = arith.constant 0 : index
    %598 = vector.load %arg34[%c256_427, %c0_428] : memref<360x256xf32, #tpu.memory_space<vmem>>, vector<8x256xf32>
    tpu.vector_store %arg34[%c256_427, %c0_428], %597 {strides = array<i32>} : memref<360x256xf32, #tpu.memory_space<vmem>>, vector<8x256xf32>,
    %c241_i32_429 = arith.constant 241 : i32
    %599 = tpu.dynamic_rotate %577 by %c241_i32_429 dim 1 : vector<8x256xf32>, i32 -> vector<8x256xf32>
    %600 = vector.broadcast %5 : vector<1x256xf32> to vector<8x256xf32>
    %601 = arith.mulf %599, %600 : vector<8x256xf32>
    %c264_430 = arith.constant 264 : index
    %c0_431 = arith.constant 0 : index
    %602 = vector.load %arg34[%c264_430, %c0_431] : memref<360x256xf32, #tpu.memory_space<vmem>>, vector<8x256xf32>
    tpu.vector_store %arg34[%c264_430, %c0_431], %601 {strides = array<i32>} : memref<360x256xf32, #tpu.memory_space<vmem>>, vector<8x256xf32>,
    %c240_i32_432 = arith.constant 240 : i32
    %603 = tpu.dynamic_rotate %577 by %c240_i32_432 dim 1 : vector<8x256xf32>, i32 -> vector<8x256xf32>
    %604 = vector.broadcast %6 : vector<1x256xf32> to vector<8x256xf32>
    %605 = arith.mulf %603, %604 : vector<8x256xf32>
    %c272_433 = arith.constant 272 : index
    %c0_434 = arith.constant 0 : index
    %606 = vector.load %arg34[%c272_433, %c0_434] : memref<360x256xf32, #tpu.memory_space<vmem>>, vector<8x256xf32>
    tpu.vector_store %arg34[%c272_433, %c0_434], %605 {strides = array<i32>} : memref<360x256xf32, #tpu.memory_space<vmem>>, vector<8x256xf32>,
    %c239_i32_435 = arith.constant 239 : i32
    %607 = tpu.dynamic_rotate %577 by %c239_i32_435 dim 1 : vector<8x256xf32>, i32 -> vector<8x256xf32>
    %608 = vector.broadcast %7 : vector<1x256xf32> to vector<8x256xf32>
    %609 = arith.mulf %607, %608 : vector<8x256xf32>
    %c280_436 = arith.constant 280 : index
    %c0_437 = arith.constant 0 : index
    %610 = vector.load %arg34[%c280_436, %c0_437] : memref<360x256xf32, #tpu.memory_space<vmem>>, vector<8x256xf32>
    tpu.vector_store %arg34[%c280_436, %c0_437], %609 {strides = array<i32>} : memref<360x256xf32, #tpu.memory_space<vmem>>, vector<8x256xf32>,
    %c0_438 = arith.constant 0 : index
    %c0_439 = arith.constant 0 : index
    %611 = vector.load %arg34[%c0_438, %c0_439] : memref<360x256xf32, #tpu.memory_space<vmem>>, vector<288x256xf32>
    %c0_440 = arith.constant 0 : index
    %c0_441 = arith.constant 0 : index
    %612 = vector.load %arg16[%c0_440, %c0_441] : memref<8x288xf32, #tpu.memory_space<vmem>>, vector<8x288xf32>
    %cst_442 = arith.constant dense<0.000000e+00> : vector<8x256xf32>
    %613 = tpu.matmul %612, %611, %cst_442 {dimension_numbers = #tpu.dot_dimension_numbers<[1], [0], [0], [1], [0, 0, 1, 1], [], []>} : vector<8x288xf32>, vector<288x256xf32>, vector<8x256xf32> -> vector<8x256xf32>
    %c0_443 = arith.constant 0 : index
    %c0_444 = arith.constant 0 : index
    %614 = vector.load %arg31[%c0_443, %c0_444] : memref<8x1xf32, #tpu.memory_space<vmem>>, vector<8x1xf32>
    %615 = vector.broadcast %614 : vector<8x1xf32> to vector<8x256xf32>
    %616 = arith.addf %613, %615 : vector<8x256xf32>
    %cst_445 = arith.constant 0.000000e+00 : f32
    %617 = vector.broadcast %cst_445 : f32 to vector<8x256xf32>
    %618 = arith.cmpf oge, %616, %617 : vector<8x256xf32>
    %cst_446 = arith.constant 2.000000e-01 : f32
    %619 = vector.broadcast %cst_446 : f32 to vector<8x256xf32>
    %620 = arith.mulf %616, %619 : vector<8x256xf32>
    %621 = arith.select %618, %616, %620 : vector<8x256xi1>, vector<8x256xf32>
    %c17_i32_447 = arith.constant 17 : i32
    %622 = tpu.dynamic_rotate %621 by %c17_i32_447 dim 1 : vector<8x256xf32>, i32 -> vector<8x256xf32>
    %623 = vector.broadcast %0 : vector<1x256xf32> to vector<8x256xf32>
    %624 = arith.mulf %622, %623 : vector<8x256xf32>
    %c288_448 = arith.constant 288 : index
    %c0_449 = arith.constant 0 : index
    %625 = vector.load %arg34[%c288_448, %c0_449] : memref<360x256xf32, #tpu.memory_space<vmem>>, vector<8x256xf32>
    tpu.vector_store %arg34[%c288_448, %c0_449], %624 {strides = array<i32>} : memref<360x256xf32, #tpu.memory_space<vmem>>, vector<8x256xf32>,
    %c16_i32_450 = arith.constant 16 : i32
    %626 = tpu.dynamic_rotate %621 by %c16_i32_450 dim 1 : vector<8x256xf32>, i32 -> vector<8x256xf32>
    %627 = vector.broadcast %1 : vector<1x256xf32> to vector<8x256xf32>
    %628 = arith.mulf %626, %627 : vector<8x256xf32>
    %c296_451 = arith.constant 296 : index
    %c0_452 = arith.constant 0 : index
    %629 = vector.load %arg34[%c296_451, %c0_452] : memref<360x256xf32, #tpu.memory_space<vmem>>, vector<8x256xf32>
    tpu.vector_store %arg34[%c296_451, %c0_452], %628 {strides = array<i32>} : memref<360x256xf32, #tpu.memory_space<vmem>>, vector<8x256xf32>,
    %c15_i32_453 = arith.constant 15 : i32
    %630 = tpu.dynamic_rotate %621 by %c15_i32_453 dim 1 : vector<8x256xf32>, i32 -> vector<8x256xf32>
    %631 = vector.broadcast %2 : vector<1x256xf32> to vector<8x256xf32>
    %632 = arith.mulf %630, %631 : vector<8x256xf32>
    %c304_454 = arith.constant 304 : index
    %c0_455 = arith.constant 0 : index
    %633 = vector.load %arg34[%c304_454, %c0_455] : memref<360x256xf32, #tpu.memory_space<vmem>>, vector<8x256xf32>
    tpu.vector_store %arg34[%c304_454, %c0_455], %632 {strides = array<i32>} : memref<360x256xf32, #tpu.memory_space<vmem>>, vector<8x256xf32>,
    %c1_i32_456 = arith.constant 1 : i32
    %634 = tpu.dynamic_rotate %621 by %c1_i32_456 dim 1 : vector<8x256xf32>, i32 -> vector<8x256xf32>
    %635 = vector.broadcast %3 : vector<1x256xf32> to vector<8x256xf32>
    %636 = arith.mulf %634, %635 : vector<8x256xf32>
    %c312_457 = arith.constant 312 : index
    %c0_458 = arith.constant 0 : index
    %637 = vector.load %arg34[%c312_457, %c0_458] : memref<360x256xf32, #tpu.memory_space<vmem>>, vector<8x256xf32>
    tpu.vector_store %arg34[%c312_457, %c0_458], %636 {strides = array<i32>} : memref<360x256xf32, #tpu.memory_space<vmem>>, vector<8x256xf32>,
    %c320_459 = arith.constant 320 : index
    %c0_460 = arith.constant 0 : index
    %638 = vector.load %arg34[%c320_459, %c0_460] : memref<360x256xf32, #tpu.memory_space<vmem>>, vector<8x256xf32>
    tpu.vector_store %arg34[%c320_459, %c0_460], %621 {strides = array<i32>} : memref<360x256xf32, #tpu.memory_space<vmem>>, vector<8x256xf32>,
    %c255_i32_461 = arith.constant 255 : i32
    %639 = tpu.dynamic_rotate %621 by %c255_i32_461 dim 1 : vector<8x256xf32>, i32 -> vector<8x256xf32>
    %640 = vector.broadcast %4 : vector<1x256xf32> to vector<8x256xf32>
    %641 = arith.mulf %639, %640 : vector<8x256xf32>
    %c328_462 = arith.constant 328 : index
    %c0_463 = arith.constant 0 : index
    %642 = vector.load %arg34[%c328_462, %c0_463] : memref<360x256xf32, #tpu.memory_space<vmem>>, vector<8x256xf32>
    tpu.vector_store %arg34[%c328_462, %c0_463], %641 {strides = array<i32>} : memref<360x256xf32, #tpu.memory_space<vmem>>, vector<8x256xf32>,
    %c241_i32_464 = arith.constant 241 : i32
    %643 = tpu.dynamic_rotate %621 by %c241_i32_464 dim 1 : vector<8x256xf32>, i32 -> vector<8x256xf32>
    %644 = vector.broadcast %5 : vector<1x256xf32> to vector<8x256xf32>
    %645 = arith.mulf %643, %644 : vector<8x256xf32>
    %c336_465 = arith.constant 336 : index
    %c0_466 = arith.constant 0 : index
    %646 = vector.load %arg34[%c336_465, %c0_466] : memref<360x256xf32, #tpu.memory_space<vmem>>, vector<8x256xf32>
    tpu.vector_store %arg34[%c336_465, %c0_466], %645 {strides = array<i32>} : memref<360x256xf32, #tpu.memory_space<vmem>>, vector<8x256xf32>,
    %c240_i32_467 = arith.constant 240 : i32
    %647 = tpu.dynamic_rotate %621 by %c240_i32_467 dim 1 : vector<8x256xf32>, i32 -> vector<8x256xf32>
    %648 = vector.broadcast %6 : vector<1x256xf32> to vector<8x256xf32>
    %649 = arith.mulf %647, %648 : vector<8x256xf32>
    %c344_468 = arith.constant 344 : index
    %c0_469 = arith.constant 0 : index
    %650 = vector.load %arg34[%c344_468, %c0_469] : memref<360x256xf32, #tpu.memory_space<vmem>>, vector<8x256xf32>
    tpu.vector_store %arg34[%c344_468, %c0_469], %649 {strides = array<i32>} : memref<360x256xf32, #tpu.memory_space<vmem>>, vector<8x256xf32>,
    %c239_i32_470 = arith.constant 239 : i32
    %651 = tpu.dynamic_rotate %621 by %c239_i32_470 dim 1 : vector<8x256xf32>, i32 -> vector<8x256xf32>
    %652 = vector.broadcast %7 : vector<1x256xf32> to vector<8x256xf32>
    %653 = arith.mulf %651, %652 : vector<8x256xf32>
    %c352_471 = arith.constant 352 : index
    %c0_472 = arith.constant 0 : index
    %654 = vector.load %arg34[%c352_471, %c0_472] : memref<360x256xf32, #tpu.memory_space<vmem>>, vector<8x256xf32>
    tpu.vector_store %arg34[%c352_471, %c0_472], %653 {strides = array<i32>} : memref<360x256xf32, #tpu.memory_space<vmem>>, vector<8x256xf32>,
    %c0_473 = arith.constant 0 : index
    %c0_474 = arith.constant 0 : index
    %655 = vector.load %arg34[%c0_473, %c0_474] : memref<360x256xf32, #tpu.memory_space<vmem>>, vector<360x256xf32>
    %c0_475 = arith.constant 0 : index
    %c0_476 = arith.constant 0 : index
    %656 = vector.load %arg17[%c0_475, %c0_476] : memref<8x360xf32, #tpu.memory_space<vmem>>, vector<8x360xf32>
    %cst_477 = arith.constant dense<0.000000e+00> : vector<8x256xf32>
    %657 = tpu.matmul %656, %655, %cst_477 {dimension_numbers = #tpu.dot_dimension_numbers<[1], [0], [0], [1], [0, 0, 1, 1], [], []>} : vector<8x360xf32>, vector<360x256xf32>, vector<8x256xf32> -> vector<8x256xf32>
    %c0_478 = arith.constant 0 : index
    %c0_479 = arith.constant 0 : index
    %658 = vector.load %arg32[%c0_478, %c0_479] : memref<8x1xf32, #tpu.memory_space<vmem>>, vector<8x1xf32>
    %659 = vector.broadcast %658 : vector<8x1xf32> to vector<8x256xf32>
    %660 = arith.addf %657, %659 : vector<8x256xf32>
    %cst_480 = arith.constant 2.000000e-01 : f32
    %661 = vector.broadcast %cst_480 : f32 to vector<8x256xf32>
    %662 = arith.mulf %660, %661 : vector<8x256xf32>
    %663 = arith.addf %662, %445 : vector<8x256xf32>
    %cst_481 = arith.constant 2.000000e-01 : f32
    %664 = vector.broadcast %cst_481 : f32 to vector<8x256xf32>
    %665 = arith.mulf %663, %664 : vector<8x256xf32>
    %666 = arith.addf %665, %9 : vector<8x256xf32>
    %c0_482 = arith.constant 0 : index
    %c0_483 = arith.constant 0 : index
    %c0_484 = arith.constant 0 : index
    %667 = vector.load %arg33[%c0_482, %c0_483, %c0_484] : memref<1x8x256xf32, #tpu.memory_space<vmem>>, vector<1x8x256xf32>
    %668 = vector.shape_cast %667 : vector<1x8x256xf32> to vector<8x256xf32>
    %669 = vector.shape_cast %666 : vector<8x256xf32> to vector<1x8x256xf32>
    tpu.vector_store %arg33[%c0_482, %c0_483, %c0_484], %669 {strides = array<i32>} : memref<1x8x256xf32, #tpu.memory_space<vmem>>, vector<1x8x256xf32>,
    return
  }
  func.func @transform_0(%arg0: i32) -> (i32, i32, i32) {
    %c0_i32 = arith.constant 0 : i32
    %c0_i32_0 = arith.constant 0 : i32
    %c0_i32_1 = arith.constant 0 : i32
    return %arg0, %c0_i32, %c0_i32_0 : i32, i32, i32
  }
  func.func @transform_1(%arg0: i32) -> (i32, i32) {
    %c0_i32 = arith.constant 0 : i32
    %c0_i32_0 = arith.constant 0 : i32
    %c0_i32_1 = arith.constant 0 : i32
    return %c0_i32, %c0_i32_0 : i32, i32
  }
  func.func @transform_2(%arg0: i32) -> (i32, i32) {
    %c0_i32 = arith.constant 0 : i32
    %c0_i32_0 = arith.constant 0 : i32
    %c0_i32_1 = arith.constant 0 : i32
    return %c0_i32, %c0_i32_0 : i32, i32
  }
  func.func @transform_3(%arg0: i32) -> (i32, i32) {
    %c0_i32 = arith.constant 0 : i32
    %c0_i32_0 = arith.constant 0 : i32
    %c0_i32_1 = arith.constant 0 : i32
    return %c0_i32, %c0_i32_0 : i32, i32
  }
  func.func @transform_4(%arg0: i32) -> (i32, i32) {
    %c0_i32 = arith.constant 0 : i32
    %c0_i32_0 = arith.constant 0 : i32
    %c0_i32_1 = arith.constant 0 : i32
    return %c0_i32, %c0_i32_0 : i32, i32
  }
  func.func @transform_5(%arg0: i32) -> (i32, i32) {
    %c0_i32 = arith.constant 0 : i32
    %c0_i32_0 = arith.constant 0 : i32
    %c0_i32_1 = arith.constant 0 : i32
    return %c0_i32, %c0_i32_0 : i32, i32
  }
  func.func @transform_6(%arg0: i32) -> (i32, i32) {
    %c0_i32 = arith.constant 0 : i32
    %c0_i32_0 = arith.constant 0 : i32
    %c0_i32_1 = arith.constant 0 : i32
    return %c0_i32, %c0_i32_0 : i32, i32
  }
  func.func @transform_7(%arg0: i32) -> (i32, i32) {
    %c0_i32 = arith.constant 0 : i32
    %c0_i32_0 = arith.constant 0 : i32
    %c0_i32_1 = arith.constant 0 : i32
    return %c0_i32, %c0_i32_0 : i32, i32
  }
  func.func @transform_8(%arg0: i32) -> (i32, i32) {
    %c0_i32 = arith.constant 0 : i32
    %c0_i32_0 = arith.constant 0 : i32
    %c0_i32_1 = arith.constant 0 : i32
    return %c0_i32, %c0_i32_0 : i32, i32
  }
  func.func @transform_9(%arg0: i32) -> (i32, i32) {
    %c0_i32 = arith.constant 0 : i32
    %c0_i32_0 = arith.constant 0 : i32
    %c0_i32_1 = arith.constant 0 : i32
    return %c0_i32, %c0_i32_0 : i32, i32
  }
  func.func @transform_10(%arg0: i32) -> (i32, i32) {
    %c0_i32 = arith.constant 0 : i32
    %c0_i32_0 = arith.constant 0 : i32
    %c0_i32_1 = arith.constant 0 : i32
    return %c0_i32, %c0_i32_0 : i32, i32
  }
  func.func @transform_11(%arg0: i32) -> (i32, i32) {
    %c0_i32 = arith.constant 0 : i32
    %c0_i32_0 = arith.constant 0 : i32
    %c0_i32_1 = arith.constant 0 : i32
    return %c0_i32, %c0_i32_0 : i32, i32
  }
  func.func @transform_12(%arg0: i32) -> (i32, i32) {
    %c0_i32 = arith.constant 0 : i32
    %c0_i32_0 = arith.constant 0 : i32
    %c0_i32_1 = arith.constant 0 : i32
    return %c0_i32, %c0_i32_0 : i32, i32
  }
  func.func @transform_13(%arg0: i32) -> (i32, i32) {
    %c0_i32 = arith.constant 0 : i32
    %c0_i32_0 = arith.constant 0 : i32
    %c0_i32_1 = arith.constant 0 : i32
    return %c0_i32, %c0_i32_0 : i32, i32
  }
  func.func @transform_14(%arg0: i32) -> (i32, i32) {
    %c0_i32 = arith.constant 0 : i32
    %c0_i32_0 = arith.constant 0 : i32
    %c0_i32_1 = arith.constant 0 : i32
    return %c0_i32, %c0_i32_0 : i32, i32
  }
  func.func @transform_15(%arg0: i32) -> (i32, i32) {
    %c0_i32 = arith.constant 0 : i32
    %c0_i32_0 = arith.constant 0 : i32
    %c0_i32_1 = arith.constant 0 : i32
    return %c0_i32, %c0_i32_0 : i32, i32
  }
  func.func @transform_16(%arg0: i32) -> (i32, i32) {
    %c0_i32 = arith.constant 0 : i32
    %c0_i32_0 = arith.constant 0 : i32
    %c0_i32_1 = arith.constant 0 : i32
    return %c0_i32, %c0_i32_0 : i32, i32
  }
  func.func @transform_17(%arg0: i32) -> (i32, i32) {
    %c0_i32 = arith.constant 0 : i32
    %c0_i32_0 = arith.constant 0 : i32
    %c0_i32_1 = arith.constant 0 : i32
    return %c0_i32, %c0_i32_0 : i32, i32
  }
  func.func @transform_18(%arg0: i32) -> (i32, i32) {
    %c0_i32 = arith.constant 0 : i32
    %c0_i32_0 = arith.constant 0 : i32
    %c0_i32_1 = arith.constant 0 : i32
    return %c0_i32, %c0_i32_0 : i32, i32
  }
  func.func @transform_19(%arg0: i32) -> (i32, i32) {
    %c0_i32 = arith.constant 0 : i32
    %c0_i32_0 = arith.constant 0 : i32
    %c0_i32_1 = arith.constant 0 : i32
    return %c0_i32, %c0_i32_0 : i32, i32
  }
  func.func @transform_20(%arg0: i32) -> (i32, i32) {
    %c0_i32 = arith.constant 0 : i32
    %c0_i32_0 = arith.constant 0 : i32
    %c0_i32_1 = arith.constant 0 : i32
    return %c0_i32, %c0_i32_0 : i32, i32
  }
  func.func @transform_21(%arg0: i32) -> (i32, i32) {
    %c0_i32 = arith.constant 0 : i32
    %c0_i32_0 = arith.constant 0 : i32
    %c0_i32_1 = arith.constant 0 : i32
    return %c0_i32, %c0_i32_0 : i32, i32
  }
  func.func @transform_22(%arg0: i32) -> (i32, i32) {
    %c0_i32 = arith.constant 0 : i32
    %c0_i32_0 = arith.constant 0 : i32
    %c0_i32_1 = arith.constant 0 : i32
    return %c0_i32, %c0_i32_0 : i32, i32
  }
  func.func @transform_23(%arg0: i32) -> (i32, i32) {
    %c0_i32 = arith.constant 0 : i32
    %c0_i32_0 = arith.constant 0 : i32
    %c0_i32_1 = arith.constant 0 : i32
    return %c0_i32, %c0_i32_0 : i32, i32
  }
  func.func @transform_24(%arg0: i32) -> (i32, i32) {
    %c0_i32 = arith.constant 0 : i32
    %c0_i32_0 = arith.constant 0 : i32
    %c0_i32_1 = arith.constant 0 : i32
    return %c0_i32, %c0_i32_0 : i32, i32
  }
  func.func @transform_25(%arg0: i32) -> (i32, i32) {
    %c0_i32 = arith.constant 0 : i32
    %c0_i32_0 = arith.constant 0 : i32
    %c0_i32_1 = arith.constant 0 : i32
    return %c0_i32, %c0_i32_0 : i32, i32
  }
  func.func @transform_26(%arg0: i32) -> (i32, i32) {
    %c0_i32 = arith.constant 0 : i32
    %c0_i32_0 = arith.constant 0 : i32
    %c0_i32_1 = arith.constant 0 : i32
    return %c0_i32, %c0_i32_0 : i32, i32
  }
  func.func @transform_27(%arg0: i32) -> (i32, i32) {
    %c0_i32 = arith.constant 0 : i32
    %c0_i32_0 = arith.constant 0 : i32
    %c0_i32_1 = arith.constant 0 : i32
    return %c0_i32, %c0_i32_0 : i32, i32
  }
  func.func @transform_28(%arg0: i32) -> (i32, i32) {
    %c0_i32 = arith.constant 0 : i32
    %c0_i32_0 = arith.constant 0 : i32
    %c0_i32_1 = arith.constant 0 : i32
    return %c0_i32, %c0_i32_0 : i32, i32
  }
  func.func @transform_29(%arg0: i32) -> (i32, i32) {
    %c0_i32 = arith.constant 0 : i32
    %c0_i32_0 = arith.constant 0 : i32
    %c0_i32_1 = arith.constant 0 : i32
    return %c0_i32, %c0_i32_0 : i32, i32
  }
  func.func @transform_30(%arg0: i32) -> (i32, i32) {
    %c0_i32 = arith.constant 0 : i32
    %c0_i32_0 = arith.constant 0 : i32
    %c0_i32_1 = arith.constant 0 : i32
    return %c0_i32, %c0_i32_0 : i32, i32
  }
  func.func @transform_31(%arg0: i32) -> (i32, i32) {
    %c0_i32 = arith.constant 0 : i32
    %c0_i32_0 = arith.constant 0 : i32
    %c0_i32_1 = arith.constant 0 : i32
    return %c0_i32, %c0_i32_0 : i32, i32
  }
  func.func @transform_32(%arg0: i32) -> (i32, i32, i32) {
    %c0_i32 = arith.constant 0 : i32
    %c0_i32_0 = arith.constant 0 : i32
    %c0_i32_1 = arith.constant 0 : i32
    return %arg0, %c0_i32, %c0_i32_0 : i32, i32, i32
  }
}

</mosaic_0001>

<llo_original>
// kernel: rrdb_forward_nchw.1
$region0: #{rrdb_forward_nchw.1}
  #allocation0 [shape = 'u32[]', space=smem, size = 0x4, offset = 0x4, fixed_abs, tag = 'smem constant byte address 0x4 - core index']
  #allocation1 [shape = 'u32[144,128]{1,0:T(1,128)}', space=vmem, size = 0x12000, scoped, tag = 'internal scratch']
  #allocation2 [shape = 'f32[360,256]{1,0:T(8,128)}', space=vmem, size = 0x5a000, scoped, tag = 'scratch operand']
  %s0 = inlined_call_operand.smem [shape: u32[33], index: -1, kind: input, shape index: {}]
  %s1 = sld [smem:[%s0]]
  %s2 = scalar_lea.smem %s0, 1
  %s3 = sld [smem:[%s2]]
  %s4 = scalar_lea.smem %s0, 2
  %s5 = sld [smem:[%s4]]
  %s6 = scalar_lea.smem %s0, 3
  %s7 = sld [smem:[%s6]]
  %s8 = scalar_lea.smem %s0, 4
  %s9 = sld [smem:[%s8]]
  %s10 = scalar_lea.smem %s0, 5
  %s11 = sld [smem:[%s10]]
  %s12 = scalar_lea.smem %s0, 6
  %s13 = sld [smem:[%s12]]
  %s14 = scalar_lea.smem %s0, 7
  %s15 = sld [smem:[%s14]]
  %s16 = scalar_lea.smem %s0, 8
  %s17 = sld [smem:[%s16]]
  %s18 = scalar_lea.smem %s0, 9
  %s19 = sld [smem:[%s18]]
  %s20 = scalar_lea.smem %s0, 10
  %s21 = sld [smem:[%s20]]
  %s22 = scalar_lea.smem %s0, 11
  %s23 = sld [smem:[%s22]]
  %s24 = scalar_lea.smem %s0, 12
  %s25 = sld [smem:[%s24]]
  %s26 = scalar_lea.smem %s0, 13
  %s27 = sld [smem:[%s26]]
  %s28 = scalar_lea.smem %s0, 14
  %s29 = sld [smem:[%s28]]
  %s30 = scalar_lea.smem %s0, 15
  %s31 = sld [smem:[%s30]]
  %s32 = scalar_lea.smem %s0, 16
  %s33 = sld [smem:[%s32]]
  %s34 = scalar_lea.smem %s0, 17
  %s35 = sld [smem:[%s34]]
  %s36 = scalar_lea.smem %s0, 18
  %s37 = sld [smem:[%s36]]
  %s38 = scalar_lea.smem %s0, 19
  %s39 = sld [smem:[%s38]]
  %s40 = scalar_lea.smem %s0, 20
  %s41 = sld [smem:[%s40]]
  %s42 = scalar_lea.smem %s0, 21
  %s43 = sld [smem:[%s42]]
  %s44 = scalar_lea.smem %s0, 22
  %s45 = sld [smem:[%s44]]
  %s46 = scalar_lea.smem %s0, 23
  %s47 = sld [smem:[%s46]]
  %s48 = scalar_lea.smem %s0, 24
  %s49 = sld [smem:[%s48]]
  %s50 = scalar_lea.smem %s0, 25
  %s51 = sld [smem:[%s50]]
  %s52 = scalar_lea.smem %s0, 26
  %s53 = sld [smem:[%s52]]
  %s54 = scalar_lea.smem %s0, 27
  %s55 = sld [smem:[%s54]]
  %s56 = scalar_lea.smem %s0, 28
  %s57 = sld [smem:[%s56]]
  %s58 = scalar_lea.smem %s0, 29
  %s59 = sld [smem:[%s58]]
  %s60 = scalar_lea.smem %s0, 30
  %s61 = sld [smem:[%s60]]
  %s62 = scalar_lea.smem %s0, 31
  %s63 = sld [smem:[%s62]]
  %s64 = scalar_lea.smem %s0, 32
  %s65 = sld [smem:[%s64]]
  %s66 = sld [smem:[#allocation0]]
  $region161: #{rrdb_forward_nchw.1} parent=0
    _
  %s68 = ssub.s32 1, %s66
  %s69 = scalar_select 0, %s68, %s66
  loop: start=0, step=1, limit=4
  $region2: #{rrdb_forward_nchw.1} parent=0 // loop_pre_header
    _
  $region3: #{rrdb_forward_nchw.1} parent=0 // loop_header
    %s71 = sphi 0, %s75
    %p72 = scmp.ge.s32.totalorder %s71, 4
    %s81 = sphi 0, %s83
    %s84 = sphi 0, %s81
    %s85 = sphi 0, %s84
    %s101 = sphi 0, %s85
    %s105 = sphi 0, %s105
    %s107 = sphi 0, %s105
    %s108 = sphi 0, %s107
    %s122 = sphi 0, %s108
    %s126 = sphi 0, %s126
    %s128 = sphi 0, %s126
    %s129 = sphi 0, %s128
    %s143 = sphi 0, %s129
    %s147 = sphi 0, %s147
    %s149 = sphi 0, %s147
    %s150 = sphi 0, %s149
    %s164 = sphi 0, %s150
    %s168 = sphi 0, %s168
    %s170 = sphi 0, %s168
    %s171 = sphi 0, %s170
    %s185 = sphi 0, %s171
    %s189 = sphi 0, %s189
    %s191 = sphi 0, %s189
    %s192 = sphi 0, %s191
    %s206 = sphi 0, %s192
    %s210 = sphi 0, %s210
    %s212 = sphi 0, %s210
    %s213 = sphi 0, %s212
    %s227 = sphi 0, %s213
    %s231 = sphi 0, %s231
    %s233 = sphi 0, %s231
    %s234 = sphi 0, %s233
    %s248 = sphi 0, %s234
    %s252 = sphi 0, %s252
    %s254 = sphi 0, %s252
    %s255 = sphi 0, %s254
    %s269 = sphi 0, %s255
    %s273 = sphi 0, %s273
    %s275 = sphi 0, %s273
    %s276 = sphi 0, %s275
    %s290 = sphi 0, %s276
    %s294 = sphi 0, %s294
    %s296 = sphi 0, %s294
    %s297 = sphi 0, %s296
    %s311 = sphi 0, %s297
    %s315 = sphi 0, %s315
    %s317 = sphi 0, %s315
    %s318 = sphi 0, %s317
    %s332 = sphi 0, %s318
    %s336 = sphi 0, %s336
    %s338 = sphi 0, %s336
    %s339 = sphi 0, %s338
    %s353 = sphi 0, %s339
    %s357 = sphi 0, %s357
    %s359 = sphi 0, %s357
    %s360 = sphi 0, %s359
    %s374 = sphi 0, %s360
    %s378 = sphi 0, %s378
    %s380 = sphi 0, %s378
    %s381 = sphi 0, %s380
    %s395 = sphi 0, %s381
    %s399 = sphi 0, %s399
    %s401 = sphi 0, %s399
    %s402 = sphi 0, %s401
    %s416 = sphi 0, %s402
    %s420 = sphi 0, %s420
    %s422 = sphi 0, %s420
    %s423 = sphi 0, %s422
    %s437 = sphi 0, %s423
    %s441 = sphi 0, %s441
    %s443 = sphi 0, %s441
    %s444 = sphi 0, %s443
    %s458 = sphi 0, %s444
    %s462 = sphi 0, %s462
    %s464 = sphi 0, %s462
    %s465 = sphi 0, %s464
    %s479 = sphi 0, %s465
    %s483 = sphi 0, %s483
    %s485 = sphi 0, %s483
    %s486 = sphi 0, %s485
    %s500 = sphi 0, %s486
    %s504 = sphi 0, %s504
    %s506 = sphi 0, %s504
    %s507 = sphi 0, %s506
    %s521 = sphi 0, %s507
    %s525 = sphi 0, %s525
    %s527 = sphi 0, %s525
    %s528 = sphi 0, %s527
    %s542 = sphi 0, %s528
    %s546 = sphi 0, %s546
    %s548 = sphi 0, %s546
    %s549 = sphi 0, %s548
    %s563 = sphi 0, %s549
    %s567 = sphi 0, %s567
    %s569 = sphi 0, %s567
    %s570 = sphi 0, %s569
    %s584 = sphi 0, %s570
    %s588 = sphi 0, %s588
    %s590 = sphi 0, %s588
    %s591 = sphi 0, %s590
    %s605 = sphi 0, %s591
    %s609 = sphi 0, %s609
    %s611 = sphi 0, %s609
    %s612 = sphi 0, %s611
    %s626 = sphi 0, %s612
    %s630 = sphi 0, %s630
    %s632 = sphi 0, %s630
    %s633 = sphi 0, %s632
    %s647 = sphi 0, %s633
    %s651 = sphi 0, %s651
    %s653 = sphi 0, %s651
    %s654 = sphi 0, %s653
    %s668 = sphi 0, %s654
    %s672 = sphi 0, %s672
    %s674 = sphi 0, %s672
    %s675 = sphi 0, %s674
    %s689 = sphi 0, %s675
    %s693 = sphi 0, %s693
    %s695 = sphi 0, %s693
    %s696 = sphi 0, %s695
    %s710 = sphi 0, %s696
    %s714 = sphi 0, %s714
    %s716 = sphi 0, %s714
    %s717 = sphi 0, %s716
    %s731 = sphi 0, %s717
    %s735 = sphi 0, %s735
    %s737 = sphi 0, %s735
    %s738 = sphi 0, %s737
    %s752 = sphi 0, %s738
    %s758 = sphi 0, %s760
    %s761 = sphi 0, %s758
    %s762 = sphi 0, %s761
    %s778 = sphi 0, %s762
  $region4: #{rrdb_forward_nchw.1} parent=0 // loop_header_branch
    %74 = sbr.rel (%p72) target = $region8
  $region5: #{rrdb_forward_nchw.1} parent=0 // loop_body
    %s76 = ssub.s32 %s71, 1
    %s77 = ssub.s32 %s71, 2
    %s78 = sadd.s32 %s71, 1
    %s79 = ssub.s32 %s71, %s78
    %p80 = scmp.eq.s32.totalorder %s79, 0
    %s82 = sadd.s32 %s81, 1
    %s83 = scalar_select %p80, %s81, %s82
    %p86 = pneg %p80
    %p87 = scmp.eq.s32.totalorder %s71, 1
    %p88 = por %p86, %p87
    %p89 = scmp.ne.s32.totalorder %s81, %s84
    %p90 = scmp.eq.s32.totalorder %s71, 0
    %p91 = por %p89, %p90
    %p92 = scmp.ne.s32.totalorder %s81, %s84
    %p93 = scmp.eq.s32.totalorder %s76, 1
    %p94 = por %p92, %p93
    %p95 = scmp.ne.s32.totalorder %s84, %s85
    %p96 = scmp.eq.s32.totalorder %s76, 0
    %p97 = por %p95, %p96
    %p98 = scmp.ne.s32.totalorder %s84, %s85
    %p99 = scmp.eq.s32.totalorder %s77, 1
    %p100 = por %p98, %p99
    %p102 = scmp.ne.s32.totalorder %s85, %s101
    %p103 = scmp.eq.s32.totalorder %s77, 0
    %p104 = por %p102, %p103
    %s106 = sadd.s32 %s105, 1
    %p109 = scmp.eq.s32.totalorder %s71, 1
    %p110 = scmp.ne.s32.totalorder %s105, %s107
    %p111 = scmp.eq.s32.totalorder %s71, 0
    %p112 = por %p110, %p111
    %p113 = scmp.ne.s32.totalorder %s105, %s107
    %p114 = scmp.eq.s32.totalorder %s76, 1
    %p115 = por %p113, %p114
    %p116 = scmp.ne.s32.totalorder %s107, %s108
    %p117 = scmp.eq.s32.totalorder %s76, 0
    %p118 = por %p116, %p117
    %p119 = scmp.ne.s32.totalorder %s107, %s108
    %p120 = scmp.eq.s32.totalorder %s77, 1
    %p121 = por %p119, %p120
    %p123 = scmp.ne.s32.totalorder %s108, %s122
    %p124 = scmp.eq.s32.totalorder %s77, 0
    %p125 = por %p123, %p124
    %s127 = sadd.s32 %s126, 1
    %p130 = scmp.eq.s32.totalorder %s71, 1
    %p131 = scmp.ne.s32.totalorder %s126, %s128
    %p132 = scmp.eq.s32.totalorder %s71, 0
    %p133 = por %p131, %p132
    %p134 = scmp.ne.s32.totalorder %s126, %s128
    %p135 = scmp.eq.s32.totalorder %s76, 1
    %p136 = por %p134, %p135
    %p137 = scmp.ne.s32.totalorder %s128, %s129
    %p138 = scmp.eq.s32.totalorder %s76, 0
    %p139 = por %p137, %p138
    %p140 = scmp.ne.s32.totalorder %s128, %s129
    %p141 = scmp.eq.s32.totalorder %s77, 1
    %p142 = por %p140, %p141
    %p144 = scmp.ne.s32.totalorder %s129, %s143
    %p145 = scmp.eq.s32.totalorder %s77, 0
    %p146 = por %p144, %p145
    %s148 = sadd.s32 %s147, 1
    %p151 = scmp.eq.s32.totalorder %s71, 1
    %p152 = scmp.ne.s32.totalorder %s147, %s149
    %p153 = scmp.eq.s32.totalorder %s71, 0
    %p154 = por %p152, %p153
    %p155 = scmp.ne.s32.totalorder %s147, %s149
    %p156 = scmp.eq.s32.totalorder %s76, 1
    %p157 = por %p155, %p156
    %p158 = scmp.ne.s32.totalorder %s149, %s150
    %p159 = scmp.eq.s32.totalorder %s76, 0
    %p160 = por %p158, %p159
    %p161 = scmp.ne.s32.totalorder %s149, %s150
    %p162 = scmp.eq.s32.totalorder %s77, 1
    %p163 = por %p161, %p162
    %p165 = scmp.ne.s32.totalorder %s150, %s164
    %p166 = scmp.eq.s32.totalorder %s77, 0
    %p167 = por %p165, %p166
    %s169 = sadd.s32 %s168, 1
    %p172 = scmp.eq.s32.totalorder %s71, 1
    %p173 = scmp.ne.s32.totalorder %s168, %s170
    %p174 = scmp.eq.s32.totalorder %s71, 0
    %p175 = por %p173, %p174
    %p176 = scmp.ne.s32.totalorder %s168, %s170
    %p177 = scmp.eq.s32.totalorder %s76, 1
    %p178 = por %p176, %p177
    %p179 = scmp.ne.s32.totalorder %s170, %s171
    %p180 = scmp.eq.s32.totalorder %s76, 0
    %p181 = por %p179, %p180
    %p182 = scmp.ne.s32.totalorder %s170, %s171
    %p183 = scmp.eq.s32.totalorder %s77, 1
    %p184 = por %p182, %p183
    %p186 = scmp.ne.s32.totalorder %s171, %s185
    %p187 = scmp.eq.s32.totalorder %s77, 0
    %p188 = por %p186, %p187
    %s190 = sadd.s32 %s189, 1
    %p193 = scmp.eq.s32.totalorder %s71, 1
    %p194 = scmp.ne.s32.totalorder %s189, %s191
    %p195 = scmp.eq.s32.totalorder %s71, 0
    %p196 = por %p194, %p195
    %p197 = scmp.ne.s32.totalorder %s189, %s191
    %p198 = scmp.eq.s32.totalorder %s76, 1
    %p199 = por %p197, %p198
    %p200 = scmp.ne.s32.totalorder %s191, %s192
    %p201 = scmp.eq.s32.totalorder %s76, 0
    %p202 = por %p200, %p201
    %p203 = scmp.ne.s32.totalorder %s191, %s192
    %p204 = scmp.eq.s32.totalorder %s77, 1
    %p205 = por %p203, %p204
    %p207 = scmp.ne.s32.totalorder %s192, %s206
    %p208 = scmp.eq.s32.totalorder %s77, 0
    %p209 = por %p207, %p208
    %s211 = sadd.s32 %s210, 1
    %p214 = scmp.eq.s32.totalorder %s71, 1
    %p215 = scmp.ne.s32.totalorder %s210, %s212
    %p216 = scmp.eq.s32.totalorder %s71, 0
    %p217 = por %p215, %p216
    %p218 = scmp.ne.s32.totalorder %s210, %s212
    %p219 = scmp.eq.s32.totalorder %s76, 1
    %p220 = por %p218, %p219
    %p221 = scmp.ne.s32.totalorder %s212, %s213
    %p222 = scmp.eq.s32.totalorder %s76, 0
    %p223 = por %p221, %p222
    %p224 = scmp.ne.s32.totalorder %s212, %s213
    %p225 = scmp.eq.s32.totalorder %s77, 1
    %p226 = por %p224, %p225
    %p228 = scmp.ne.s32.totalorder %s213, %s227
    %p229 = scmp.eq.s32.totalorder %s77, 0
    %p230 = por %p228, %p229
    %s232 = sadd.s32 %s231, 1
    %p235 = scmp.eq.s32.totalorder %s71, 1
    %p236 = scmp.ne.s32.totalorder %s231, %s233
    %p237 = scmp.eq.s32.totalorder %s71, 0
    %p238 = por %p236, %p237
    %p239 = scmp.ne.s32.totalorder %s231, %s233
    %p240 = scmp.eq.s32.totalorder %s76, 1
    %p241 = por %p239, %p240
    %p242 = scmp.ne.s32.totalorder %s233, %s234
    %p243 = scmp.eq.s32.totalorder %s76, 0
    %p244 = por %p242, %p243
    %p245 = scmp.ne.s32.totalorder %s233, %s234
    %p246 = scmp.eq.s32.totalorder %s77, 1
    %p247 = por %p245, %p246
    %p249 = scmp.ne.s32.totalorder %s234, %s248
    %p250 = scmp.eq.s32.totalorder %s77, 0
    %p251 = por %p249, %p250
    %s253 = sadd.s32 %s252, 1
    %p256 = scmp.eq.s32.totalorder %s71, 1
    %p257 = scmp.ne.s32.totalorder %s252, %s254
    %p258 = scmp.eq.s32.totalorder %s71, 0
    %p259 = por %p257, %p258
    %p260 = scmp.ne.s32.totalorder %s252, %s254
    %p261 = scmp.eq.s32.totalorder %s76, 1
    %p262 = por %p260, %p261
    %p263 = scmp.ne.s32.totalorder %s254, %s255
    %p264 = scmp.eq.s32.totalorder %s76, 0
    %p265 = por %p263, %p264
    %p266 = scmp.ne.s32.totalorder %s254, %s255
    %p267 = scmp.eq.s32.totalorder %s77, 1
    %p268 = por %p266, %p267
    %p270 = scmp.ne.s32.totalorder %s255, %s269
    %p271 = scmp.eq.s32.totalorder %s77, 0
    %p272 = por %p270, %p271
    %s274 = sadd.s32 %s273, 1
    %p277 = scmp.eq.s32.totalorder %s71, 1
    %p278 = scmp.ne.s32.totalorder %s273, %s275
    %p279 = scmp.eq.s32.totalorder %s71, 0
    %p280 = por %p278, %p279
    %p281 = scmp.ne.s32.totalorder %s273, %s275
    %p282 = scmp.eq.s32.totalorder %s76, 1
    %p283 = por %p281, %p282
    %p284 = scmp.ne.s32.totalorder %s275, %s276
    %p285 = scmp.eq.s32.totalorder %s76, 0
    %p286 = por %p284, %p285
    %p287 = scmp.ne.s32.totalorder %s275, %s276
    %p288 = scmp.eq.s32.totalorder %s77, 1
    %p289 = por %p287, %p288
    %p291 = scmp.ne.s32.totalorder %s276, %s290
    %p292 = scmp.eq.s32.totalorder %s77, 0
    %p293 = por %p291, %p292
    %s295 = sadd.s32 %s294, 1
    %p298 = scmp.eq.s32.totalorder %s71, 1
    %p299 = scmp.ne.s32.totalorder %s294, %s296
    %p300 = scmp.eq.s32.totalorder %s71, 0
    %p301 = por %p299, %p300
    %p302 = scmp.ne.s32.totalorder %s294, %s296
    %p303 = scmp.eq.s32.totalorder %s76, 1
    %p304 = por %p302, %p303
    %p305 = scmp.ne.s32.totalorder %s296, %s297
    %p306 = scmp.eq.s32.totalorder %s76, 0
    %p307 = por %p305, %p306
    %p308 = scmp.ne.s32.totalorder %s296, %s297
    %p309 = scmp.eq.s32.totalorder %s77, 1
    %p310 = por %p308, %p309
    %p312 = scmp.ne.s32.totalorder %s297, %s311
    %p313 = scmp.eq.s32.totalorder %s77, 0
    %p314 = por %p312, %p313
    %s316 = sadd.s32 %s315, 1
    %p319 = scmp.eq.s32.totalorder %s71, 1
    %p320 = scmp.ne.s32.totalorder %s315, %s317
    %p321 = scmp.eq.s32.totalorder %s71, 0
    %p322 = por %p320, %p321
    %p323 = scmp.ne.s32.totalorder %s315, %s317
    %p324 = scmp.eq.s32.totalorder %s76, 1
    %p325 = por %p323, %p324
    %p326 = scmp.ne.s32.totalorder %s317, %s318
    %p327 = scmp.eq.s32.totalorder %s76, 0
    %p328 = por %p326, %p327
    %p329 = scmp.ne.s32.totalorder %s317, %s318
    %p330 = scmp.eq.s32.totalorder %s77, 1
    %p331 = por %p329, %p330
    %p333 = scmp.ne.s32.totalorder %s318, %s332
    %p334 = scmp.eq.s32.totalorder %s77, 0
    %p335 = por %p333, %p334
    %s337 = sadd.s32 %s336, 1
    %p340 = scmp.eq.s32.totalorder %s71, 1
    %p341 = scmp.ne.s32.totalorder %s336, %s338
    %p342 = scmp.eq.s32.totalorder %s71, 0
    %p343 = por %p341, %p342
    %p344 = scmp.ne.s32.totalorder %s336, %s338
    %p345 = scmp.eq.s32.totalorder %s76, 1
    %p346 = por %p344, %p345
    %p347 = scmp.ne.s32.totalorder %s338, %s339
    %p348 = scmp.eq.s32.totalorder %s76, 0
    %p349 = por %p347, %p348
    %p350 = scmp.ne.s32.totalorder %s338, %s339
    %p351 = scmp.eq.s32.totalorder %s77, 1
    %p352 = por %p350, %p351
    %p354 = scmp.ne.s32.totalorder %s339, %s353
    %p355 = scmp.eq.s32.totalorder %s77, 0
    %p356 = por %p354, %p355
    %s358 = sadd.s32 %s357, 1
    %p361 = scmp.eq.s32.totalorder %s71, 1
    %p362 = scmp.ne.s32.totalorder %s357, %s359
    %p363 = scmp.eq.s32.totalorder %s71, 0
    %p364 = por %p362, %p363
    %p365 = scmp.ne.s32.totalorder %s357, %s359
    %p366 = scmp.eq.s32.totalorder %s76, 1
    %p367 = por %p365, %p366
    %p368 = scmp.ne.s32.totalorder %s359, %s360
    %p369 = scmp.eq.s32.totalorder %s76, 0
    %p370 = por %p368, %p369
    %p371 = scmp.ne.s32.totalorder %s359, %s360
    %p372 = scmp.eq.s32.totalorder %s77, 1
    %p373 = por %p371, %p372
    %p375 = scmp.ne.s32.totalorder %s360, %s374
    %p376 = scmp.eq.s32.totalorder %s77, 0
    %p377 = por %p375, %p376
    %s379 = sadd.s32 %s378, 1
    %p382 = scmp.eq.s32.totalorder %s71, 1
    %p383 = scmp.ne.s32.totalorder %s378, %s380
    %p384 = scmp.eq.s32.totalorder %s71, 0
    %p385 = por %p383, %p384
    %p386 = scmp.ne.s32.totalorder %s378, %s380
    %p387 = scmp.eq.s32.totalorder %s76, 1
    %p388 = por %p386, %p387
    %p389 = scmp.ne.s32.totalorder %s380, %s381
    %p390 = scmp.eq.s32.totalorder %s76, 0
    %p391 = por %p389, %p390
    %p392 = scmp.ne.s32.totalorder %s380, %s381
    %p393 = scmp.eq.s32.totalorder %s77, 1
    %p394 = por %p392, %p393
    %p396 = scmp.ne.s32.totalorder %s381, %s395
    %p397 = scmp.eq.s32.totalorder %s77, 0
    %p398 = por %p396, %p397
    %s400 = sadd.s32 %s399, 1
    %p403 = scmp.eq.s32.totalorder %s71, 1
    %p404 = scmp.ne.s32.totalorder %s399, %s401
    %p405 = scmp.eq.s32.totalorder %s71, 0
    %p406 = por %p404, %p405
    %p407 = scmp.ne.s32.totalorder %s399, %s401
    %p408 = scmp.eq.s32.totalorder %s76, 1
    %p409 = por %p407, %p408
    %p410 = scmp.ne.s32.totalorder %s401, %s402
    %p411 = scmp.eq.s32.totalorder %s76, 0
    %p412 = por %p410, %p411
    %p413 = scmp.ne.s32.totalorder %s401, %s402
    %p414 = scmp.eq.s32.totalorder %s77, 1
    %p415 = por %p413, %p414
    %p417 = scmp.ne.s32.totalorder %s402, %s416
    %p418 = scmp.eq.s32.totalorder %s77, 0
    %p419 = por %p417, %p418
    %s421 = sadd.s32 %s420, 1
    %p424 = scmp.eq.s32.totalorder %s71, 1
    %p425 = scmp.ne.s32.totalorder %s420, %s422
    %p426 = scmp.eq.s32.totalorder %s71, 0
    %p427 = por %p425, %p426
    %p428 = scmp.ne.s32.totalorder %s420, %s422
    %p429 = scmp.eq.s32.totalorder %s76, 1
    %p430 = por %p428, %p429
    %p431 = scmp.ne.s32.totalorder %s422, %s423
    %p432 = scmp.eq.s32.totalorder %s76, 0
    %p433 = por %p431, %p432
    %p434 = scmp.ne.s32.totalorder %s422, %s423
    %p435 = scmp.eq.s32.totalorder %s77, 1
    %p436 = por %p434, %p435
    %p438 = scmp.ne.s32.totalorder %s423, %s437
    %p439 = scmp.eq.s32.totalorder %s77, 0
    %p440 = por %p438, %p439
    %s442 = sadd.s32 %s441, 1
    %p445 = scmp.eq.s32.totalorder %s71, 1
    %p446 = scmp.ne.s32.totalorder %s441, %s443
    %p447 = scmp.eq.s32.totalorder %s71, 0
    %p448 = por %p446, %p447
    %p449 = scmp.ne.s32.totalorder %s441, %s443
    %p450 = scmp.eq.s32.totalorder %s76, 1
    %p451 = por %p449, %p450
    %p452 = scmp.ne.s32.totalorder %s443, %s444
    %p453 = scmp.eq.s32.totalorder %s76, 0
    %p454 = por %p452, %p453
    %p455 = scmp.ne.s32.totalorder %s443, %s444
    %p456 = scmp.eq.s32.totalorder %s77, 1
    %p457 = por %p455, %p456
    %p459 = scmp.ne.s32.totalorder %s444, %s458
    %p460 = scmp.eq.s32.totalorder %s77, 0
    %p461 = por %p459, %p460
    %s463 = sadd.s32 %s462, 1
    %p466 = scmp.eq.s32.totalorder %s71, 1
    %p467 = scmp.ne.s32.totalorder %s462, %s464
    %p468 = scmp.eq.s32.totalorder %s71, 0
    %p469 = por %p467, %p468
    %p470 = scmp.ne.s32.totalorder %s462, %s464
    %p471 = scmp.eq.s32.totalorder %s76, 1
    %p472 = por %p470, %p471
    %p473 = scmp.ne.s32.totalorder %s464, %s465
    %p474 = scmp.eq.s32.totalorder %s76, 0
    %p475 = por %p473, %p474
    %p476 = scmp.ne.s32.totalorder %s464, %s465
    %p477 = scmp.eq.s32.totalorder %s77, 1
    %p478 = por %p476, %p477
    %p480 = scmp.ne.s32.totalorder %s465, %s479
    %p481 = scmp.eq.s32.totalorder %s77, 0
    %p482 = por %p480, %p481
    %s484 = sadd.s32 %s483, 1
    %p487 = scmp.eq.s32.totalorder %s71, 1
    %p488 = scmp.ne.s32.totalorder %s483, %s485
    %p489 = scmp.eq.s32.totalorder %s71, 0
    %p490 = por %p488, %p489
    %p491 = scmp.ne.s32.totalorder %s483, %s485
    %p492 = scmp.eq.s32.totalorder %s76, 1
    %p493 = por %p491, %p492
    %p494 = scmp.ne.s32.totalorder %s485, %s486
    %p495 = scmp.eq.s32.totalorder %s76, 0
    %p496 = por %p494, %p495
    %p497 = scmp.ne.s32.totalorder %s485, %s486
    %p498 = scmp.eq.s32.totalorder %s77, 1
    %p499 = por %p497, %p498
    %p501 = scmp.ne.s32.totalorder %s486, %s500
    %p502 = scmp.eq.s32.totalorder %s77, 0
    %p503 = por %p501, %p502
    %s505 = sadd.s32 %s504, 1
    %p508 = scmp.eq.s32.totalorder %s71, 1
    %p509 = scmp.ne.s32.totalorder %s504, %s506
    %p510 = scmp.eq.s32.totalorder %s71, 0
    %p511 = por %p509, %p510
    %p512 = scmp.ne.s32.totalorder %s504, %s506
    %p513 = scmp.eq.s32.totalorder %s76, 1
    %p514 = por %p512, %p513
    %p515 = scmp.ne.s32.totalorder %s506, %s507
    %p516 = scmp.eq.s32.totalorder %s76, 0
    %p517 = por %p515, %p516
    %p518 = scmp.ne.s32.totalorder %s506, %s507
    %p519 = scmp.eq.s32.totalorder %s77, 1
    %p520 = por %p518, %p519
    %p522 = scmp.ne.s32.totalorder %s507, %s521
    %p523 = scmp.eq.s32.totalorder %s77, 0
    %p524 = por %p522, %p523
    %s526 = sadd.s32 %s525, 1
    %p529 = scmp.eq.s32.totalorder %s71, 1
    %p530 = scmp.ne.s32.totalorder %s525, %s527
    %p531 = scmp.eq.s32.totalorder %s71, 0
    %p532 = por %p530, %p531
    %p533 = scmp.ne.s32.totalorder %s525, %s527
    %p534 = scmp.eq.s32.totalorder %s76, 1
    %p535 = por %p533, %p534
    %p536 = scmp.ne.s32.totalorder %s527, %s528
    %p537 = scmp.eq.s32.totalorder %s76, 0
    %p538 = por %p536, %p537
    %p539 = scmp.ne.s32.totalorder %s527, %s528
    %p540 = scmp.eq.s32.totalorder %s77, 1
    %p541 = por %p539, %p540
    %p543 = scmp.ne.s32.totalorder %s528, %s542
    %p544 = scmp.eq.s32.totalorder %s77, 0
    %p545 = por %p543, %p544
    %s547 = sadd.s32 %s546, 1
    %p550 = scmp.eq.s32.totalorder %s71, 1
    %p551 = scmp.ne.s32.totalorder %s546, %s548
    %p552 = scmp.eq.s32.totalorder %s71, 0
    %p553 = por %p551, %p552
    %p554 = scmp.ne.s32.totalorder %s546, %s548
    %p555 = scmp.eq.s32.totalorder %s76, 1
    %p556 = por %p554, %p555
    %p557 = scmp.ne.s32.totalorder %s548, %s549
    %p558 = scmp.eq.s32.totalorder %s76, 0
    %p559 = por %p557, %p558
    %p560 = scmp.ne.s32.totalorder %s548, %s549
    %p561 = scmp.eq.s32.totalorder %s77, 1
    %p562 = por %p560, %p561
    %p564 = scmp.ne.s32.totalorder %s549, %s563
    %p565 = scmp.eq.s32.totalorder %s77, 0
    %p566 = por %p564, %p565
    %s568 = sadd.s32 %s567, 1
    %p571 = scmp.eq.s32.totalorder %s71, 1
    %p572 = scmp.ne.s32.totalorder %s567, %s569
    %p573 = scmp.eq.s32.totalorder %s71, 0
    %p574 = por %p572, %p573
    %p575 = scmp.ne.s32.totalorder %s567, %s569
    %p576 = scmp.eq.s32.totalorder %s76, 1
    %p577 = por %p575, %p576
    %p578 = scmp.ne.s32.totalorder %s569, %s570
    %p579 = scmp.eq.s32.totalorder %s76, 0
    %p580 = por %p578, %p579
    %p581 = scmp.ne.s32.totalorder %s569, %s570
    %p582 = scmp.eq.s32.totalorder %s77, 1
    %p583 = por %p581, %p582
    %p585 = scmp.ne.s32.totalorder %s570, %s584
    %p586 = scmp.eq.s32.totalorder %s77, 0
    %p587 = por %p585, %p586
    %s589 = sadd.s32 %s588, 1
    %p592 = scmp.eq.s32.totalorder %s71, 1
    %p593 = scmp.ne.s32.totalorder %s588, %s590
    %p594 = scmp.eq.s32.totalorder %s71, 0
    %p595 = por %p593, %p594
    %p596 = scmp.ne.s32.totalorder %s588, %s590
    %p597 = scmp.eq.s32.totalorder %s76, 1
    %p598 = por %p596, %p597
    %p599 = scmp.ne.s32.totalorder %s590, %s591
    %p600 = scmp.eq.s32.totalorder %s76, 0
    %p601 = por %p599, %p600
    %p602 = scmp.ne.s32.totalorder %s590, %s591
    %p603 = scmp.eq.s32.totalorder %s77, 1
    %p604 = por %p602, %p603
    %p606 = scmp.ne.s32.totalorder %s591, %s605
    %p607 = scmp.eq.s32.totalorder %s77, 0
    %p608 = por %p606, %p607
    %s610 = sadd.s32 %s609, 1
    %p613 = scmp.eq.s32.totalorder %s71, 1
    %p614 = scmp.ne.s32.totalorder %s609, %s611
    %p615 = scmp.eq.s32.totalorder %s71, 0
    %p616 = por %p614, %p615
    %p617 = scmp.ne.s32.totalorder %s609, %s611
    %p618 = scmp.eq.s32.totalorder %s76, 1
    %p619 = por %p617, %p618
    %p620 = scmp.ne.s32.totalorder %s611, %s612
    %p621 = scmp.eq.s32.totalorder %s76, 0
    %p622 = por %p620, %p621
    %p623 = scmp.ne.s32.totalorder %s611, %s612
    %p624 = scmp.eq.s32.totalorder %s77, 1
    %p625 = por %p623, %p624
    %p627 = scmp.ne.s32.totalorder %s612, %s626
    %p628 = scmp.eq.s32.totalorder %s77, 0
    %p629 = por %p627, %p628
    %s631 = sadd.s32 %s630, 1
    %p634 = scmp.eq.s32.totalorder %s71, 1
    %p635 = scmp.ne.s32.totalorder %s630, %s632
    %p636 = scmp.eq.s32.totalorder %s71, 0
    %p637 = por %p635, %p636
    %p638 = scmp.ne.s32.totalorder %s630, %s632
    %p639 = scmp.eq.s32.totalorder %s76, 1
    %p640 = por %p638, %p639
    %p641 = scmp.ne.s32.totalorder %s632, %s633
    %p642 = scmp.eq.s32.totalorder %s76, 0
    %p643 = por %p641, %p642
    %p644 = scmp.ne.s32.totalorder %s632, %s633
    %p645 = scmp.eq.s32.totalorder %s77, 1
    %p646 = por %p644, %p645
    %p648 = scmp.ne.s32.totalorder %s633, %s647
    %p649 = scmp.eq.s32.totalorder %s77, 0
    %p650 = por %p648, %p649
    %s652 = sadd.s32 %s651, 1
    %p655 = scmp.eq.s32.totalorder %s71, 1
    %p656 = scmp.ne.s32.totalorder %s651, %s653
    %p657 = scmp.eq.s32.totalorder %s71, 0
    %p658 = por %p656, %p657
    %p659 = scmp.ne.s32.totalorder %s651, %s653
    %p660 = scmp.eq.s32.totalorder %s76, 1
    %p661 = por %p659, %p660
    %p662 = scmp.ne.s32.totalorder %s653, %s654
    %p663 = scmp.eq.s32.totalorder %s76, 0
    %p664 = por %p662, %p663
    %p665 = scmp.ne.s32.totalorder %s653, %s654
    %p666 = scmp.eq.s32.totalorder %s77, 1
    %p667 = por %p665, %p666
    %p669 = scmp.ne.s32.totalorder %s654, %s668
    %p670 = scmp.eq.s32.totalorder %s77, 0
    %p671 = por %p669, %p670
    %s673 = sadd.s32 %s672, 1
    %p676 = scmp.eq.s32.totalorder %s71, 1
    %p677 = scmp.ne.s32.totalorder %s672, %s674
    %p678 = scmp.eq.s32.totalorder %s71, 0
    %p679 = por %p677, %p678
    %p680 = scmp.ne.s32.totalorder %s672, %s674
    %p681 = scmp.eq.s32.totalorder %s76, 1
    %p682 = por %p680, %p681
    %p683 = scmp.ne.s32.totalorder %s674, %s675
    %p684 = scmp.eq.s32.totalorder %s76, 0
    %p685 = por %p683, %p684
    %p686 = scmp.ne.s32.totalorder %s674, %s675
    %p687 = scmp.eq.s32.totalorder %s77, 1
    %p688 = por %p686, %p687
    %p690 = scmp.ne.s32.totalorder %s675, %s689
    %p691 = scmp.eq.s32.totalorder %s77, 0
    %p692 = por %p690, %p691
    %s694 = sadd.s32 %s693, 1
    %p697 = scmp.eq.s32.totalorder %s71, 1
    %p698 = scmp.ne.s32.totalorder %s693, %s695
    %p699 = scmp.eq.s32.totalorder %s71, 0
    %p700 = por %p698, %p699
    %p701 = scmp.ne.s32.totalorder %s693, %s695
    %p702 = scmp.eq.s32.totalorder %s76, 1
    %p703 = por %p701, %p702
    %p704 = scmp.ne.s32.totalorder %s695, %s696
    %p705 = scmp.eq.s32.totalorder %s76, 0
    %p706 = por %p704, %p705
    %p707 = scmp.ne.s32.totalorder %s695, %s696
    %p708 = scmp.eq.s32.totalorder %s77, 1
    %p709 = por %p707, %p708
    %p711 = scmp.ne.s32.totalorder %s696, %s710
    %p712 = scmp.eq.s32.totalorder %s77, 0
    %p713 = por %p711, %p712
    %s715 = sadd.s32 %s714, 1
    %p718 = scmp.eq.s32.totalorder %s71, 1
    %p719 = scmp.ne.s32.totalorder %s714, %s716
    %p720 = scmp.eq.s32.totalorder %s71, 0
    %p721 = por %p719, %p720
    %p722 = scmp.ne.s32.totalorder %s714, %s716
    %p723 = scmp.eq.s32.totalorder %s76, 1
    %p724 = por %p722, %p723
    %p725 = scmp.ne.s32.totalorder %s716, %s717
    %p726 = scmp.eq.s32.totalorder %s76, 0
    %p727 = por %p725, %p726
    %p728 = scmp.ne.s32.totalorder %s716, %s717
    %p729 = scmp.eq.s32.totalorder %s77, 1
    %p730 = por %p728, %p729
    %p732 = scmp.ne.s32.totalorder %s717, %s731
    %p733 = scmp.eq.s32.totalorder %s77, 0
    %p734 = por %p732, %p733
    %s736 = sadd.s32 %s735, 1
    %p739 = scmp.eq.s32.totalorder %s71, 1
    %p740 = scmp.ne.s32.totalorder %s735, %s737
    %p741 = scmp.eq.s32.totalorder %s71, 0
    %p742 = por %p740, %p741
    %p743 = scmp.ne.s32.totalorder %s735, %s737
    %p744 = scmp.eq.s32.totalorder %s76, 1
    %p745 = por %p743, %p744
    %p746 = scmp.ne.s32.totalorder %s737, %s738
    %p747 = scmp.eq.s32.totalorder %s76, 0
    %p748 = por %p746, %p747
    %p749 = scmp.ne.s32.totalorder %s737, %s738
    %p750 = scmp.eq.s32.totalorder %s77, 1
    %p751 = por %p749, %p750
    %p753 = scmp.ne.s32.totalorder %s738, %s752
    %p754 = scmp.eq.s32.totalorder %s77, 0
    %p755 = por %p753, %p754
    %s756 = ssub.s32 %s71, %s78
    %p757 = scmp.eq.s32.totalorder %s756, 0
    %s759 = sadd.s32 %s758, 1
    %s760 = scalar_select %p757, %s758, %s759
    %p763 = pneg %p757
    %p764 = scmp.eq.s32.totalorder %s71, 1
    %p765 = por %p763, %p764
    %p766 = scmp.ne.s32.totalorder %s758, %s761
    %p767 = scmp.eq.s32.totalorder %s71, 0
    %p768 = por %p766, %p767
    %p769 = scmp.ne.s32.totalorder %s758, %s761
    %p770 = scmp.eq.s32.totalorder %s76, 1
    %p771 = por %p769, %p770
    %p772 = scmp.ne.s32.totalorder %s761, %s762
    %p773 = scmp.eq.s32.totalorder %s76, 0
    %p774 = por %p772, %p773
    %p775 = scmp.ne.s32.totalorder %s761, %s762
    %p776 = scmp.eq.s32.totalorder %s77, 1
    %p777 = por %p775, %p776
    %p779 = scmp.ne.s32.totalorder %s762, %s778
    %p780 = scmp.eq.s32.totalorder %s77, 0
    %p781 = por %p779, %p780
    %p782 = scmp.le.s32.totalorder 1, %s71
    %p783 = scmp.lt.s32.totalorder %s71, 3
    %p784 = pnand %p782, %p783
    %p785 = pneg %p784
    // Predicated region
    $region9: #{rrdb_forward_nchw.1} parent=5 // pred_check
      _
    $region10: #{rrdb_forward_nchw.1} parent=5 // pred_check_branch
      %787 = sbr.rel (%p784) target = $region12
    $region11: #{rrdb_forward_nchw.1} parent=5 // pred_region
      %s788 = ssub.s32 %s71, 1
      // Predicated region
      $region13: #{rrdb_forward_nchw.1} parent=11 // pred_check
        %p789 = pneg %p118
      $region14: #{rrdb_forward_nchw.1} parent=11 // pred_check_branch
        %791 = sbr.rel (%p789) target = $region16
      $region15: #{rrdb_forward_nchw.1} parent=11 // pred_region
        _
      $region16: #{rrdb_forward_nchw.1} parent=11 // pred_fallthru
        _
      // Predicated region
      $region17: #{rrdb_forward_nchw.1} parent=11 // pred_check
        %p792 = pneg %p139
      $region18: #{rrdb_forward_nchw.1} parent=11 // pred_check_branch
        %794 = sbr.rel (%p792) target = $region20
      $region19: #{rrdb_forward_nchw.1} parent=11 // pred_region
        _
      $region20: #{rrdb_forward_nchw.1} parent=11 // pred_fallthru
        _
      // Predicated region
      $region21: #{rrdb_forward_nchw.1} parent=11 // pred_check
        %p795 = pneg %p160
      $region22: #{rrdb_forward_nchw.1} parent=11 // pred_check_branch
        %797 = sbr.rel (%p795) target = $region24
      $region23: #{rrdb_forward_nchw.1} parent=11 // pred_region
        _
      $region24: #{rrdb_forward_nchw.1} parent=11 // pred_fallthru
        _
      // Predicated region
      $region25: #{rrdb_forward_nchw.1} parent=11 // pred_check
        %p798 = pneg %p181
      $region26: #{rrdb_forward_nchw.1} parent=11 // pred_check_branch
        %800 = sbr.rel (%p798) target = $region28
      $region27: #{rrdb_forward_nchw.1} parent=11 // pred_region
        _
      $region28: #{rrdb_forward_nchw.1} parent=11 // pred_fallthru
        _
      // Predicated region
      $region29: #{rrdb_forward_nchw.1} parent=11 // pred_check
        %p801 = pneg %p202
      $region30: #{rrdb_forward_nchw.1} parent=11 // pred_check_branch
        %803 = sbr.rel (%p801) target = $region32
      $region31: #{rrdb_forward_nchw.1} parent=11 // pred_region
        _
      $region32: #{rrdb_forward_nchw.1} parent=11 // pred_fallthru
        _
      // Predicated region
      $region33: #{rrdb_forward_nchw.1} parent=11 // pred_check
        %p804 = pneg %p223
      $region34: #{rrdb_forward_nchw.1} parent=11 // pred_check_branch
        %806 = sbr.rel (%p804) target = $region36
      $region35: #{rrdb_forward_nchw.1} parent=11 // pred_region
        _
      $region36: #{rrdb_forward_nchw.1} parent=11 // pred_fallthru
        _
      // Predicated region
      $region37: #{rrdb_forward_nchw.1} parent=11 // pred_check
        %p807 = pneg %p244
      $region38: #{rrdb_forward_nchw.1} parent=11 // pred_check_branch
        %809 = sbr.rel (%p807) target = $region40
      $region39: #{rrdb_forward_nchw.1} parent=11 // pred_region
        _
      $region40: #{rrdb_forward_nchw.1} parent=11 // pred_fallthru
        _
      // Predicated region
      $region41: #{rrdb_forward_nchw.1} parent=11 // pred_check
        %p810 = pneg %p265
      $region42: #{rrdb_forward_nchw.1} parent=11 // pred_check_branch
        %812 = sbr.rel (%p810) target = $region44
      $region43: #{rrdb_forward_nchw.1} parent=11 // pred_region
        _
      $region44: #{rrdb_forward_nchw.1} parent=11 // pred_fallthru
        _
      // Predicated region
      $region45: #{rrdb_forward_nchw.1} parent=11 // pred_check
        %p813 = pneg %p286
      $region46: #{rrdb_forward_nchw.1} parent=11 // pred_check_branch
        %815 = sbr.rel (%p813) target = $region48
      $region47: #{rrdb_forward_nchw.1} parent=11 // pred_region
        _
      $region48: #{rrdb_forward_nchw.1} parent=11 // pred_fallthru
        _
      // Predicated region
      $region49: #{rrdb_forward_nchw.1} parent=11 // pred_check
        %p816 = pneg %p307
      $region50: #{rrdb_forward_nchw.1} parent=11 // pred_check_branch
        %818 = sbr.rel (%p816) target = $region52
      $region51: #{rrdb_forward_nchw.1} parent=11 // pred_region
        _
      $region52: #{rrdb_forward_nchw.1} parent=11 // pred_fallthru
        _
      // Predicated region
      $region53: #{rrdb_forward_nchw.1} parent=11 // pred_check
        %p819 = pneg %p328
      $region54: #{rrdb_forward_nchw.1} parent=11 // pred_check_branch
        %821 = sbr.rel (%p819) target = $region56
      $region55: #{rrdb_forward_nchw.1} parent=11 // pred_region
        _
      $region56: #{rrdb_forward_nchw.1} parent=11 // pred_fallthru
        _
      // Predicated region
      $region57: #{rrdb_forward_nchw.1} parent=11 // pred_check
        %p822 = pneg %p349
      $region58: #{rrdb_forward_nchw.1} parent=11 // pred_check_branch
        %824 = sbr.rel (%p822) target = $region60
      $region59: #{rrdb_forward_nchw.1} parent=11 // pred_region
        _
      $region60: #{rrdb_forward_nchw.1} parent=11 // pred_fallthru
        _
      // Predicated region
      $region61: #{rrdb_forward_nchw.1} parent=11 // pred_check
        %p825 = pneg %p370
      $region62: #{rrdb_forward_nchw.1} parent=11 // pred_check_branch
        %827 = sbr.rel (%p825) target = $region64
      $region63: #{rrdb_forward_nchw.1} parent=11 // pred_region
        _
      $region64: #{rrdb_forward_nchw.1} parent=11 // pred_fallthru
        _
      // Predicated region
      $region65: #{rrdb_forward_nchw.1} parent=11 // pred_check
        %p828 = pneg %p391
      $region66: #{rrdb_forward_nchw.1} parent=11 // pred_check_branch
        %830 = sbr.rel (%p828) target = $region68
      $region67: #{rrdb_forward_nchw.1} parent=11 // pred_region
        _
      $region68: #{rrdb_forward_nchw.1} parent=11 // pred_fallthru
        _
      // Predicated region
      $region69: #{rrdb_forward_nchw.1} parent=11 // pred_check
        %p831 = pneg %p412
      $region70: #{rrdb_forward_nchw.1} parent=11 // pred_check_branch
        %833 = sbr.rel (%p831) target = $region72
      $region71: #{rrdb_forward_nchw.1} parent=11 // pred_region
        _
      $region72: #{rrdb_forward_nchw.1} parent=11 // pred_fallthru
        _
      // Predicated region
      $region73: #{rrdb_forward_nchw.1} parent=11 // pred_check
        %p834 = pneg %p433
      $region74: #{rrdb_forward_nchw.1} parent=11 // pred_check_branch
        %836 = sbr.rel (%p834) target = $region76
      $region75: #{rrdb_forward_nchw.1} parent=11 // pred_region
        _
      $region76: #{rrdb_forward_nchw.1} parent=11 // pred_fallthru
        _
      // Predicated region
      $region77: #{rrdb_forward_nchw.1} parent=11 // pred_check
        %p837 = pneg %p454
      $region78: #{rrdb_forward_nchw.1} parent=11 // pred_check_branch
        %839 = sbr.rel (%p837) target = $region80
      $region79: #{rrdb_forward_nchw.1} parent=11 // pred_region
        _
      $region80: #{rrdb_forward_nchw.1} parent=11 // pred_fallthru
        _
      // Predicated region
      $region81: #{rrdb_forward_nchw.1} parent=11 // pred_check
        %p840 = pneg %p475
      $region82: #{rrdb_forward_nchw.1} parent=11 // pred_check_branch
        %842 = sbr.rel (%p840) target = $region84
      $region83: #{rrdb_forward_nchw.1} parent=11 // pred_region
        _
      $region84: #{rrdb_forward_nchw.1} parent=11 // pred_fallthru
        _
      // Predicated region
      $region85: #{rrdb_forward_nchw.1} parent=11 // pred_check
        %p843 = pneg %p496
      $region86: #{rrdb_forward_nchw.1} parent=11 // pred_check_branch
        %845 = sbr.rel (%p843) target = $region88
      $region87: #{rrdb_forward_nchw.1} parent=11 // pred_region
        _
      $region88: #{rrdb_forward_nchw.1} parent=11 // pred_fallthru
        _
      // Predicated region
      $region89: #{rrdb_forward_nchw.1} parent=11 // pred_check
        %p846 = pneg %p517
      $region90: #{rrdb_forward_nchw.1} parent=11 // pred_check_branch
        %848 = sbr.rel (%p846) target = $region92
      $region91: #{rrdb_forward_nchw.1} parent=11 // pred_region
        _
      $region92: #{rrdb_forward_nchw.1} parent=11 // pred_fallthru
        _
      // Predicated region
      $region93: #{rrdb_forward_nchw.1} parent=11 // pred_check
        %p849 = pneg %p538
      $region94: #{rrdb_forward_nchw.1} parent=11 // pred_check_branch
        %851 = sbr.rel (%p849) target = $region96
      $region95: #{rrdb_forward_nchw.1} parent=11 // pred_region
        _
      $region96: #{rrdb_forward_nchw.1} parent=11 // pred_fallthru
        _
      // Predicated region
      $region97: #{rrdb_forward_nchw.1} parent=11 // pred_check
        %p852 = pneg %p559
      $region98: #{rrdb_forward_nchw.1} parent=11 // pred_check_branch
        %854 = sbr.rel (%p852) target = $region100
      $region99: #{rrdb_forward_nchw.1} parent=11 // pred_region
        _
      $region100: #{rrdb_forward_nchw.1} parent=11 // pred_fallthru
        _
      // Predicated region
      $region101: #{rrdb_forward_nchw.1} parent=11 // pred_check
        %p855 = pneg %p580
      $region102: #{rrdb_forward_nchw.1} parent=11 // pred_check_branch
        %857 = sbr.rel (%p855) target = $region104
      $region103: #{rrdb_forward_nchw.1} parent=11 // pred_region
        _
      $region104: #{rrdb_forward_nchw.1} parent=11 // pred_fallthru
        _
      // Predicated region
      $region105: #{rrdb_forward_nchw.1} parent=11 // pred_check
        %p858 = pneg %p601
      $region106: #{rrdb_forward_nchw.1} parent=11 // pred_check_branch
        %860 = sbr.rel (%p858) target = $region108
      $region107: #{rrdb_forward_nchw.1} parent=11 // pred_region
        _
      $region108: #{rrdb_forward_nchw.1} parent=11 // pred_fallthru
        _
      // Predicated region
      $region109: #{rrdb_forward_nchw.1} parent=11 // pred_check
        %p861 = pneg %p622
      $region110: #{rrdb_forward_nchw.1} parent=11 // pred_check_branch
        %863 = sbr.rel (%p861) target = $region112
      $region111: #{rrdb_forward_nchw.1} parent=11 // pred_region
        _
      $region112: #{rrdb_forward_nchw.1} parent=11 // pred_fallthru
        _
      // Predicated region
      $region113: #{rrdb_forward_nchw.1} parent=11 // pred_check
        %p864 = pneg %p643
      $region114: #{rrdb_forward_nchw.1} parent=11 // pred_check_branch
        %866 = sbr.rel (%p864) target = $region116
      $region115: #{rrdb_forward_nchw.1} parent=11 // pred_region
        _
      $region116: #{rrdb_forward_nchw.1} parent=11 // pred_fallthru
        _
      // Predicated region
      $region117: #{rrdb_forward_nchw.1} parent=11 // pred_check
        %p867 = pneg %p664
      $region118: #{rrdb_forward_nchw.1} parent=11 // pred_check_branch
        %869 = sbr.rel (%p867) target = $region120
      $region119: #{rrdb_forward_nchw.1} parent=11 // pred_region
        _
      $region120: #{rrdb_forward_nchw.1} parent=11 // pred_fallthru
        _
      // Predicated region
      $region121: #{rrdb_forward_nchw.1} parent=11 // pred_check
        %p870 = pneg %p685
      $region122: #{rrdb_forward_nchw.1} parent=11 // pred_check_branch
        %872 = sbr.rel (%p870) target = $region124
      $region123: #{rrdb_forward_nchw.1} parent=11 // pred_region
        _
      $region124: #{rrdb_forward_nchw.1} parent=11 // pred_fallthru
        _
      // Predicated region
      $region125: #{rrdb_forward_nchw.1} parent=11 // pred_check
        %p873 = pneg %p706
      $region126: #{rrdb_forward_nchw.1} parent=11 // pred_check_branch
        %875 = sbr.rel (%p873) target = $region128
      $region127: #{rrdb_forward_nchw.1} parent=11 // pred_region
        _
      $region128: #{rrdb_forward_nchw.1} parent=11 // pred_fallthru
        _
      // Predicated region
      $region129: #{rrdb_forward_nchw.1} parent=11 // pred_check
        %p876 = pneg %p727
      $region130: #{rrdb_forward_nchw.1} parent=11 // pred_check_branch
        %878 = sbr.rel (%p876) target = $region132
      $region131: #{rrdb_forward_nchw.1} parent=11 // pred_region
        _
      $region132: #{rrdb_forward_nchw.1} parent=11 // pred_fallthru
        _
      // Predicated region
      $region133: #{rrdb_forward_nchw.1} parent=11 // pred_check
        %p879 = pneg %p748
      $region134: #{rrdb_forward_nchw.1} parent=11 // pred_check_branch
        %881 = sbr.rel (%p879) target = $region136
      $region135: #{rrdb_forward_nchw.1} parent=11 // pred_region
        _
      $region136: #{rrdb_forward_nchw.1} parent=11 // pred_fallthru
        _
    $region12: #{rrdb_forward_nchw.1} parent=5 // pred_fallthru
      _
    %p882 = scmp.lt.s32.totalorder %s71, 2
    // Predicated region
    $region137: #{rrdb_forward_nchw.1} parent=5 // pred_check
      %p883 = pneg %p882
    $region138: #{rrdb_forward_nchw.1} parent=5 // pred_check_branch
      %885 = sbr.rel (%p883) target = $region140
    $region139: #{rrdb_forward_nchw.1} parent=5 // pred_region
      // Predicated region
      $region141: #{rrdb_forward_nchw.1} parent=139 // pred_check
        %p886 = pneg %p91
      $region142: #{rrdb_forward_nchw.1} parent=139 // pred_check_branch
        %888 = sbr.rel (%p886) target = $region144
      $region143: #{rrdb_forward_nchw.1} parent=139 // pred_region
        %p889 = scmp.lt.s32.totalorder %s71, 1
        %s890 = scalar_select %p889, %s71, 1
        %s891 = smul.addr %s890, 2
        %s892 = smul.addr %s891, 8
        %s893 = scalar_lea.vmem %s1, %s892
      $region144: #{rrdb_forward_nchw.1} parent=139 // pred_fallthru
        _
    $region140: #{rrdb_forward_nchw.1} parent=5 // pred_fallthru
      _
    %p894 = scmp.le.s32.totalorder 1, %s71
    %p895 = scmp.lt.s32.totalorder %s71, 3
    %p896 = pnand %p894, %p895
    %p897 = pneg %p896
    // Predicated region
    $region145: #{rrdb_forward_nchw.1} parent=5 // pred_check
      _
    $region146: #{rrdb_forward_nchw.1} parent=5 // pred_check_branch
      %899 = sbr.rel (%p896) target = $region148
    $region147: #{rrdb_forward_nchw.1} parent=5 // pred_region
      %s900 = ssub.s32 %s71, 1
      %p901 = scmp.lt.s32.totalorder %s76, 1
      %s902 = scalar_select %p901, %s76, 1
      %s903 = smul.addr %s902, 2
      %s904 = smul.addr %s903, 8
      %s905 = scalar_lea.vmem %s1, %s904
      %p906 = pneg %p97
      %p907 = pneg %p94
      %p908 = pneg %p118
      %p909 = pneg %p115
      %p910 = pneg %p139
      %p911 = pneg %p136
      %p912 = pneg %p160
      %p913 = pneg %p157
      %p914 = pneg %p181
      %p915 = pneg %p178
      %p916 = pneg %p202
      %p917 = pneg %p199
      %p918 = pneg %p223
      %p919 = pneg %p220
      %p920 = pneg %p244
      %p921 = pneg %p241
      %p922 = pneg %p265
      %p923 = pneg %p262
      %p924 = pneg %p286
      %p925 = pneg %p283
      %p926 = pneg %p307
      %p927 = pneg %p304
      %p928 = pneg %p328
      %p929 = pneg %p325
      %p930 = pneg %p349
      %p931 = pneg %p346
      %p932 = pneg %p370
      %p933 = pneg %p367
      %p934 = pneg %p391
      %p935 = pneg %p388
      %p936 = pneg %p412
      %p937 = pneg %p409
      %p938 = pneg %p433
      %p939 = pneg %p430
      %p940 = pneg %p454
      %p941 = pneg %p451
      %p942 = pneg %p475
      %p943 = pneg %p472
      %p944 = pneg %p496
      %p945 = pneg %p493
      %p946 = pneg %p517
      %p947 = pneg %p514
      %p948 = pneg %p538
      %p949 = pneg %p535
      %p950 = pneg %p559
      %p951 = pneg %p556
      %p952 = pneg %p580
      %p953 = pneg %p577
      %p954 = pneg %p601
      %p955 = pneg %p598
      %p956 = pneg %p622
      %p957 = pneg %p619
      %p958 = pneg %p643
      %p959 = pneg %p640
      %p960 = pneg %p664
      %p961 = pneg %p661
      %p962 = pneg %p685
      %p963 = pneg %p682
      %p964 = pneg %p706
      %p965 = pneg %p703
      %p966 = pneg %p727
      %p967 = pneg %p724
      %p968 = pneg %p748
      %p969 = pneg %p745
      %p970 = pneg %p774
      %p971 = pneg %p771
      %p972 = scmp.lt.s32.totalorder %s76, 1
      %s973 = scalar_select %p972, %s76, 1
      %s974 = smul.addr %s973, 2
      %s975 = smul.addr %s974, 8
      %s976 = scalar_lea.vmem %s65, %s975
      %p977 = scmp.lt.s32.totalorder %s76, 1
      %s978 = scalar_select %p977, %s76, 1
      %s979 = smul.addr %s978, 2
      %s980 = smul.addr %s979, 8
      %s981 = scalar_lea.vmem %s1, %s980
      %p982 = scmp.lt.s32.totalorder %s76, 1
      %s983 = scalar_select %p982, %s76, 1
      %s984 = smul.addr %s983, 2
      %s985 = smul.addr %s984, 8
      %s986 = scalar_lea.vmem %s65, %s985
      %v987 = vld [vmem:[%s3] ss:$8 sm:$0x3]
      %s988 = scalar_lea.vmem %s3, 1
      %v989 = vld [vmem:[%s988] ss:$8 sm:$0x3]
      %s990 = scalar_lea.vmem %s3, 2
      %v991 = vld [vmem:[%s990] ss:$8 sm:$0x3]
      %s992 = scalar_lea.vmem %s3, 3
      %v993 = vld [vmem:[%s992] ss:$8 sm:$0x3]
      %s994 = scalar_lea.vmem %s3, 5
      %v995 = vld [vmem:[%s994] ss:$8 sm:$0x3]
      %s996 = scalar_lea.vmem %s3, 6
      %v997 = vld [vmem:[%s996] ss:$8 sm:$0x3]
      %s998 = scalar_lea.vmem %s3, 7
      %v999 = vld [vmem:[%s998] ss:$8 sm:$0x3]
      %s1000 = scalar_lea.vmem %s3, 16
      %v1001 = vld [vmem:[%s1000] ss:$8 sm:$0x3]
      %v1002 = vld [vmem:[%s981] sm:$0xff]
      %v1003 = vld [vmem:[%s981 + $0x8] sm:$0xff]
      %1004 = vrot.lane.b32.xlu0 %v1002, 17
      %v1005 = vpop.permute.xlu0 %1004
      %1006 = vrot.lane.b32.xlu0 %v1003, 17
      %v1007 = vpop.permute.xlu0 %1006
      %v1008 = vlaneseq
      %v1009 = vand.u32 %v1008, 127
      %vm1010 = vcmp.lt.s32.totalorder %v1009, 17
      %v1011 = vsel %vm1010, %v1005, %v1007
      %v1012 = vsel %vm1010, %v1007, %v1005
      %v1014 = vlaneseq
      %v1015 = vshrl.u32 %v1014, 7
      %v1016 = vsub.s32 0, %v1015
      %v1017 = vrot.slane %v987, %v1016
      %v1018 = vlaneseq
      %v1019 = vshrl.u32 %v1018, 7
      %v1020 = vsub.s32 1, %v1019
      %v1021 = vrot.slane %v987, %v1020
      %v1024 = vmul.f32 %v1012, %v1017
      %v1025 = vmul.f32 %v1011, %v1021
      %1026 = vst [vmem:[#allocation2] sm:$0xff] %v1024
      %1027 = vst [vmem:[#allocation2 + $0x8] sm:$0xff] %v1025
      %1028 = vrot.lane.b32.xlu0 %v1002, 16
      %v1029 = vpop.permute.xlu0 %1028
      %1030 = vrot.lane.b32.xlu0 %v1003, 16
      %v1031 = vpop.permute.xlu0 %1030
      %vm1032 = vcmp.lt.s32.totalorder %v1009, 16
      %v1033 = vsel %vm1032, %v1029, %v1031
      %v1034 = vsel %vm1032, %v1031, %v1029
      %v1036 = vlaneseq
      %v1037 = vshrl.u32 %v1036, 7
      %v1038 = vsub.s32 0, %v1037
      %v1039 = vrot.slane %v989, %v1038
      %v1040 = vlaneseq
      %v1041 = vshrl.u32 %v1040, 7
      %v1042 = vsub.s32 1, %v1041
      %v1043 = vrot.slane %v989, %v1042
      %v1046 = vmul.f32 %v1034, %v1039
      %v1047 = vmul.f32 %v1033, %v1043
      %1048 = vst [vmem:[#allocation2 + $0x10] sm:$0xff] %v1046
      %1049 = vst [vmem:[#allocation2 + $0x18] sm:$0xff] %v1047
      %1050 = vrot.lane.b32.xlu0 %v1002, 15
      %v1051 = vpop.permute.xlu0 %1050
      %1052 = vrot.lane.b32.xlu0 %v1003, 15
      %v1053 = vpop.permute.xlu0 %1052
      %vm1054 = vcmp.lt.s32.totalorder %v1009, 15
      %v1055 = vsel %vm1054, %v1051, %v1053
      %v1056 = vsel %vm1054, %v1053, %v1051
      %v1058 = vlaneseq
      %v1059 = vshrl.u32 %v1058, 7
      %v1060 = vsub.s32 0, %v1059
      %v1061 = vrot.slane %v991, %v1060
      %v1062 = vlaneseq
      %v1063 = vshrl.u32 %v1062, 7
      %v1064 = vsub.s32 1, %v1063
      %v1065 = vrot.slane %v991, %v1064
      %v1068 = vmul.f32 %v1056, %v1061
      %v1069 = vmul.f32 %v1055, %v1065
      %1070 = vst [vmem:[#allocation2 + $0x20] sm:$0xff] %v1068
      %1071 = vst [vmem:[#allocation2 + $0x28] sm:$0xff] %v1069
      %1072 = vrot.lane.b32.xlu0 %v1002, 1
      %v1073 = vpop.permute.xlu0 %1072
      %1074 = vrot.lane.b32.xlu0 %v1003, 1
      %v1075 = vpop.permute.xlu0 %1074
      %vm1076 = vcmp.lt.s32.totalorder %v1009, 1
      %v1077 = vsel %vm1076, %v1073, %v1075
      %v1078 = vsel %vm1076, %v1075, %v1073
      %v1080 = vlaneseq
      %v1081 = vshrl.u32 %v1080, 7
      %v1082 = vsub.s32 0, %v1081
      %v1083 = vrot.slane %v993, %v1082
      %v1084 = vlaneseq
      %v1085 = vshrl.u32 %v1084, 7
      %v1086 = vsub.s32 1, %v1085
      %v1087 = vrot.slane %v993, %v1086
      %v1090 = vmul.f32 %v1078, %v1083
      %v1091 = vmul.f32 %v1077, %v1087
      %1092 = vst [vmem:[#allocation2 + $0x30] sm:$0xff] %v1090
      %1093 = vst [vmem:[#allocation2 + $0x38] sm:$0xff] %v1091
      %1094 = vst [vmem:[#allocation2 + $0x40] sm:$0xff] %v1002
      %1095 = vst [vmem:[#allocation2 + $0x48] sm:$0xff] %v1003
      %1096 = vrot.lane.b32.xlu0 %v1002, 127
      %v1097 = vpop.permute.xlu0 %1096
      %1098 = vrot.lane.b32.xlu0 %v1003, 127
      %v1099 = vpop.permute.xlu0 %1098
      %vm1100 = vcmp.lt.s32.totalorder %v1009, 127
      %v1101 = vsel %vm1100, %v1097, %v1099
      %v1102 = vsel %vm1100, %v1099, %v1097
      %v1104 = vlaneseq
      %v1105 = vshrl.u32 %v1104, 7
      %v1106 = vsub.s32 0, %v1105
      %v1107 = vrot.slane %v995, %v1106
      %v1108 = vlaneseq
      %v1109 = vshrl.u32 %v1108, 7
      %v1110 = vsub.s32 1, %v1109
      %v1111 = vrot.slane %v995, %v1110
      %v1114 = vmul.f32 %v1101, %v1107
      %v1115 = vmul.f32 %v1102, %v1111
      %1116 = vst [vmem:[#allocation2 + $0x50] sm:$0xff] %v1114
      %1117 = vst [vmem:[#allocation2 + $0x58] sm:$0xff] %v1115
      %1118 = vrot.lane.b32.xlu0 %v1002, 113
      %v1119 = vpop.permute.xlu0 %1118
      %1120 = vrot.lane.b32.xlu0 %v1003, 113
      %v1121 = vpop.permute.xlu0 %1120
      %vm1122 = vcmp.lt.s32.totalorder %v1009, 113
      %v1123 = vsel %vm1122, %v1119, %v1121
      %v1124 = vsel %vm1122, %v1121, %v1119
      %v1126 = vlaneseq
      %v1127 = vshrl.u32 %v1126, 7
      %v1128 = vsub.s32 0, %v1127
      %v1129 = vrot.slane %v997, %v1128
      %v1130 = vlaneseq
      %v1131 = vshrl.u32 %v1130, 7
      %v1132 = vsub.s32 1, %v1131
      %v1133 = vrot.slane %v997, %v1132
      %v1136 = vmul.f32 %v1123, %v1129
      %v1137 = vmul.f32 %v1124, %v1133
      %1138 = vst [vmem:[#allocation2 + $0x60] sm:$0xff] %v1136
      %1139 = vst [vmem:[#allocation2 + $0x68] sm:$0xff] %v1137
      %1140 = vrot.lane.b32.xlu0 %v1002, 112
      %v1141 = vpop.permute.xlu0 %1140
      %1142 = vrot.lane.b32.xlu0 %v1003, 112
      %v1143 = vpop.permute.xlu0 %1142
      %vm1144 = vcmp.lt.s32.totalorder %v1009, 112
      %v1145 = vsel %vm1144, %v1141, %v1143
      %v1146 = vsel %vm1144, %v1143, %v1141
      %v1148 = vlaneseq
      %v1149 = vshrl.u32 %v1148, 7
      %v1150 = vsub.s32 0, %v1149
      %v1151 = vrot.slane %v999, %v1150
      %v1152 = vlaneseq
      %v1153 = vshrl.u32 %v1152, 7
      %v1154 = vsub.s32 1, %v1153
      %v1155 = vrot.slane %v999, %v1154
      %v1158 = vmul.f32 %v1145, %v1151
      %v1159 = vmul.f32 %v1146, %v1155
      %1160 = vst [vmem:[#allocation2 + $0x70] sm:$0xff] %v1158
      %1161 = vst [vmem:[#allocation2 + $0x78] sm:$0xff] %v1159
      %1162 = vrot.lane.b32.xlu0 %v1002, 111
      %v1163 = vpop.permute.xlu0 %1162
      %1164 = vrot.lane.b32.xlu0 %v1003, 111
      %v1165 = vpop.permute.xlu0 %1164
      %vm1166 = vcmp.lt.s32.totalorder %v1009, 111
      %v1167 = vsel %vm1166, %v1163, %v1165
      %v1168 = vsel %vm1166, %v1165, %v1163
      %v1170 = vlaneseq
      %v1171 = vshrl.u32 %v1170, 7
      %v1172 = vsub.s32 0, %v1171
      %v1173 = vrot.slane %v1001, %v1172
      %v1174 = vlaneseq
      %v1175 = vshrl.u32 %v1174, 7
      %v1176 = vsub.s32 1, %v1175
      %v1177 = vrot.slane %v1001, %v1176
      %v1180 = vmul.f32 %v1167, %v1173
      %v1181 = vmul.f32 %v1168, %v1177
      %1182 = vst [vmem:[#allocation2 + $0x80] sm:$0xff] %v1180
      %1183 = vst [vmem:[#allocation2 + $0x88] sm:$0xff] %v1181
      %v1184 = vld [vmem:[#allocation2] sm:$0xff]
      %v1185 = vld [vmem:[#allocation2 + $0x8] sm:$0xff]
      %v1186 = vld [vmem:[#allocation2 + $0x10] sm:$0xff]
      %v1187 = vld [vmem:[#allocation2 + $0x18] sm:$0xff]
      %v1188 = vld [vmem:[#allocation2 + $0x20] sm:$0xff]
      %v1189 = vld [vmem:[#allocation2 + $0x28] sm:$0xff]
      %v1190 = vld [vmem:[#allocation2 + $0x30] sm:$0xff]
      %v1191 = vld [vmem:[#allocation2 + $0x38] sm:$0xff]
      %v1192 = vld [vmem:[#allocation2 + $0x40] sm:$0xff]
      %v1193 = vld [vmem:[#allocation2 + $0x48] sm:$0xff]
      %v1194 = vld [vmem:[#allocation2 + $0x50] sm:$0xff]
      %v1195 = vld [vmem:[#allocation2 + $0x58] sm:$0xff]
      %v1196 = vld [vmem:[#allocation2 + $0x60] sm:$0xff]
      %v1197 = vld [vmem:[#allocation2 + $0x68] sm:$0xff]
      %v1198 = vld [vmem:[#allocation2 + $0x70] sm:$0xff]
      %v1199 = vld [vmem:[#allocation2 + $0x78] sm:$0xff]
      %v1200 = vld [vmem:[#allocation2 + $0x80] sm:$0xff]
      %v1201 = vld [vmem:[#allocation2 + $0x88] sm:$0xff]
      %v1202 = vld [vmem:[%s5] sm:$0xff]
      %v1203 = vld [vmem:[%s35] sm:$0xff]
      %1205 = vset.pattern.permute.xlu0 0
      %1206 = vperm.xlu0 %1205, %v1203
      %v1207 = vpop.permute.xlu0 %1206
      %vm1209 = vcmask 588800
      %v1211 = vsel %vm1209, %v1202, 0
      %1213 = vmatprep.subr.mxu0 0.0
      %1214 = vmatpush1.msra.mxu0 0.0
      %1215 = vmatprep.subr.mxu0 0.0
      %1216 = vmatpush1.msra.mxu0 0.0
      %1217 = vmatprep.subr.mxu0 0.0
      %1218 = vmatpush1.msra.mxu0 0.0
      %1219 = vmatprep.subr.mxu0 0.0
      %1220 = vmatpush1.msra.mxu0 0.0
      %1221 = vmatprep.subr.mxu0 0.0
      %1222 = vmatpush1.msra.mxu0 0.0
      %1223 = vmatprep.subr.mxu0 0.0
      %1224 = vmatpush1.msra.mxu0 0.0
      %1225 = vmatprep.subr.mxu0 0.0
      %1226 = vmatpush1.msra.mxu0 0.0
      %1227 = vmatprep.subr.mxu0 %v1201
      %1228 = vmatpush1.msra.mxu0 %v1200
      %1229 = vmatprep.subr.mxu0 %v1199
      %1230 = vmatpush1.msra.mxu0 %v1198
      %1231 = vmatprep.subr.mxu0 %v1197
      %1232 = vmatpush1.msra.mxu0 %v1196
      %1233 = vmatprep.subr.mxu0 %v1195
      %1234 = vmatpush1.msra.mxu0 %v1194
      %1235 = vmatprep.subr.mxu0 %v1193
      %1236 = vmatpush1.msra.mxu0 %v1192
      %1237 = vmatprep.subr.mxu0 %v1191
      %1238 = vmatpush1.msra.mxu0 %v1190
      %1239 = vmatprep.subr.mxu0 %v1189
      %1240 = vmatpush1.msra.mxu0 %v1188
      %1241 = vmatprep.subr.mxu0 %v1187
      %1242 = vmatpush1.msra.mxu0 %v1186
      %1243 = vmatprep.subr.mxu0 %v1185
      %1244 = vmatpush1.msra.mxu0 %v1184
      %1245 = vmatprep.subr.mxu0 0.0
      %1246 = vmatpush2.msra.mxu0 0.0
      %1247 = vmatprep.subr.mxu0 0.0
      %1248 = vmatpush2.msra.mxu0 0.0
      %1249 = vmatprep.subr.mxu0 0.0
      %1250 = vmatpush2.msra.mxu0 0.0
      %1251 = vmatprep.subr.mxu0 0.0
      %1252 = vmatpush2.msra.mxu0 0.0
      %1253 = vmatprep.subr.mxu0 0.0
      %1254 = vmatpush2.msra.mxu0 0.0
      %1255 = vmatprep.subr.mxu0 0.0
      %1256 = vmatpush2.msra.mxu0 0.0
      %1257 = vmatprep.subr.mxu0 0.0
      %1258 = vmatpush2.msra.mxu0 0.0
      %1259 = vmatprep.subr.mxu0 0.0
      %1260 = vmatpush2.msra.mxu0 0.0
      %1261 = vmatprep.subr.mxu0 0.0
      %1262 = vmatpush2.msra.mxu0 0.0
      %1263 = vmatprep.subr.mxu0 0.0
      %1264 = vmatpush2.msra.mxu0 0.0
      %1265 = vmatprep.subr.mxu0 0.0
      %1266 = vmatpush2.msra.mxu0 0.0
      %1267 = vmatprep.subr.mxu0 0.0
      %1268 = vmatpush2.msra.mxu0 0.0
      %1269 = vmatprep.subr.mxu0 0.0
      %1270 = vmatpush2.msra.mxu0 0.0
      %1271 = vmatprep.subr.mxu0 0.0
      %1272 = vmatpush2.msra.mxu0 0.0
      %1273 = vmatprep.subr.mxu0 0.0
      %1274 = vmatpush2.msra.mxu0 0.0
      %1275 = vmatprep.subr.mxu0 0.0
      %1276 = vmatpush2.msra.mxu0 0.0
      %1277 = vmatprep.mubr.f32.mxu0 0.0
      %1278 = vmatmul.mubr.f32.gmra.mxu0 %v1211
      %v1279 = vpop.f32.mrf.mxu0
      %v1280 = vadd.f32 %v1207, %v1279
      %v1281 = vpop.f32.mrf.mxu0
      %v1282 = vadd.f32 %v1207, %v1281
      %1283 = vdwg.mxu0
      %vm1284 = vcmp.ge.f32.partialorder %v1280, 0.0
      %vm1285 = vcmp.ge.f32.partialorder %v1282, 0.0
      %v1286 = vmul.f32 %v1280, 0.2
      %v1287 = vmul.f32 %v1282, 0.2
      %v1288 = vsel %vm1284, %v1280, %v1286
      %v1289 = vsel %vm1285, %v1282, %v1287
      %1290 = vrot.lane.b32.xlu0 %v1288, 17
      %v1291 = vpop.permute.xlu0 %1290
      %1292 = vrot.lane.b32.xlu0 %v1289, 17
      %v1293 = vpop.permute.xlu0 %1292
      %v1294 = vsel %vm1010, %v1291, %v1293
      %v1295 = vsel %vm1010, %v1293, %v1291
      %v1296 = vmul.f32 %v1295, %v1017
      %v1297 = vmul.f32 %v1294, %v1021
      %1298 = vst [vmem:[#allocation2 + $0x90] sm:$0xff] %v1296
      %1299 = vst [vmem:[#allocation2 + $0x98] sm:$0xff] %v1297
      %1300 = vrot.lane.b32.xlu0 %v1288, 16
      %v1301 = vpop.permute.xlu0 %1300
      %1302 = vrot.lane.b32.xlu0 %v1289, 16
      %v1303 = vpop.permute.xlu0 %1302
      %v1304 = vsel %vm1032, %v1301, %v1303
      %v1305 = vsel %vm1032, %v1303, %v1301
      %v1306 = vmul.f32 %v1305, %v1039
      %v1307 = vmul.f32 %v1304, %v1043
      %1308 = vst [vmem:[#allocation2 + $0xa0] sm:$0xff] %v1306
      %1309 = vst [vmem:[#allocation2 + $0xa8] sm:$0xff] %v1307
      %1310 = vrot.lane.b32.xlu0 %v1288, 15
      %v1311 = vpop.permute.xlu0 %1310
      %1312 = vrot.lane.b32.xlu0 %v1289, 15
      %v1313 = vpop.permute.xlu0 %1312
      %v1314 = vsel %vm1054, %v1311, %v1313
      %v1315 = vsel %vm1054, %v1313, %v1311
      %v1316 = vmul.f32 %v1315, %v1061
      %v1317 = vmul.f32 %v1314, %v1065
      %1318 = vst [vmem:[#allocation2 + $0xb0] sm:$0xff] %v1316
      %1319 = vst [vmem:[#allocation2 + $0xb8] sm:$0xff] %v1317
      %1320 = vrot.lane.b32.xlu0 %v1288, 1
      %v1321 = vpop.permute.xlu0 %1320
      %1322 = vrot.lane.b32.xlu0 %v1289, 1
      %v1323 = vpop.permute.xlu0 %1322
      %v1324 = vsel %vm1076, %v1321, %v1323
      %v1325 = vsel %vm1076, %v1323, %v1321
      %v1326 = vmul.f32 %v1325, %v1083
      %v1327 = vmul.f32 %v1324, %v1087
      %1328 = vst [vmem:[#allocation2 + $0xc0] sm:$0xff] %v1326
      %1329 = vst [vmem:[#allocation2 + $0xc8] sm:$0xff] %v1327
      %1330 = vst [vmem:[#allocation2 + $0xd0] sm:$0xff] %v1288
      %1331 = vst [vmem:[#allocation2 + $0xd8] sm:$0xff] %v1289
      %1332 = vrot.lane.b32.xlu0 %v1288, 127
      %v1333 = vpop.permute.xlu0 %1332
      %1334 = vrot.lane.b32.xlu0 %v1289, 127
      %v1335 = vpop.permute.xlu0 %1334
      %v1336 = vsel %vm1100, %v1333, %v1335
      %v1337 = vsel %vm1100, %v1335, %v1333
      %v1338 = vmul.f32 %v1336, %v1107
      %v1339 = vmul.f32 %v1337, %v1111
      %1340 = vst [vmem:[#allocation2 + $0xe0] sm:$0xff] %v1338
      %1341 = vst [vmem:[#allocation2 + $0xe8] sm:$0xff] %v1339
      %1342 = vrot.lane.b32.xlu0 %v1288, 113
      %v1343 = vpop.permute.xlu0 %1342
      %1344 = vrot.lane.b32.xlu0 %v1289, 113
      %v1345 = vpop.permute.xlu0 %1344
      %v1346 = vsel %vm1122, %v1343, %v1345
      %v1347 = vsel %vm1122, %v1345, %v1343
      %v1348 = vmul.f32 %v1346, %v1129
      %v1349 = vmul.f32 %v1347, %v1133
      %1350 = vst [vmem:[#allocation2 + $0xf0] sm:$0xff] %v1348
      %1351 = vst [vmem:[#allocation2 + $0xf8] sm:$0xff] %v1349
      %1352 = vrot.lane.b32.xlu0 %v1288, 112
      %v1353 = vpop.permute.xlu0 %1352
      %1354 = vrot.lane.b32.xlu0 %v1289, 112
      %v1355 = vpop.permute.xlu0 %1354
      %v1356 = vsel %vm1144, %v1353, %v1355
      %v1357 = vsel %vm1144, %v1355, %v1353
      %v1358 = vmul.f32 %v1356, %v1151
      %v1359 = vmul.f32 %v1357, %v1155
      %1360 = vst [vmem:[#allocation2 + $0x100] sm:$0xff] %v1358
      %1361 = vst [vmem:[#allocation2 + $0x108] sm:$0xff] %v1359
      %1362 = vrot.lane.b32.xlu0 %v1288, 111
      %v1363 = vpop.permute.xlu0 %1362
      %1364 = vrot.lane.b32.xlu0 %v1289, 111
      %v1365 = vpop.permute.xlu0 %1364
      %v1366 = vsel %vm1166, %v1363, %v1365
      %v1367 = vsel %vm1166, %v1365, %v1363
      %v1368 = vmul.f32 %v1366, %v1173
      %v1369 = vmul.f32 %v1367, %v1177
      %1370 = vst [vmem:[#allocation2 + $0x110] sm:$0xff] %v1368
      %1371 = vst [vmem:[#allocation2 + $0x118] sm:$0xff] %v1369
      %v1372 = vld [vmem:[#allocation2] sm:$0xff]
      %v1373 = vld [vmem:[#allocation2 + $0x8] sm:$0xff]
      %v1374 = vld [vmem:[#allocation2 + $0x10] sm:$0xff]
      %v1375 = vld [vmem:[#allocation2 + $0x18] sm:$0xff]
      %v1376 = vld [vmem:[#allocation2 + $0x20] sm:$0xff]
      %v1377 = vld [vmem:[#allocation2 + $0x28] sm:$0xff]
      %v1378 = vld [vmem:[#allocation2 + $0x30] sm:$0xff]
      %v1379 = vld [vmem:[#allocation2 + $0x38] sm:$0xff]
      %v1380 = vld [vmem:[#allocation2 + $0x40] sm:$0xff]
      %v1381 = vld [vmem:[#allocation2 + $0x48] sm:$0xff]
      %v1382 = vld [vmem:[#allocation2 + $0x50] sm:$0xff]
      %v1383 = vld [vmem:[#allocation2 + $0x58] sm:$0xff]
      %v1384 = vld [vmem:[#allocation2 + $0x60] sm:$0xff]
      %v1385 = vld [vmem:[#allocation2 + $0x68] sm:$0xff]
      %v1386 = vld [vmem:[#allocation2 + $0x70] sm:$0xff]
      %v1387 = vld [vmem:[#allocation2 + $0x78] sm:$0xff]
      %v1388 = vld [vmem:[#allocation2 + $0x80] sm:$0xff]
      %v1389 = vld [vmem:[#allocation2 + $0x88] sm:$0xff]
      %v1390 = vld [vmem:[#allocation2 + $0x90] sm:$0xff]
      %v1391 = vld [vmem:[#allocation2 + $0x98] sm:$0xff]
      %v1392 = vld [vmem:[#allocation2 + $0xa0] sm:$0xff]
      %v1393 = vld [vmem:[#allocation2 + $0xa8] sm:$0xff]
      %v1394 = vld [vmem:[#allocation2 + $0xb0] sm:$0xff]
      %v1395 = vld [vmem:[#allocation2 + $0xb8] sm:$0xff]
      %v1396 = vld [vmem:[#allocation2 + $0xc0] sm:$0xff]
      %v1397 = vld [vmem:[#allocation2 + $0xc8] sm:$0xff]
      %v1398 = vld [vmem:[#allocation2 + $0xd0] sm:$0xff]
      %v1399 = vld [vmem:[#allocation2 + $0xd8] sm:$0xff]
      %v1400 = vld [vmem:[#allocation2 + $0xe0] sm:$0xff]
      %v1401 = vld [vmem:[#allocation2 + $0xe8] sm:$0xff]
      %v1402 = vld [vmem:[#allocation2 + $0xf0] sm:$0xff]
      %v1403 = vld [vmem:[#allocation2 + $0xf8] sm:$0xff]
      %v1404 = vld [vmem:[#allocation2 + $0x100] sm:$0xff]
      %v1405 = vld [vmem:[#allocation2 + $0x108] sm:$0xff]
      %v1406 = vld [vmem:[#allocation2 + $0x110] sm:$0xff]
      %v1407 = vld [vmem:[#allocation2 + $0x118] sm:$0xff]
      %v1408 = vld [vmem:[%s7] sm:$0xff]
      %v1409 = vld [vmem:[%s7 + $0x8] sm:$0xff]
      %v1410 = vld [vmem:[%s37] sm:$0xff]
      %1412 = vset.pattern.permute.xlu0 0
      %1413 = vperm.xlu0 %1412, %v1410
      %v1414 = vpop.permute.xlu0 %1413
      %vm1416 = vcmask 130048
      %v1418 = vsel %vm1416, %v1409, 0
      %1420 = vmatprep.subr.mxu0 %v1403
      %1421 = vmatpush1.msra.mxu0 %v1402
      %1422 = vmatprep.subr.mxu0 %v1401
      %1423 = vmatpush1.msra.mxu0 %v1400
      %1424 = vmatprep.subr.mxu0 %v1399
      %1425 = vmatpush1.msra.mxu0 %v1398
      %1426 = vmatprep.subr.mxu0 %v1397
      %1427 = vmatpush1.msra.mxu0 %v1396
      %1428 = vmatprep.subr.mxu0 %v1395
      %1429 = vmatpush1.msra.mxu0 %v1394
      %1430 = vmatprep.subr.mxu0 %v1393
      %1431 = vmatpush1.msra.mxu0 %v1392
      %1432 = vmatprep.subr.mxu0 %v1391
      %1433 = vmatpush1.msra.mxu0 %v1390
      %1434 = vmatprep.subr.mxu0 %v1389
      %1435 = vmatpush1.msra.mxu0 %v1388
      %1436 = vmatprep.subr.mxu0 %v1387
      %1437 = vmatpush1.msra.mxu0 %v1386
      %1438 = vmatprep.subr.mxu0 %v1385
      %1439 = vmatpush1.msra.mxu0 %v1384
      %1440 = vmatprep.subr.mxu0 %v1383
      %1441 = vmatpush1.msra.mxu0 %v1382
      %1442 = vmatprep.subr.mxu0 %v1381
      %1443 = vmatpush1.msra.mxu0 %v1380
      %1444 = vmatprep.subr.mxu0 %v1379
      %1445 = vmatpush1.msra.mxu0 %v1378
      %1446 = vmatprep.subr.mxu0 %v1377
      %1447 = vmatpush1.msra.mxu0 %v1376
      %1448 = vmatprep.subr.mxu0 %v1375
      %1449 = vmatpush1.msra.mxu0 %v1374
      %1450 = vmatprep.subr.mxu0 %v1373
      %1451 = vmatpush1.msra.mxu0 %v1372
      %1452 = vmatprep.subr.mxu0 0.0
      %1453 = vmatpush2.msra.mxu0 0.0
      %1454 = vmatprep.subr.mxu0 0.0
      %1455 = vmatpush2.msra.mxu0 0.0
      %1456 = vmatprep.subr.mxu0 0.0
      %1457 = vmatpush2.msra.mxu0 0.0
      %1458 = vmatprep.subr.mxu0 0.0
      %1459 = vmatpush2.msra.mxu0 0.0
      %1460 = vmatprep.subr.mxu0 0.0
      %1461 = vmatpush2.msra.mxu0 0.0
      %1462 = vmatprep.subr.mxu0 0.0
      %1463 = vmatpush2.msra.mxu0 0.0
      %1464 = vmatprep.subr.mxu0 0.0
      %1465 = vmatpush2.msra.mxu0 0.0
      %1466 = vmatprep.subr.mxu0 0.0
      %1467 = vmatpush2.msra.mxu0 0.0
      %1468 = vmatprep.subr.mxu0 0.0
      %1469 = vmatpush2.msra.mxu0 0.0
      %1470 = vmatprep.subr.mxu0 0.0
      %1471 = vmatpush2.msra.mxu0 0.0
      %1472 = vmatprep.subr.mxu0 0.0
      %1473 = vmatpush2.msra.mxu0 0.0
      %1474 = vmatprep.subr.mxu0 0.0
      %1475 = vmatpush2.msra.mxu0 0.0
      %1476 = vmatprep.subr.mxu0 0.0
      %1477 = vmatpush2.msra.mxu0 0.0
      %1478 = vmatprep.subr.mxu0 0.0
      %1479 = vmatpush2.msra.mxu0 0.0
      %1480 = vmatprep.subr.mxu0 %v1407
      %1481 = vmatpush2.msra.mxu0 %v1406
      %1482 = vmatprep.subr.mxu0 %v1405
      %1483 = vmatpush2.msra.mxu0 %v1404
      %1484 = vmatprep.mubr.f32.mxu0 %v1418
      %1485 = vmatmul.mubr.f32.gmra.mxu0 %v1408
      %v1486 = vpop.f32.mrf.mxu0
      %v1487 = vadd.f32 %v1414, %v1486
      %v1488 = vpop.f32.mrf.mxu0
      %v1489 = vadd.f32 %v1414, %v1488
      %1490 = vdwg.mxu0
      %vm1491 = vcmp.ge.f32.partialorder %v1487, 0.0
      %vm1492 = vcmp.ge.f32.partialorder %v1489, 0.0
      %v1493 = vmul.f32 %v1487, 0.2
      %v1494 = vmul.f32 %v1489, 0.2
      %v1495 = vsel %vm1491, %v1487, %v1493
      %v1496 = vsel %vm1492, %v1489, %v1494
      %1497 = vrot.lane.b32.xlu0 %v1495, 17
      %v1498 = vpop.permute.xlu0 %1497
      %1499 = vrot.lane.b32.xlu0 %v1496, 17
      %v1500 = vpop.permute.xlu0 %1499
      %v1501 = vsel %vm1010, %v1498, %v1500
      %v1502 = vsel %vm1010, %v1500, %v1498
      %v1503 = vmul.f32 %v1502, %v1017
      %v1504 = vmul.f32 %v1501, %v1021
      %1505 = vst [vmem:[#allocation2 + $0x120] sm:$0xff] %v1503
      %1506 = vst [vmem:[#allocation2 + $0x128] sm:$0xff] %v1504
      %1507 = vrot.lane.b32.xlu0 %v1495, 16
      %v1508 = vpop.permute.xlu0 %1507
      %1509 = vrot.lane.b32.xlu0 %v1496, 16
      %v1510 = vpop.permute.xlu0 %1509
      %v1511 = vsel %vm1032, %v1508, %v1510
      %v1512 = vsel %vm1032, %v1510, %v1508
      %v1513 = vmul.f32 %v1512, %v1039
      %v1514 = vmul.f32 %v1511, %v1043
      %1515 = vst [vmem:[#allocation2 + $0x130] sm:$0xff] %v1513
      %1516 = vst [vmem:[#allocation2 + $0x138] sm:$0xff] %v1514
      %1517 = vrot.lane.b32.xlu0 %v1495, 15
      %v1518 = vpop.permute.xlu0 %1517
      %1519 = vrot.lane.b32.xlu0 %v1496, 15
      %v1520 = vpop.permute.xlu0 %1519
      %v1521 = vsel %vm1054, %v1518, %v1520
      %v1522 = vsel %vm1054, %v1520, %v1518
      %v1523 = vmul.f32 %v1522, %v1061
      %v1524 = vmul.f32 %v1521, %v1065
      %1525 = vst [vmem:[#allocation2 + $0x140] sm:$0xff] %v1523
      %1526 = vst [vmem:[#allocation2 + $0x148] sm:$0xff] %v1524
      %1527 = vrot.lane.b32.xlu0 %v1495, 1
      %v1528 = vpop.permute.xlu0 %1527
      %1529 = vrot.lane.b32.xlu0 %v1496, 1
      %v1530 = vpop.permute.xlu0 %1529
      %v1531 = vsel %vm1076, %v1528, %v1530
      %v1532 = vsel %vm1076, %v1530, %v1528
      %v1533 = vmul.f32 %v1532, %v1083
      %v1534 = vmul.f32 %v1531, %v1087
      %1535 = vst [vmem:[#allocation2 + $0x150] sm:$0xff] %v1533
      %1536 = vst [vmem:[#allocation2 + $0x158] sm:$0xff] %v1534
      %1537 = vst [vmem:[#allocation2 + $0x160] sm:$0xff] %v1495
      %1538 = vst [vmem:[#allocation2 + $0x168] sm:$0xff] %v1496
      %1539 = vrot.lane.b32.xlu0 %v1495, 127
      %v1540 = vpop.permute.xlu0 %1539
      %1541 = vrot.lane.b32.xlu0 %v1496, 127
      %v1542 = vpop.permute.xlu0 %1541
      %v1543 = vsel %vm1100, %v1540, %v1542
      %v1544 = vsel %vm1100, %v1542, %v1540
      %v1545 = vmul.f32 %v1543, %v1107
      %v1546 = vmul.f32 %v1544, %v1111
      %1547 = vst [vmem:[#allocation2 + $0x170] sm:$0xff] %v1545
      %1548 = vst [vmem:[#allocation2 + $0x178] sm:$0xff] %v1546
      %1549 = vrot.lane.b32.xlu0 %v1495, 113
      %v1550 = vpop.permute.xlu0 %1549
      %1551 = vrot.lane.b32.xlu0 %v1496, 113
      %v1552 = vpop.permute.xlu0 %1551
      %v1553 = vsel %vm1122, %v1550, %v1552
      %v1554 = vsel %vm1122, %v1552, %v1550
      %v1555 = vmul.f32 %v1553, %v1129
      %v1556 = vmul.f32 %v1554, %v1133
      %1557 = vst [vmem:[#allocation2 + $0x180] sm:$0xff] %v1555
      %1558 = vst [vmem:[#allocation2 + $0x188] sm:$0xff] %v1556
      %1559 = vrot.lane.b32.xlu0 %v1495, 112
      %v1560 = vpop.permute.xlu0 %1559
      %1561 = vrot.lane.b32.xlu0 %v1496, 112
      %v1562 = vpop.permute.xlu0 %1561
      %v1563 = vsel %vm1144, %v1560, %v1562
      %v1564 = vsel %vm1144, %v1562, %v1560
      %v1565 = vmul.f32 %v1563, %v1151
      %v1566 = vmul.f32 %v1564, %v1155
      %1567 = vst [vmem:[#allocation2 + $0x190] sm:$0xff] %v1565
      %1568 = vst [vmem:[#allocation2 + $0x198] sm:$0xff] %v1566
      %1569 = vrot.lane.b32.xlu0 %v1495, 111
      %v1570 = vpop.permute.xlu0 %1569
      %1571 = vrot.lane.b32.xlu0 %v1496, 111
      %v1572 = vpop.permute.xlu0 %1571
      %v1573 = vsel %vm1166, %v1570, %v1572
      %v1574 = vsel %vm1166, %v1572, %v1570
      %v1575 = vmul.f32 %v1573, %v1173
      %v1576 = vmul.f32 %v1574, %v1177
      %1577 = vst [vmem:[#allocation2 + $0x1a0] sm:$0xff] %v1575
      %1578 = vst [vmem:[#allocation2 + $0x1a8] sm:$0xff] %v1576
      %v1579 = vld [vmem:[#allocation2] sm:$0xff]
      %v1580 = vld [vmem:[#allocation2 + $0x8] sm:$0xff]
      %v1581 = vld [vmem:[#allocation2 + $0x10] sm:$0xff]
      %v1582 = vld [vmem:[#allocation2 + $0x18] sm:$0xff]
      %v1583 = vld [vmem:[#allocation2 + $0x20] sm:$0xff]
      %v1584 = vld [vmem:[#allocation2 + $0x28] sm:$0xff]
      %v1585 = vld [vmem:[#allocation2 + $0x30] sm:$0xff]
      %v1586 = vld [vmem:[#allocation2 + $0x38] sm:$0xff]
      %v1587 = vld [vmem:[#allocation2 + $0x40] sm:$0xff]
      %v1588 = vld [vmem:[#allocation2 + $0x48] sm:$0xff]
      %v1589 = vld [vmem:[#allocation2 + $0x50] sm:$0xff]
      %v1590 = vld [vmem:[#allocation2 + $0x58] sm:$0xff]
      %v1591 = vld [vmem:[#allocation2 + $0x60] sm:$0xff]
      %v1592 = vld [vmem:[#allocation2 + $0x68] sm:$0xff]
      %v1593 = vld [vmem:[#allocation2 + $0x70] sm:$0xff]
      %v1594 = vld [vmem:[#allocation2 + $0x78] sm:$0xff]
      %v1595 = vld [vmem:[#allocation2 + $0x80] sm:$0xff]
      %v1596 = vld [vmem:[#allocation2 + $0x88] sm:$0xff]
      %v1597 = vld [vmem:[#allocation2 + $0x90] sm:$0xff]
      %v1598 = vld [vmem:[#allocation2 + $0x98] sm:$0xff]
      %v1599 = vld [vmem:[#allocation2 + $0xa0] sm:$0xff]
      %v1600 = vld [vmem:[#allocation2 + $0xa8] sm:$0xff]
      %v1601 = vld [vmem:[#allocation2 + $0xb0] sm:$0xff]
      %v1602 = vld [vmem:[#allocation2 + $0xb8] sm:$0xff]
      %v1603 = vld [vmem:[#allocation2 + $0xc0] sm:$0xff]
      %v1604 = vld [vmem:[#allocation2 + $0xc8] sm:$0xff]
      %v1605 = vld [vmem:[#allocation2 + $0xd0] sm:$0xff]
      %v1606 = vld [vmem:[#allocation2 + $0xd8] sm:$0xff]
      %v1607 = vld [vmem:[#allocation2 + $0xe0] sm:$0xff]
      %v1608 = vld [vmem:[#allocation2 + $0xe8] sm:$0xff]
      %v1609 = vld [vmem:[#allocation2 + $0xf0] sm:$0xff]
      %v1610 = vld [vmem:[#allocation2 + $0xf8] sm:$0xff]
      %v1611 = vld [vmem:[#allocation2 + $0x100] sm:$0xff]
      %v1612 = vld [vmem:[#allocation2 + $0x108] sm:$0xff]
      %v1613 = vld [vmem:[#allocation2 + $0x110] sm:$0xff]
      %v1614 = vld [vmem:[#allocation2 + $0x118] sm:$0xff]
      %v1615 = vld [vmem:[#allocation2 + $0x120] sm:$0xff]
      %v1616 = vld [vmem:[#allocation2 + $0x128] sm:$0xff]
      %v1617 = vld [vmem:[#allocation2 + $0x130] sm:$0xff]
      %v1618 = vld [vmem:[#allocation2 + $0x138] sm:$0xff]
      %v1619 = vld [vmem:[#allocation2 + $0x140] sm:$0xff]
      %v1620 = vld [vmem:[#allocation2 + $0x148] sm:$0xff]
      %v1621 = vld [vmem:[#allocation2 + $0x150] sm:$0xff]
      %v1622 = vld [vmem:[#allocation2 + $0x158] sm:$0xff]
      %v1623 = vld [vmem:[#allocation2 + $0x160] sm:$0xff]
      %v1624 = vld [vmem:[#allocation2 + $0x168] sm:$0xff]
      %v1625 = vld [vmem:[#allocation2 + $0x170] sm:$0xff]
      %v1626 = vld [vmem:[#allocation2 + $0x178] sm:$0xff]
      %v1627 = vld [vmem:[#allocation2 + $0x180] sm:$0xff]
      %v1628 = vld [vmem:[#allocation2 + $0x188] sm:$0xff]
      %v1629 = vld [vmem:[#allocation2 + $0x190] sm:$0xff]
      %v1630 = vld [vmem:[#allocation2 + $0x198] sm:$0xff]
      %v1631 = vld [vmem:[#allocation2 + $0x1a0] sm:$0xff]
      %v1632 = vld [vmem:[#allocation2 + $0x1a8] sm:$0xff]
      %v1633 = vld [vmem:[%s9] sm:$0xff]
      %v1634 = vld [vmem:[%s9 + $0x8] sm:$0xff]
      %v1635 = vld [vmem:[%s39] sm:$0xff]
      %1637 = vset.pattern.permute.xlu0 0
      %1638 = vperm.xlu0 %1637, %v1635
      %v1639 = vpop.permute.xlu0 %1638
      %vm1641 = vcmask 719872
      %v1643 = vsel %vm1641, %v1634, 0
      %1645 = vmatprep.subr.mxu0 %v1610
      %1646 = vmatpush1.msra.mxu0 %v1609
      %1647 = vmatprep.subr.mxu0 %v1608
      %1648 = vmatpush1.msra.mxu0 %v1607
      %1649 = vmatprep.subr.mxu0 %v1606
      %1650 = vmatpush1.msra.mxu0 %v1605
      %1651 = vmatprep.subr.mxu0 %v1604
      %1652 = vmatpush1.msra.mxu0 %v1603
      %1653 = vmatprep.subr.mxu0 %v1602
      %1654 = vmatpush1.msra.mxu0 %v1601
      %1655 = vmatprep.subr.mxu0 %v1600
      %1656 = vmatpush1.msra.mxu0 %v1599
      %1657 = vmatprep.subr.mxu0 %v1598
      %1658 = vmatpush1.msra.mxu0 %v1597
      %1659 = vmatprep.subr.mxu0 %v1596
      %1660 = vmatpush1.msra.mxu0 %v1595
      %1661 = vmatprep.subr.mxu0 %v1594
      %1662 = vmatpush1.msra.mxu0 %v1593
      %1663 = vmatprep.subr.mxu0 %v1592
      %1664 = vmatpush1.msra.mxu0 %v1591
      %1665 = vmatprep.subr.mxu0 %v1590
      %1666 = vmatpush1.msra.mxu0 %v1589
      %1667 = vmatprep.subr.mxu0 %v1588
      %1668 = vmatpush1.msra.mxu0 %v1587
      %1669 = vmatprep.subr.mxu0 %v1586
      %1670 = vmatpush1.msra.mxu0 %v1585
      %1671 = vmatprep.subr.mxu0 %v1584
      %1672 = vmatpush1.msra.mxu0 %v1583
      %1673 = vmatprep.subr.mxu0 %v1582
      %1674 = vmatpush1.msra.mxu0 %v1581
      %1675 = vmatprep.subr.mxu0 %v1580
      %1676 = vmatpush1.msra.mxu0 %v1579
      %1677 = vmatprep.subr.mxu0 0.0
      %1678 = vmatpush2.msra.mxu0 0.0
      %1679 = vmatprep.subr.mxu0 0.0
      %1680 = vmatpush2.msra.mxu0 0.0
      %1681 = vmatprep.subr.mxu0 0.0
      %1682 = vmatpush2.msra.mxu0 0.0
      %1683 = vmatprep.subr.mxu0 0.0
      %1684 = vmatpush2.msra.mxu0 0.0
      %1685 = vmatprep.subr.mxu0 0.0
      %1686 = vmatpush2.msra.mxu0 0.0
      %1687 = vmatprep.subr.mxu0 %v1632
      %1688 = vmatpush2.msra.mxu0 %v1631
      %1689 = vmatprep.subr.mxu0 %v1630
      %1690 = vmatpush2.msra.mxu0 %v1629
      %1691 = vmatprep.subr.mxu0 %v1628
      %1692 = vmatpush2.msra.mxu0 %v1627
      %1693 = vmatprep.subr.mxu0 %v1626
      %1694 = vmatpush2.msra.mxu0 %v1625
      %1695 = vmatprep.subr.mxu0 %v1624
      %1696 = vmatpush2.msra.mxu0 %v1623
      %1697 = vmatprep.subr.mxu0 %v1622
      %1698 = vmatpush2.msra.mxu0 %v1621
      %1699 = vmatprep.subr.mxu0 %v1620
      %1700 = vmatpush2.msra.mxu0 %v1619
      %1701 = vmatprep.subr.mxu0 %v1618
      %1702 = vmatpush2.msra.mxu0 %v1617
      %1703 = vmatprep.subr.mxu0 %v1616
      %1704 = vmatpush2.msra.mxu0 %v1615
      %1705 = vmatprep.subr.mxu0 %v1614
      %1706 = vmatpush2.msra.mxu0 %v1613
      %1707 = vmatprep.subr.mxu0 %v1612
      %1708 = vmatpush2.msra.mxu0 %v1611
      %1709 = vmatprep.mubr.f32.mxu0 %v1643
      %1710 = vmatmul.mubr.f32.gmra.mxu0 %v1633
      %v1711 = vpop.f32.mrf.mxu0
      %v1712 = vadd.f32 %v1639, %v1711
      %v1713 = vpop.f32.mrf.mxu0
      %v1714 = vadd.f32 %v1639, %v1713
      %1715 = vdwg.mxu0
      %vm1716 = vcmp.ge.f32.partialorder %v1712, 0.0
      %vm1717 = vcmp.ge.f32.partialorder %v1714, 0.0
      %v1718 = vmul.f32 %v1712, 0.2
      %v1719 = vmul.f32 %v1714, 0.2
      %v1720 = vsel %vm1716, %v1712, %v1718
      %v1721 = vsel %vm1717, %v1714, %v1719
      %1722 = vrot.lane.b32.xlu0 %v1720, 17
      %v1723 = vpop.permute.xlu0 %1722
      %1724 = vrot.lane.b32.xlu0 %v1721, 17
      %v1725 = vpop.permute.xlu0 %1724
      %v1726 = vsel %vm1010, %v1723, %v1725
      %v1727 = vsel %vm1010, %v1725, %v1723
      %v1728 = vmul.f32 %v1727, %v1017
      %v1729 = vmul.f32 %v1726, %v1021
      %1730 = vst [vmem:[#allocation2 + $0x1b0] sm:$0xff] %v1728
      %1731 = vst [vmem:[#allocation2 + $0x1b8] sm:$0xff] %v1729
      %1732 = vrot.lane.b32.xlu0 %v1720, 16
      %v1733 = vpop.permute.xlu0 %1732
      %1734 = vrot.lane.b32.xlu0 %v1721, 16
      %v1735 = vpop.permute.xlu0 %1734
      %v1736 = vsel %vm1032, %v1733, %v1735
      %v1737 = vsel %vm1032, %v1735, %v1733
      %v1738 = vmul.f32 %v1737, %v1039
      %v1739 = vmul.f32 %v1736, %v1043
      %1740 = vst [vmem:[#allocation2 + $0x1c0] sm:$0xff] %v1738
      %1741 = vst [vmem:[#allocation2 + $0x1c8] sm:$0xff] %v1739
      %1742 = vrot.lane.b32.xlu0 %v1720, 15
      %v1743 = vpop.permute.xlu0 %1742
      %1744 = vrot.lane.b32.xlu0 %v1721, 15
      %v1745 = vpop.permute.xlu0 %1744
      %v1746 = vsel %vm1054, %v1743, %v1745
      %v1747 = vsel %vm1054, %v1745, %v1743
      %v1748 = vmul.f32 %v1747, %v1061
      %v1749 = vmul.f32 %v1746, %v1065
      %1750 = vst [vmem:[#allocation2 + $0x1d0] sm:$0xff] %v1748
      %1751 = vst [vmem:[#allocation2 + $0x1d8] sm:$0xff] %v1749
      %1752 = vrot.lane.b32.xlu0 %v1720, 1
      %v1753 = vpop.permute.xlu0 %1752
      %1754 = vrot.lane.b32.xlu0 %v1721, 1
      %v1755 = vpop.permute.xlu0 %1754
      %v1756 = vsel %vm1076, %v1753, %v1755
      %v1757 = vsel %vm1076, %v1755, %v1753
      %v1758 = vmul.f32 %v1757, %v1083
      %v1759 = vmul.f32 %v1756, %v1087
      %1760 = vst [vmem:[#allocation2 + $0x1e0] sm:$0xff] %v1758
      %1761 = vst [vmem:[#allocation2 + $0x1e8] sm:$0xff] %v1759
      %1762 = vst [vmem:[#allocation2 + $0x1f0] sm:$0xff] %v1720
      %1763 = vst [vmem:[#allocation2 + $0x1f8] sm:$0xff] %v1721
      %1764 = vrot.lane.b32.xlu0 %v1720, 127
      %v1765 = vpop.permute.xlu0 %1764
      %1766 = vrot.lane.b32.xlu0 %v1721, 127
      %v1767 = vpop.permute.xlu0 %1766
      %v1768 = vsel %vm1100, %v1765, %v1767
      %v1769 = vsel %vm1100, %v1767, %v1765
      %v1770 = vmul.f32 %v1768, %v1107
      %v1771 = vmul.f32 %v1769, %v1111
      %1772 = vst [vmem:[#allocation2 + $0x200] sm:$0xff] %v1770
      %1773 = vst [vmem:[#allocation2 + $0x208] sm:$0xff] %v1771
      %1774 = vrot.lane.b32.xlu0 %v1720, 113
      %v1775 = vpop.permute.xlu0 %1774
      %1776 = vrot.lane.b32.xlu0 %v1721, 113
      %v1777 = vpop.permute.xlu0 %1776
      %v1778 = vsel %vm1122, %v1775, %v1777
      %v1779 = vsel %vm1122, %v1777, %v1775
      %v1780 = vmul.f32 %v1778, %v1129
      %v1781 = vmul.f32 %v1779, %v1133
      %1782 = vst [vmem:[#allocation2 + $0x210] sm:$0xff] %v1780
      %1783 = vst [vmem:[#allocation2 + $0x218] sm:$0xff] %v1781
      %1784 = vrot.lane.b32.xlu0 %v1720, 112
      %v1785 = vpop.permute.xlu0 %1784
      %1786 = vrot.lane.b32.xlu0 %v1721, 112
      %v1787 = vpop.permute.xlu0 %1786
      %v1788 = vsel %vm1144, %v1785, %v1787
      %v1789 = vsel %vm1144, %v1787, %v1785
      %v1790 = vmul.f32 %v1788, %v1151
      %v1791 = vmul.f32 %v1789, %v1155
      %1792 = vst [vmem:[#allocation2 + $0x220] sm:$0xff] %v1790
      %1793 = vst [vmem:[#allocation2 + $0x228] sm:$0xff] %v1791
      %1794 = vrot.lane.b32.xlu0 %v1720, 111
      %v1795 = vpop.permute.xlu0 %1794
      %1796 = vrot.lane.b32.xlu0 %v1721, 111
      %v1797 = vpop.permute.xlu0 %1796
      %v1798 = vsel %vm1166, %v1795, %v1797
      %v1799 = vsel %vm1166, %v1797, %v1795
      %v1800 = vmul.f32 %v1798, %v1173
      %v1801 = vmul.f32 %v1799, %v1177
      %1802 = vst [vmem:[#allocation2 + $0x230] sm:$0xff] %v1800
      %1803 = vst [vmem:[#allocation2 + $0x238] sm:$0xff] %v1801
      %v1804 = vld [vmem:[#allocation2] sm:$0xff]
      %v1805 = vld [vmem:[#allocation2 + $0x8] sm:$0xff]
      %v1806 = vld [vmem:[#allocation2 + $0x10] sm:$0xff]
      %v1807 = vld [vmem:[#allocation2 + $0x18] sm:$0xff]
      %v1808 = vld [vmem:[#allocation2 + $0x20] sm:$0xff]
      %v1809 = vld [vmem:[#allocation2 + $0x28] sm:$0xff]
      %v1810 = vld [vmem:[#allocation2 + $0x30] sm:$0xff]
      %v1811 = vld [vmem:[#allocation2 + $0x38] sm:$0xff]
      %v1812 = vld [vmem:[#allocation2 + $0x40] sm:$0xff]
      %v1813 = vld [vmem:[#allocation2 + $0x48] sm:$0xff]
      %v1814 = vld [vmem:[#allocation2 + $0x50] sm:$0xff]
      %v1815 = vld [vmem:[#allocation2 + $0x58] sm:$0xff]
      %v1816 = vld [vmem:[#allocation2 + $0x60] sm:$0xff]
      %v1817 = vld [vmem:[#allocation2 + $0x68] sm:$0xff]
      %v1818 = vld [vmem:[#allocation2 + $0x70] sm:$0xff]
      %v1819 = vld [vmem:[#allocation2 + $0x78] sm:$0xff]
      %v1820 = vld [vmem:[#allocation2 + $0x80] sm:$0xff]
      %v1821 = vld [vmem:[#allocation2 + $0x88] sm:$0xff]
      %v1822 = vld [vmem:[#allocation2 + $0x90] sm:$0xff]
      %v1823 = vld [vmem:[#allocation2 + $0x98] sm:$0xff]
      %v1824 = vld [vmem:[#allocation2 + $0xa0] sm:$0xff]
      %v1825 = vld [vmem:[#allocation2 + $0xa8] sm:$0xff]
      %v1826 = vld [vmem:[#allocation2 + $0xb0] sm:$0xff]
      %v1827 = vld [vmem:[#allocation2 + $0xb8] sm:$0xff]
      %v1828 = vld [vmem:[#allocation2 + $0xc0] sm:$0xff]
      %v1829 = vld [vmem:[#allocation2 + $0xc8] sm:$0xff]
      %v1830 = vld [vmem:[#allocation2 + $0xd0] sm:$0xff]
      %v1831 = vld [vmem:[#allocation2 + $0xd8] sm:$0xff]
      %v1832 = vld [vmem:[#allocation2 + $0xe0] sm:$0xff]
      %v1833 = vld [vmem:[#allocation2 + $0xe8] sm:$0xff]
      %v1834 = vld [vmem:[#allocation2 + $0xf0] sm:$0xff]
      %v1835 = vld [vmem:[#allocation2 + $0xf8] sm:$0xff]
      %v1836 = vld [vmem:[#allocation2 + $0x100] sm:$0xff]
      %v1837 = vld [vmem:[#allocation2 + $0x108] sm:$0xff]
      %v1838 = vld [vmem:[#allocation2 + $0x110] sm:$0xff]
      %v1839 = vld [vmem:[#allocation2 + $0x118] sm:$0xff]
      %v1840 = vld [vmem:[#allocation2 + $0x120] sm:$0xff]
      %v1841 = vld [vmem:[#allocation2 + $0x128] sm:$0xff]
      %v1842 = vld [vmem:[#allocation2 + $0x130] sm:$0xff]
      %v1843 = vld [vmem:[#allocation2 + $0x138] sm:$0xff]
      %v1844 = vld [vmem:[#allocation2 + $0x140] sm:$0xff]
      %v1845 = vld [vmem:[#allocation2 + $0x148] sm:$0xff]
      %v1846 = vld [vmem:[#allocation2 + $0x150] sm:$0xff]
      %v1847 = vld [vmem:[#allocation2 + $0x158] sm:$0xff]
      %v1848 = vld [vmem:[#allocation2 + $0x160] sm:$0xff]
      %v1849 = vld [vmem:[#allocation2 + $0x168] sm:$0xff]
      %v1850 = vld [vmem:[#allocation2 + $0x170] sm:$0xff]
      %v1851 = vld [vmem:[#allocation2 + $0x178] sm:$0xff]
      %v1852 = vld [vmem:[#allocation2 + $0x180] sm:$0xff]
      %v1853 = vld [vmem:[#allocation2 + $0x188] sm:$0xff]
      %v1854 = vld [vmem:[#allocation2 + $0x190] sm:$0xff]
      %v1855 = vld [vmem:[#allocation2 + $0x198] sm:$0xff]
      %v1856 = vld [vmem:[#allocation2 + $0x1a0] sm:$0xff]
      %v1857 = vld [vmem:[#allocation2 + $0x1a8] sm:$0xff]
      %v1858 = vld [vmem:[#allocation2 + $0x1b0] sm:$0xff]
      %v1859 = vld [vmem:[#allocation2 + $0x1b8] sm:$0xff]
      %v1860 = vld [vmem:[#allocation2 + $0x1c0] sm:$0xff]
      %v1861 = vld [vmem:[#allocation2 + $0x1c8] sm:$0xff]
      %v1862 = vld [vmem:[#allocation2 + $0x1d0] sm:$0xff]
      %v1863 = vld [vmem:[#allocation2 + $0x1d8] sm:$0xff]
      %v1864 = vld [vmem:[#allocation2 + $0x1e0] sm:$0xff]
      %v1865 = vld [vmem:[#allocation2 + $0x1e8] sm:$0xff]
      %v1866 = vld [vmem:[#allocation2 + $0x1f0] sm:$0xff]
      %v1867 = vld [vmem:[#allocation2 + $0x1f8] sm:$0xff]
      %v1868 = vld [vmem:[#allocation2 + $0x200] sm:$0xff]
      %v1869 = vld [vmem:[#allocation2 + $0x208] sm:$0xff]
      %v1870 = vld [vmem:[#allocation2 + $0x210] sm:$0xff]
      %v1871 = vld [vmem:[#allocation2 + $0x218] sm:$0xff]
      %v1872 = vld [vmem:[#allocation2 + $0x220] sm:$0xff]
      %v1873 = vld [vmem:[#allocation2 + $0x228] sm:$0xff]
      %v1874 = vld [vmem:[#allocation2 + $0x230] sm:$0xff]
      %v1875 = vld [vmem:[#allocation2 + $0x238] sm:$0xff]
      %v1876 = vld [vmem:[%s11] sm:$0xff]
      %v1877 = vld [vmem:[%s11 + $0x8] sm:$0xff]
      %v1878 = vld [vmem:[%s11 + $0x10] sm:$0xff]
      %v1879 = vld [vmem:[%s41] sm:$0xff]
      %1881 = vset.pattern.permute.xlu0 0
      %1882 = vperm.xlu0 %1881, %v1879
      %v1883 = vpop.permute.xlu0 %1882
      %vm1885 = vcmask 261120
      %v1887 = vsel %vm1885, %v1878, 0
      %1889 = vmatprep.subr.mxu0 %v1835
      %1890 = vmatpush1.msra.mxu0 %v1834
      %1891 = vmatprep.subr.mxu0 %v1833
      %1892 = vmatpush1.msra.mxu0 %v1832
      %1893 = vmatprep.subr.mxu0 %v1831
      %1894 = vmatpush1.msra.mxu0 %v1830
      %1895 = vmatprep.subr.mxu0 %v1829
      %1896 = vmatpush1.msra.mxu0 %v1828
      %1897 = vmatprep.subr.mxu0 %v1827
      %1898 = vmatpush1.msra.mxu0 %v1826
      %1899 = vmatprep.subr.mxu0 %v1825
      %1900 = vmatpush1.msra.mxu0 %v1824
      %1901 = vmatprep.subr.mxu0 %v1823
      %1902 = vmatpush1.msra.mxu0 %v1822
      %1903 = vmatprep.subr.mxu0 %v1821
      %1904 = vmatpush1.msra.mxu0 %v1820
      %1905 = vmatprep.subr.mxu0 %v1819
      %1906 = vmatpush1.msra.mxu0 %v1818
      %1907 = vmatprep.subr.mxu0 %v1817
      %1908 = vmatpush1.msra.mxu0 %v1816
      %1909 = vmatprep.subr.mxu0 %v1815
      %1910 = vmatpush1.msra.mxu0 %v1814
      %1911 = vmatprep.subr.mxu0 %v1813
      %1912 = vmatpush1.msra.mxu0 %v1812
      %1913 = vmatprep.subr.mxu0 %v1811
      %1914 = vmatpush1.msra.mxu0 %v1810
      %1915 = vmatprep.subr.mxu0 %v1809
      %1916 = vmatpush1.msra.mxu0 %v1808
      %1917 = vmatprep.subr.mxu0 %v1807
      %1918 = vmatpush1.msra.mxu0 %v1806
      %1919 = vmatprep.subr.mxu0 %v1805
      %1920 = vmatpush1.msra.mxu0 %v1804
      %1921 = vmatprep.subr.mxu0 %v1867
      %1922 = vmatpush2.msra.mxu0 %v1866
      %1923 = vmatprep.subr.mxu0 %v1865
      %1924 = vmatpush2.msra.mxu0 %v1864
      %1925 = vmatprep.subr.mxu0 %v1863
      %1926 = vmatpush2.msra.mxu0 %v1862
      %1927 = vmatprep.subr.mxu0 %v1861
      %1928 = vmatpush2.msra.mxu0 %v1860
      %1929 = vmatprep.subr.mxu0 %v1859
      %1930 = vmatpush2.msra.mxu0 %v1858
      %1931 = vmatprep.subr.mxu0 %v1857
      %1932 = vmatpush2.msra.mxu0 %v1856
      %1933 = vmatprep.subr.mxu0 %v1855
      %1934 = vmatpush2.msra.mxu0 %v1854
      %1935 = vmatprep.subr.mxu0 %v1853
      %1936 = vmatpush2.msra.mxu0 %v1852
      %1937 = vmatprep.subr.mxu0 %v1851
      %1938 = vmatpush2.msra.mxu0 %v1850
      %1939 = vmatprep.subr.mxu0 %v1849
      %1940 = vmatpush2.msra.mxu0 %v1848
      %1941 = vmatprep.subr.mxu0 %v1847
      %1942 = vmatpush2.msra.mxu0 %v1846
      %1943 = vmatprep.subr.mxu0 %v1845
      %1944 = vmatpush2.msra.mxu0 %v1844
      %1945 = vmatprep.subr.mxu0 %v1843
      %1946 = vmatpush2.msra.mxu0 %v1842
      %1947 = vmatprep.subr.mxu0 %v1841
      %1948 = vmatpush2.msra.mxu0 %v1840
      %1949 = vmatprep.subr.mxu0 %v1839
      %1950 = vmatpush2.msra.mxu0 %v1838
      %1951 = vmatprep.subr.mxu0 %v1837
      %1952 = vmatpush2.msra.mxu0 %v1836
      %1953 = vmatprep.mubr.f32.mxu0 %v1877
      %1954 = vmatmul.mubr.f32.gmra.mxu0 %v1876
      %v1955 = vpop.f32.mrf.mxu0
      %v1956 = vadd.f32 %v1883, %v1955
      %v1957 = vpop.f32.mrf.mxu0
      %v1958 = vadd.f32 %v1883, %v1957
      %1959 = vdwg.mxu0
      %1960 = vmatprep.subr.mxu0 0.0
      %1961 = vmatpush1.msra.mxu0 0.0
      %1962 = vmatprep.subr.mxu0 0.0
      %1963 = vmatpush1.msra.mxu0 0.0
      %1964 = vmatprep.subr.mxu0 0.0
      %1965 = vmatpush1.msra.mxu0 0.0
      %1966 = vmatprep.subr.mxu0 0.0
      %1967 = vmatpush1.msra.mxu0 0.0
      %1968 = vmatprep.subr.mxu0 0.0
      %1969 = vmatpush1.msra.mxu0 0.0
      %1970 = vmatprep.subr.mxu0 0.0
      %1971 = vmatpush1.msra.mxu0 0.0
      %1972 = vmatprep.subr.mxu0 0.0
      %1973 = vmatpush1.msra.mxu0 0.0
      %1974 = vmatprep.subr.mxu0 0.0
      %1975 = vmatpush1.msra.mxu0 0.0
      %1976 = vmatprep.subr.mxu0 0.0
      %1977 = vmatpush1.msra.mxu0 0.0
      %1978 = vmatprep.subr.mxu0 0.0
      %1979 = vmatpush1.msra.mxu0 0.0
      %1980 = vmatprep.subr.mxu0 0.0
      %1981 = vmatpush1.msra.mxu0 0.0
      %1982 = vmatprep.subr.mxu0 0.0
      %1983 = vmatpush1.msra.mxu0 0.0
      %1984 = vmatprep.subr.mxu0 %v1875
      %1985 = vmatpush1.msra.mxu0 %v1874
      %1986 = vmatprep.subr.mxu0 %v1873
      %1987 = vmatpush1.msra.mxu0 %v1872
      %1988 = vmatprep.subr.mxu0 %v1871
      %1989 = vmatpush1.msra.mxu0 %v1870
      %1990 = vmatprep.subr.mxu0 %v1869
      %1991 = vmatpush1.msra.mxu0 %v1868
      %1992 = vmatprep.subr.mxu0 0.0
      %1993 = vmatpush2.msra.mxu0 0.0
      %1994 = vmatprep.subr.mxu0 0.0
      %1995 = vmatpush2.msra.mxu0 0.0
      %1996 = vmatprep.subr.mxu0 0.0
      %1997 = vmatpush2.msra.mxu0 0.0
      %1998 = vmatprep.subr.mxu0 0.0
      %1999 = vmatpush2.msra.mxu0 0.0
      %2000 = vmatprep.subr.mxu0 0.0
      %2001 = vmatpush2.msra.mxu0 0.0
      %2002 = vmatprep.subr.mxu0 0.0
      %2003 = vmatpush2.msra.mxu0 0.0
      %2004 = vmatprep.subr.mxu0 0.0
      %2005 = vmatpush2.msra.mxu0 0.0
      %2006 = vmatprep.subr.mxu0 0.0
      %2007 = vmatpush2.msra.mxu0 0.0
      %2008 = vmatprep.subr.mxu0 0.0
      %2009 = vmatpush2.msra.mxu0 0.0
      %2010 = vmatprep.subr.mxu0 0.0
      %2011 = vmatpush2.msra.mxu0 0.0
      %2012 = vmatprep.subr.mxu0 0.0
      %2013 = vmatpush2.msra.mxu0 0.0
      %2014 = vmatprep.subr.mxu0 0.0
      %2015 = vmatpush2.msra.mxu0 0.0
      %2016 = vmatprep.subr.mxu0 0.0
      %2017 = vmatpush2.msra.mxu0 0.0
      %2018 = vmatprep.subr.mxu0 0.0
      %2019 = vmatpush2.msra.mxu0 0.0
      %2020 = vmatprep.subr.mxu0 0.0
      %2021 = vmatpush2.msra.mxu0 0.0
      %2022 = vmatprep.subr.mxu0 0.0
      %2023 = vmatpush2.msra.mxu0 0.0
      %2024 = vmatprep.mubr.f32.mxu0 0.0
      %2025 = vmatmul.mubr.f32.gmra.mxu0 %v1887
      %v2026 = vpop.f32.mrf.mxu0
      %v2027 = vadd.f32 %v1956, %v2026
      %v2028 = vpop.f32.mrf.mxu0
      %v2029 = vadd.f32 %v1958, %v2028
      %2030 = vdwg.mxu0
      %vm2031 = vcmp.ge.f32.partialorder %v2027, 0.0
      %vm2032 = vcmp.ge.f32.partialorder %v2029, 0.0
      %v2033 = vmul.f32 %v2027, 0.2
      %v2034 = vmul.f32 %v2029, 0.2
      %v2035 = vsel %vm2031, %v2027, %v2033
      %v2036 = vsel %vm2032, %v2029, %v2034
      %2037 = vrot.lane.b32.xlu0 %v2035, 17
      %v2038 = vpop.permute.xlu0 %2037
      %2039 = vrot.lane.b32.xlu0 %v2036, 17
      %v2040 = vpop.permute.xlu0 %2039
      %v2041 = vsel %vm1010, %v2038, %v2040
      %v2042 = vsel %vm1010, %v2040, %v2038
      %v2043 = vmul.f32 %v2042, %v1017
      %v2044 = vmul.f32 %v2041, %v1021
      %2045 = vst [vmem:[#allocation2 + $0x240] sm:$0xff] %v2043
      %2046 = vst [vmem:[#allocation2 + $0x248] sm:$0xff] %v2044
      %2047 = vrot.lane.b32.xlu0 %v2035, 16
      %v2048 = vpop.permute.xlu0 %2047
      %2049 = vrot.lane.b32.xlu0 %v2036, 16
      %v2050 = vpop.permute.xlu0 %2049
      %v2051 = vsel %vm1032, %v2048, %v2050
      %v2052 = vsel %vm1032, %v2050, %v2048
      %v2053 = vmul.f32 %v2052, %v1039
      %v2054 = vmul.f32 %v2051, %v1043
      %2055 = vst [vmem:[#allocation2 + $0x250] sm:$0xff] %v2053
      %2056 = vst [vmem:[#allocation2 + $0x258] sm:$0xff] %v2054
      %2057 = vrot.lane.b32.xlu0 %v2035, 15
      %v2058 = vpop.permute.xlu0 %2057
      %2059 = vrot.lane.b32.xlu0 %v2036, 15
      %v2060 = vpop.permute.xlu0 %2059
      %v2061 = vsel %vm1054, %v2058, %v2060
      %v2062 = vsel %vm1054, %v2060, %v2058
      %v2063 = vmul.f32 %v2062, %v1061
      %v2064 = vmul.f32 %v2061, %v1065
      %2065 = vst [vmem:[#allocation2 + $0x260] sm:$0xff] %v2063
      %2066 = vst [vmem:[#allocation2 + $0x268] sm:$0xff] %v2064
      %2067 = vrot.lane.b32.xlu0 %v2035, 1
      %v2068 = vpop.permute.xlu0 %2067
      %2069 = vrot.lane.b32.xlu0 %v2036, 1
      %v2070 = vpop.permute.xlu0 %2069
      %v2071 = vsel %vm1076, %v2068, %v2070
      %v2072 = vsel %vm1076, %v2070, %v2068
      %v2073 = vmul.f32 %v2072, %v1083
      %v2074 = vmul.f32 %v2071, %v1087
      %2075 = vst [vmem:[#allocation2 + $0x270] sm:$0xff] %v2073
      %2076 = vst [vmem:[#allocation2 + $0x278] sm:$0xff] %v2074
      %2077 = vst [vmem:[#allocation2 + $0x280] sm:$0xff] %v2035
      %2078 = vst [vmem:[#allocation2 + $0x288] sm:$0xff] %v2036
      %2079 = vrot.lane.b32.xlu0 %v2035, 127
      %v2080 = vpop.permute.xlu0 %2079
      %2081 = vrot.lane.b32.xlu0 %v2036, 127
      %v2082 = vpop.permute.xlu0 %2081
      %v2083 = vsel %vm1100, %v2080, %v2082
      %v2084 = vsel %vm1100, %v2082, %v2080
      %v2085 = vmul.f32 %v2083, %v1107
      %v2086 = vmul.f32 %v2084, %v1111
      %2087 = vst [vmem:[#allocation2 + $0x290] sm:$0xff] %v2085
      %2088 = vst [vmem:[#allocation2 + $0x298] sm:$0xff] %v2086
      %2089 = vrot.lane.b32.xlu0 %v2035, 113
      %v2090 = vpop.permute.xlu0 %2089
      %2091 = vrot.lane.b32.xlu0 %v2036, 113
      %v2092 = vpop.permute.xlu0 %2091
      %v2093 = vsel %vm1122, %v2090, %v2092
      %v2094 = vsel %vm1122, %v2092, %v2090
      %v2095 = vmul.f32 %v2093, %v1129
      %v2096 = vmul.f32 %v2094, %v1133
      %2097 = vst [vmem:[#allocation2 + $0x2a0] sm:$0xff] %v2095
      %2098 = vst [vmem:[#allocation2 + $0x2a8] sm:$0xff] %v2096
      %2099 = vrot.lane.b32.xlu0 %v2035, 112
      %v2100 = vpop.permute.xlu0 %2099
      %2101 = vrot.lane.b32.xlu0 %v2036, 112
      %v2102 = vpop.permute.xlu0 %2101
      %v2103 = vsel %vm1144, %v2100, %v2102
      %v2104 = vsel %vm1144, %v2102, %v2100
      %v2105 = vmul.f32 %v2103, %v1151
      %v2106 = vmul.f32 %v2104, %v1155
      %2107 = vst [vmem:[#allocation2 + $0x2b0] sm:$0xff] %v2105
      %2108 = vst [vmem:[#allocation2 + $0x2b8] sm:$0xff] %v2106
      %2109 = vrot.lane.b32.xlu0 %v2035, 111
      %v2110 = vpop.permute.xlu0 %2109
      %2111 = vrot.lane.b32.xlu0 %v2036, 111
      %v2112 = vpop.permute.xlu0 %2111
      %v2113 = vsel %vm1166, %v2110, %v2112
      %v2114 = vsel %vm1166, %v2112, %v2110
      %v2115 = vmul.f32 %v2113, %v1173
      %v2116 = vmul.f32 %v2114, %v1177
      %2117 = vst [vmem:[#allocation2 + $0x2c0] sm:$0xff] %v2115
      %2118 = vst [vmem:[#allocation2 + $0x2c8] sm:$0xff] %v2116
      %v2119 = vld [vmem:[#allocation2] sm:$0xff]
      %v2120 = vld [vmem:[#allocation2 + $0x8] sm:$0xff]
      %v2121 = vld [vmem:[#allocation2 + $0x10] sm:$0xff]
      %v2122 = vld [vmem:[#allocation2 + $0x18] sm:$0xff]
      %v2123 = vld [vmem:[#allocation2 + $0x20] sm:$0xff]
      %v2124 = vld [vmem:[#allocation2 + $0x28] sm:$0xff]
      %v2125 = vld [vmem:[#allocation2 + $0x30] sm:$0xff]
      %v2126 = vld [vmem:[#allocation2 + $0x38] sm:$0xff]
      %v2127 = vld [vmem:[#allocation2 + $0x40] sm:$0xff]
      %v2128 = vld [vmem:[#allocation2 + $0x48] sm:$0xff]
      %v2129 = vld [vmem:[#allocation2 + $0x50] sm:$0xff]
      %v2130 = vld [vmem:[#allocation2 + $0x58] sm:$0xff]
      %v2131 = vld [vmem:[#allocation2 + $0x60] sm:$0xff]
      %v2132 = vld [vmem:[#allocation2 + $0x68] sm:$0xff]
      %v2133 = vld [vmem:[#allocation2 + $0x70] sm:$0xff]
      %v2134 = vld [vmem:[#allocation2 + $0x78] sm:$0xff]
      %v2135 = vld [vmem:[#allocation2 + $0x80] sm:$0xff]
      %v2136 = vld [vmem:[#allocation2 + $0x88] sm:$0xff]
      %v2137 = vld [vmem:[#allocation2 + $0x90] sm:$0xff]
      %v2138 = vld [vmem:[#allocation2 + $0x98] sm:$0xff]
      %v2139 = vld [vmem:[#allocation2 + $0xa0] sm:$0xff]
      %v2140 = vld [vmem:[#allocation2 + $0xa8] sm:$0xff]
      %v2141 = vld [vmem:[#allocation2 + $0xb0] sm:$0xff]
      %v2142 = vld [vmem:[#allocation2 + $0xb8] sm:$0xff]
      %v2143 = vld [vmem:[#allocation2 + $0xc0] sm:$0xff]
      %v2144 = vld [vmem:[#allocation2 + $0xc8] sm:$0xff]
      %v2145 = vld [vmem:[#allocation2 + $0xd0] sm:$0xff]
      %v2146 = vld [vmem:[#allocation2 + $0xd8] sm:$0xff]
      %v2147 = vld [vmem:[#allocation2 + $0xe0] sm:$0xff]
      %v2148 = vld [vmem:[#allocation2 + $0xe8] sm:$0xff]
      %v2149 = vld [vmem:[#allocation2 + $0xf0] sm:$0xff]
      %v2150 = vld [vmem:[#allocation2 + $0xf8] sm:$0xff]
      %v2151 = vld [vmem:[#allocation2 + $0x100] sm:$0xff]
      %v2152 = vld [vmem:[#allocation2 + $0x108] sm:$0xff]
      %v2153 = vld [vmem:[#allocation2 + $0x110] sm:$0xff]
      %v2154 = vld [vmem:[#allocation2 + $0x118] sm:$0xff]
      %v2155 = vld [vmem:[#allocation2 + $0x120] sm:$0xff]
      %v2156 = vld [vmem:[#allocation2 + $0x128] sm:$0xff]
      %v2157 = vld [vmem:[#allocation2 + $0x130] sm:$0xff]
      %v2158 = vld [vmem:[#allocation2 + $0x138] sm:$0xff]
      %v2159 = vld [vmem:[#allocation2 + $0x140] sm:$0xff]
      %v2160 = vld [vmem:[#allocation2 + $0x148] sm:$0xff]
      %v2161 = vld [vmem:[#allocation2 + $0x150] sm:$0xff]
      %v2162 = vld [vmem:[#allocation2 + $0x158] sm:$0xff]
      %v2163 = vld [vmem:[#allocation2 + $0x160] sm:$0xff]
      %v2164 = vld [vmem:[#allocation2 + $0x168] sm:$0xff]
      %v2165 = vld [vmem:[#allocation2 + $0x170] sm:$0xff]
      %v2166 = vld [vmem:[#allocation2 + $0x178] sm:$0xff]
      %v2167 = vld [vmem:[#allocation2 + $0x180] sm:$0xff]
      %v2168 = vld [vmem:[#allocation2 + $0x188] sm:$0xff]
      %v2169 = vld [vmem:[#allocation2 + $0x190] sm:$0xff]
      %v2170 = vld [vmem:[#allocation2 + $0x198] sm:$0xff]
      %v2171 = vld [vmem:[#allocation2 + $0x1a0] sm:$0xff]
      %v2172 = vld [vmem:[#allocation2 + $0x1a8] sm:$0xff]
      %v2173 = vld [vmem:[#allocation2 + $0x1b0] sm:$0xff]
      %v2174 = vld [vmem:[#allocation2 + $0x1b8] sm:$0xff]
      %v2175 = vld [vmem:[#allocation2 + $0x1c0] sm:$0xff]
      %v2176 = vld [vmem:[#allocation2 + $0x1c8] sm:$0xff]
      %v2177 = vld [vmem:[#allocation2 + $0x1d0] sm:$0xff]
      %v2178 = vld [vmem:[#allocation2 + $0x1d8] sm:$0xff]
      %v2179 = vld [vmem:[#allocation2 + $0x1e0] sm:$0xff]
      %v2180 = vld [vmem:[#allocation2 + $0x1e8] sm:$0xff]
      %v2181 = vld [vmem:[#allocation2 + $0x1f0] sm:$0xff]
      %v2182 = vld [vmem:[#allocation2 + $0x1f8] sm:$0xff]
      %v2183 = vld [vmem:[#allocation2 + $0x200] sm:$0xff]
      %v2184 = vld [vmem:[#allocation2 + $0x208] sm:$0xff]
      %v2185 = vld [vmem:[#allocation2 + $0x210] sm:$0xff]
      %v2186 = vld [vmem:[#allocation2 + $0x218] sm:$0xff]
      %v2187 = vld [vmem:[#allocation2 + $0x220] sm:$0xff]
      %v2188 = vld [vmem:[#allocation2 + $0x228] sm:$0xff]
      %v2189 = vld [vmem:[#allocation2 + $0x230] sm:$0xff]
      %v2190 = vld [vmem:[#allocation2 + $0x238] sm:$0xff]
      %v2191 = vld [vmem:[#allocation2 + $0x240] sm:$0xff]
      %v2192 = vld [vmem:[#allocation2 + $0x248] sm:$0xff]
      %v2193 = vld [vmem:[#allocation2 + $0x250] sm:$0xff]
      %v2194 = vld [vmem:[#allocation2 + $0x258] sm:$0xff]
      %v2195 = vld [vmem:[#allocation2 + $0x260] sm:$0xff]
      %v2196 = vld [vmem:[#allocation2 + $0x268] sm:$0xff]
      %v2197 = vld [vmem:[#allocation2 + $0x270] sm:$0xff]
      %v2198 = vld [vmem:[#allocation2 + $0x278] sm:$0xff]
      %v2199 = vld [vmem:[#allocation2 + $0x280] sm:$0xff]
      %v2200 = vld [vmem:[#allocation2 + $0x288] sm:$0xff]
      %v2201 = vld [vmem:[#allocation2 + $0x290] sm:$0xff]
      %v2202 = vld [vmem:[#allocation2 + $0x298] sm:$0xff]
      %v2203 = vld [vmem:[#allocation2 + $0x2a0] sm:$0xff]
      %v2204 = vld [vmem:[#allocation2 + $0x2a8] sm:$0xff]
      %v2205 = vld [vmem:[#allocation2 + $0x2b0] sm:$0xff]
      %v2206 = vld [vmem:[#allocation2 + $0x2b8] sm:$0xff]
      %v2207 = vld [vmem:[#allocation2 + $0x2c0] sm:$0xff]
      %v2208 = vld [vmem:[#allocation2 + $0x2c8] sm:$0xff]
      %v2209 = vld [vmem:[%s13] sm:$0xff]
      %v2210 = vld [vmem:[%s13 + $0x8] sm:$0xff]
      %v2211 = vld [vmem:[%s13 + $0x10] sm:$0xff]
      %v2212 = vld [vmem:[%s43] sm:$0xff]
      %2214 = vset.pattern.permute.xlu0 0
      %2215 = vperm.xlu0 %2214, %v2212
      %v2216 = vpop.permute.xlu0 %2215
      %vm2218 = vcmask 850944
      %v2220 = vsel %vm2218, %v2211, 0
      %2222 = vmatprep.subr.mxu0 %v2150
      %2223 = vmatpush1.msra.mxu0 %v2149
      %2224 = vmatprep.subr.mxu0 %v2148
      %2225 = vmatpush1.msra.mxu0 %v2147
      %2226 = vmatprep.subr.mxu0 %v2146
      %2227 = vmatpush1.msra.mxu0 %v2145
      %2228 = vmatprep.subr.mxu0 %v2144
      %2229 = vmatpush1.msra.mxu0 %v2143
      %2230 = vmatprep.subr.mxu0 %v2142
      %2231 = vmatpush1.msra.mxu0 %v2141
      %2232 = vmatprep.subr.mxu0 %v2140
      %2233 = vmatpush1.msra.mxu0 %v2139
      %2234 = vmatprep.subr.mxu0 %v2138
      %2235 = vmatpush1.msra.mxu0 %v2137
      %2236 = vmatprep.subr.mxu0 %v2136
      %2237 = vmatpush1.msra.mxu0 %v2135
      %2238 = vmatprep.subr.mxu0 %v2134
      %2239 = vmatpush1.msra.mxu0 %v2133
      %2240 = vmatprep.subr.mxu0 %v2132
      %2241 = vmatpush1.msra.mxu0 %v2131
      %2242 = vmatprep.subr.mxu0 %v2130
      %2243 = vmatpush1.msra.mxu0 %v2129
      %2244 = vmatprep.subr.mxu0 %v2128
      %2245 = vmatpush1.msra.mxu0 %v2127
      %2246 = vmatprep.subr.mxu0 %v2126
      %2247 = vmatpush1.msra.mxu0 %v2125
      %2248 = vmatprep.subr.mxu0 %v2124
      %2249 = vmatpush1.msra.mxu0 %v2123
      %2250 = vmatprep.subr.mxu0 %v2122
      %2251 = vmatpush1.msra.mxu0 %v2121
      %2252 = vmatprep.subr.mxu0 %v2120
      %2253 = vmatpush1.msra.mxu0 %v2119
      %2254 = vmatprep.subr.mxu0 %v2182
      %2255 = vmatpush2.msra.mxu0 %v2181
      %2256 = vmatprep.subr.mxu0 %v2180
      %2257 = vmatpush2.msra.mxu0 %v2179
      %2258 = vmatprep.subr.mxu0 %v2178
      %2259 = vmatpush2.msra.mxu0 %v2177
      %2260 = vmatprep.subr.mxu0 %v2176
      %2261 = vmatpush2.msra.mxu0 %v2175
      %2262 = vmatprep.subr.mxu0 %v2174
      %2263 = vmatpush2.msra.mxu0 %v2173
      %2264 = vmatprep.subr.mxu0 %v2172
      %2265 = vmatpush2.msra.mxu0 %v2171
      %2266 = vmatprep.subr.mxu0 %v2170
      %2267 = vmatpush2.msra.mxu0 %v2169
      %2268 = vmatprep.subr.mxu0 %v2168
      %2269 = vmatpush2.msra.mxu0 %v2167
      %2270 = vmatprep.subr.mxu0 %v2166
      %2271 = vmatpush2.msra.mxu0 %v2165
      %2272 = vmatprep.subr.mxu0 %v2164
      %2273 = vmatpush2.msra.mxu0 %v2163
      %2274 = vmatprep.subr.mxu0 %v2162
      %2275 = vmatpush2.msra.mxu0 %v2161
      %2276 = vmatprep.subr.mxu0 %v2160
      %2277 = vmatpush2.msra.mxu0 %v2159
      %2278 = vmatprep.subr.mxu0 %v2158
      %2279 = vmatpush2.msra.mxu0 %v2157
      %2280 = vmatprep.subr.mxu0 %v2156
      %2281 = vmatpush2.msra.mxu0 %v2155
      %2282 = vmatprep.subr.mxu0 %v2154
      %2283 = vmatpush2.msra.mxu0 %v2153
      %2284 = vmatprep.subr.mxu0 %v2152
      %2285 = vmatpush2.msra.mxu0 %v2151
      %2286 = vmatprep.mubr.f32.mxu0 %v2210
      %2287 = vmatmul.mubr.f32.gmra.mxu0 %v2209
      %v2288 = vpop.f32.mrf.mxu0
      %v2289 = vadd.f32 %v2216, %v2288
      %v2290 = vpop.f32.mrf.mxu0
      %v2291 = vadd.f32 %v2216, %v2290
      %2292 = vdwg.mxu0
      %2293 = vmatprep.subr.mxu0 0.0
      %2294 = vmatpush1.msra.mxu0 0.0
      %2295 = vmatprep.subr.mxu0 0.0
      %2296 = vmatpush1.msra.mxu0 0.0
      %2297 = vmatprep.subr.mxu0 0.0
      %2298 = vmatpush1.msra.mxu0 0.0
      %2299 = vmatprep.subr.mxu0 %v2208
      %2300 = vmatpush1.msra.mxu0 %v2207
      %2301 = vmatprep.subr.mxu0 %v2206
      %2302 = vmatpush1.msra.mxu0 %v2205
      %2303 = vmatprep.subr.mxu0 %v2204
      %2304 = vmatpush1.msra.mxu0 %v2203
      %2305 = vmatprep.subr.mxu0 %v2202
      %2306 = vmatpush1.msra.mxu0 %v2201
      %2307 = vmatprep.subr.mxu0 %v2200
      %2308 = vmatpush1.msra.mxu0 %v2199
      %2309 = vmatprep.subr.mxu0 %v2198
      %2310 = vmatpush1.msra.mxu0 %v2197
      %2311 = vmatprep.subr.mxu0 %v2196
      %2312 = vmatpush1.msra.mxu0 %v2195
      %2313 = vmatprep.subr.mxu0 %v2194
      %2314 = vmatpush1.msra.mxu0 %v2193
      %2315 = vmatprep.subr.mxu0 %v2192
      %2316 = vmatpush1.msra.mxu0 %v2191
      %2317 = vmatprep.subr.mxu0 %v2190
      %2318 = vmatpush1.msra.mxu0 %v2189
      %2319 = vmatprep.subr.mxu0 %v2188
      %2320 = vmatpush1.msra.mxu0 %v2187
      %2321 = vmatprep.subr.mxu0 %v2186
      %2322 = vmatpush1.msra.mxu0 %v2185
      %2323 = vmatprep.subr.mxu0 %v2184
      %2324 = vmatpush1.msra.mxu0 %v2183
      %2325 = vmatprep.subr.mxu0 0.0
      %2326 = vmatpush2.msra.mxu0 0.0
      %2327 = vmatprep.subr.mxu0 0.0
      %2328 = vmatpush2.msra.mxu0 0.0
      %2329 = vmatprep.subr.mxu0 0.0
      %2330 = vmatpush2.msra.mxu0 0.0
      %2331 = vmatprep.subr.mxu0 0.0
      %2332 = vmatpush2.msra.mxu0 0.0
      %2333 = vmatprep.subr.mxu0 0.0
      %2334 = vmatpush2.msra.mxu0 0.0
      %2335 = vmatprep.subr.mxu0 0.0
      %2336 = vmatpush2.msra.mxu0 0.0
      %2337 = vmatprep.subr.mxu0 0.0
      %2338 = vmatpush2.msra.mxu0 0.0
      %2339 = vmatprep.subr.mxu0 0.0
      %2340 = vmatpush2.msra.mxu0 0.0
      %2341 = vmatprep.subr.mxu0 0.0
      %2342 = vmatpush2.msra.mxu0 0.0
      %2343 = vmatprep.subr.mxu0 0.0
      %2344 = vmatpush2.msra.mxu0 0.0
      %2345 = vmatprep.subr.mxu0 0.0
      %2346 = vmatpush2.msra.mxu0 0.0
      %2347 = vmatprep.subr.mxu0 0.0
      %2348 = vmatpush2.msra.mxu0 0.0
      %2349 = vmatprep.subr.mxu0 0.0
      %2350 = vmatpush2.msra.mxu0 0.0
      %2351 = vmatprep.subr.mxu0 0.0
      %2352 = vmatpush2.msra.mxu0 0.0
      %2353 = vmatprep.subr.mxu0 0.0
      %2354 = vmatpush2.msra.mxu0 0.0
      %2355 = vmatprep.subr.mxu0 0.0
      %2356 = vmatpush2.msra.mxu0 0.0
      %2357 = vmatprep.mubr.f32.mxu0 0.0
      %2358 = vmatmul.mubr.f32.gmra.mxu0 %v2220
      %v2359 = vpop.f32.mrf.mxu0
      %v2360 = vadd.f32 %v2289, %v2359
      %v2361 = vpop.f32.mrf.mxu0
      %v2362 = vadd.f32 %v2291, %v2361
      %2363 = vdwg.mxu0
      %v2364 = vmul.f32 %v2360, 0.2
      %v2365 = vmul.f32 %v2362, 0.2
      %v2366 = vadd.f32 %v2364, %v1002
      %v2367 = vadd.f32 %v2365, %v1003
      %2368 = vrot.lane.b32.xlu0 %v2366, 17
      %v2369 = vpop.permute.xlu0 %2368
      %2370 = vrot.lane.b32.xlu0 %v2367, 17
      %v2371 = vpop.permute.xlu0 %2370
      %v2372 = vsel %vm1010, %v2369, %v2371
      %v2373 = vsel %vm1010, %v2371, %v2369
      %v2374 = vmul.f32 %v2373, %v1017
      %v2375 = vmul.f32 %v2372, %v1021
      %2376 = vst [vmem:[#allocation2] sm:$0xff] %v2374
      %2377 = vst [vmem:[#allocation2 + $0x8] sm:$0xff] %v2375
      %2378 = vrot.lane.b32.xlu0 %v2366, 16
      %v2379 = vpop.permute.xlu0 %2378
      %2380 = vrot.lane.b32.xlu0 %v2367, 16
      %v2381 = vpop.permute.xlu0 %2380
      %v2382 = vsel %vm1032, %v2379, %v2381
      %v2383 = vsel %vm1032, %v2381, %v2379
      %v2384 = vmul.f32 %v2383, %v1039
      %v2385 = vmul.f32 %v2382, %v1043
      %2386 = vst [vmem:[#allocation2 + $0x10] sm:$0xff] %v2384
      %2387 = vst [vmem:[#allocation2 + $0x18] sm:$0xff] %v2385
      %2388 = vrot.lane.b32.xlu0 %v2366, 15
      %v2389 = vpop.permute.xlu0 %2388
      %2390 = vrot.lane.b32.xlu0 %v2367, 15
      %v2391 = vpop.permute.xlu0 %2390
      %v2392 = vsel %vm1054, %v2389, %v2391
      %v2393 = vsel %vm1054, %v2391, %v2389
      %v2394 = vmul.f32 %v2393, %v1061
      %v2395 = vmul.f32 %v2392, %v1065
      %2396 = vst [vmem:[#allocation2 + $0x20] sm:$0xff] %v2394
      %2397 = vst [vmem:[#allocation2 + $0x28] sm:$0xff] %v2395
      %2398 = vrot.lane.b32.xlu0 %v2366, 1
      %v2399 = vpop.permute.xlu0 %2398
      %2400 = vrot.lane.b32.xlu0 %v2367, 1
      %v2401 = vpop.permute.xlu0 %2400
      %v2402 = vsel %vm1076, %v2399, %v2401
      %v2403 = vsel %vm1076, %v2401, %v2399
      %v2404 = vmul.f32 %v2403, %v1083
      %v2405 = vmul.f32 %v2402, %v1087
      %2406 = vst [vmem:[#allocation2 + $0x30] sm:$0xff] %v2404
      %2407 = vst [vmem:[#allocation2 + $0x38] sm:$0xff] %v2405
      %2408 = vst [vmem:[#allocation2 + $0x40] sm:$0xff] %v2366
      %2409 = vst [vmem:[#allocation2 + $0x48] sm:$0xff] %v2367
      %2410 = vrot.lane.b32.xlu0 %v2366, 127
      %v2411 = vpop.permute.xlu0 %2410
      %2412 = vrot.lane.b32.xlu0 %v2367, 127
      %v2413 = vpop.permute.xlu0 %2412
      %v2414 = vsel %vm1100, %v2411, %v2413
      %v2415 = vsel %vm1100, %v2413, %v2411
      %v2416 = vmul.f32 %v2414, %v1107
      %v2417 = vmul.f32 %v2415, %v1111
      %2418 = vst [vmem:[#allocation2 + $0x50] sm:$0xff] %v2416
      %2419 = vst [vmem:[#allocation2 + $0x58] sm:$0xff] %v2417
      %2420 = vrot.lane.b32.xlu0 %v2366, 113
      %v2421 = vpop.permute.xlu0 %2420
      %2422 = vrot.lane.b32.xlu0 %v2367, 113
      %v2423 = vpop.permute.xlu0 %2422
      %v2424 = vsel %vm1122, %v2421, %v2423
      %v2425 = vsel %vm1122, %v2423, %v2421
      %v2426 = vmul.f32 %v2424, %v1129
      %v2427 = vmul.f32 %v2425, %v1133
      %2428 = vst [vmem:[#allocation2 + $0x60] sm:$0xff] %v2426
      %2429 = vst [vmem:[#allocation2 + $0x68] sm:$0xff] %v2427
      %2430 = vrot.lane.b32.xlu0 %v2366, 112
      %v2431 = vpop.permute.xlu0 %2430
      %2432 = vrot.lane.b32.xlu0 %v2367, 112
      %v2433 = vpop.permute.xlu0 %2432
      %v2434 = vsel %vm1144, %v2431, %v2433
      %v2435 = vsel %vm1144, %v2433, %v2431
      %v2436 = vmul.f32 %v2434, %v1151
      %v2437 = vmul.f32 %v2435, %v1155
      %2438 = vst [vmem:[#allocation2 + $0x70] sm:$0xff] %v2436
      %2439 = vst [vmem:[#allocation2 + $0x78] sm:$0xff] %v2437
      %2440 = vrot.lane.b32.xlu0 %v2366, 111
      %v2441 = vpop.permute.xlu0 %2440
      %2442 = vrot.lane.b32.xlu0 %v2367, 111
      %v2443 = vpop.permute.xlu0 %2442
      %v2444 = vsel %vm1166, %v2441, %v2443
      %v2445 = vsel %vm1166, %v2443, %v2441
      %v2446 = vmul.f32 %v2444, %v1173
      %v2447 = vmul.f32 %v2445, %v1177
      %2448 = vst [vmem:[#allocation2 + $0x80] sm:$0xff] %v2446
      %2449 = vst [vmem:[#allocation2 + $0x88] sm:$0xff] %v2447
      %v2450 = vld [vmem:[#allocation2] sm:$0xff]
      %v2451 = vld [vmem:[#allocation2 + $0x8] sm:$0xff]
      %v2452 = vld [vmem:[#allocation2 + $0x10] sm:$0xff]
      %v2453 = vld [vmem:[#allocation2 + $0x18] sm:$0xff]
      %v2454 = vld [vmem:[#allocation2 + $0x20] sm:$0xff]
      %v2455 = vld [vmem:[#allocation2 + $0x28] sm:$0xff]
      %v2456 = vld [vmem:[#allocation2 + $0x30] sm:$0xff]
      %v2457 = vld [vmem:[#allocation2 + $0x38] sm:$0xff]
      %v2458 = vld [vmem:[#allocation2 + $0x40] sm:$0xff]
      %v2459 = vld [vmem:[#allocation2 + $0x48] sm:$0xff]
      %v2460 = vld [vmem:[#allocation2 + $0x50] sm:$0xff]
      %v2461 = vld [vmem:[#allocation2 + $0x58] sm:$0xff]
      %v2462 = vld [vmem:[#allocation2 + $0x60] sm:$0xff]
      %v2463 = vld [vmem:[#allocation2 + $0x68] sm:$0xff]
      %v2464 = vld [vmem:[#allocation2 + $0x70] sm:$0xff]
      %v2465 = vld [vmem:[#allocation2 + $0x78] sm:$0xff]
      %v2466 = vld [vmem:[#allocation2 + $0x80] sm:$0xff]
      %v2467 = vld [vmem:[#allocation2 + $0x88] sm:$0xff]
      %v2468 = vld [vmem:[%s15] sm:$0xff]
      %v2469 = vld [vmem:[%s45] sm:$0xff]
      %2471 = vset.pattern.permute.xlu0 0
      %2472 = vperm.xlu0 %2471, %v2469
      %v2473 = vpop.permute.xlu0 %2472
      %v2476 = vsel %vm1209, %v2468, 0
      %2478 = vmatprep.subr.mxu0 0.0
      %2479 = vmatpush1.msra.mxu0 0.0
      %2480 = vmatprep.subr.mxu0 0.0
      %2481 = vmatpush1.msra.mxu0 0.0
      %2482 = vmatprep.subr.mxu0 0.0
      %2483 = vmatpush1.msra.mxu0 0.0
      %2484 = vmatprep.subr.mxu0 0.0
      %2485 = vmatpush1.msra.mxu0 0.0
      %2486 = vmatprep.subr.mxu0 0.0
      %2487 = vmatpush1.msra.mxu0 0.0
      %2488 = vmatprep.subr.mxu0 0.0
      %2489 = vmatpush1.msra.mxu0 0.0
      %2490 = vmatprep.subr.mxu0 0.0
      %2491 = vmatpush1.msra.mxu0 0.0
      %2492 = vmatprep.subr.mxu0 %v2467
      %2493 = vmatpush1.msra.mxu0 %v2466
      %2494 = vmatprep.subr.mxu0 %v2465
      %2495 = vmatpush1.msra.mxu0 %v2464
      %2496 = vmatprep.subr.mxu0 %v2463
      %2497 = vmatpush1.msra.mxu0 %v2462
      %2498 = vmatprep.subr.mxu0 %v2461
      %2499 = vmatpush1.msra.mxu0 %v2460
      %2500 = vmatprep.subr.mxu0 %v2459
      %2501 = vmatpush1.msra.mxu0 %v2458
      %2502 = vmatprep.subr.mxu0 %v2457
      %2503 = vmatpush1.msra.mxu0 %v2456
      %2504 = vmatprep.subr.mxu0 %v2455
      %2505 = vmatpush1.msra.mxu0 %v2454
      %2506 = vmatprep.subr.mxu0 %v2453
      %2507 = vmatpush1.msra.mxu0 %v2452
      %2508 = vmatprep.subr.mxu0 %v2451
      %2509 = vmatpush1.msra.mxu0 %v2450
      %2510 = vmatprep.subr.mxu0 0.0
      %2511 = vmatpush2.msra.mxu0 0.0
      %2512 = vmatprep.subr.mxu0 0.0
      %2513 = vmatpush2.msra.mxu0 0.0
      %2514 = vmatprep.subr.mxu0 0.0
      %2515 = vmatpush2.msra.mxu0 0.0
      %2516 = vmatprep.subr.mxu0 0.0
      %2517 = vmatpush2.msra.mxu0 0.0
      %2518 = vmatprep.subr.mxu0 0.0
      %2519 = vmatpush2.msra.mxu0 0.0
      %2520 = vmatprep.subr.mxu0 0.0
      %2521 = vmatpush2.msra.mxu0 0.0
      %2522 = vmatprep.subr.mxu0 0.0
      %2523 = vmatpush2.msra.mxu0 0.0
      %2524 = vmatprep.subr.mxu0 0.0
      %2525 = vmatpush2.msra.mxu0 0.0
      %2526 = vmatprep.subr.mxu0 0.0
      %2527 = vmatpush2.msra.mxu0 0.0
      %2528 = vmatprep.subr.mxu0 0.0
      %2529 = vmatpush2.msra.mxu0 0.0
      %2530 = vmatprep.subr.mxu0 0.0
      %2531 = vmatpush2.msra.mxu0 0.0
      %2532 = vmatprep.subr.mxu0 0.0
      %2533 = vmatpush2.msra.mxu0 0.0
      %2534 = vmatprep.subr.mxu0 0.0
      %2535 = vmatpush2.msra.mxu0 0.0
      %2536 = vmatprep.subr.mxu0 0.0
      %2537 = vmatpush2.msra.mxu0 0.0
      %2538 = vmatprep.subr.mxu0 0.0
      %2539 = vmatpush2.msra.mxu0 0.0
      %2540 = vmatprep.subr.mxu0 0.0
      %2541 = vmatpush2.msra.mxu0 0.0
      %2542 = vmatprep.mubr.f32.mxu0 0.0
      %2543 = vmatmul.mubr.f32.gmra.mxu0 %v2476
      %v2544 = vpop.f32.mrf.mxu0
      %v2545 = vadd.f32 %v2473, %v2544
      %v2546 = vpop.f32.mrf.mxu0
      %v2547 = vadd.f32 %v2473, %v2546
      %2548 = vdwg.mxu0
      %vm2549 = vcmp.ge.f32.partialorder %v2545, 0.0
      %vm2550 = vcmp.ge.f32.partialorder %v2547, 0.0
      %v2551 = vmul.f32 %v2545, 0.2
      %v2552 = vmul.f32 %v2547, 0.2
      %v2553 = vsel %vm2549, %v2545, %v2551
      %v2554 = vsel %vm2550, %v2547, %v2552
      %2555 = vrot.lane.b32.xlu0 %v2553, 17
      %v2556 = vpop.permute.xlu0 %2555
      %2557 = vrot.lane.b32.xlu0 %v2554, 17
      %v2558 = vpop.permute.xlu0 %2557
      %v2559 = vsel %vm1010, %v2556, %v2558
      %v2560 = vsel %vm1010, %v2558, %v2556
      %v2561 = vmul.f32 %v2560, %v1017
      %v2562 = vmul.f32 %v2559, %v1021
      %2563 = vst [vmem:[#allocation2 + $0x90] sm:$0xff] %v2561
      %2564 = vst [vmem:[#allocation2 + $0x98] sm:$0xff] %v2562
      %2565 = vrot.lane.b32.xlu0 %v2553, 16
      %v2566 = vpop.permute.xlu0 %2565
      %2567 = vrot.lane.b32.xlu0 %v2554, 16
      %v2568 = vpop.permute.xlu0 %2567
      %v2569 = vsel %vm1032, %v2566, %v2568
      %v2570 = vsel %vm1032, %v2568, %v2566
      %v2571 = vmul.f32 %v2570, %v1039
      %v2572 = vmul.f32 %v2569, %v1043
      %2573 = vst [vmem:[#allocation2 + $0xa0] sm:$0xff] %v2571
      %2574 = vst [vmem:[#allocation2 + $0xa8] sm:$0xff] %v2572
      %2575 = vrot.lane.b32.xlu0 %v2553, 15
      %v2576 = vpop.permute.xlu0 %2575
      %2577 = vrot.lane.b32.xlu0 %v2554, 15
      %v2578 = vpop.permute.xlu0 %2577
      %v2579 = vsel %vm1054, %v2576, %v2578
      %v2580 = vsel %vm1054, %v2578, %v2576
      %v2581 = vmul.f32 %v2580, %v1061
      %v2582 = vmul.f32 %v2579, %v1065
      %2583 = vst [vmem:[#allocation2 + $0xb0] sm:$0xff] %v2581
      %2584 = vst [vmem:[#allocation2 + $0xb8] sm:$0xff] %v2582
      %2585 = vrot.lane.b32.xlu0 %v2553, 1
      %v2586 = vpop.permute.xlu0 %2585
      %2587 = vrot.lane.b32.xlu0 %v2554, 1
      %v2588 = vpop.permute.xlu0 %2587
      %v2589 = vsel %vm1076, %v2586, %v2588
      %v2590 = vsel %vm1076, %v2588, %v2586
      %v2591 = vmul.f32 %v2590, %v1083
      %v2592 = vmul.f32 %v2589, %v1087
      %2593 = vst [vmem:[#allocation2 + $0xc0] sm:$0xff] %v2591
      %2594 = vst [vmem:[#allocation2 + $0xc8] sm:$0xff] %v2592
      %2595 = vst [vmem:[#allocation2 + $0xd0] sm:$0xff] %v2553
      %2596 = vst [vmem:[#allocation2 + $0xd8] sm:$0xff] %v2554
      %2597 = vrot.lane.b32.xlu0 %v2553, 127
      %v2598 = vpop.permute.xlu0 %2597
      %2599 = vrot.lane.b32.xlu0 %v2554, 127
      %v2600 = vpop.permute.xlu0 %2599
      %v2601 = vsel %vm1100, %v2598, %v2600
      %v2602 = vsel %vm1100, %v2600, %v2598
      %v2603 = vmul.f32 %v2601, %v1107
      %v2604 = vmul.f32 %v2602, %v1111
      %2605 = vst [vmem:[#allocation2 + $0xe0] sm:$0xff] %v2603
      %2606 = vst [vmem:[#allocation2 + $0xe8] sm:$0xff] %v2604
      %2607 = vrot.lane.b32.xlu0 %v2553, 113
      %v2608 = vpop.permute.xlu0 %2607
      %2609 = vrot.lane.b32.xlu0 %v2554, 113
      %v2610 = vpop.permute.xlu0 %2609
      %v2611 = vsel %vm1122, %v2608, %v2610
      %v2612 = vsel %vm1122, %v2610, %v2608
      %v2613 = vmul.f32 %v2611, %v1129
      %v2614 = vmul.f32 %v2612, %v1133
      %2615 = vst [vmem:[#allocation2 + $0xf0] sm:$0xff] %v2613
      %2616 = vst [vmem:[#allocation2 + $0xf8] sm:$0xff] %v2614
      %2617 = vrot.lane.b32.xlu0 %v2553, 112
      %v2618 = vpop.permute.xlu0 %2617
      %2619 = vrot.lane.b32.xlu0 %v2554, 112
      %v2620 = vpop.permute.xlu0 %2619
      %v2621 = vsel %vm1144, %v2618, %v2620
      %v2622 = vsel %vm1144, %v2620, %v2618
      %v2623 = vmul.f32 %v2621, %v1151
      %v2624 = vmul.f32 %v2622, %v1155
      %2625 = vst [vmem:[#allocation2 + $0x100] sm:$0xff] %v2623
      %2626 = vst [vmem:[#allocation2 + $0x108] sm:$0xff] %v2624
      %2627 = vrot.lane.b32.xlu0 %v2553, 111
      %v2628 = vpop.permute.xlu0 %2627
      %2629 = vrot.lane.b32.xlu0 %v2554, 111
      %v2630 = vpop.permute.xlu0 %2629
      %v2631 = vsel %vm1166, %v2628, %v2630
      %v2632 = vsel %vm1166, %v2630, %v2628
      %v2633 = vmul.f32 %v2631, %v1173
      %v2634 = vmul.f32 %v2632, %v1177
      %2635 = vst [vmem:[#allocation2 + $0x110] sm:$0xff] %v2633
      %2636 = vst [vmem:[#allocation2 + $0x118] sm:$0xff] %v2634
      %v2637 = vld [vmem:[#allocation2] sm:$0xff]
      %v2638 = vld [vmem:[#allocation2 + $0x8] sm:$0xff]
      %v2639 = vld [vmem:[#allocation2 + $0x10] sm:$0xff]
      %v2640 = vld [vmem:[#allocation2 + $0x18] sm:$0xff]
      %v2641 = vld [vmem:[#allocation2 + $0x20] sm:$0xff]
      %v2642 = vld [vmem:[#allocation2 + $0x28] sm:$0xff]
      %v2643 = vld [vmem:[#allocation2 + $0x30] sm:$0xff]
      %v2644 = vld [vmem:[#allocation2 + $0x38] sm:$0xff]
      %v2645 = vld [vmem:[#allocation2 + $0x40] sm:$0xff]
      %v2646 = vld [vmem:[#allocation2 + $0x48] sm:$0xff]
      %v2647 = vld [vmem:[#allocation2 + $0x50] sm:$0xff]
      %v2648 = vld [vmem:[#allocation2 + $0x58] sm:$0xff]
      %v2649 = vld [vmem:[#allocation2 + $0x60] sm:$0xff]
      %v2650 = vld [vmem:[#allocation2 + $0x68] sm:$0xff]
      %v2651 = vld [vmem:[#allocation2 + $0x70] sm:$0xff]
      %v2652 = vld [vmem:[#allocation2 + $0x78] sm:$0xff]
      %v2653 = vld [vmem:[#allocation2 + $0x80] sm:$0xff]
      %v2654 = vld [vmem:[#allocation2 + $0x88] sm:$0xff]
      %v2655 = vld [vmem:[#allocation2 + $0x90] sm:$0xff]
      %v2656 = vld [vmem:[#allocation2 + $0x98] sm:$0xff]
      %v2657 = vld [vmem:[#allocation2 + $0xa0] sm:$0xff]
      %v2658 = vld [vmem:[#allocation2 + $0xa8] sm:$0xff]
      %v2659 = vld [vmem:[#allocation2 + $0xb0] sm:$0xff]
      %v2660 = vld [vmem:[#allocation2 + $0xb8] sm:$0xff]
      %v2661 = vld [vmem:[#allocation2 + $0xc0] sm:$0xff]
      %v2662 = vld [vmem:[#allocation2 + $0xc8] sm:$0xff]
      %v2663 = vld [vmem:[#allocation2 + $0xd0] sm:$0xff]
      %v2664 = vld [vmem:[#allocation2 + $0xd8] sm:$0xff]
      %v2665 = vld [vmem:[#allocation2 + $0xe0] sm:$0xff]
      %v2666 = vld [vmem:[#allocation2 + $0xe8] sm:$0xff]
      %v2667 = vld [vmem:[#allocation2 + $0xf0] sm:$0xff]
      %v2668 = vld [vmem:[#allocation2 + $0xf8] sm:$0xff]
      %v2669 = vld [vmem:[#allocation2 + $0x100] sm:$0xff]
      %v2670 = vld [vmem:[#allocation2 + $0x108] sm:$0xff]
      %v2671 = vld [vmem:[#allocation2 + $0x110] sm:$0xff]
      %v2672 = vld [vmem:[#allocation2 + $0x118] sm:$0xff]
      %v2673 = vld [vmem:[%s17] sm:$0xff]
      %v2674 = vld [vmem:[%s17 + $0x8] sm:$0xff]
      %v2675 = vld [vmem:[%s47] sm:$0xff]
      %2677 = vset.pattern.permute.xlu0 0
      %2678 = vperm.xlu0 %2677, %v2675
      %v2679 = vpop.permute.xlu0 %2678
      %v2682 = vsel %vm1416, %v2674, 0
      %2684 = vmatprep.subr.mxu0 %v2668
      %2685 = vmatpush1.msra.mxu0 %v2667
      %2686 = vmatprep.subr.mxu0 %v2666
      %2687 = vmatpush1.msra.mxu0 %v2665
      %2688 = vmatprep.subr.mxu0 %v2664
      %2689 = vmatpush1.msra.mxu0 %v2663
      %2690 = vmatprep.subr.mxu0 %v2662
      %2691 = vmatpush1.msra.mxu0 %v2661
      %2692 = vmatprep.subr.mxu0 %v2660
      %2693 = vmatpush1.msra.mxu0 %v2659
      %2694 = vmatprep.subr.mxu0 %v2658
      %2695 = vmatpush1.msra.mxu0 %v2657
      %2696 = vmatprep.subr.mxu0 %v2656
      %2697 = vmatpush1.msra.mxu0 %v2655
      %2698 = vmatprep.subr.mxu0 %v2654
      %2699 = vmatpush1.msra.mxu0 %v2653
      %2700 = vmatprep.subr.mxu0 %v2652
      %2701 = vmatpush1.msra.mxu0 %v2651
      %2702 = vmatprep.subr.mxu0 %v2650
      %2703 = vmatpush1.msra.mxu0 %v2649
      %2704 = vmatprep.subr.mxu0 %v2648
      %2705 = vmatpush1.msra.mxu0 %v2647
      %2706 = vmatprep.subr.mxu0 %v2646
      %2707 = vmatpush1.msra.mxu0 %v2645
      %2708 = vmatprep.subr.mxu0 %v2644
      %2709 = vmatpush1.msra.mxu0 %v2643
      %2710 = vmatprep.subr.mxu0 %v2642
      %2711 = vmatpush1.msra.mxu0 %v2641
      %2712 = vmatprep.subr.mxu0 %v2640
      %2713 = vmatpush1.msra.mxu0 %v2639
      %2714 = vmatprep.subr.mxu0 %v2638
      %2715 = vmatpush1.msra.mxu0 %v2637
      %2716 = vmatprep.subr.mxu0 0.0
      %2717 = vmatpush2.msra.mxu0 0.0
      %2718 = vmatprep.subr.mxu0 0.0
      %2719 = vmatpush2.msra.mxu0 0.0
      %2720 = vmatprep.subr.mxu0 0.0
      %2721 = vmatpush2.msra.mxu0 0.0
      %2722 = vmatprep.subr.mxu0 0.0
      %2723 = vmatpush2.msra.mxu0 0.0
      %2724 = vmatprep.subr.mxu0 0.0
      %2725 = vmatpush2.msra.mxu0 0.0
      %2726 = vmatprep.subr.mxu0 0.0
      %2727 = vmatpush2.msra.mxu0 0.0
      %2728 = vmatprep.subr.mxu0 0.0
      %2729 = vmatpush2.msra.mxu0 0.0
      %2730 = vmatprep.subr.mxu0 0.0
      %2731 = vmatpush2.msra.mxu0 0.0
      %2732 = vmatprep.subr.mxu0 0.0
      %2733 = vmatpush2.msra.mxu0 0.0
      %2734 = vmatprep.subr.mxu0 0.0
      %2735 = vmatpush2.msra.mxu0 0.0
      %2736 = vmatprep.subr.mxu0 0.0
      %2737 = vmatpush2.msra.mxu0 0.0
      %2738 = vmatprep.subr.mxu0 0.0
      %2739 = vmatpush2.msra.mxu0 0.0
      %2740 = vmatprep.subr.mxu0 0.0
      %2741 = vmatpush2.msra.mxu0 0.0
      %2742 = vmatprep.subr.mxu0 0.0
      %2743 = vmatpush2.msra.mxu0 0.0
      %2744 = vmatprep.subr.mxu0 %v2672
      %2745 = vmatpush2.msra.mxu0 %v2671
      %2746 = vmatprep.subr.mxu0 %v2670
      %2747 = vmatpush2.msra.mxu0 %v2669
      %2748 = vmatprep.mubr.f32.mxu0 %v2682
      %2749 = vmatmul.mubr.f32.gmra.mxu0 %v2673
      %v2750 = vpop.f32.mrf.mxu0
      %v2751 = vadd.f32 %v2679, %v2750
      %v2752 = vpop.f32.mrf.mxu0
      %v2753 = vadd.f32 %v2679, %v2752
      %2754 = vdwg.mxu0
      %vm2755 = vcmp.ge.f32.partialorder %v2751, 0.0
      %vm2756 = vcmp.ge.f32.partialorder %v2753, 0.0
      %v2757 = vmul.f32 %v2751, 0.2
      %v2758 = vmul.f32 %v2753, 0.2
      %v2759 = vsel %vm2755, %v2751, %v2757
      %v2760 = vsel %vm2756, %v2753, %v2758
      %2761 = vrot.lane.b32.xlu0 %v2759, 17
      %v2762 = vpop.permute.xlu0 %2761
      %2763 = vrot.lane.b32.xlu0 %v2760, 17
      %v2764 = vpop.permute.xlu0 %2763
      %v2765 = vsel %vm1010, %v2762, %v2764
      %v2766 = vsel %vm1010, %v2764, %v2762
      %v2767 = vmul.f32 %v2766, %v1017
      %v2768 = vmul.f32 %v2765, %v1021
      %2769 = vst [vmem:[#allocation2 + $0x120] sm:$0xff] %v2767
      %2770 = vst [vmem:[#allocation2 + $0x128] sm:$0xff] %v2768
      %2771 = vrot.lane.b32.xlu0 %v2759, 16
      %v2772 = vpop.permute.xlu0 %2771
      %2773 = vrot.lane.b32.xlu0 %v2760, 16
      %v2774 = vpop.permute.xlu0 %2773
      %v2775 = vsel %vm1032, %v2772, %v2774
      %v2776 = vsel %vm1032, %v2774, %v2772
      %v2777 = vmul.f32 %v2776, %v1039
      %v2778 = vmul.f32 %v2775, %v1043
      %2779 = vst [vmem:[#allocation2 + $0x130] sm:$0xff] %v2777
      %2780 = vst [vmem:[#allocation2 + $0x138] sm:$0xff] %v2778
      %2781 = vrot.lane.b32.xlu0 %v2759, 15
      %v2782 = vpop.permute.xlu0 %2781
      %2783 = vrot.lane.b32.xlu0 %v2760, 15
      %v2784 = vpop.permute.xlu0 %2783
      %v2785 = vsel %vm1054, %v2782, %v2784
      %v2786 = vsel %vm1054, %v2784, %v2782
      %v2787 = vmul.f32 %v2786, %v1061
      %v2788 = vmul.f32 %v2785, %v1065
      %2789 = vst [vmem:[#allocation2 + $0x140] sm:$0xff] %v2787
      %2790 = vst [vmem:[#allocation2 + $0x148] sm:$0xff] %v2788
      %2791 = vrot.lane.b32.xlu0 %v2759, 1
      %v2792 = vpop.permute.xlu0 %2791
      %2793 = vrot.lane.b32.xlu0 %v2760, 1
      %v2794 = vpop.permute.xlu0 %2793
      %v2795 = vsel %vm1076, %v2792, %v2794
      %v2796 = vsel %vm1076, %v2794, %v2792
      %v2797 = vmul.f32 %v2796, %v1083
      %v2798 = vmul.f32 %v2795, %v1087
      %2799 = vst [vmem:[#allocation2 + $0x150] sm:$0xff] %v2797
      %2800 = vst [vmem:[#allocation2 + $0x158] sm:$0xff] %v2798
      %2801 = vst [vmem:[#allocation2 + $0x160] sm:$0xff] %v2759
      %2802 = vst [vmem:[#allocation2 + $0x168] sm:$0xff] %v2760
      %2803 = vrot.lane.b32.xlu0 %v2759, 127
      %v2804 = vpop.permute.xlu0 %2803
      %2805 = vrot.lane.b32.xlu0 %v2760, 127
      %v2806 = vpop.permute.xlu0 %2805
      %v2807 = vsel %vm1100, %v2804, %v2806
      %v2808 = vsel %vm1100, %v2806, %v2804
      %v2809 = vmul.f32 %v2807, %v1107
      %v2810 = vmul.f32 %v2808, %v1111
      %2811 = vst [vmem:[#allocation2 + $0x170] sm:$0xff] %v2809
      %2812 = vst [vmem:[#allocation2 + $0x178] sm:$0xff] %v2810
      %2813 = vrot.lane.b32.xlu0 %v2759, 113
      %v2814 = vpop.permute.xlu0 %2813
      %2815 = vrot.lane.b32.xlu0 %v2760, 113
      %v2816 = vpop.permute.xlu0 %2815
      %v2817 = vsel %vm1122, %v2814, %v2816
      %v2818 = vsel %vm1122, %v2816, %v2814
      %v2819 = vmul.f32 %v2817, %v1129
      %v2820 = vmul.f32 %v2818, %v1133
      %2821 = vst [vmem:[#allocation2 + $0x180] sm:$0xff] %v2819
      %2822 = vst [vmem:[#allocation2 + $0x188] sm:$0xff] %v2820
      %2823 = vrot.lane.b32.xlu0 %v2759, 112
      %v2824 = vpop.permute.xlu0 %2823
      %2825 = vrot.lane.b32.xlu0 %v2760, 112
      %v2826 = vpop.permute.xlu0 %2825
      %v2827 = vsel %vm1144, %v2824, %v2826
      %v2828 = vsel %vm1144, %v2826, %v2824
      %v2829 = vmul.f32 %v2827, %v1151
      %v2830 = vmul.f32 %v2828, %v1155
      %2831 = vst [vmem:[#allocation2 + $0x190] sm:$0xff] %v2829
      %2832 = vst [vmem:[#allocation2 + $0x198] sm:$0xff] %v2830
      %2833 = vrot.lane.b32.xlu0 %v2759, 111
      %v2834 = vpop.permute.xlu0 %2833
      %2835 = vrot.lane.b32.xlu0 %v2760, 111
      %v2836 = vpop.permute.xlu0 %2835
      %v2837 = vsel %vm1166, %v2834, %v2836
      %v2838 = vsel %vm1166, %v2836, %v2834
      %v2839 = vmul.f32 %v2837, %v1173
      %v2840 = vmul.f32 %v2838, %v1177
      %2841 = vst [vmem:[#allocation2 + $0x1a0] sm:$0xff] %v2839
      %2842 = vst [vmem:[#allocation2 + $0x1a8] sm:$0xff] %v2840
      %v2843 = vld [vmem:[#allocation2] sm:$0xff]
      %v2844 = vld [vmem:[#allocation2 + $0x8] sm:$0xff]
      %v2845 = vld [vmem:[#allocation2 + $0x10] sm:$0xff]
      %v2846 = vld [vmem:[#allocation2 + $0x18] sm:$0xff]
      %v2847 = vld [vmem:[#allocation2 + $0x20] sm:$0xff]
      %v2848 = vld [vmem:[#allocation2 + $0x28] sm:$0xff]
      %v2849 = vld [vmem:[#allocation2 + $0x30] sm:$0xff]
      %v2850 = vld [vmem:[#allocation2 + $0x38] sm:$0xff]
      %v2851 = vld [vmem:[#allocation2 + $0x40] sm:$0xff]
      %v2852 = vld [vmem:[#allocation2 + $0x48] sm:$0xff]
      %v2853 = vld [vmem:[#allocation2 + $0x50] sm:$0xff]
      %v2854 = vld [vmem:[#allocation2 + $0x58] sm:$0xff]
      %v2855 = vld [vmem:[#allocation2 + $0x60] sm:$0xff]
      %v2856 = vld [vmem:[#allocation2 + $0x68] sm:$0xff]
      %v2857 = vld [vmem:[#allocation2 + $0x70] sm:$0xff]
      %v2858 = vld [vmem:[#allocation2 + $0x78] sm:$0xff]
      %v2859 = vld [vmem:[#allocation2 + $0x80] sm:$0xff]
      %v2860 = vld [vmem:[#allocation2 + $0x88] sm:$0xff]
      %v2861 = vld [vmem:[#allocation2 + $0x90] sm:$0xff]
      %v2862 = vld [vmem:[#allocation2 + $0x98] sm:$0xff]
      %v2863 = vld [vmem:[#allocation2 + $0xa0] sm:$0xff]
      %v2864 = vld [vmem:[#allocation2 + $0xa8] sm:$0xff]
      %v2865 = vld [vmem:[#allocation2 + $0xb0] sm:$0xff]
      %v2866 = vld [vmem:[#allocation2 + $0xb8] sm:$0xff]
      %v2867 = vld [vmem:[#allocation2 + $0xc0] sm:$0xff]
      %v2868 = vld [vmem:[#allocation2 + $0xc8] sm:$0xff]
      %v2869 = vld [vmem:[#allocation2 + $0xd0] sm:$0xff]
      %v2870 = vld [vmem:[#allocation2 + $0xd8] sm:$0xff]
      %v2871 = vld [vmem:[#allocation2 + $0xe0] sm:$0xff]
      %v2872 = vld [vmem:[#allocation2 + $0xe8] sm:$0xff]
      %v2873 = vld [vmem:[#allocation2 + $0xf0] sm:$0xff]
      %v2874 = vld [vmem:[#allocation2 + $0xf8] sm:$0xff]
      %v2875 = vld [vmem:[#allocation2 + $0x100] sm:$0xff]
      %v2876 = vld [vmem:[#allocation2 + $0x108] sm:$0xff]
      %v2877 = vld [vmem:[#allocation2 + $0x110] sm:$0xff]
      %v2878 = vld [vmem:[#allocation2 + $0x118] sm:$0xff]
      %v2879 = vld [vmem:[#allocation2 + $0x120] sm:$0xff]
      %v2880 = vld [vmem:[#allocation2 + $0x128] sm:$0xff]
      %v2881 = vld [vmem:[#allocation2 + $0x130] sm:$0xff]
      %v2882 = vld [vmem:[#allocation2 + $0x138] sm:$0xff]
      %v2883 = vld [vmem:[#allocation2 + $0x140] sm:$0xff]
      %v2884 = vld [vmem:[#allocation2 + $0x148] sm:$0xff]
      %v2885 = vld [vmem:[#allocation2 + $0x150] sm:$0xff]
      %v2886 = vld [vmem:[#allocation2 + $0x158] sm:$0xff]
      %v2887 = vld [vmem:[#allocation2 + $0x160] sm:$0xff]
      %v2888 = vld [vmem:[#allocation2 + $0x168] sm:$0xff]
      %v2889 = vld [vmem:[#allocation2 + $0x170] sm:$0xff]
      %v2890 = vld [vmem:[#allocation2 + $0x178] sm:$0xff]
      %v2891 = vld [vmem:[#allocation2 + $0x180] sm:$0xff]
      %v2892 = vld [vmem:[#allocation2 + $0x188] sm:$0xff]
      %v2893 = vld [vmem:[#allocation2 + $0x190] sm:$0xff]
      %v2894 = vld [vmem:[#allocation2 + $0x198] sm:$0xff]
      %v2895 = vld [vmem:[#allocation2 + $0x1a0] sm:$0xff]
      %v2896 = vld [vmem:[#allocation2 + $0x1a8] sm:$0xff]
      %v2897 = vld [vmem:[%s19] sm:$0xff]
      %v2898 = vld [vmem:[%s19 + $0x8] sm:$0xff]
      %v2899 = vld [vmem:[%s49] sm:$0xff]
      %2901 = vset.pattern.permute.xlu0 0
      %2902 = vperm.xlu0 %2901, %v2899
      %v2903 = vpop.permute.xlu0 %2902
      %v2906 = vsel %vm1641, %v2898, 0
      %2908 = vmatprep.subr.mxu0 %v2874
      %2909 = vmatpush1.msra.mxu0 %v2873
      %2910 = vmatprep.subr.mxu0 %v2872
      %2911 = vmatpush1.msra.mxu0 %v2871
      %2912 = vmatprep.subr.mxu0 %v2870
      %2913 = vmatpush1.msra.mxu0 %v2869
      %2914 = vmatprep.subr.mxu0 %v2868
      %2915 = vmatpush1.msra.mxu0 %v2867
      %2916 = vmatprep.subr.mxu0 %v2866
      %2917 = vmatpush1.msra.mxu0 %v2865
      %2918 = vmatprep.subr.mxu0 %v2864
      %2919 = vmatpush1.msra.mxu0 %v2863
      %2920 = vmatprep.subr.mxu0 %v2862
      %2921 = vmatpush1.msra.mxu0 %v2861
      %2922 = vmatprep.subr.mxu0 %v2860
      %2923 = vmatpush1.msra.mxu0 %v2859
      %2924 = vmatprep.subr.mxu0 %v2858
      %2925 = vmatpush1.msra.mxu0 %v2857
      %2926 = vmatprep.subr.mxu0 %v2856
      %2927 = vmatpush1.msra.mxu0 %v2855
      %2928 = vmatprep.subr.mxu0 %v2854
      %2929 = vmatpush1.msra.mxu0 %v2853
      %2930 = vmatprep.subr.mxu0 %v2852
      %2931 = vmatpush1.msra.mxu0 %v2851
      %2932 = vmatprep.subr.mxu0 %v2850
      %2933 = vmatpush1.msra.mxu0 %v2849
      %2934 = vmatprep.subr.mxu0 %v2848
      %2935 = vmatpush1.msra.mxu0 %v2847
      %2936 = vmatprep.subr.mxu0 %v2846
      %2937 = vmatpush1.msra.mxu0 %v2845
      %2938 = vmatprep.subr.mxu0 %v2844
      %2939 = vmatpush1.msra.mxu0 %v2843
      %2940 = vmatprep.subr.mxu0 0.0
      %2941 = vmatpush2.msra.mxu0 0.0
      %2942 = vmatprep.subr.mxu0 0.0
      %2943 = vmatpush2.msra.mxu0 0.0
      %2944 = vmatprep.subr.mxu0 0.0
      %2945 = vmatpush2.msra.mxu0 0.0
      %2946 = vmatprep.subr.mxu0 0.0
      %2947 = vmatpush2.msra.mxu0 0.0
      %2948 = vmatprep.subr.mxu0 0.0
      %2949 = vmatpush2.msra.mxu0 0.0
      %2950 = vmatprep.subr.mxu0 %v2896
      %2951 = vmatpush2.msra.mxu0 %v2895
      %2952 = vmatprep.subr.mxu0 %v2894
      %2953 = vmatpush2.msra.mxu0 %v2893
      %2954 = vmatprep.subr.mxu0 %v2892
      %2955 = vmatpush2.msra.mxu0 %v2891
      %2956 = vmatprep.subr.mxu0 %v2890
      %2957 = vmatpush2.msra.mxu0 %v2889
      %2958 = vmatprep.subr.mxu0 %v2888
      %2959 = vmatpush2.msra.mxu0 %v2887
      %2960 = vmatprep.subr.mxu0 %v2886
      %2961 = vmatpush2.msra.mxu0 %v2885
      %2962 = vmatprep.subr.mxu0 %v2884
      %2963 = vmatpush2.msra.mxu0 %v2883
      %2964 = vmatprep.subr.mxu0 %v2882
      %2965 = vmatpush2.msra.mxu0 %v2881
      %2966 = vmatprep.subr.mxu0 %v2880
      %2967 = vmatpush2.msra.mxu0 %v2879
      %2968 = vmatprep.subr.mxu0 %v2878
      %2969 = vmatpush2.msra.mxu0 %v2877
      %2970 = vmatprep.subr.mxu0 %v2876
      %2971 = vmatpush2.msra.mxu0 %v2875
      %2972 = vmatprep.mubr.f32.mxu0 %v2906
      %2973 = vmatmul.mubr.f32.gmra.mxu0 %v2897
      %v2974 = vpop.f32.mrf.mxu0
      %v2975 = vadd.f32 %v2903, %v2974
      %v2976 = vpop.f32.mrf.mxu0
      %v2977 = vadd.f32 %v2903, %v2976
      %2978 = vdwg.mxu0
      %vm2979 = vcmp.ge.f32.partialorder %v2975, 0.0
      %vm2980 = vcmp.ge.f32.partialorder %v2977, 0.0
      %v2981 = vmul.f32 %v2975, 0.2
      %v2982 = vmul.f32 %v2977, 0.2
      %v2983 = vsel %vm2979, %v2975, %v2981
      %v2984 = vsel %vm2980, %v2977, %v2982
      %2985 = vrot.lane.b32.xlu0 %v2983, 17
      %v2986 = vpop.permute.xlu0 %2985
      %2987 = vrot.lane.b32.xlu0 %v2984, 17
      %v2988 = vpop.permute.xlu0 %2987
      %v2989 = vsel %vm1010, %v2986, %v2988
      %v2990 = vsel %vm1010, %v2988, %v2986
      %v2991 = vmul.f32 %v2990, %v1017
      %v2992 = vmul.f32 %v2989, %v1021
      %2993 = vst [vmem:[#allocation2 + $0x1b0] sm:$0xff] %v2991
      %2994 = vst [vmem:[#allocation2 + $0x1b8] sm:$0xff] %v2992
      %2995 = vrot.lane.b32.xlu0 %v2983, 16
      %v2996 = vpop.permute.xlu0 %2995
      %2997 = vrot.lane.b32.xlu0 %v2984, 16
      %v2998 = vpop.permute.xlu0 %2997
      %v2999 = vsel %vm1032, %v2996, %v2998
      %v3000 = vsel %vm1032, %v2998, %v2996
      %v3001 = vmul.f32 %v3000, %v1039
      %v3002 = vmul.f32 %v2999, %v1043
      %3003 = vst [vmem:[#allocation2 + $0x1c0] sm:$0xff] %v3001
      %3004 = vst [vmem:[#allocation2 + $0x1c8] sm:$0xff] %v3002
      %3005 = vrot.lane.b32.xlu0 %v2983, 15
      %v3006 = vpop.permute.xlu0 %3005
      %3007 = vrot.lane.b32.xlu0 %v2984, 15
      %v3008 = vpop.permute.xlu0 %3007
      %v3009 = vsel %vm1054, %v3006, %v3008
      %v3010 = vsel %vm1054, %v3008, %v3006
      %v3011 = vmul.f32 %v3010, %v1061
      %v3012 = vmul.f32 %v3009, %v1065
      %3013 = vst [vmem:[#allocation2 + $0x1d0] sm:$0xff] %v3011
      %3014 = vst [vmem:[#allocation2 + $0x1d8] sm:$0xff] %v3012
      %3015 = vrot.lane.b32.xlu0 %v2983, 1
      %v3016 = vpop.permute.xlu0 %3015
      %3017 = vrot.lane.b32.xlu0 %v2984, 1
      %v3018 = vpop.permute.xlu0 %3017
      %v3019 = vsel %vm1076, %v3016, %v3018
      %v3020 = vsel %vm1076, %v3018, %v3016
      %v3021 = vmul.f32 %v3020, %v1083
      %v3022 = vmul.f32 %v3019, %v1087
      %3023 = vst [vmem:[#allocation2 + $0x1e0] sm:$0xff] %v3021
      %3024 = vst [vmem:[#allocation2 + $0x1e8] sm:$0xff] %v3022
      %3025 = vst [vmem:[#allocation2 + $0x1f0] sm:$0xff] %v2983
      %3026 = vst [vmem:[#allocation2 + $0x1f8] sm:$0xff] %v2984
      %3027 = vrot.lane.b32.xlu0 %v2983, 127
      %v3028 = vpop.permute.xlu0 %3027
      %3029 = vrot.lane.b32.xlu0 %v2984, 127
      %v3030 = vpop.permute.xlu0 %3029
      %v3031 = vsel %vm1100, %v3028, %v3030
      %v3032 = vsel %vm1100, %v3030, %v3028
      %v3033 = vmul.f32 %v3031, %v1107
      %v3034 = vmul.f32 %v3032, %v1111
      %3035 = vst [vmem:[#allocation2 + $0x200] sm:$0xff] %v3033
      %3036 = vst [vmem:[#allocation2 + $0x208] sm:$0xff] %v3034
      %3037 = vrot.lane.b32.xlu0 %v2983, 113
      %v3038 = vpop.permute.xlu0 %3037
      %3039 = vrot.lane.b32.xlu0 %v2984, 113
      %v3040 = vpop.permute.xlu0 %3039
      %v3041 = vsel %vm1122, %v3038, %v3040
      %v3042 = vsel %vm1122, %v3040, %v3038
      %v3043 = vmul.f32 %v3041, %v1129
      %v3044 = vmul.f32 %v3042, %v1133
      %3045 = vst [vmem:[#allocation2 + $0x210] sm:$0xff] %v3043
      %3046 = vst [vmem:[#allocation2 + $0x218] sm:$0xff] %v3044
      %3047 = vrot.lane.b32.xlu0 %v2983, 112
      %v3048 = vpop.permute.xlu0 %3047
      %3049 = vrot.lane.b32.xlu0 %v2984, 112
      %v3050 = vpop.permute.xlu0 %3049
      %v3051 = vsel %vm1144, %v3048, %v3050
      %v3052 = vsel %vm1144, %v3050, %v3048
      %v3053 = vmul.f32 %v3051, %v1151
      %v3054 = vmul.f32 %v3052, %v1155
      %3055 = vst [vmem:[#allocation2 + $0x220] sm:$0xff] %v3053
      %3056 = vst [vmem:[#allocation2 + $0x228] sm:$0xff] %v3054
      %3057 = vrot.lane.b32.xlu0 %v2983, 111
      %v3058 = vpop.permute.xlu0 %3057
      %3059 = vrot.lane.b32.xlu0 %v2984, 111
      %v3060 = vpop.permute.xlu0 %3059
      %v3061 = vsel %vm1166, %v3058, %v3060
      %v3062 = vsel %vm1166, %v3060, %v3058
      %v3063 = vmul.f32 %v3061, %v1173
      %v3064 = vmul.f32 %v3062, %v1177
      %3065 = vst [vmem:[#allocation2 + $0x230] sm:$0xff] %v3063
      %3066 = vst [vmem:[#allocation2 + $0x238] sm:$0xff] %v3064
      %v3067 = vld [vmem:[#allocation2] sm:$0xff]
      %v3068 = vld [vmem:[#allocation2 + $0x8] sm:$0xff]
      %v3069 = vld [vmem:[#allocation2 + $0x10] sm:$0xff]
      %v3070 = vld [vmem:[#allocation2 + $0x18] sm:$0xff]
      %v3071 = vld [vmem:[#allocation2 + $0x20] sm:$0xff]
      %v3072 = vld [vmem:[#allocation2 + $0x28] sm:$0xff]
      %v3073 = vld [vmem:[#allocation2 + $0x30] sm:$0xff]
      %v3074 = vld [vmem:[#allocation2 + $0x38] sm:$0xff]
      %v3075 = vld [vmem:[#allocation2 + $0x40] sm:$0xff]
      %v3076 = vld [vmem:[#allocation2 + $0x48] sm:$0xff]
      %v3077 = vld [vmem:[#allocation2 + $0x50] sm:$0xff]
      %v3078 = vld [vmem:[#allocation2 + $0x58] sm:$0xff]
      %v3079 = vld [vmem:[#allocation2 + $0x60] sm:$0xff]
      %v3080 = vld [vmem:[#allocation2 + $0x68] sm:$0xff]
      %v3081 = vld [vmem:[#allocation2 + $0x70] sm:$0xff]
      %v3082 = vld [vmem:[#allocation2 + $0x78] sm:$0xff]
      %v3083 = vld [vmem:[#allocation2 + $0x80] sm:$0xff]
      %v3084 = vld [vmem:[#allocation2 + $0x88] sm:$0xff]
      %v3085 = vld [vmem:[#allocation2 + $0x90] sm:$0xff]
      %v3086 = vld [vmem:[#allocation2 + $0x98] sm:$0xff]
      %v3087 = vld [vmem:[#allocation2 + $0xa0] sm:$0xff]
      %v3088 = vld [vmem:[#allocation2 + $0xa8] sm:$0xff]
      %v3089 = vld [vmem:[#allocation2 + $0xb0] sm:$0xff]
      %v3090 = vld [vmem:[#allocation2 + $0xb8] sm:$0xff]
      %v3091 = vld [vmem:[#allocation2 + $0xc0] sm:$0xff]
      %v3092 = vld [vmem:[#allocation2 + $0xc8] sm:$0xff]
      %v3093 = vld [vmem:[#allocation2 + $0xd0] sm:$0xff]
      %v3094 = vld [vmem:[#allocation2 + $0xd8] sm:$0xff]
      %v3095 = vld [vmem:[#allocation2 + $0xe0] sm:$0xff]
      %v3096 = vld [vmem:[#allocation2 + $0xe8] sm:$0xff]
      %v3097 = vld [vmem:[#allocation2 + $0xf0] sm:$0xff]
      %v3098 = vld [vmem:[#allocation2 + $0xf8] sm:$0xff]
      %v3099 = vld [vmem:[#allocation2 + $0x100] sm:$0xff]
      %v3100 = vld [vmem:[#allocation2 + $0x108] sm:$0xff]
      %v3101 = vld [vmem:[#allocation2 + $0x110] sm:$0xff]
      %v3102 = vld [vmem:[#allocation2 + $0x118] sm:$0xff]
      %v3103 = vld [vmem:[#allocation2 + $0x120] sm:$0xff]
      %v3104 = vld [vmem:[#allocation2 + $0x128] sm:$0xff]
      %v3105 = vld [vmem:[#allocation2 + $0x130] sm:$0xff]
      %v3106 = vld [vmem:[#allocation2 + $0x138] sm:$0xff]
      %v3107 = vld [vmem:[#allocation2 + $0x140] sm:$0xff]
      %v3108 = vld [vmem:[#allocation2 + $0x148] sm:$0xff]
      %v3109 = vld [vmem:[#allocation2 + $0x150] sm:$0xff]
      %v3110 = vld [vmem:[#allocation2 + $0x158] sm:$0xff]
      %v3111 = vld [vmem:[#allocation2 + $0x160] sm:$0xff]
      %v3112 = vld [vmem:[#allocation2 + $0x168] sm:$0xff]
      %v3113 = vld [vmem:[#allocation2 + $0x170] sm:$0xff]
      %v3114 = vld [vmem:[#allocation2 + $0x178] sm:$0xff]
      %v3115 = vld [vmem:[#allocation2 + $0x180] sm:$0xff]
      %v3116 = vld [vmem:[#allocation2 + $0x188] sm:$0xff]
      %v3117 = vld [vmem:[#allocation2 + $0x190] sm:$0xff]
      %v3118 = vld [vmem:[#allocation2 + $0x198] sm:$0xff]
      %v3119 = vld [vmem:[#allocation2 + $0x1a0] sm:$0xff]
      %v3120 = vld [vmem:[#allocation2 + $0x1a8] sm:$0xff]
      %v3121 = vld [vmem:[#allocation2 + $0x1b0] sm:$0xff]
      %v3122 = vld [vmem:[#allocation2 + $0x1b8] sm:$0xff]
      %v3123 = vld [vmem:[#allocation2 + $0x1c0] sm:$0xff]
      %v3124 = vld [vmem:[#allocation2 + $0x1c8] sm:$0xff]
      %v3125 = vld [vmem:[#allocation2 + $0x1d0] sm:$0xff]
      %v3126 = vld [vmem:[#allocation2 + $0x1d8] sm:$0xff]
      %v3127 = vld [vmem:[#allocation2 + $0x1e0] sm:$0xff]
      %v3128 = vld [vmem:[#allocation2 + $0x1e8] sm:$0xff]
      %v3129 = vld [vmem:[#allocation2 + $0x1f0] sm:$0xff]
      %v3130 = vld [vmem:[#allocation2 + $0x1f8] sm:$0xff]
      %v3131 = vld [vmem:[#allocation2 + $0x200] sm:$0xff]
      %v3132 = vld [vmem:[#allocation2 + $0x208] sm:$0xff]
      %v3133 = vld [vmem:[#allocation2 + $0x210] sm:$0xff]
      %v3134 = vld [vmem:[#allocation2 + $0x218] sm:$0xff]
      %v3135 = vld [vmem:[#allocation2 + $0x220] sm:$0xff]
      %v3136 = vld [vmem:[#allocation2 + $0x228] sm:$0xff]
      %v3137 = vld [vmem:[#allocation2 + $0x230] sm:$0xff]
      %v3138 = vld [vmem:[#allocation2 + $0x238] sm:$0xff]
      %v3139 = vld [vmem:[%s21] sm:$0xff]
      %v3140 = vld [vmem:[%s21 + $0x8] sm:$0xff]
      %v3141 = vld [vmem:[%s21 + $0x10] sm:$0xff]
      %v3142 = vld [vmem:[%s51] sm:$0xff]
      %3144 = vset.pattern.permute.xlu0 0
      %3145 = vperm.xlu0 %3144, %v3142
      %v3146 = vpop.permute.xlu0 %3145
      %v3149 = vsel %vm1885, %v3141, 0
      %3151 = vmatprep.subr.mxu0 %v3098
      %3152 = vmatpush1.msra.mxu0 %v3097
      %3153 = vmatprep.subr.mxu0 %v3096
      %3154 = vmatpush1.msra.mxu0 %v3095
      %3155 = vmatprep.subr.mxu0 %v3094
      %3156 = vmatpush1.msra.mxu0 %v3093
      %3157 = vmatprep.subr.mxu0 %v3092
      %3158 = vmatpush1.msra.mxu0 %v3091
      %3159 = vmatprep.subr.mxu0 %v3090
      %3160 = vmatpush1.msra.mxu0 %v3089
      %3161 = vmatprep.subr.mxu0 %v3088
      %3162 = vmatpush1.msra.mxu0 %v3087
      %3163 = vmatprep.subr.mxu0 %v3086
      %3164 = vmatpush1.msra.mxu0 %v3085
      %3165 = vmatprep.subr.mxu0 %v3084
      %3166 = vmatpush1.msra.mxu0 %v3083
      %3167 = vmatprep.subr.mxu0 %v3082
      %3168 = vmatpush1.msra.mxu0 %v3081
      %3169 = vmatprep.subr.mxu0 %v3080
      %3170 = vmatpush1.msra.mxu0 %v3079
      %3171 = vmatprep.subr.mxu0 %v3078
      %3172 = vmatpush1.msra.mxu0 %v3077
      %3173 = vmatprep.subr.mxu0 %v3076
      %3174 = vmatpush1.msra.mxu0 %v3075
      %3175 = vmatprep.subr.mxu0 %v3074
      %3176 = vmatpush1.msra.mxu0 %v3073
      %3177 = vmatprep.subr.mxu0 %v3072
      %3178 = vmatpush1.msra.mxu0 %v3071
      %3179 = vmatprep.subr.mxu0 %v3070
      %3180 = vmatpush1.msra.mxu0 %v3069
      %3181 = vmatprep.subr.mxu0 %v3068
      %3182 = vmatpush1.msra.mxu0 %v3067
      %3183 = vmatprep.subr.mxu0 %v3130
      %3184 = vmatpush2.msra.mxu0 %v3129
      %3185 = vmatprep.subr.mxu0 %v3128
      %3186 = vmatpush2.msra.mxu0 %v3127
      %3187 = vmatprep.subr.mxu0 %v3126
      %3188 = vmatpush2.msra.mxu0 %v3125
      %3189 = vmatprep.subr.mxu0 %v3124
      %3190 = vmatpush2.msra.mxu0 %v3123
      %3191 = vmatprep.subr.mxu0 %v3122
      %3192 = vmatpush2.msra.mxu0 %v3121
      %3193 = vmatprep.subr.mxu0 %v3120
      %3194 = vmatpush2.msra.mxu0 %v3119
      %3195 = vmatprep.subr.mxu0 %v3118
      %3196 = vmatpush2.msra.mxu0 %v3117
      %3197 = vmatprep.subr.mxu0 %v3116
      %3198 = vmatpush2.msra.mxu0 %v3115
      %3199 = vmatprep.subr.mxu0 %v3114
      %3200 = vmatpush2.msra.mxu0 %v3113
      %3201 = vmatprep.subr.mxu0 %v3112
      %3202 = vmatpush2.msra.mxu0 %v3111
      %3203 = vmatprep.subr.mxu0 %v3110
      %3204 = vmatpush2.msra.mxu0 %v3109
      %3205 = vmatprep.subr.mxu0 %v3108
      %3206 = vmatpush2.msra.mxu0 %v3107
      %3207 = vmatprep.subr.mxu0 %v3106
      %3208 = vmatpush2.msra.mxu0 %v3105
      %3209 = vmatprep.subr.mxu0 %v3104
      %3210 = vmatpush2.msra.mxu0 %v3103
      %3211 = vmatprep.subr.mxu0 %v3102
      %3212 = vmatpush2.msra.mxu0 %v3101
      %3213 = vmatprep.subr.mxu0 %v3100
      %3214 = vmatpush2.msra.mxu0 %v3099
      %3215 = vmatprep.mubr.f32.mxu0 %v3140
      %3216 = vmatmul.mubr.f32.gmra.mxu0 %v3139
      %v3217 = vpop.f32.mrf.mxu0
      %v3218 = vadd.f32 %v3146, %v3217
      %v3219 = vpop.f32.mrf.mxu0
      %v3220 = vadd.f32 %v3146, %v3219
      %3221 = vdwg.mxu0
      %3222 = vmatprep.subr.mxu0 0.0
      %3223 = vmatpush1.msra.mxu0 0.0
      %3224 = vmatprep.subr.mxu0 0.0
      %3225 = vmatpush1.msra.mxu0 0.0
      %3226 = vmatprep.subr.mxu0 0.0
      %3227 = vmatpush1.msra.mxu0 0.0
      %3228 = vmatprep.subr.mxu0 0.0
      %3229 = vmatpush1.msra.mxu0 0.0
      %3230 = vmatprep.subr.mxu0 0.0
      %3231 = vmatpush1.msra.mxu0 0.0
      %3232 = vmatprep.subr.mxu0 0.0
      %3233 = vmatpush1.msra.mxu0 0.0
      %3234 = vmatprep.subr.mxu0 0.0
      %3235 = vmatpush1.msra.mxu0 0.0
      %3236 = vmatprep.subr.mxu0 0.0
      %3237 = vmatpush1.msra.mxu0 0.0
      %3238 = vmatprep.subr.mxu0 0.0
      %3239 = vmatpush1.msra.mxu0 0.0
      %3240 = vmatprep.subr.mxu0 0.0
      %3241 = vmatpush1.msra.mxu0 0.0
      %3242 = vmatprep.subr.mxu0 0.0
      %3243 = vmatpush1.msra.mxu0 0.0
      %3244 = vmatprep.subr.mxu0 0.0
      %3245 = vmatpush1.msra.mxu0 0.0
      %3246 = vmatprep.subr.mxu0 %v3138
      %3247 = vmatpush1.msra.mxu0 %v3137
      %3248 = vmatprep.subr.mxu0 %v3136
      %3249 = vmatpush1.msra.mxu0 %v3135
      %3250 = vmatprep.subr.mxu0 %v3134
      %3251 = vmatpush1.msra.mxu0 %v3133
      %3252 = vmatprep.subr.mxu0 %v3132
      %3253 = vmatpush1.msra.mxu0 %v3131
      %3254 = vmatprep.subr.mxu0 0.0
      %3255 = vmatpush2.msra.mxu0 0.0
      %3256 = vmatprep.subr.mxu0 0.0
      %3257 = vmatpush2.msra.mxu0 0.0
      %3258 = vmatprep.subr.mxu0 0.0
      %3259 = vmatpush2.msra.mxu0 0.0
      %3260 = vmatprep.subr.mxu0 0.0
      %3261 = vmatpush2.msra.mxu0 0.0
      %3262 = vmatprep.subr.mxu0 0.0
      %3263 = vmatpush2.msra.mxu0 0.0
      %3264 = vmatprep.subr.mxu0 0.0
      %3265 = vmatpush2.msra.mxu0 0.0
      %3266 = vmatprep.subr.mxu0 0.0
      %3267 = vmatpush2.msra.mxu0 0.0
      %3268 = vmatprep.subr.mxu0 0.0
      %3269 = vmatpush2.msra.mxu0 0.0
      %3270 = vmatprep.subr.mxu0 0.0
      %3271 = vmatpush2.msra.mxu0 0.0
      %3272 = vmatprep.subr.mxu0 0.0
      %3273 = vmatpush2.msra.mxu0 0.0
      %3274 = vmatprep.subr.mxu0 0.0
      %3275 = vmatpush2.msra.mxu0 0.0
      %3276 = vmatprep.subr.mxu0 0.0
      %3277 = vmatpush2.msra.mxu0 0.0
      %3278 = vmatprep.subr.mxu0 0.0
      %3279 = vmatpush2.msra.mxu0 0.0
      %3280 = vmatprep.subr.mxu0 0.0
      %3281 = vmatpush2.msra.mxu0 0.0
      %3282 = vmatprep.subr.mxu0 0.0
      %3283 = vmatpush2.msra.mxu0 0.0
      %3284 = vmatprep.subr.mxu0 0.0
      %3285 = vmatpush2.msra.mxu0 0.0
      %3286 = vmatprep.mubr.f32.mxu0 0.0
      %3287 = vmatmul.mubr.f32.gmra.mxu0 %v3149
      %v3288 = vpop.f32.mrf.mxu0
      %v3289 = vadd.f32 %v3218, %v3288
      %v3290 = vpop.f32.mrf.mxu0
      %v3291 = vadd.f32 %v3220, %v3290
      %3292 = vdwg.mxu0
      %vm3293 = vcmp.ge.f32.partialorder %v3289, 0.0
      %vm3294 = vcmp.ge.f32.partialorder %v3291, 0.0
      %v3295 = vmul.f32 %v3289, 0.2
      %v3296 = vmul.f32 %v3291, 0.2
      %v3297 = vsel %vm3293, %v3289, %v3295
      %v3298 = vsel %vm3294, %v3291, %v3296
      %3299 = vrot.lane.b32.xlu0 %v3297, 17
      %v3300 = vpop.permute.xlu0 %3299
      %3301 = vrot.lane.b32.xlu0 %v3298, 17
      %v3302 = vpop.permute.xlu0 %3301
      %v3303 = vsel %vm1010, %v3300, %v3302
      %v3304 = vsel %vm1010, %v3302, %v3300
      %v3305 = vmul.f32 %v3304, %v1017
      %v3306 = vmul.f32 %v3303, %v1021
      %3307 = vst [vmem:[#allocation2 + $0x240] sm:$0xff] %v3305
      %3308 = vst [vmem:[#allocation2 + $0x248] sm:$0xff] %v3306
      %3309 = vrot.lane.b32.xlu0 %v3297, 16
      %v3310 = vpop.permute.xlu0 %3309
      %3311 = vrot.lane.b32.xlu0 %v3298, 16
      %v3312 = vpop.permute.xlu0 %3311
      %v3313 = vsel %vm1032, %v3310, %v3312
      %v3314 = vsel %vm1032, %v3312, %v3310
      %v3315 = vmul.f32 %v3314, %v1039
      %v3316 = vmul.f32 %v3313, %v1043
      %3317 = vst [vmem:[#allocation2 + $0x250] sm:$0xff] %v3315
      %3318 = vst [vmem:[#allocation2 + $0x258] sm:$0xff] %v3316
      %3319 = vrot.lane.b32.xlu0 %v3297, 15
      %v3320 = vpop.permute.xlu0 %3319
      %3321 = vrot.lane.b32.xlu0 %v3298, 15
      %v3322 = vpop.permute.xlu0 %3321
      %v3323 = vsel %vm1054, %v3320, %v3322
      %v3324 = vsel %vm1054, %v3322, %v3320
      %v3325 = vmul.f32 %v3324, %v1061
      %v3326 = vmul.f32 %v3323, %v1065
      %3327 = vst [vmem:[#allocation2 + $0x260] sm:$0xff] %v3325
      %3328 = vst [vmem:[#allocation2 + $0x268] sm:$0xff] %v3326
      %3329 = vrot.lane.b32.xlu0 %v3297, 1
      %v3330 = vpop.permute.xlu0 %3329
      %3331 = vrot.lane.b32.xlu0 %v3298, 1
      %v3332 = vpop.permute.xlu0 %3331
      %v3333 = vsel %vm1076, %v3330, %v3332
      %v3334 = vsel %vm1076, %v3332, %v3330
      %v3335 = vmul.f32 %v3334, %v1083
      %v3336 = vmul.f32 %v3333, %v1087
      %3337 = vst [vmem:[#allocation2 + $0x270] sm:$0xff] %v3335
      %3338 = vst [vmem:[#allocation2 + $0x278] sm:$0xff] %v3336
      %3339 = vst [vmem:[#allocation2 + $0x280] sm:$0xff] %v3297
      %3340 = vst [vmem:[#allocation2 + $0x288] sm:$0xff] %v3298
      %3341 = vrot.lane.b32.xlu0 %v3297, 127
      %v3342 = vpop.permute.xlu0 %3341
      %3343 = vrot.lane.b32.xlu0 %v3298, 127
      %v3344 = vpop.permute.xlu0 %3343
      %v3345 = vsel %vm1100, %v3342, %v3344
      %v3346 = vsel %vm1100, %v3344, %v3342
      %v3347 = vmul.f32 %v3345, %v1107
      %v3348 = vmul.f32 %v3346, %v1111
      %3349 = vst [vmem:[#allocation2 + $0x290] sm:$0xff] %v3347
      %3350 = vst [vmem:[#allocation2 + $0x298] sm:$0xff] %v3348
      %3351 = vrot.lane.b32.xlu0 %v3297, 113
      %v3352 = vpop.permute.xlu0 %3351
      %3353 = vrot.lane.b32.xlu0 %v3298, 113
      %v3354 = vpop.permute.xlu0 %3353
      %v3355 = vsel %vm1122, %v3352, %v3354
      %v3356 = vsel %vm1122, %v3354, %v3352
      %v3357 = vmul.f32 %v3355, %v1129
      %v3358 = vmul.f32 %v3356, %v1133
      %3359 = vst [vmem:[#allocation2 + $0x2a0] sm:$0xff] %v3357
      %3360 = vst [vmem:[#allocation2 + $0x2a8] sm:$0xff] %v3358
      %3361 = vrot.lane.b32.xlu0 %v3297, 112
      %v3362 = vpop.permute.xlu0 %3361
      %3363 = vrot.lane.b32.xlu0 %v3298, 112
      %v3364 = vpop.permute.xlu0 %3363
      %v3365 = vsel %vm1144, %v3362, %v3364
      %v3366 = vsel %vm1144, %v3364, %v3362
      %v3367 = vmul.f32 %v3365, %v1151
      %v3368 = vmul.f32 %v3366, %v1155
      %3369 = vst [vmem:[#allocation2 + $0x2b0] sm:$0xff] %v3367
      %3370 = vst [vmem:[#allocation2 + $0x2b8] sm:$0xff] %v3368
      %3371 = vrot.lane.b32.xlu0 %v3297, 111
      %v3372 = vpop.permute.xlu0 %3371
      %3373 = vrot.lane.b32.xlu0 %v3298, 111
      %v3374 = vpop.permute.xlu0 %3373
      %v3375 = vsel %vm1166, %v3372, %v3374
      %v3376 = vsel %vm1166, %v3374, %v3372
      %v3377 = vmul.f32 %v3375, %v1173
      %v3378 = vmul.f32 %v3376, %v1177
      %3379 = vst [vmem:[#allocation2 + $0x2c0] sm:$0xff] %v3377
      %3380 = vst [vmem:[#allocation2 + $0x2c8] sm:$0xff] %v3378
      %v3381 = vld [vmem:[#allocation2] sm:$0xff]
      %v3382 = vld [vmem:[#allocation2 + $0x8] sm:$0xff]
      %v3383 = vld [vmem:[#allocation2 + $0x10] sm:$0xff]
      %v3384 = vld [vmem:[#allocation2 + $0x18] sm:$0xff]
      %v3385 = vld [vmem:[#allocation2 + $0x20] sm:$0xff]
      %v3386 = vld [vmem:[#allocation2 + $0x28] sm:$0xff]
      %v3387 = vld [vmem:[#allocation2 + $0x30] sm:$0xff]
      %v3388 = vld [vmem:[#allocation2 + $0x38] sm:$0xff]
      %v3389 = vld [vmem:[#allocation2 + $0x40] sm:$0xff]
      %v3390 = vld [vmem:[#allocation2 + $0x48] sm:$0xff]
      %v3391 = vld [vmem:[#allocation2 + $0x50] sm:$0xff]
      %v3392 = vld [vmem:[#allocation2 + $0x58] sm:$0xff]
      %v3393 = vld [vmem:[#allocation2 + $0x60] sm:$0xff]
      %v3394 = vld [vmem:[#allocation2 + $0x68] sm:$0xff]
      %v3395 = vld [vmem:[#allocation2 + $0x70] sm:$0xff]
      %v3396 = vld [vmem:[#allocation2 + $0x78] sm:$0xff]
      %v3397 = vld [vmem:[#allocation2 + $0x80] sm:$0xff]
      %v3398 = vld [vmem:[#allocation2 + $0x88] sm:$0xff]
      %v3399 = vld [vmem:[#allocation2 + $0x90] sm:$0xff]
      %v3400 = vld [vmem:[#allocation2 + $0x98] sm:$0xff]
      %v3401 = vld [vmem:[#allocation2 + $0xa0] sm:$0xff]
      %v3402 = vld [vmem:[#allocation2 + $0xa8] sm:$0xff]
      %v3403 = vld [vmem:[#allocation2 + $0xb0] sm:$0xff]
      %v3404 = vld [vmem:[#allocation2 + $0xb8] sm:$0xff]
      %v3405 = vld [vmem:[#allocation2 + $0xc0] sm:$0xff]
      %v3406 = vld [vmem:[#allocation2 + $0xc8] sm:$0xff]
      %v3407 = vld [vmem:[#allocation2 + $0xd0] sm:$0xff]
      %v3408 = vld [vmem:[#allocation2 + $0xd8] sm:$0xff]
      %v3409 = vld [vmem:[#allocation2 + $0xe0] sm:$0xff]
      %v3410 = vld [vmem:[#allocation2 + $0xe8] sm:$0xff]
      %v3411 = vld [vmem:[#allocation2 + $0xf0] sm:$0xff]
      %v3412 = vld [vmem:[#allocation2 + $0xf8] sm:$0xff]
      %v3413 = vld [vmem:[#allocation2 + $0x100] sm:$0xff]
      %v3414 = vld [vmem:[#allocation2 + $0x108] sm:$0xff]
      %v3415 = vld [vmem:[#allocation2 + $0x110] sm:$0xff]
      %v3416 = vld [vmem:[#allocation2 + $0x118] sm:$0xff]
      %v3417 = vld [vmem:[#allocation2 + $0x120] sm:$0xff]
      %v3418 = vld [vmem:[#allocation2 + $0x128] sm:$0xff]
      %v3419 = vld [vmem:[#allocation2 + $0x130] sm:$0xff]
      %v3420 = vld [vmem:[#allocation2 + $0x138] sm:$0xff]
      %v3421 = vld [vmem:[#allocation2 + $0x140] sm:$0xff]
      %v3422 = vld [vmem:[#allocation2 + $0x148] sm:$0xff]
      %v3423 = vld [vmem:[#allocation2 + $0x150] sm:$0xff]
      %v3424 = vld [vmem:[#allocation2 + $0x158] sm:$0xff]
      %v3425 = vld [vmem:[#allocation2 + $0x160] sm:$0xff]
      %v3426 = vld [vmem:[#allocation2 + $0x168] sm:$0xff]
      %v3427 = vld [vmem:[#allocation2 + $0x170] sm:$0xff]
      %v3428 = vld [vmem:[#allocation2 + $0x178] sm:$0xff]
      %v3429 = vld [vmem:[#allocation2 + $0x180] sm:$0xff]
      %v3430 = vld [vmem:[#allocation2 + $0x188] sm:$0xff]
      %v3431 = vld [vmem:[#allocation2 + $0x190] sm:$0xff]
      %v3432 = vld [vmem:[#allocation2 + $0x198] sm:$0xff]
      %v3433 = vld [vmem:[#allocation2 + $0x1a0] sm:$0xff]
      %v3434 = vld [vmem:[#allocation2 + $0x1a8] sm:$0xff]
      %v3435 = vld [vmem:[#allocation2 + $0x1b0] sm:$0xff]
      %v3436 = vld [vmem:[#allocation2 + $0x1b8] sm:$0xff]
      %v3437 = vld [vmem:[#allocation2 + $0x1c0] sm:$0xff]
      %v3438 = vld [vmem:[#allocation2 + $0x1c8] sm:$0xff]
      %v3439 = vld [vmem:[#allocation2 + $0x1d0] sm:$0xff]
      %v3440 = vld [vmem:[#allocation2 + $0x1d8] sm:$0xff]
      %v3441 = vld [vmem:[#allocation2 + $0x1e0] sm:$0xff]
      %v3442 = vld [vmem:[#allocation2 + $0x1e8] sm:$0xff]
      %v3443 = vld [vmem:[#allocation2 + $0x1f0] sm:$0xff]
      %v3444 = vld [vmem:[#allocation2 + $0x1f8] sm:$0xff]
      %v3445 = vld [vmem:[#allocation2 + $0x200] sm:$0xff]
      %v3446 = vld [vmem:[#allocation2 + $0x208] sm:$0xff]
      %v3447 = vld [vmem:[#allocation2 + $0x210] sm:$0xff]
      %v3448 = vld [vmem:[#allocation2 + $0x218] sm:$0xff]
      %v3449 = vld [vmem:[#allocation2 + $0x220] sm:$0xff]
      %v3450 = vld [vmem:[#allocation2 + $0x228] sm:$0xff]
      %v3451 = vld [vmem:[#allocation2 + $0x230] sm:$0xff]
      %v3452 = vld [vmem:[#allocation2 + $0x238] sm:$0xff]
      %v3453 = vld [vmem:[#allocation2 + $0x240] sm:$0xff]
      %v3454 = vld [vmem:[#allocation2 + $0x248] sm:$0xff]
      %v3455 = vld [vmem:[#allocation2 + $0x250] sm:$0xff]
      %v3456 = vld [vmem:[#allocation2 + $0x258] sm:$0xff]
      %v3457 = vld [vmem:[#allocation2 + $0x260] sm:$0xff]
      %v3458 = vld [vmem:[#allocation2 + $0x268] sm:$0xff]
      %v3459 = vld [vmem:[#allocation2 + $0x270] sm:$0xff]
      %v3460 = vld [vmem:[#allocation2 + $0x278] sm:$0xff]
      %v3461 = vld [vmem:[#allocation2 + $0x280] sm:$0xff]
      %v3462 = vld [vmem:[#allocation2 + $0x288] sm:$0xff]
      %v3463 = vld [vmem:[#allocation2 + $0x290] sm:$0xff]
      %v3464 = vld [vmem:[#allocation2 + $0x298] sm:$0xff]
      %v3465 = vld [vmem:[#allocation2 + $0x2a0] sm:$0xff]
      %v3466 = vld [vmem:[#allocation2 + $0x2a8] sm:$0xff]
      %v3467 = vld [vmem:[#allocation2 + $0x2b0] sm:$0xff]
      %v3468 = vld [vmem:[#allocation2 + $0x2b8] sm:$0xff]
      %v3469 = vld [vmem:[#allocation2 + $0x2c0] sm:$0xff]
      %v3470 = vld [vmem:[#allocation2 + $0x2c8] sm:$0xff]
      %v3471 = vld [vmem:[%s23] sm:$0xff]
      %v3472 = vld [vmem:[%s23 + $0x8] sm:$0xff]
      %v3473 = vld [vmem:[%s23 + $0x10] sm:$0xff]
      %v3474 = vld [vmem:[%s53] sm:$0xff]
      %3476 = vset.pattern.permute.xlu0 0
      %3477 = vperm.xlu0 %3476, %v3474
      %v3478 = vpop.permute.xlu0 %3477
      %v3481 = vsel %vm2218, %v3473, 0
      %3483 = vmatprep.subr.mxu0 %v3412
      %3484 = vmatpush1.msra.mxu0 %v3411
      %3485 = vmatprep.subr.mxu0 %v3410
      %3486 = vmatpush1.msra.mxu0 %v3409
      %3487 = vmatprep.subr.mxu0 %v3408
      %3488 = vmatpush1.msra.mxu0 %v3407
      %3489 = vmatprep.subr.mxu0 %v3406
      %3490 = vmatpush1.msra.mxu0 %v3405
      %3491 = vmatprep.subr.mxu0 %v3404
      %3492 = vmatpush1.msra.mxu0 %v3403
      %3493 = vmatprep.subr.mxu0 %v3402
      %3494 = vmatpush1.msra.mxu0 %v3401
      %3495 = vmatprep.subr.mxu0 %v3400
      %3496 = vmatpush1.msra.mxu0 %v3399
      %3497 = vmatprep.subr.mxu0 %v3398
      %3498 = vmatpush1.msra.mxu0 %v3397
      %3499 = vmatprep.subr.mxu0 %v3396
      %3500 = vmatpush1.msra.mxu0 %v3395
      %3501 = vmatprep.subr.mxu0 %v3394
      %3502 = vmatpush1.msra.mxu0 %v3393
      %3503 = vmatprep.subr.mxu0 %v3392
      %3504 = vmatpush1.msra.mxu0 %v3391
      %3505 = vmatprep.subr.mxu0 %v3390
      %3506 = vmatpush1.msra.mxu0 %v3389
      %3507 = vmatprep.subr.mxu0 %v3388
      %3508 = vmatpush1.msra.mxu0 %v3387
      %3509 = vmatprep.subr.mxu0 %v3386
      %3510 = vmatpush1.msra.mxu0 %v3385
      %3511 = vmatprep.subr.mxu0 %v3384
      %3512 = vmatpush1.msra.mxu0 %v3383
      %3513 = vmatprep.subr.mxu0 %v3382
      %3514 = vmatpush1.msra.mxu0 %v3381
      %3515 = vmatprep.subr.mxu0 %v3444
      %3516 = vmatpush2.msra.mxu0 %v3443
      %3517 = vmatprep.subr.mxu0 %v3442
      %3518 = vmatpush2.msra.mxu0 %v3441
      %3519 = vmatprep.subr.mxu0 %v3440
      %3520 = vmatpush2.msra.mxu0 %v3439
      %3521 = vmatprep.subr.mxu0 %v3438
      %3522 = vmatpush2.msra.mxu0 %v3437
      %3523 = vmatprep.subr.mxu0 %v3436
      %3524 = vmatpush2.msra.mxu0 %v3435
      %3525 = vmatprep.subr.mxu0 %v3434
      %3526 = vmatpush2.msra.mxu0 %v3433
      %3527 = vmatprep.subr.mxu0 %v3432
      %3528 = vmatpush2.msra.mxu0 %v3431
      %3529 = vmatprep.subr.mxu0 %v3430
      %3530 = vmatpush2.msra.mxu0 %v3429
      %3531 = vmatprep.subr.mxu0 %v3428
      %3532 = vmatpush2.msra.mxu0 %v3427
      %3533 = vmatprep.subr.mxu0 %v3426
      %3534 = vmatpush2.msra.mxu0 %v3425
      %3535 = vmatprep.subr.mxu0 %v3424
      %3536 = vmatpush2.msra.mxu0 %v3423
      %3537 = vmatprep.subr.mxu0 %v3422
      %3538 = vmatpush2.msra.mxu0 %v3421
      %3539 = vmatprep.subr.mxu0 %v3420
      %3540 = vmatpush2.msra.mxu0 %v3419
      %3541 = vmatprep.subr.mxu0 %v3418
      %3542 = vmatpush2.msra.mxu0 %v3417
      %3543 = vmatprep.subr.mxu0 %v3416
      %3544 = vmatpush2.msra.mxu0 %v3415
      %3545 = vmatprep.subr.mxu0 %v3414
      %3546 = vmatpush2.msra.mxu0 %v3413
      %3547 = vmatprep.mubr.f32.mxu0 %v3472
      %3548 = vmatmul.mubr.f32.gmra.mxu0 %v3471
      %v3549 = vpop.f32.mrf.mxu0
      %v3550 = vadd.f32 %v3478, %v3549
      %v3551 = vpop.f32.mrf.mxu0
      %v3552 = vadd.f32 %v3478, %v3551
      %3553 = vdwg.mxu0
      %3554 = vmatprep.subr.mxu0 0.0
      %3555 = vmatpush1.msra.mxu0 0.0
      %3556 = vmatprep.subr.mxu0 0.0
      %3557 = vmatpush1.msra.mxu0 0.0
      %3558 = vmatprep.subr.mxu0 0.0
      %3559 = vmatpush1.msra.mxu0 0.0
      %3560 = vmatprep.subr.mxu0 %v3470
      %3561 = vmatpush1.msra.mxu0 %v3469
      %3562 = vmatprep.subr.mxu0 %v3468
      %3563 = vmatpush1.msra.mxu0 %v3467
      %3564 = vmatprep.subr.mxu0 %v3466
      %3565 = vmatpush1.msra.mxu0 %v3465
      %3566 = vmatprep.subr.mxu0 %v3464
      %3567 = vmatpush1.msra.mxu0 %v3463
      %3568 = vmatprep.subr.mxu0 %v3462
      %3569 = vmatpush1.msra.mxu0 %v3461
      %3570 = vmatprep.subr.mxu0 %v3460
      %3571 = vmatpush1.msra.mxu0 %v3459
      %3572 = vmatprep.subr.mxu0 %v3458
      %3573 = vmatpush1.msra.mxu0 %v3457
      %3574 = vmatprep.subr.mxu0 %v3456
      %3575 = vmatpush1.msra.mxu0 %v3455
      %3576 = vmatprep.subr.mxu0 %v3454
      %3577 = vmatpush1.msra.mxu0 %v3453
      %3578 = vmatprep.subr.mxu0 %v3452
      %3579 = vmatpush1.msra.mxu0 %v3451
      %3580 = vmatprep.subr.mxu0 %v3450
      %3581 = vmatpush1.msra.mxu0 %v3449
      %3582 = vmatprep.subr.mxu0 %v3448
      %3583 = vmatpush1.msra.mxu0 %v3447
      %3584 = vmatprep.subr.mxu0 %v3446
      %3585 = vmatpush1.msra.mxu0 %v3445
      %3586 = vmatprep.subr.mxu0 0.0
      %3587 = vmatpush2.msra.mxu0 0.0
      %3588 = vmatprep.subr.mxu0 0.0
      %3589 = vmatpush2.msra.mxu0 0.0
      %3590 = vmatprep.subr.mxu0 0.0
      %3591 = vmatpush2.msra.mxu0 0.0
      %3592 = vmatprep.subr.mxu0 0.0
      %3593 = vmatpush2.msra.mxu0 0.0
      %3594 = vmatprep.subr.mxu0 0.0
      %3595 = vmatpush2.msra.mxu0 0.0
      %3596 = vmatprep.subr.mxu0 0.0
      %3597 = vmatpush2.msra.mxu0 0.0
      %3598 = vmatprep.subr.mxu0 0.0
      %3599 = vmatpush2.msra.mxu0 0.0
      %3600 = vmatprep.subr.mxu0 0.0
      %3601 = vmatpush2.msra.mxu0 0.0
      %3602 = vmatprep.subr.mxu0 0.0
      %3603 = vmatpush2.msra.mxu0 0.0
      %3604 = vmatprep.subr.mxu0 0.0
      %3605 = vmatpush2.msra.mxu0 0.0
      %3606 = vmatprep.subr.mxu0 0.0
      %3607 = vmatpush2.msra.mxu0 0.0
      %3608 = vmatprep.subr.mxu0 0.0
      %3609 = vmatpush2.msra.mxu0 0.0
      %3610 = vmatprep.subr.mxu0 0.0
      %3611 = vmatpush2.msra.mxu0 0.0
      %3612 = vmatprep.subr.mxu0 0.0
      %3613 = vmatpush2.msra.mxu0 0.0
      %3614 = vmatprep.subr.mxu0 0.0
      %3615 = vmatpush2.msra.mxu0 0.0
      %3616 = vmatprep.subr.mxu0 0.0
      %3617 = vmatpush2.msra.mxu0 0.0
      %3618 = vmatprep.mubr.f32.mxu0 0.0
      %3619 = vmatmul.mubr.f32.gmra.mxu0 %v3481
      %v3620 = vpop.f32.mrf.mxu0
      %v3621 = vadd.f32 %v3550, %v3620
      %v3622 = vpop.f32.mrf.mxu0
      %v3623 = vadd.f32 %v3552, %v3622
      %3624 = vdwg.mxu0
      %v3625 = vmul.f32 %v3621, 0.2
      %v3626 = vmul.f32 %v3623, 0.2
      %v3627 = vadd.f32 %v3625, %v2366
      %v3628 = vadd.f32 %v3626, %v2367
      %3629 = vrot.lane.b32.xlu0 %v3627, 17
      %v3630 = vpop.permute.xlu0 %3629
      %3631 = vrot.lane.b32.xlu0 %v3628, 17
      %v3632 = vpop.permute.xlu0 %3631
      %v3633 = vsel %vm1010, %v3630, %v3632
      %v3634 = vsel %vm1010, %v3632, %v3630
      %v3635 = vmul.f32 %v3634, %v1017
      %v3636 = vmul.f32 %v3633, %v1021
      %3637 = vst [vmem:[#allocation2] sm:$0xff] %v3635
      %3638 = vst [vmem:[#allocation2 + $0x8] sm:$0xff] %v3636
      %3639 = vrot.lane.b32.xlu0 %v3627, 16
      %v3640 = vpop.permute.xlu0 %3639
      %3641 = vrot.lane.b32.xlu0 %v3628, 16
      %v3642 = vpop.permute.xlu0 %3641
      %v3643 = vsel %vm1032, %v3640, %v3642
      %v3644 = vsel %vm1032, %v3642, %v3640
      %v3645 = vmul.f32 %v3644, %v1039
      %v3646 = vmul.f32 %v3643, %v1043
      %3647 = vst [vmem:[#allocation2 + $0x10] sm:$0xff] %v3645
      %3648 = vst [vmem:[#allocation2 + $0x18] sm:$0xff] %v3646
      %3649 = vrot.lane.b32.xlu0 %v3627, 15
      %v3650 = vpop.permute.xlu0 %3649
      %3651 = vrot.lane.b32.xlu0 %v3628, 15
      %v3652 = vpop.permute.xlu0 %3651
      %v3653 = vsel %vm1054, %v3650, %v3652
      %v3654 = vsel %vm1054, %v3652, %v3650
      %v3655 = vmul.f32 %v3654, %v1061
      %v3656 = vmul.f32 %v3653, %v1065
      %3657 = vst [vmem:[#allocation2 + $0x20] sm:$0xff] %v3655
      %3658 = vst [vmem:[#allocation2 + $0x28] sm:$0xff] %v3656
      %3659 = vrot.lane.b32.xlu0 %v3627, 1
      %v3660 = vpop.permute.xlu0 %3659
      %3661 = vrot.lane.b32.xlu0 %v3628, 1
      %v3662 = vpop.permute.xlu0 %3661
      %v3663 = vsel %vm1076, %v3660, %v3662
      %v3664 = vsel %vm1076, %v3662, %v3660
      %v3665 = vmul.f32 %v3664, %v1083
      %v3666 = vmul.f32 %v3663, %v1087
      %3667 = vst [vmem:[#allocation2 + $0x30] sm:$0xff] %v3665
      %3668 = vst [vmem:[#allocation2 + $0x38] sm:$0xff] %v3666
      %3669 = vst [vmem:[#allocation2 + $0x40] sm:$0xff] %v3627
      %3670 = vst [vmem:[#allocation2 + $0x48] sm:$0xff] %v3628
      %3671 = vrot.lane.b32.xlu0 %v3627, 127
      %v3672 = vpop.permute.xlu0 %3671
      %3673 = vrot.lane.b32.xlu0 %v3628, 127
      %v3674 = vpop.permute.xlu0 %3673
      %v3675 = vsel %vm1100, %v3672, %v3674
      %v3676 = vsel %vm1100, %v3674, %v3672
      %v3677 = vmul.f32 %v3675, %v1107
      %v3678 = vmul.f32 %v3676, %v1111
      %3679 = vst [vmem:[#allocation2 + $0x50] sm:$0xff] %v3677
      %3680 = vst [vmem:[#allocation2 + $0x58] sm:$0xff] %v3678
      %3681 = vrot.lane.b32.xlu0 %v3627, 113
      %v3682 = vpop.permute.xlu0 %3681
      %3683 = vrot.lane.b32.xlu0 %v3628, 113
      %v3684 = vpop.permute.xlu0 %3683
      %v3685 = vsel %vm1122, %v3682, %v3684
      %v3686 = vsel %vm1122, %v3684, %v3682
      %v3687 = vmul.f32 %v3685, %v1129
      %v3688 = vmul.f32 %v3686, %v1133
      %3689 = vst [vmem:[#allocation2 + $0x60] sm:$0xff] %v3687
      %3690 = vst [vmem:[#allocation2 + $0x68] sm:$0xff] %v3688
      %3691 = vrot.lane.b32.xlu0 %v3627, 112
      %v3692 = vpop.permute.xlu0 %3691
      %3693 = vrot.lane.b32.xlu0 %v3628, 112
      %v3694 = vpop.permute.xlu0 %3693
      %v3695 = vsel %vm1144, %v3692, %v3694
      %v3696 = vsel %vm1144, %v3694, %v3692
      %v3697 = vmul.f32 %v3695, %v1151
      %v3698 = vmul.f32 %v3696, %v1155
      %3699 = vst [vmem:[#allocation2 + $0x70] sm:$0xff] %v3697
      %3700 = vst [vmem:[#allocation2 + $0x78] sm:$0xff] %v3698
      %3701 = vrot.lane.b32.xlu0 %v3627, 111
      %v3702 = vpop.permute.xlu0 %3701
      %3703 = vrot.lane.b32.xlu0 %v3628, 111
      %v3704 = vpop.permute.xlu0 %3703
      %v3705 = vsel %vm1166, %v3702, %v3704
      %v3706 = vsel %vm1166, %v3704, %v3702
      %v3707 = vmul.f32 %v3705, %v1173
      %v3708 = vmul.f32 %v3706, %v1177
      %3709 = vst [vmem:[#allocation2 + $0x80] sm:$0xff] %v3707
      %3710 = vst [vmem:[#allocation2 + $0x88] sm:$0xff] %v3708
      %v3711 = vld [vmem:[#allocation2] sm:$0xff]
      %v3712 = vld [vmem:[#allocation2 + $0x8] sm:$0xff]
      %v3713 = vld [vmem:[#allocation2 + $0x10] sm:$0xff]
      %v3714 = vld [vmem:[#allocation2 + $0x18] sm:$0xff]
      %v3715 = vld [vmem:[#allocation2 + $0x20] sm:$0xff]
      %v3716 = vld [vmem:[#allocation2 + $0x28] sm:$0xff]
      %v3717 = vld [vmem:[#allocation2 + $0x30] sm:$0xff]
      %v3718 = vld [vmem:[#allocation2 + $0x38] sm:$0xff]
      %v3719 = vld [vmem:[#allocation2 + $0x40] sm:$0xff]
      %v3720 = vld [vmem:[#allocation2 + $0x48] sm:$0xff]
      %v3721 = vld [vmem:[#allocation2 + $0x50] sm:$0xff]
      %v3722 = vld [vmem:[#allocation2 + $0x58] sm:$0xff]
      %v3723 = vld [vmem:[#allocation2 + $0x60] sm:$0xff]
      %v3724 = vld [vmem:[#allocation2 + $0x68] sm:$0xff]
      %v3725 = vld [vmem:[#allocation2 + $0x70] sm:$0xff]
      %v3726 = vld [vmem:[#allocation2 + $0x78] sm:$0xff]
      %v3727 = vld [vmem:[#allocation2 + $0x80] sm:$0xff]
      %v3728 = vld [vmem:[#allocation2 + $0x88] sm:$0xff]
      %v3729 = vld [vmem:[%s25] sm:$0xff]
      %v3730 = vld [vmem:[%s55] sm:$0xff]
      %3732 = vset.pattern.permute.xlu0 0
      %3733 = vperm.xlu0 %3732, %v3730
      %v3734 = vpop.permute.xlu0 %3733
      %v3737 = vsel %vm1209, %v3729, 0
      %3739 = vmatprep.subr.mxu0 0.0
      %3740 = vmatpush1.msra.mxu0 0.0
      %3741 = vmatprep.subr.mxu0 0.0
      %3742 = vmatpush1.msra.mxu0 0.0
      %3743 = vmatprep.subr.mxu0 0.0
      %3744 = vmatpush1.msra.mxu0 0.0
      %3745 = vmatprep.subr.mxu0 0.0
      %3746 = vmatpush1.msra.mxu0 0.0
      %3747 = vmatprep.subr.mxu0 0.0
      %3748 = vmatpush1.msra.mxu0 0.0
      %3749 = vmatprep.subr.mxu0 0.0
      %3750 = vmatpush1.msra.mxu0 0.0
      %3751 = vmatprep.subr.mxu0 0.0
      %3752 = vmatpush1.msra.mxu0 0.0
      %3753 = vmatprep.subr.mxu0 %v3728
      %3754 = vmatpush1.msra.mxu0 %v3727
      %3755 = vmatprep.subr.mxu0 %v3726
      %3756 = vmatpush1.msra.mxu0 %v3725
      %3757 = vmatprep.subr.mxu0 %v3724
      %3758 = vmatpush1.msra.mxu0 %v3723
      %3759 = vmatprep.subr.mxu0 %v3722
      %3760 = vmatpush1.msra.mxu0 %v3721
      %3761 = vmatprep.subr.mxu0 %v3720
      %3762 = vmatpush1.msra.mxu0 %v3719
      %3763 = vmatprep.subr.mxu0 %v3718
      %3764 = vmatpush1.msra.mxu0 %v3717
      %3765 = vmatprep.subr.mxu0 %v3716
      %3766 = vmatpush1.msra.mxu0 %v3715
      %3767 = vmatprep.subr.mxu0 %v3714
      %3768 = vmatpush1.msra.mxu0 %v3713
      %3769 = vmatprep.subr.mxu0 %v3712
      %3770 = vmatpush1.msra.mxu0 %v3711
      %3771 = vmatprep.subr.mxu0 0.0
      %3772 = vmatpush2.msra.mxu0 0.0
      %3773 = vmatprep.subr.mxu0 0.0
      %3774 = vmatpush2.msra.mxu0 0.0
      %3775 = vmatprep.subr.mxu0 0.0
      %3776 = vmatpush2.msra.mxu0 0.0
      %3777 = vmatprep.subr.mxu0 0.0
      %3778 = vmatpush2.msra.mxu0 0.0
      %3779 = vmatprep.subr.mxu0 0.0
      %3780 = vmatpush2.msra.mxu0 0.0
      %3781 = vmatprep.subr.mxu0 0.0
      %3782 = vmatpush2.msra.mxu0 0.0
      %3783 = vmatprep.subr.mxu0 0.0
      %3784 = vmatpush2.msra.mxu0 0.0
      %3785 = vmatprep.subr.mxu0 0.0
      %3786 = vmatpush2.msra.mxu0 0.0
      %3787 = vmatprep.subr.mxu0 0.0
      %3788 = vmatpush2.msra.mxu0 0.0
      %3789 = vmatprep.subr.mxu0 0.0
      %3790 = vmatpush2.msra.mxu0 0.0
      %3791 = vmatprep.subr.mxu0 0.0
      %3792 = vmatpush2.msra.mxu0 0.0
      %3793 = vmatprep.subr.mxu0 0.0
      %3794 = vmatpush2.msra.mxu0 0.0
      %3795 = vmatprep.subr.mxu0 0.0
      %3796 = vmatpush2.msra.mxu0 0.0
      %3797 = vmatprep.subr.mxu0 0.0
      %3798 = vmatpush2.msra.mxu0 0.0
      %3799 = vmatprep.subr.mxu0 0.0
      %3800 = vmatpush2.msra.mxu0 0.0
      %3801 = vmatprep.subr.mxu0 0.0
      %3802 = vmatpush2.msra.mxu0 0.0
      %3803 = vmatprep.mubr.f32.mxu0 0.0
      %3804 = vmatmul.mubr.f32.gmra.mxu0 %v3737
      %v3805 = vpop.f32.mrf.mxu0
      %v3806 = vadd.f32 %v3734, %v3805
      %v3807 = vpop.f32.mrf.mxu0
      %v3808 = vadd.f32 %v3734, %v3807
      %3809 = vdwg.mxu0
      %vm3810 = vcmp.ge.f32.partialorder %v3806, 0.0
      %vm3811 = vcmp.ge.f32.partialorder %v3808, 0.0
      %v3812 = vmul.f32 %v3806, 0.2
      %v3813 = vmul.f32 %v3808, 0.2
      %v3814 = vsel %vm3810, %v3806, %v3812
      %v3815 = vsel %vm3811, %v3808, %v3813
      %3816 = vrot.lane.b32.xlu0 %v3814, 17
      %v3817 = vpop.permute.xlu0 %3816
      %3818 = vrot.lane.b32.xlu0 %v3815, 17
      %v3819 = vpop.permute.xlu0 %3818
      %v3820 = vsel %vm1010, %v3817, %v3819
      %v3821 = vsel %vm1010, %v3819, %v3817
      %v3822 = vmul.f32 %v3821, %v1017
      %v3823 = vmul.f32 %v3820, %v1021
      %3824 = vst [vmem:[#allocation2 + $0x90] sm:$0xff] %v3822
      %3825 = vst [vmem:[#allocation2 + $0x98] sm:$0xff] %v3823
      %3826 = vrot.lane.b32.xlu0 %v3814, 16
      %v3827 = vpop.permute.xlu0 %3826
      %3828 = vrot.lane.b32.xlu0 %v3815, 16
      %v3829 = vpop.permute.xlu0 %3828
      %v3830 = vsel %vm1032, %v3827, %v3829
      %v3831 = vsel %vm1032, %v3829, %v3827
      %v3832 = vmul.f32 %v3831, %v1039
      %v3833 = vmul.f32 %v3830, %v1043
      %3834 = vst [vmem:[#allocation2 + $0xa0] sm:$0xff] %v3832
      %3835 = vst [vmem:[#allocation2 + $0xa8] sm:$0xff] %v3833
      %3836 = vrot.lane.b32.xlu0 %v3814, 15
      %v3837 = vpop.permute.xlu0 %3836
      %3838 = vrot.lane.b32.xlu0 %v3815, 15
      %v3839 = vpop.permute.xlu0 %3838
      %v3840 = vsel %vm1054, %v3837, %v3839
      %v3841 = vsel %vm1054, %v3839, %v3837
      %v3842 = vmul.f32 %v3841, %v1061
      %v3843 = vmul.f32 %v3840, %v1065
      %3844 = vst [vmem:[#allocation2 + $0xb0] sm:$0xff] %v3842
      %3845 = vst [vmem:[#allocation2 + $0xb8] sm:$0xff] %v3843
      %3846 = vrot.lane.b32.xlu0 %v3814, 1
      %v3847 = vpop.permute.xlu0 %3846
      %3848 = vrot.lane.b32.xlu0 %v3815, 1
      %v3849 = vpop.permute.xlu0 %3848
      %v3850 = vsel %vm1076, %v3847, %v3849
      %v3851 = vsel %vm1076, %v3849, %v3847
      %v3852 = vmul.f32 %v3851, %v1083
      %v3853 = vmul.f32 %v3850, %v1087
      %3854 = vst [vmem:[#allocation2 + $0xc0] sm:$0xff] %v3852
      %3855 = vst [vmem:[#allocation2 + $0xc8] sm:$0xff] %v3853
      %3856 = vst [vmem:[#allocation2 + $0xd0] sm:$0xff] %v3814
      %3857 = vst [vmem:[#allocation2 + $0xd8] sm:$0xff] %v3815
      %3858 = vrot.lane.b32.xlu0 %v3814, 127
      %v3859 = vpop.permute.xlu0 %3858
      %3860 = vrot.lane.b32.xlu0 %v3815, 127
      %v3861 = vpop.permute.xlu0 %3860
      %v3862 = vsel %vm1100, %v3859, %v3861
      %v3863 = vsel %vm1100, %v3861, %v3859
      %v3864 = vmul.f32 %v3862, %v1107
      %v3865 = vmul.f32 %v3863, %v1111
      %3866 = vst [vmem:[#allocation2 + $0xe0] sm:$0xff] %v3864
      %3867 = vst [vmem:[#allocation2 + $0xe8] sm:$0xff] %v3865
      %3868 = vrot.lane.b32.xlu0 %v3814, 113
      %v3869 = vpop.permute.xlu0 %3868
      %3870 = vrot.lane.b32.xlu0 %v3815, 113
      %v3871 = vpop.permute.xlu0 %3870
      %v3872 = vsel %vm1122, %v3869, %v3871
      %v3873 = vsel %vm1122, %v3871, %v3869
      %v3874 = vmul.f32 %v3872, %v1129
      %v3875 = vmul.f32 %v3873, %v1133
      %3876 = vst [vmem:[#allocation2 + $0xf0] sm:$0xff] %v3874
      %3877 = vst [vmem:[#allocation2 + $0xf8] sm:$0xff] %v3875
      %3878 = vrot.lane.b32.xlu0 %v3814, 112
      %v3879 = vpop.permute.xlu0 %3878
      %3880 = vrot.lane.b32.xlu0 %v3815, 112
      %v3881 = vpop.permute.xlu0 %3880
      %v3882 = vsel %vm1144, %v3879, %v3881
      %v3883 = vsel %vm1144, %v3881, %v3879
      %v3884 = vmul.f32 %v3882, %v1151
      %v3885 = vmul.f32 %v3883, %v1155
      %3886 = vst [vmem:[#allocation2 + $0x100] sm:$0xff] %v3884
      %3887 = vst [vmem:[#allocation2 + $0x108] sm:$0xff] %v3885
      %3888 = vrot.lane.b32.xlu0 %v3814, 111
      %v3889 = vpop.permute.xlu0 %3888
      %3890 = vrot.lane.b32.xlu0 %v3815, 111
      %v3891 = vpop.permute.xlu0 %3890
      %v3892 = vsel %vm1166, %v3889, %v3891
      %v3893 = vsel %vm1166, %v3891, %v3889
      %v3894 = vmul.f32 %v3892, %v1173
      %v3895 = vmul.f32 %v3893, %v1177
      %3896 = vst [vmem:[#allocation2 + $0x110] sm:$0xff] %v3894
      %3897 = vst [vmem:[#allocation2 + $0x118] sm:$0xff] %v3895
      %v3898 = vld [vmem:[#allocation2] sm:$0xff]
      %v3899 = vld [vmem:[#allocation2 + $0x8] sm:$0xff]
      %v3900 = vld [vmem:[#allocation2 + $0x10] sm:$0xff]
      %v3901 = vld [vmem:[#allocation2 + $0x18] sm:$0xff]
      %v3902 = vld [vmem:[#allocation2 + $0x20] sm:$0xff]
      %v3903 = vld [vmem:[#allocation2 + $0x28] sm:$0xff]
      %v3904 = vld [vmem:[#allocation2 + $0x30] sm:$0xff]
      %v3905 = vld [vmem:[#allocation2 + $0x38] sm:$0xff]
      %v3906 = vld [vmem:[#allocation2 + $0x40] sm:$0xff]
      %v3907 = vld [vmem:[#allocation2 + $0x48] sm:$0xff]
      %v3908 = vld [vmem:[#allocation2 + $0x50] sm:$0xff]
      %v3909 = vld [vmem:[#allocation2 + $0x58] sm:$0xff]
      %v3910 = vld [vmem:[#allocation2 + $0x60] sm:$0xff]
      %v3911 = vld [vmem:[#allocation2 + $0x68] sm:$0xff]
      %v3912 = vld [vmem:[#allocation2 + $0x70] sm:$0xff]
      %v3913 = vld [vmem:[#allocation2 + $0x78] sm:$0xff]
      %v3914 = vld [vmem:[#allocation2 + $0x80] sm:$0xff]
      %v3915 = vld [vmem:[#allocation2 + $0x88] sm:$0xff]
      %v3916 = vld [vmem:[#allocation2 + $0x90] sm:$0xff]
      %v3917 = vld [vmem:[#allocation2 + $0x98] sm:$0xff]
      %v3918 = vld [vmem:[#allocation2 + $0xa0] sm:$0xff]
      %v3919 = vld [vmem:[#allocation2 + $0xa8] sm:$0xff]
      %v3920 = vld [vmem:[#allocation2 + $0xb0] sm:$0xff]
      %v3921 = vld [vmem:[#allocation2 + $0xb8] sm:$0xff]
      %v3922 = vld [vmem:[#allocation2 + $0xc0] sm:$0xff]
      %v3923 = vld [vmem:[#allocation2 + $0xc8] sm:$0xff]
      %v3924 = vld [vmem:[#allocation2 + $0xd0] sm:$0xff]
      %v3925 = vld [vmem:[#allocation2 + $0xd8] sm:$0xff]
      %v3926 = vld [vmem:[#allocation2 + $0xe0] sm:$0xff]
      %v3927 = vld [vmem:[#allocation2 + $0xe8] sm:$0xff]
      %v3928 = vld [vmem:[#allocation2 + $0xf0] sm:$0xff]
      %v3929 = vld [vmem:[#allocation2 + $0xf8] sm:$0xff]
      %v3930 = vld [vmem:[#allocation2 + $0x100] sm:$0xff]
      %v3931 = vld [vmem:[#allocation2 + $0x108] sm:$0xff]
      %v3932 = vld [vmem:[#allocation2 + $0x110] sm:$0xff]
      %v3933 = vld [vmem:[#allocation2 + $0x118] sm:$0xff]
      %v3934 = vld [vmem:[%s27] sm:$0xff]
      %v3935 = vld [vmem:[%s27 + $0x8] sm:$0xff]
      %v3936 = vld [vmem:[%s57] sm:$0xff]
      %3938 = vset.pattern.permute.xlu0 0
      %3939 = vperm.xlu0 %3938, %v3936
      %v3940 = vpop.permute.xlu0 %3939
      %v3943 = vsel %vm1416, %v3935, 0
      %3945 = vmatprep.subr.mxu0 %v3929
      %3946 = vmatpush1.msra.mxu0 %v3928
      %3947 = vmatprep.subr.mxu0 %v3927
      %3948 = vmatpush1.msra.mxu0 %v3926
      %3949 = vmatprep.subr.mxu0 %v3925
      %3950 = vmatpush1.msra.mxu0 %v3924
      %3951 = vmatprep.subr.mxu0 %v3923
      %3952 = vmatpush1.msra.mxu0 %v3922
      %3953 = vmatprep.subr.mxu0 %v3921
      %3954 = vmatpush1.msra.mxu0 %v3920
      %3955 = vmatprep.subr.mxu0 %v3919
      %3956 = vmatpush1.msra.mxu0 %v3918
      %3957 = vmatprep.subr.mxu0 %v3917
      %3958 = vmatpush1.msra.mxu0 %v3916
      %3959 = vmatprep.subr.mxu0 %v3915
      %3960 = vmatpush1.msra.mxu0 %v3914
      %3961 = vmatprep.subr.mxu0 %v3913
      %3962 = vmatpush1.msra.mxu0 %v3912
      %3963 = vmatprep.subr.mxu0 %v3911
      %3964 = vmatpush1.msra.mxu0 %v3910
      %3965 = vmatprep.subr.mxu0 %v3909
      %3966 = vmatpush1.msra.mxu0 %v3908
      %3967 = vmatprep.subr.mxu0 %v3907
      %3968 = vmatpush1.msra.mxu0 %v3906
      %3969 = vmatprep.subr.mxu0 %v3905
      %3970 = vmatpush1.msra.mxu0 %v3904
      %3971 = vmatprep.subr.mxu0 %v3903
      %3972 = vmatpush1.msra.mxu0 %v3902
      %3973 = vmatprep.subr.mxu0 %v3901
      %3974 = vmatpush1.msra.mxu0 %v3900
      %3975 = vmatprep.subr.mxu0 %v3899
      %3976 = vmatpush1.msra.mxu0 %v3898
      %3977 = vmatprep.subr.mxu0 0.0
      %3978 = vmatpush2.msra.mxu0 0.0
      %3979 = vmatprep.subr.mxu0 0.0
      %3980 = vmatpush2.msra.mxu0 0.0
      %3981 = vmatprep.subr.mxu0 0.0
      %3982 = vmatpush2.msra.mxu0 0.0
      %3983 = vmatprep.subr.mxu0 0.0
      %3984 = vmatpush2.msra.mxu0 0.0
      %3985 = vmatprep.subr.mxu0 0.0
      %3986 = vmatpush2.msra.mxu0 0.0
      %3987 = vmatprep.subr.mxu0 0.0
      %3988 = vmatpush2.msra.mxu0 0.0
      %3989 = vmatprep.subr.mxu0 0.0
      %3990 = vmatpush2.msra.mxu0 0.0
      %3991 = vmatprep.subr.mxu0 0.0
      %3992 = vmatpush2.msra.mxu0 0.0
      %3993 = vmatprep.subr.mxu0 0.0
      %3994 = vmatpush2.msra.mxu0 0.0
      %3995 = vmatprep.subr.mxu0 0.0
      %3996 = vmatpush2.msra.mxu0 0.0
      %3997 = vmatprep.subr.mxu0 0.0
      %3998 = vmatpush2.msra.mxu0 0.0
      %3999 = vmatprep.subr.mxu0 0.0
      %4000 = vmatpush2.msra.mxu0 0.0
      %4001 = vmatprep.subr.mxu0 0.0
      %4002 = vmatpush2.msra.mxu0 0.0
      %4003 = vmatprep.subr.mxu0 0.0
      %4004 = vmatpush2.msra.mxu0 0.0
      %4005 = vmatprep.subr.mxu0 %v3933
      %4006 = vmatpush2.msra.mxu0 %v3932
      %4007 = vmatprep.subr.mxu0 %v3931
      %4008 = vmatpush2.msra.mxu0 %v3930
      %4009 = vmatprep.mubr.f32.mxu0 %v3943
      %4010 = vmatmul.mubr.f32.gmra.mxu0 %v3934
      %v4011 = vpop.f32.mrf.mxu0
      %v4012 = vadd.f32 %v3940, %v4011
      %v4013 = vpop.f32.mrf.mxu0
      %v4014 = vadd.f32 %v3940, %v4013
      %4015 = vdwg.mxu0
      %vm4016 = vcmp.ge.f32.partialorder %v4012, 0.0
      %vm4017 = vcmp.ge.f32.partialorder %v4014, 0.0
      %v4018 = vmul.f32 %v4012, 0.2
      %v4019 = vmul.f32 %v4014, 0.2
      %v4020 = vsel %vm4016, %v4012, %v4018
      %v4021 = vsel %vm4017, %v4014, %v4019
      %4022 = vrot.lane.b32.xlu0 %v4020, 17
      %v4023 = vpop.permute.xlu0 %4022
      %4024 = vrot.lane.b32.xlu0 %v4021, 17
      %v4025 = vpop.permute.xlu0 %4024
      %v4026 = vsel %vm1010, %v4023, %v4025
      %v4027 = vsel %vm1010, %v4025, %v4023
      %v4028 = vmul.f32 %v4027, %v1017
      %v4029 = vmul.f32 %v4026, %v1021
      %4030 = vst [vmem:[#allocation2 + $0x120] sm:$0xff] %v4028
      %4031 = vst [vmem:[#allocation2 + $0x128] sm:$0xff] %v4029
      %4032 = vrot.lane.b32.xlu0 %v4020, 16
      %v4033 = vpop.permute.xlu0 %4032
      %4034 = vrot.lane.b32.xlu0 %v4021, 16
      %v4035 = vpop.permute.xlu0 %4034
      %v4036 = vsel %vm1032, %v4033, %v4035
      %v4037 = vsel %vm1032, %v4035, %v4033
      %v4038 = vmul.f32 %v4037, %v1039
      %v4039 = vmul.f32 %v4036, %v1043
      %4040 = vst [vmem:[#allocation2 + $0x130] sm:$0xff] %v4038
      %4041 = vst [vmem:[#allocation2 + $0x138] sm:$0xff] %v4039
      %4042 = vrot.lane.b32.xlu0 %v4020, 15
      %v4043 = vpop.permute.xlu0 %4042
      %4044 = vrot.lane.b32.xlu0 %v4021, 15
      %v4045 = vpop.permute.xlu0 %4044
      %v4046 = vsel %vm1054, %v4043, %v4045
      %v4047 = vsel %vm1054, %v4045, %v4043
      %v4048 = vmul.f32 %v4047, %v1061
      %v4049 = vmul.f32 %v4046, %v1065
      %4050 = vst [vmem:[#allocation2 + $0x140] sm:$0xff] %v4048
      %4051 = vst [vmem:[#allocation2 + $0x148] sm:$0xff] %v4049
      %4052 = vrot.lane.b32.xlu0 %v4020, 1
      %v4053 = vpop.permute.xlu0 %4052
      %4054 = vrot.lane.b32.xlu0 %v4021, 1
      %v4055 = vpop.permute.xlu0 %4054
      %v4056 = vsel %vm1076, %v4053, %v4055
      %v4057 = vsel %vm1076, %v4055, %v4053
      %v4058 = vmul.f32 %v4057, %v1083
      %v4059 = vmul.f32 %v4056, %v1087
      %4060 = vst [vmem:[#allocation2 + $0x150] sm:$0xff] %v4058
      %4061 = vst [vmem:[#allocation2 + $0x158] sm:$0xff] %v4059
      %4062 = vst [vmem:[#allocation2 + $0x160] sm:$0xff] %v4020
      %4063 = vst [vmem:[#allocation2 + $0x168] sm:$0xff] %v4021
      %4064 = vrot.lane.b32.xlu0 %v4020, 127
      %v4065 = vpop.permute.xlu0 %4064
      %4066 = vrot.lane.b32.xlu0 %v4021, 127
      %v4067 = vpop.permute.xlu0 %4066
      %v4068 = vsel %vm1100, %v4065, %v4067
      %v4069 = vsel %vm1100, %v4067, %v4065
      %v4070 = vmul.f32 %v4068, %v1107
      %v4071 = vmul.f32 %v4069, %v1111
      %4072 = vst [vmem:[#allocation2 + $0x170] sm:$0xff] %v4070
      %4073 = vst [vmem:[#allocation2 + $0x178] sm:$0xff] %v4071
      %4074 = vrot.lane.b32.xlu0 %v4020, 113
      %v4075 = vpop.permute.xlu0 %4074
      %4076 = vrot.lane.b32.xlu0 %v4021, 113
      %v4077 = vpop.permute.xlu0 %4076
      %v4078 = vsel %vm1122, %v4075, %v4077
      %v4079 = vsel %vm1122, %v4077, %v4075
      %v4080 = vmul.f32 %v4078, %v1129
      %v4081 = vmul.f32 %v4079, %v1133
      %4082 = vst [vmem:[#allocation2 + $0x180] sm:$0xff] %v4080
      %4083 = vst [vmem:[#allocation2 + $0x188] sm:$0xff] %v4081
      %4084 = vrot.lane.b32.xlu0 %v4020, 112
      %v4085 = vpop.permute.xlu0 %4084
      %4086 = vrot.lane.b32.xlu0 %v4021, 112
      %v4087 = vpop.permute.xlu0 %4086
      %v4088 = vsel %vm1144, %v4085, %v4087
      %v4089 = vsel %vm1144, %v4087, %v4085
      %v4090 = vmul.f32 %v4088, %v1151
      %v4091 = vmul.f32 %v4089, %v1155
      %4092 = vst [vmem:[#allocation2 + $0x190] sm:$0xff] %v4090
      %4093 = vst [vmem:[#allocation2 + $0x198] sm:$0xff] %v4091
      %4094 = vrot.lane.b32.xlu0 %v4020, 111
      %v4095 = vpop.permute.xlu0 %4094
      %4096 = vrot.lane.b32.xlu0 %v4021, 111
      %v4097 = vpop.permute.xlu0 %4096
      %v4098 = vsel %vm1166, %v4095, %v4097
      %v4099 = vsel %vm1166, %v4097, %v4095
      %v4100 = vmul.f32 %v4098, %v1173
      %v4101 = vmul.f32 %v4099, %v1177
      %4102 = vst [vmem:[#allocation2 + $0x1a0] sm:$0xff] %v4100
      %4103 = vst [vmem:[#allocation2 + $0x1a8] sm:$0xff] %v4101
      %v4104 = vld [vmem:[#allocation2] sm:$0xff]
      %v4105 = vld [vmem:[#allocation2 + $0x8] sm:$0xff]
      %v4106 = vld [vmem:[#allocation2 + $0x10] sm:$0xff]
      %v4107 = vld [vmem:[#allocation2 + $0x18] sm:$0xff]
      %v4108 = vld [vmem:[#allocation2 + $0x20] sm:$0xff]
      %v4109 = vld [vmem:[#allocation2 + $0x28] sm:$0xff]
      %v4110 = vld [vmem:[#allocation2 + $0x30] sm:$0xff]
      %v4111 = vld [vmem:[#allocation2 + $0x38] sm:$0xff]
      %v4112 = vld [vmem:[#allocation2 + $0x40] sm:$0xff]
      %v4113 = vld [vmem:[#allocation2 + $0x48] sm:$0xff]
      %v4114 = vld [vmem:[#allocation2 + $0x50] sm:$0xff]
      %v4115 = vld [vmem:[#allocation2 + $0x58] sm:$0xff]
      %v4116 = vld [vmem:[#allocation2 + $0x60] sm:$0xff]
      %v4117 = vld [vmem:[#allocation2 + $0x68] sm:$0xff]
      %v4118 = vld [vmem:[#allocation2 + $0x70] sm:$0xff]
      %v4119 = vld [vmem:[#allocation2 + $0x78] sm:$0xff]
      %v4120 = vld [vmem:[#allocation2 + $0x80] sm:$0xff]
      %v4121 = vld [vmem:[#allocation2 + $0x88] sm:$0xff]
      %v4122 = vld [vmem:[#allocation2 + $0x90] sm:$0xff]
      %v4123 = vld [vmem:[#allocation2 + $0x98] sm:$0xff]
      %v4124 = vld [vmem:[#allocation2 + $0xa0] sm:$0xff]
      %v4125 = vld [vmem:[#allocation2 + $0xa8] sm:$0xff]
      %v4126 = vld [vmem:[#allocation2 + $0xb0] sm:$0xff]
      %v4127 = vld [vmem:[#allocation2 + $0xb8] sm:$0xff]
      %v4128 = vld [vmem:[#allocation2 + $0xc0] sm:$0xff]
      %v4129 = vld [vmem:[#allocation2 + $0xc8] sm:$0xff]
      %v4130 = vld [vmem:[#allocation2 + $0xd0] sm:$0xff]
      %v4131 = vld [vmem:[#allocation2 + $0xd8] sm:$0xff]
      %v4132 = vld [vmem:[#allocation2 + $0xe0] sm:$0xff]
      %v4133 = vld [vmem:[#allocation2 + $0xe8] sm:$0xff]
      %v4134 = vld [vmem:[#allocation2 + $0xf0] sm:$0xff]
      %v4135 = vld [vmem:[#allocation2 + $0xf8] sm:$0xff]
      %v4136 = vld [vmem:[#allocation2 + $0x100] sm:$0xff]
      %v4137 = vld [vmem:[#allocation2 + $0x108] sm:$0xff]
      %v4138 = vld [vmem:[#allocation2 + $0x110] sm:$0xff]
      %v4139 = vld [vmem:[#allocation2 + $0x118] sm:$0xff]
      %v4140 = vld [vmem:[#allocation2 + $0x120] sm:$0xff]
      %v4141 = vld [vmem:[#allocation2 + $0x128] sm:$0xff]
      %v4142 = vld [vmem:[#allocation2 + $0x130] sm:$0xff]
      %v4143 = vld [vmem:[#allocation2 + $0x138] sm:$0xff]
      %v4144 = vld [vmem:[#allocation2 + $0x140] sm:$0xff]
      %v4145 = vld [vmem:[#allocation2 + $0x148] sm:$0xff]
      %v4146 = vld [vmem:[#allocation2 + $0x150] sm:$0xff]
      %v4147 = vld [vmem:[#allocation2 + $0x158] sm:$0xff]
      %v4148 = vld [vmem:[#allocation2 + $0x160] sm:$0xff]
      %v4149 = vld [vmem:[#allocation2 + $0x168] sm:$0xff]
      %v4150 = vld [vmem:[#allocation2 + $0x170] sm:$0xff]
      %v4151 = vld [vmem:[#allocation2 + $0x178] sm:$0xff]
      %v4152 = vld [vmem:[#allocation2 + $0x180] sm:$0xff]
      %v4153 = vld [vmem:[#allocation2 + $0x188] sm:$0xff]
      %v4154 = vld [vmem:[#allocation2 + $0x190] sm:$0xff]
      %v4155 = vld [vmem:[#allocation2 + $0x198] sm:$0xff]
      %v4156 = vld [vmem:[#allocation2 + $0x1a0] sm:$0xff]
      %v4157 = vld [vmem:[#allocation2 + $0x1a8] sm:$0xff]
      %v4158 = vld [vmem:[%s29] sm:$0xff]
      %v4159 = vld [vmem:[%s29 + $0x8] sm:$0xff]
      %v4160 = vld [vmem:[%s59] sm:$0xff]
      %4162 = vset.pattern.permute.xlu0 0
      %4163 = vperm.xlu0 %4162, %v4160
      %v4164 = vpop.permute.xlu0 %4163
      %v4167 = vsel %vm1641, %v4159, 0
      %4169 = vmatprep.subr.mxu0 %v4135
      %4170 = vmatpush1.msra.mxu0 %v4134
      %4171 = vmatprep.subr.mxu0 %v4133
      %4172 = vmatpush1.msra.mxu0 %v4132
      %4173 = vmatprep.subr.mxu0 %v4131
      %4174 = vmatpush1.msra.mxu0 %v4130
      %4175 = vmatprep.subr.mxu0 %v4129
      %4176 = vmatpush1.msra.mxu0 %v4128
      %4177 = vmatprep.subr.mxu0 %v4127
      %4178 = vmatpush1.msra.mxu0 %v4126
      %4179 = vmatprep.subr.mxu0 %v4125
      %4180 = vmatpush1.msra.mxu0 %v4124
      %4181 = vmatprep.subr.mxu0 %v4123
      %4182 = vmatpush1.msra.mxu0 %v4122
      %4183 = vmatprep.subr.mxu0 %v4121
      %4184 = vmatpush1.msra.mxu0 %v4120
      %4185 = vmatprep.subr.mxu0 %v4119
      %4186 = vmatpush1.msra.mxu0 %v4118
      %4187 = vmatprep.subr.mxu0 %v4117
      %4188 = vmatpush1.msra.mxu0 %v4116
      %4189 = vmatprep.subr.mxu0 %v4115
      %4190 = vmatpush1.msra.mxu0 %v4114
      %4191 = vmatprep.subr.mxu0 %v4113
      %4192 = vmatpush1.msra.mxu0 %v4112
      %4193 = vmatprep.subr.mxu0 %v4111
      %4194 = vmatpush1.msra.mxu0 %v4110
      %4195 = vmatprep.subr.mxu0 %v4109
      %4196 = vmatpush1.msra.mxu0 %v4108
      %4197 = vmatprep.subr.mxu0 %v4107
      %4198 = vmatpush1.msra.mxu0 %v4106
      %4199 = vmatprep.subr.mxu0 %v4105
      %4200 = vmatpush1.msra.mxu0 %v4104
      %4201 = vmatprep.subr.mxu0 0.0
      %4202 = vmatpush2.msra.mxu0 0.0
      %4203 = vmatprep.subr.mxu0 0.0
      %4204 = vmatpush2.msra.mxu0 0.0
      %4205 = vmatprep.subr.mxu0 0.0
      %4206 = vmatpush2.msra.mxu0 0.0
      %4207 = vmatprep.subr.mxu0 0.0
      %4208 = vmatpush2.msra.mxu0 0.0
      %4209 = vmatprep.subr.mxu0 0.0
      %4210 = vmatpush2.msra.mxu0 0.0
      %4211 = vmatprep.subr.mxu0 %v4157
      %4212 = vmatpush2.msra.mxu0 %v4156
      %4213 = vmatprep.subr.mxu0 %v4155
      %4214 = vmatpush2.msra.mxu0 %v4154
      %4215 = vmatprep.subr.mxu0 %v4153
      %4216 = vmatpush2.msra.mxu0 %v4152
      %4217 = vmatprep.subr.mxu0 %v4151
      %4218 = vmatpush2.msra.mxu0 %v4150
      %4219 = vmatprep.subr.mxu0 %v4149
      %4220 = vmatpush2.msra.mxu0 %v4148
      %4221 = vmatprep.subr.mxu0 %v4147
      %4222 = vmatpush2.msra.mxu0 %v4146
      %4223 = vmatprep.subr.mxu0 %v4145
      %4224 = vmatpush2.msra.mxu0 %v4144
      %4225 = vmatprep.subr.mxu0 %v4143
      %4226 = vmatpush2.msra.mxu0 %v4142
      %4227 = vmatprep.subr.mxu0 %v4141
      %4228 = vmatpush2.msra.mxu0 %v4140
      %4229 = vmatprep.subr.mxu0 %v4139
      %4230 = vmatpush2.msra.mxu0 %v4138
      %4231 = vmatprep.subr.mxu0 %v4137
      %4232 = vmatpush2.msra.mxu0 %v4136
      %4233 = vmatprep.mubr.f32.mxu0 %v4167
      %4234 = vmatmul.mubr.f32.gmra.mxu0 %v4158
      %v4235 = vpop.f32.mrf.mxu0
      %v4236 = vadd.f32 %v4164, %v4235
      %v4237 = vpop.f32.mrf.mxu0
      %v4238 = vadd.f32 %v4164, %v4237
      %4239 = vdwg.mxu0
      %vm4240 = vcmp.ge.f32.partialorder %v4236, 0.0
      %vm4241 = vcmp.ge.f32.partialorder %v4238, 0.0
      %v4242 = vmul.f32 %v4236, 0.2
      %v4243 = vmul.f32 %v4238, 0.2
      %v4244 = vsel %vm4240, %v4236, %v4242
      %v4245 = vsel %vm4241, %v4238, %v4243
      %4246 = vrot.lane.b32.xlu0 %v4244, 17
      %v4247 = vpop.permute.xlu0 %4246
      %4248 = vrot.lane.b32.xlu0 %v4245, 17
      %v4249 = vpop.permute.xlu0 %4248
      %v4250 = vsel %vm1010, %v4247, %v4249
      %v4251 = vsel %vm1010, %v4249, %v4247
      %v4252 = vmul.f32 %v4251, %v1017
      %v4253 = vmul.f32 %v4250, %v1021
      %4254 = vst [vmem:[#allocation2 + $0x1b0] sm:$0xff] %v4252
      %4255 = vst [vmem:[#allocation2 + $0x1b8] sm:$0xff] %v4253
      %4256 = vrot.lane.b32.xlu0 %v4244, 16
      %v4257 = vpop.permute.xlu0 %4256
      %4258 = vrot.lane.b32.xlu0 %v4245, 16
      %v4259 = vpop.permute.xlu0 %4258
      %v4260 = vsel %vm1032, %v4257, %v4259
      %v4261 = vsel %vm1032, %v4259, %v4257
      %v4262 = vmul.f32 %v4261, %v1039
      %v4263 = vmul.f32 %v4260, %v1043
      %4264 = vst [vmem:[#allocation2 + $0x1c0] sm:$0xff] %v4262
      %4265 = vst [vmem:[#allocation2 + $0x1c8] sm:$0xff] %v4263
      %4266 = vrot.lane.b32.xlu0 %v4244, 15
      %v4267 = vpop.permute.xlu0 %4266
      %4268 = vrot.lane.b32.xlu0 %v4245, 15
      %v4269 = vpop.permute.xlu0 %4268
      %v4270 = vsel %vm1054, %v4267, %v4269
      %v4271 = vsel %vm1054, %v4269, %v4267
      %v4272 = vmul.f32 %v4271, %v1061
      %v4273 = vmul.f32 %v4270, %v1065
      %4274 = vst [vmem:[#allocation2 + $0x1d0] sm:$0xff] %v4272
      %4275 = vst [vmem:[#allocation2 + $0x1d8] sm:$0xff] %v4273
      %4276 = vrot.lane.b32.xlu0 %v4244, 1
      %v4277 = vpop.permute.xlu0 %4276
      %4278 = vrot.lane.b32.xlu0 %v4245, 1
      %v4279 = vpop.permute.xlu0 %4278
      %v4280 = vsel %vm1076, %v4277, %v4279
      %v4281 = vsel %vm1076, %v4279, %v4277
      %v4282 = vmul.f32 %v4281, %v1083
      %v4283 = vmul.f32 %v4280, %v1087
      %4284 = vst [vmem:[#allocation2 + $0x1e0] sm:$0xff] %v4282
      %4285 = vst [vmem:[#allocation2 + $0x1e8] sm:$0xff] %v4283
      %4286 = vst [vmem:[#allocation2 + $0x1f0] sm:$0xff] %v4244
      %4287 = vst [vmem:[#allocation2 + $0x1f8] sm:$0xff] %v4245
      %4288 = vrot.lane.b32.xlu0 %v4244, 127
      %v4289 = vpop.permute.xlu0 %4288
      %4290 = vrot.lane.b32.xlu0 %v4245, 127
      %v4291 = vpop.permute.xlu0 %4290
      %v4292 = vsel %vm1100, %v4289, %v4291
      %v4293 = vsel %vm1100, %v4291, %v4289
      %v4294 = vmul.f32 %v4292, %v1107
      %v4295 = vmul.f32 %v4293, %v1111
      %4296 = vst [vmem:[#allocation2 + $0x200] sm:$0xff] %v4294
      %4297 = vst [vmem:[#allocation2 + $0x208] sm:$0xff] %v4295
      %4298 = vrot.lane.b32.xlu0 %v4244, 113
      %v4299 = vpop.permute.xlu0 %4298
      %4300 = vrot.lane.b32.xlu0 %v4245, 113
      %v4301 = vpop.permute.xlu0 %4300
      %v4302 = vsel %vm1122, %v4299, %v4301
      %v4303 = vsel %vm1122, %v4301, %v4299
      %v4304 = vmul.f32 %v4302, %v1129
      %v4305 = vmul.f32 %v4303, %v1133
      %4306 = vst [vmem:[#allocation2 + $0x210] sm:$0xff] %v4304
      %4307 = vst [vmem:[#allocation2 + $0x218] sm:$0xff] %v4305
      %4308 = vrot.lane.b32.xlu0 %v4244, 112
      %v4309 = vpop.permute.xlu0 %4308
      %4310 = vrot.lane.b32.xlu0 %v4245, 112
      %v4311 = vpop.permute.xlu0 %4310
      %v4312 = vsel %vm1144, %v4309, %v4311
      %v4313 = vsel %vm1144, %v4311, %v4309
      %v4314 = vmul.f32 %v4312, %v1151
      %v4315 = vmul.f32 %v4313, %v1155
      %4316 = vst [vmem:[#allocation2 + $0x220] sm:$0xff] %v4314
      %4317 = vst [vmem:[#allocation2 + $0x228] sm:$0xff] %v4315
      %4318 = vrot.lane.b32.xlu0 %v4244, 111
      %v4319 = vpop.permute.xlu0 %4318
      %4320 = vrot.lane.b32.xlu0 %v4245, 111
      %v4321 = vpop.permute.xlu0 %4320
      %v4322 = vsel %vm1166, %v4319, %v4321
      %v4323 = vsel %vm1166, %v4321, %v4319
      %v4324 = vmul.f32 %v4322, %v1173
      %v4325 = vmul.f32 %v4323, %v1177
      %4326 = vst [vmem:[#allocation2 + $0x230] sm:$0xff] %v4324
      %4327 = vst [vmem:[#allocation2 + $0x238] sm:$0xff] %v4325
      %v4328 = vld [vmem:[#allocation2] sm:$0xff]
      %v4329 = vld [vmem:[#allocation2 + $0x8] sm:$0xff]
      %v4330 = vld [vmem:[#allocation2 + $0x10] sm:$0xff]
      %v4331 = vld [vmem:[#allocation2 + $0x18] sm:$0xff]
      %v4332 = vld [vmem:[#allocation2 + $0x20] sm:$0xff]
      %v4333 = vld [vmem:[#allocation2 + $0x28] sm:$0xff]
      %v4334 = vld [vmem:[#allocation2 + $0x30] sm:$0xff]
      %v4335 = vld [vmem:[#allocation2 + $0x38] sm:$0xff]
      %v4336 = vld [vmem:[#allocation2 + $0x40] sm:$0xff]
      %v4337 = vld [vmem:[#allocation2 + $0x48] sm:$0xff]
      %v4338 = vld [vmem:[#allocation2 + $0x50] sm:$0xff]
      %v4339 = vld [vmem:[#allocation2 + $0x58] sm:$0xff]
      %v4340 = vld [vmem:[#allocation2 + $0x60] sm:$0xff]
      %v4341 = vld [vmem:[#allocation2 + $0x68] sm:$0xff]
      %v4342 = vld [vmem:[#allocation2 + $0x70] sm:$0xff]
      %v4343 = vld [vmem:[#allocation2 + $0x78] sm:$0xff]
      %v4344 = vld [vmem:[#allocation2 + $0x80] sm:$0xff]
      %v4345 = vld [vmem:[#allocation2 + $0x88] sm:$0xff]
      %v4346 = vld [vmem:[#allocation2 + $0x90] sm:$0xff]
      %v4347 = vld [vmem:[#allocation2 + $0x98] sm:$0xff]
      %v4348 = vld [vmem:[#allocation2 + $0xa0] sm:$0xff]
      %v4349 = vld [vmem:[#allocation2 + $0xa8] sm:$0xff]
      %v4350 = vld [vmem:[#allocation2 + $0xb0] sm:$0xff]
      %v4351 = vld [vmem:[#allocation2 + $0xb8] sm:$0xff]
      %v4352 = vld [vmem:[#allocation2 + $0xc0] sm:$0xff]
      %v4353 = vld [vmem:[#allocation2 + $0xc8] sm:$0xff]
      %v4354 = vld [vmem:[#allocation2 + $0xd0] sm:$0xff]
      %v4355 = vld [vmem:[#allocation2 + $0xd8] sm:$0xff]
      %v4356 = vld [vmem:[#allocation2 + $0xe0] sm:$0xff]
      %v4357 = vld [vmem:[#allocation2 + $0xe8] sm:$0xff]
      %v4358 = vld [vmem:[#allocation2 + $0xf0] sm:$0xff]
      %v4359 = vld [vmem:[#allocation2 + $0xf8] sm:$0xff]
      %v4360 = vld [vmem:[#allocation2 + $0x100] sm:$0xff]
      %v4361 = vld [vmem:[#allocation2 + $0x108] sm:$0xff]
      %v4362 = vld [vmem:[#allocation2 + $0x110] sm:$0xff]
      %v4363 = vld [vmem:[#allocation2 + $0x118] sm:$0xff]
      %v4364 = vld [vmem:[#allocation2 + $0x120] sm:$0xff]
      %v4365 = vld [vmem:[#allocation2 + $0x128] sm:$0xff]
      %v4366 = vld [vmem:[#allocation2 + $0x130] sm:$0xff]
      %v4367 = vld [vmem:[#allocation2 + $0x138] sm:$0xff]
      %v4368 = vld [vmem:[#allocation2 + $0x140] sm:$0xff]
      %v4369 = vld [vmem:[#allocation2 + $0x148] sm:$0xff]
      %v4370 = vld [vmem:[#allocation2 + $0x150] sm:$0xff]
      %v4371 = vld [vmem:[#allocation2 + $0x158] sm:$0xff]
      %v4372 = vld [vmem:[#allocation2 + $0x160] sm:$0xff]
      %v4373 = vld [vmem:[#allocation2 + $0x168] sm:$0xff]
      %v4374 = vld [vmem:[#allocation2 + $0x170] sm:$0xff]
      %v4375 = vld [vmem:[#allocation2 + $0x178] sm:$0xff]
      %v4376 = vld [vmem:[#allocation2 + $0x180] sm:$0xff]
      %v4377 = vld [vmem:[#allocation2 + $0x188] sm:$0xff]
      %v4378 = vld [vmem:[#allocation2 + $0x190] sm:$0xff]
      %v4379 = vld [vmem:[#allocation2 + $0x198] sm:$0xff]
      %v4380 = vld [vmem:[#allocation2 + $0x1a0] sm:$0xff]
      %v4381 = vld [vmem:[#allocation2 + $0x1a8] sm:$0xff]
      %v4382 = vld [vmem:[#allocation2 + $0x1b0] sm:$0xff]
      %v4383 = vld [vmem:[#allocation2 + $0x1b8] sm:$0xff]
      %v4384 = vld [vmem:[#allocation2 + $0x1c0] sm:$0xff]
      %v4385 = vld [vmem:[#allocation2 + $0x1c8] sm:$0xff]
      %v4386 = vld [vmem:[#allocation2 + $0x1d0] sm:$0xff]
      %v4387 = vld [vmem:[#allocation2 + $0x1d8] sm:$0xff]
      %v4388 = vld [vmem:[#allocation2 + $0x1e0] sm:$0xff]
      %v4389 = vld [vmem:[#allocation2 + $0x1e8] sm:$0xff]
      %v4390 = vld [vmem:[#allocation2 + $0x1f0] sm:$0xff]
      %v4391 = vld [vmem:[#allocation2 + $0x1f8] sm:$0xff]
      %v4392 = vld [vmem:[#allocation2 + $0x200] sm:$0xff]
      %v4393 = vld [vmem:[#allocation2 + $0x208] sm:$0xff]
      %v4394 = vld [vmem:[#allocation2 + $0x210] sm:$0xff]
      %v4395 = vld [vmem:[#allocation2 + $0x218] sm:$0xff]
      %v4396 = vld [vmem:[#allocation2 + $0x220] sm:$0xff]
      %v4397 = vld [vmem:[#allocation2 + $0x228] sm:$0xff]
      %v4398 = vld [vmem:[#allocation2 + $0x230] sm:$0xff]
      %v4399 = vld [vmem:[#allocation2 + $0x238] sm:$0xff]
      %v4400 = vld [vmem:[%s31] sm:$0xff]
      %v4401 = vld [vmem:[%s31 + $0x8] sm:$0xff]
      %v4402 = vld [vmem:[%s31 + $0x10] sm:$0xff]
      %v4403 = vld [vmem:[%s61] sm:$0xff]
      %4405 = vset.pattern.permute.xlu0 0
      %4406 = vperm.xlu0 %4405, %v4403
      %v4407 = vpop.permute.xlu0 %4406
      %v4410 = vsel %vm1885, %v4402, 0
      %4412 = vmatprep.subr.mxu0 %v4359
      %4413 = vmatpush1.msra.mxu0 %v4358
      %4414 = vmatprep.subr.mxu0 %v4357
      %4415 = vmatpush1.msra.mxu0 %v4356
      %4416 = vmatprep.subr.mxu0 %v4355
      %4417 = vmatpush1.msra.mxu0 %v4354
      %4418 = vmatprep.subr.mxu0 %v4353
      %4419 = vmatpush1.msra.mxu0 %v4352
      %4420 = vmatprep.subr.mxu0 %v4351
      %4421 = vmatpush1.msra.mxu0 %v4350
      %4422 = vmatprep.subr.mxu0 %v4349
      %4423 = vmatpush1.msra.mxu0 %v4348
      %4424 = vmatprep.subr.mxu0 %v4347
      %4425 = vmatpush1.msra.mxu0 %v4346
      %4426 = vmatprep.subr.mxu0 %v4345
      %4427 = vmatpush1.msra.mxu0 %v4344
      %4428 = vmatprep.subr.mxu0 %v4343
      %4429 = vmatpush1.msra.mxu0 %v4342
      %4430 = vmatprep.subr.mxu0 %v4341
      %4431 = vmatpush1.msra.mxu0 %v4340
      %4432 = vmatprep.subr.mxu0 %v4339
      %4433 = vmatpush1.msra.mxu0 %v4338
      %4434 = vmatprep.subr.mxu0 %v4337
      %4435 = vmatpush1.msra.mxu0 %v4336
      %4436 = vmatprep.subr.mxu0 %v4335
      %4437 = vmatpush1.msra.mxu0 %v4334
      %4438 = vmatprep.subr.mxu0 %v4333
      %4439 = vmatpush1.msra.mxu0 %v4332
      %4440 = vmatprep.subr.mxu0 %v4331
      %4441 = vmatpush1.msra.mxu0 %v4330
      %4442 = vmatprep.subr.mxu0 %v4329
      %4443 = vmatpush1.msra.mxu0 %v4328
      %4444 = vmatprep.subr.mxu0 %v4391
      %4445 = vmatpush2.msra.mxu0 %v4390
      %4446 = vmatprep.subr.mxu0 %v4389
      %4447 = vmatpush2.msra.mxu0 %v4388
      %4448 = vmatprep.subr.mxu0 %v4387
      %4449 = vmatpush2.msra.mxu0 %v4386
      %4450 = vmatprep.subr.mxu0 %v4385
      %4451 = vmatpush2.msra.mxu0 %v4384
      %4452 = vmatprep.subr.mxu0 %v4383
      %4453 = vmatpush2.msra.mxu0 %v4382
      %4454 = vmatprep.subr.mxu0 %v4381
      %4455 = vmatpush2.msra.mxu0 %v4380
      %4456 = vmatprep.subr.mxu0 %v4379
      %4457 = vmatpush2.msra.mxu0 %v4378
      %4458 = vmatprep.subr.mxu0 %v4377
      %4459 = vmatpush2.msra.mxu0 %v4376
      %4460 = vmatprep.subr.mxu0 %v4375
      %4461 = vmatpush2.msra.mxu0 %v4374
      %4462 = vmatprep.subr.mxu0 %v4373
      %4463 = vmatpush2.msra.mxu0 %v4372
      %4464 = vmatprep.subr.mxu0 %v4371
      %4465 = vmatpush2.msra.mxu0 %v4370
      %4466 = vmatprep.subr.mxu0 %v4369
      %4467 = vmatpush2.msra.mxu0 %v4368
      %4468 = vmatprep.subr.mxu0 %v4367
      %4469 = vmatpush2.msra.mxu0 %v4366
      %4470 = vmatprep.subr.mxu0 %v4365
      %4471 = vmatpush2.msra.mxu0 %v4364
      %4472 = vmatprep.subr.mxu0 %v4363
      %4473 = vmatpush2.msra.mxu0 %v4362
      %4474 = vmatprep.subr.mxu0 %v4361
      %4475 = vmatpush2.msra.mxu0 %v4360
      %4476 = vmatprep.mubr.f32.mxu0 %v4401
      %4477 = vmatmul.mubr.f32.gmra.mxu0 %v4400
      %v4478 = vpop.f32.mrf.mxu0
      %v4479 = vadd.f32 %v4407, %v4478
      %v4480 = vpop.f32.mrf.mxu0
      %v4481 = vadd.f32 %v4407, %v4480
      %4482 = vdwg.mxu0
      %4483 = vmatprep.subr.mxu0 0.0
      %4484 = vmatpush1.msra.mxu0 0.0
      %4485 = vmatprep.subr.mxu0 0.0
      %4486 = vmatpush1.msra.mxu0 0.0
      %4487 = vmatprep.subr.mxu0 0.0
      %4488 = vmatpush1.msra.mxu0 0.0
      %4489 = vmatprep.subr.mxu0 0.0
      %4490 = vmatpush1.msra.mxu0 0.0
      %4491 = vmatprep.subr.mxu0 0.0
      %4492 = vmatpush1.msra.mxu0 0.0
      %4493 = vmatprep.subr.mxu0 0.0
      %4494 = vmatpush1.msra.mxu0 0.0
      %4495 = vmatprep.subr.mxu0 0.0
      %4496 = vmatpush1.msra.mxu0 0.0
      %4497 = vmatprep.subr.mxu0 0.0
      %4498 = vmatpush1.msra.mxu0 0.0
      %4499 = vmatprep.subr.mxu0 0.0
      %4500 = vmatpush1.msra.mxu0 0.0
      %4501 = vmatprep.subr.mxu0 0.0
      %4502 = vmatpush1.msra.mxu0 0.0
      %4503 = vmatprep.subr.mxu0 0.0
      %4504 = vmatpush1.msra.mxu0 0.0
      %4505 = vmatprep.subr.mxu0 0.0
      %4506 = vmatpush1.msra.mxu0 0.0
      %4507 = vmatprep.subr.mxu0 %v4399
      %4508 = vmatpush1.msra.mxu0 %v4398
      %4509 = vmatprep.subr.mxu0 %v4397
      %4510 = vmatpush1.msra.mxu0 %v4396
      %4511 = vmatprep.subr.mxu0 %v4395
      %4512 = vmatpush1.msra.mxu0 %v4394
      %4513 = vmatprep.subr.mxu0 %v4393
      %4514 = vmatpush1.msra.mxu0 %v4392
      %4515 = vmatprep.subr.mxu0 0.0
      %4516 = vmatpush2.msra.mxu0 0.0
      %4517 = vmatprep.subr.mxu0 0.0
      %4518 = vmatpush2.msra.mxu0 0.0
      %4519 = vmatprep.subr.mxu0 0.0
      %4520 = vmatpush2.msra.mxu0 0.0
      %4521 = vmatprep.subr.mxu0 0.0
      %4522 = vmatpush2.msra.mxu0 0.0
      %4523 = vmatprep.subr.mxu0 0.0
      %4524 = vmatpush2.msra.mxu0 0.0
      %4525 = vmatprep.subr.mxu0 0.0
      %4526 = vmatpush2.msra.mxu0 0.0
      %4527 = vmatprep.subr.mxu0 0.0
      %4528 = vmatpush2.msra.mxu0 0.0
      %4529 = vmatprep.subr.mxu0 0.0
      %4530 = vmatpush2.msra.mxu0 0.0
      %4531 = vmatprep.subr.mxu0 0.0
      %4532 = vmatpush2.msra.mxu0 0.0
      %4533 = vmatprep.subr.mxu0 0.0
      %4534 = vmatpush2.msra.mxu0 0.0
      %4535 = vmatprep.subr.mxu0 0.0
      %4536 = vmatpush2.msra.mxu0 0.0
      %4537 = vmatprep.subr.mxu0 0.0
      %4538 = vmatpush2.msra.mxu0 0.0
      %4539 = vmatprep.subr.mxu0 0.0
      %4540 = vmatpush2.msra.mxu0 0.0
      %4541 = vmatprep.subr.mxu0 0.0
      %4542 = vmatpush2.msra.mxu0 0.0
      %4543 = vmatprep.subr.mxu0 0.0
      %4544 = vmatpush2.msra.mxu0 0.0
      %4545 = vmatprep.subr.mxu0 0.0
      %4546 = vmatpush2.msra.mxu0 0.0
      %4547 = vmatprep.mubr.f32.mxu0 0.0
      %4548 = vmatmul.mubr.f32.gmra.mxu0 %v4410
      %v4549 = vpop.f32.mrf.mxu0
      %v4550 = vadd.f32 %v4479, %v4549
      %v4551 = vpop.f32.mrf.mxu0
      %v4552 = vadd.f32 %v4481, %v4551
      %4553 = vdwg.mxu0
      %vm4554 = vcmp.ge.f32.partialorder %v4550, 0.0
      %vm4555 = vcmp.ge.f32.partialorder %v4552, 0.0
      %v4556 = vmul.f32 %v4550, 0.2
      %v4557 = vmul.f32 %v4552, 0.2
      %v4558 = vsel %vm4554, %v4550, %v4556
      %v4559 = vsel %vm4555, %v4552, %v4557
      %4560 = vrot.lane.b32.xlu0 %v4558, 17
      %v4561 = vpop.permute.xlu0 %4560
      %4562 = vrot.lane.b32.xlu0 %v4559, 17
      %v4563 = vpop.permute.xlu0 %4562
      %v4564 = vsel %vm1010, %v4561, %v4563
      %v4565 = vsel %vm1010, %v4563, %v4561
      %v4566 = vmul.f32 %v4565, %v1017
      %v4567 = vmul.f32 %v4564, %v1021
      %4568 = vst [vmem:[#allocation2 + $0x240] sm:$0xff] %v4566
      %4569 = vst [vmem:[#allocation2 + $0x248] sm:$0xff] %v4567
      %4570 = vrot.lane.b32.xlu0 %v4558, 16
      %v4571 = vpop.permute.xlu0 %4570
      %4572 = vrot.lane.b32.xlu0 %v4559, 16
      %v4573 = vpop.permute.xlu0 %4572
      %v4574 = vsel %vm1032, %v4571, %v4573
      %v4575 = vsel %vm1032, %v4573, %v4571
      %v4576 = vmul.f32 %v4575, %v1039
      %v4577 = vmul.f32 %v4574, %v1043
      %4578 = vst [vmem:[#allocation2 + $0x250] sm:$0xff] %v4576
      %4579 = vst [vmem:[#allocation2 + $0x258] sm:$0xff] %v4577
      %4580 = vrot.lane.b32.xlu0 %v4558, 15
      %v4581 = vpop.permute.xlu0 %4580
      %4582 = vrot.lane.b32.xlu0 %v4559, 15
      %v4583 = vpop.permute.xlu0 %4582
      %v4584 = vsel %vm1054, %v4581, %v4583
      %v4585 = vsel %vm1054, %v4583, %v4581
      %v4586 = vmul.f32 %v4585, %v1061
      %v4587 = vmul.f32 %v4584, %v1065
      %4588 = vst [vmem:[#allocation2 + $0x260] sm:$0xff] %v4586
      %4589 = vst [vmem:[#allocation2 + $0x268] sm:$0xff] %v4587
      %4590 = vrot.lane.b32.xlu0 %v4558, 1
      %v4591 = vpop.permute.xlu0 %4590
      %4592 = vrot.lane.b32.xlu0 %v4559, 1
      %v4593 = vpop.permute.xlu0 %4592
      %v4594 = vsel %vm1076, %v4591, %v4593
      %v4595 = vsel %vm1076, %v4593, %v4591
      %v4596 = vmul.f32 %v4595, %v1083
      %v4597 = vmul.f32 %v4594, %v1087
      %4598 = vst [vmem:[#allocation2 + $0x270] sm:$0xff] %v4596
      %4599 = vst [vmem:[#allocation2 + $0x278] sm:$0xff] %v4597
      %4600 = vst [vmem:[#allocation2 + $0x280] sm:$0xff] %v4558
      %4601 = vst [vmem:[#allocation2 + $0x288] sm:$0xff] %v4559
      %4602 = vrot.lane.b32.xlu0 %v4558, 127
      %v4603 = vpop.permute.xlu0 %4602
      %4604 = vrot.lane.b32.xlu0 %v4559, 127
      %v4605 = vpop.permute.xlu0 %4604
      %v4606 = vsel %vm1100, %v4603, %v4605
      %v4607 = vsel %vm1100, %v4605, %v4603
      %v4608 = vmul.f32 %v4606, %v1107
      %v4609 = vmul.f32 %v4607, %v1111
      %4610 = vst [vmem:[#allocation2 + $0x290] sm:$0xff] %v4608
      %4611 = vst [vmem:[#allocation2 + $0x298] sm:$0xff] %v4609
      %4612 = vrot.lane.b32.xlu0 %v4558, 113
      %v4613 = vpop.permute.xlu0 %4612
      %4614 = vrot.lane.b32.xlu0 %v4559, 113
      %v4615 = vpop.permute.xlu0 %4614
      %v4616 = vsel %vm1122, %v4613, %v4615
      %v4617 = vsel %vm1122, %v4615, %v4613
      %v4618 = vmul.f32 %v4616, %v1129
      %v4619 = vmul.f32 %v4617, %v1133
      %4620 = vst [vmem:[#allocation2 + $0x2a0] sm:$0xff] %v4618
      %4621 = vst [vmem:[#allocation2 + $0x2a8] sm:$0xff] %v4619
      %4622 = vrot.lane.b32.xlu0 %v4558, 112
      %v4623 = vpop.permute.xlu0 %4622
      %4624 = vrot.lane.b32.xlu0 %v4559, 112
      %v4625 = vpop.permute.xlu0 %4624
      %v4626 = vsel %vm1144, %v4623, %v4625
      %v4627 = vsel %vm1144, %v4625, %v4623
      %v4628 = vmul.f32 %v4626, %v1151
      %v4629 = vmul.f32 %v4627, %v1155
      %4630 = vst [vmem:[#allocation2 + $0x2b0] sm:$0xff] %v4628
      %4631 = vst [vmem:[#allocation2 + $0x2b8] sm:$0xff] %v4629
      %4632 = vrot.lane.b32.xlu0 %v4558, 111
      %v4633 = vpop.permute.xlu0 %4632
      %4634 = vrot.lane.b32.xlu0 %v4559, 111
      %v4635 = vpop.permute.xlu0 %4634
      %v4636 = vsel %vm1166, %v4633, %v4635
      %v4637 = vsel %vm1166, %v4635, %v4633
      %v4638 = vmul.f32 %v4636, %v1173
      %v4639 = vmul.f32 %v4637, %v1177
      %4640 = vst [vmem:[#allocation2 + $0x2c0] sm:$0xff] %v4638
      %4641 = vst [vmem:[#allocation2 + $0x2c8] sm:$0xff] %v4639
      %v4642 = vld [vmem:[#allocation2] sm:$0xff]
      %v4643 = vld [vmem:[#allocation2 + $0x8] sm:$0xff]
      %v4644 = vld [vmem:[#allocation2 + $0x10] sm:$0xff]
      %v4645 = vld [vmem:[#allocation2 + $0x18] sm:$0xff]
      %v4646 = vld [vmem:[#allocation2 + $0x20] sm:$0xff]
      %v4647 = vld [vmem:[#allocation2 + $0x28] sm:$0xff]
      %v4648 = vld [vmem:[#allocation2 + $0x30] sm:$0xff]
      %v4649 = vld [vmem:[#allocation2 + $0x38] sm:$0xff]
      %v4650 = vld [vmem:[#allocation2 + $0x40] sm:$0xff]
      %v4651 = vld [vmem:[#allocation2 + $0x48] sm:$0xff]
      %v4652 = vld [vmem:[#allocation2 + $0x50] sm:$0xff]
      %v4653 = vld [vmem:[#allocation2 + $0x58] sm:$0xff]
      %v4654 = vld [vmem:[#allocation2 + $0x60] sm:$0xff]
      %v4655 = vld [vmem:[#allocation2 + $0x68] sm:$0xff]
      %v4656 = vld [vmem:[#allocation2 + $0x70] sm:$0xff]
      %v4657 = vld [vmem:[#allocation2 + $0x78] sm:$0xff]
      %v4658 = vld [vmem:[#allocation2 + $0x80] sm:$0xff]
      %v4659 = vld [vmem:[#allocation2 + $0x88] sm:$0xff]
      %v4660 = vld [vmem:[#allocation2 + $0x90] sm:$0xff]
      %v4661 = vld [vmem:[#allocation2 + $0x98] sm:$0xff]
      %v4662 = vld [vmem:[#allocation2 + $0xa0] sm:$0xff]
      %v4663 = vld [vmem:[#allocation2 + $0xa8] sm:$0xff]
      %v4664 = vld [vmem:[#allocation2 + $0xb0] sm:$0xff]
      %v4665 = vld [vmem:[#allocation2 + $0xb8] sm:$0xff]
      %v4666 = vld [vmem:[#allocation2 + $0xc0] sm:$0xff]
      %v4667 = vld [vmem:[#allocation2 + $0xc8] sm:$0xff]
      %v4668 = vld [vmem:[#allocation2 + $0xd0] sm:$0xff]
      %v4669 = vld [vmem:[#allocation2 + $0xd8] sm:$0xff]
      %v4670 = vld [vmem:[#allocation2 + $0xe0] sm:$0xff]
      %v4671 = vld [vmem:[#allocation2 + $0xe8] sm:$0xff]
      %v4672 = vld [vmem:[#allocation2 + $0xf0] sm:$0xff]
      %v4673 = vld [vmem:[#allocation2 + $0xf8] sm:$0xff]
      %v4674 = vld [vmem:[#allocation2 + $0x100] sm:$0xff]
      %v4675 = vld [vmem:[#allocation2 + $0x108] sm:$0xff]
      %v4676 = vld [vmem:[#allocation2 + $0x110] sm:$0xff]
      %v4677 = vld [vmem:[#allocation2 + $0x118] sm:$0xff]
      %v4678 = vld [vmem:[#allocation2 + $0x120] sm:$0xff]
      %v4679 = vld [vmem:[#allocation2 + $0x128] sm:$0xff]
      %v4680 = vld [vmem:[#allocation2 + $0x130] sm:$0xff]
      %v4681 = vld [vmem:[#allocation2 + $0x138] sm:$0xff]
      %v4682 = vld [vmem:[#allocation2 + $0x140] sm:$0xff]
      %v4683 = vld [vmem:[#allocation2 + $0x148] sm:$0xff]
      %v4684 = vld [vmem:[#allocation2 + $0x150] sm:$0xff]
      %v4685 = vld [vmem:[#allocation2 + $0x158] sm:$0xff]
      %v4686 = vld [vmem:[#allocation2 + $0x160] sm:$0xff]
      %v4687 = vld [vmem:[#allocation2 + $0x168] sm:$0xff]
      %v4688 = vld [vmem:[#allocation2 + $0x170] sm:$0xff]
      %v4689 = vld [vmem:[#allocation2 + $0x178] sm:$0xff]
      %v4690 = vld [vmem:[#allocation2 + $0x180] sm:$0xff]
      %v4691 = vld [vmem:[#allocation2 + $0x188] sm:$0xff]
      %v4692 = vld [vmem:[#allocation2 + $0x190] sm:$0xff]
      %v4693 = vld [vmem:[#allocation2 + $0x198] sm:$0xff]
      %v4694 = vld [vmem:[#allocation2 + $0x1a0] sm:$0xff]
      %v4695 = vld [vmem:[#allocation2 + $0x1a8] sm:$0xff]
      %v4696 = vld [vmem:[#allocation2 + $0x1b0] sm:$0xff]
      %v4697 = vld [vmem:[#allocation2 + $0x1b8] sm:$0xff]
      %v4698 = vld [vmem:[#allocation2 + $0x1c0] sm:$0xff]
      %v4699 = vld [vmem:[#allocation2 + $0x1c8] sm:$0xff]
      %v4700 = vld [vmem:[#allocation2 + $0x1d0] sm:$0xff]
      %v4701 = vld [vmem:[#allocation2 + $0x1d8] sm:$0xff]
      %v4702 = vld [vmem:[#allocation2 + $0x1e0] sm:$0xff]
      %v4703 = vld [vmem:[#allocation2 + $0x1e8] sm:$0xff]
      %v4704 = vld [vmem:[#allocation2 + $0x1f0] sm:$0xff]
      %v4705 = vld [vmem:[#allocation2 + $0x1f8] sm:$0xff]
      %v4706 = vld [vmem:[#allocation2 + $0x200] sm:$0xff]
      %v4707 = vld [vmem:[#allocation2 + $0x208] sm:$0xff]
      %v4708 = vld [vmem:[#allocation2 + $0x210] sm:$0xff]
      %v4709 = vld [vmem:[#allocation2 + $0x218] sm:$0xff]
      %v4710 = vld [vmem:[#allocation2 + $0x220] sm:$0xff]
      %v4711 = vld [vmem:[#allocation2 + $0x228] sm:$0xff]
      %v4712 = vld [vmem:[#allocation2 + $0x230] sm:$0xff]
      %v4713 = vld [vmem:[#allocation2 + $0x238] sm:$0xff]
      %v4714 = vld [vmem:[#allocation2 + $0x240] sm:$0xff]
      %v4715 = vld [vmem:[#allocation2 + $0x248] sm:$0xff]
      %v4716 = vld [vmem:[#allocation2 + $0x250] sm:$0xff]
      %v4717 = vld [vmem:[#allocation2 + $0x258] sm:$0xff]
      %v4718 = vld [vmem:[#allocation2 + $0x260] sm:$0xff]
      %v4719 = vld [vmem:[#allocation2 + $0x268] sm:$0xff]
      %v4720 = vld [vmem:[#allocation2 + $0x270] sm:$0xff]
      %v4721 = vld [vmem:[#allocation2 + $0x278] sm:$0xff]
      %v4722 = vld [vmem:[#allocation2 + $0x280] sm:$0xff]
      %v4723 = vld [vmem:[#allocation2 + $0x288] sm:$0xff]
      %v4724 = vld [vmem:[#allocation2 + $0x290] sm:$0xff]
      %v4725 = vld [vmem:[#allocation2 + $0x298] sm:$0xff]
      %v4726 = vld [vmem:[#allocation2 + $0x2a0] sm:$0xff]
      %v4727 = vld [vmem:[#allocation2 + $0x2a8] sm:$0xff]
      %v4728 = vld [vmem:[#allocation2 + $0x2b0] sm:$0xff]
      %v4729 = vld [vmem:[#allocation2 + $0x2b8] sm:$0xff]
      %v4730 = vld [vmem:[#allocation2 + $0x2c0] sm:$0xff]
      %v4731 = vld [vmem:[#allocation2 + $0x2c8] sm:$0xff]
      %v4732 = vld [vmem:[%s33] sm:$0xff]
      %v4733 = vld [vmem:[%s33 + $0x8] sm:$0xff]
      %v4734 = vld [vmem:[%s33 + $0x10] sm:$0xff]
      %v4735 = vld [vmem:[%s63] sm:$0xff]
      %4737 = vset.pattern.permute.xlu0 0
      %4738 = vperm.xlu0 %4737, %v4735
      %v4739 = vpop.permute.xlu0 %4738
      %v4742 = vsel %vm2218, %v4734, 0
      %4744 = vmatprep.subr.mxu0 %v4673
      %4745 = vmatpush1.msra.mxu0 %v4672
      %4746 = vmatprep.subr.mxu0 %v4671
      %4747 = vmatpush1.msra.mxu0 %v4670
      %4748 = vmatprep.subr.mxu0 %v4669
      %4749 = vmatpush1.msra.mxu0 %v4668
      %4750 = vmatprep.subr.mxu0 %v4667
      %4751 = vmatpush1.msra.mxu0 %v4666
      %4752 = vmatprep.subr.mxu0 %v4665
      %4753 = vmatpush1.msra.mxu0 %v4664
      %4754 = vmatprep.subr.mxu0 %v4663
      %4755 = vmatpush1.msra.mxu0 %v4662
      %4756 = vmatprep.subr.mxu0 %v4661
      %4757 = vmatpush1.msra.mxu0 %v4660
      %4758 = vmatprep.subr.mxu0 %v4659
      %4759 = vmatpush1.msra.mxu0 %v4658
      %4760 = vmatprep.subr.mxu0 %v4657
      %4761 = vmatpush1.msra.mxu0 %v4656
      %4762 = vmatprep.subr.mxu0 %v4655
      %4763 = vmatpush1.msra.mxu0 %v4654
      %4764 = vmatprep.subr.mxu0 %v4653
      %4765 = vmatpush1.msra.mxu0 %v4652
      %4766 = vmatprep.subr.mxu0 %v4651
      %4767 = vmatpush1.msra.mxu0 %v4650
      %4768 = vmatprep.subr.mxu0 %v4649
      %4769 = vmatpush1.msra.mxu0 %v4648
      %4770 = vmatprep.subr.mxu0 %v4647
      %4771 = vmatpush1.msra.mxu0 %v4646
      %4772 = vmatprep.subr.mxu0 %v4645
      %4773 = vmatpush1.msra.mxu0 %v4644
      %4774 = vmatprep.subr.mxu0 %v4643
      %4775 = vmatpush1.msra.mxu0 %v4642
      %4776 = vmatprep.subr.mxu0 %v4705
      %4777 = vmatpush2.msra.mxu0 %v4704
      %4778 = vmatprep.subr.mxu0 %v4703
      %4779 = vmatpush2.msra.mxu0 %v4702
      %4780 = vmatprep.subr.mxu0 %v4701
      %4781 = vmatpush2.msra.mxu0 %v4700
      %4782 = vmatprep.subr.mxu0 %v4699
      %4783 = vmatpush2.msra.mxu0 %v4698
      %4784 = vmatprep.subr.mxu0 %v4697
      %4785 = vmatpush2.msra.mxu0 %v4696
      %4786 = vmatprep.subr.mxu0 %v4695
      %4787 = vmatpush2.msra.mxu0 %v4694
      %4788 = vmatprep.subr.mxu0 %v4693
      %4789 = vmatpush2.msra.mxu0 %v4692
      %4790 = vmatprep.subr.mxu0 %v4691
      %4791 = vmatpush2.msra.mxu0 %v4690
      %4792 = vmatprep.subr.mxu0 %v4689
      %4793 = vmatpush2.msra.mxu0 %v4688
      %4794 = vmatprep.subr.mxu0 %v4687
      %4795 = vmatpush2.msra.mxu0 %v4686
      %4796 = vmatprep.subr.mxu0 %v4685
      %4797 = vmatpush2.msra.mxu0 %v4684
      %4798 = vmatprep.subr.mxu0 %v4683
      %4799 = vmatpush2.msra.mxu0 %v4682
      %4800 = vmatprep.subr.mxu0 %v4681
      %4801 = vmatpush2.msra.mxu0 %v4680
      %4802 = vmatprep.subr.mxu0 %v4679
      %4803 = vmatpush2.msra.mxu0 %v4678
      %4804 = vmatprep.subr.mxu0 %v4677
      %4805 = vmatpush2.msra.mxu0 %v4676
      %4806 = vmatprep.subr.mxu0 %v4675
      %4807 = vmatpush2.msra.mxu0 %v4674
      %4808 = vmatprep.mubr.f32.mxu0 %v4733
      %4809 = vmatmul.mubr.f32.gmra.mxu0 %v4732
      %v4810 = vpop.f32.mrf.mxu0
      %v4811 = vadd.f32 %v4739, %v4810
      %v4812 = vpop.f32.mrf.mxu0
      %v4813 = vadd.f32 %v4739, %v4812
      %4814 = vdwg.mxu0
      %4815 = vmatprep.subr.mxu0 0.0
      %4816 = vmatpush1.msra.mxu0 0.0
      %4817 = vmatprep.subr.mxu0 0.0
      %4818 = vmatpush1.msra.mxu0 0.0
      %4819 = vmatprep.subr.mxu0 0.0
      %4820 = vmatpush1.msra.mxu0 0.0
      %4821 = vmatprep.subr.mxu0 %v4731
      %4822 = vmatpush1.msra.mxu0 %v4730
      %4823 = vmatprep.subr.mxu0 %v4729
      %4824 = vmatpush1.msra.mxu0 %v4728
      %4825 = vmatprep.subr.mxu0 %v4727
      %4826 = vmatpush1.msra.mxu0 %v4726
      %4827 = vmatprep.subr.mxu0 %v4725
      %4828 = vmatpush1.msra.mxu0 %v4724
      %4829 = vmatprep.subr.mxu0 %v4723
      %4830 = vmatpush1.msra.mxu0 %v4722
      %4831 = vmatprep.subr.mxu0 %v4721
      %4832 = vmatpush1.msra.mxu0 %v4720
      %4833 = vmatprep.subr.mxu0 %v4719
      %4834 = vmatpush1.msra.mxu0 %v4718
      %4835 = vmatprep.subr.mxu0 %v4717
      %4836 = vmatpush1.msra.mxu0 %v4716
      %4837 = vmatprep.subr.mxu0 %v4715
      %4838 = vmatpush1.msra.mxu0 %v4714
      %4839 = vmatprep.subr.mxu0 %v4713
      %4840 = vmatpush1.msra.mxu0 %v4712
      %4841 = vmatprep.subr.mxu0 %v4711
      %4842 = vmatpush1.msra.mxu0 %v4710
      %4843 = vmatprep.subr.mxu0 %v4709
      %4844 = vmatpush1.msra.mxu0 %v4708
      %4845 = vmatprep.subr.mxu0 %v4707
      %4846 = vmatpush1.msra.mxu0 %v4706
      %4847 = vmatprep.subr.mxu0 0.0
      %4848 = vmatpush2.msra.mxu0 0.0
      %4849 = vmatprep.subr.mxu0 0.0
      %4850 = vmatpush2.msra.mxu0 0.0
      %4851 = vmatprep.subr.mxu0 0.0
      %4852 = vmatpush2.msra.mxu0 0.0
      %4853 = vmatprep.subr.mxu0 0.0
      %4854 = vmatpush2.msra.mxu0 0.0
      %4855 = vmatprep.subr.mxu0 0.0
      %4856 = vmatpush2.msra.mxu0 0.0
      %4857 = vmatprep.subr.mxu0 0.0
      %4858 = vmatpush2.msra.mxu0 0.0
      %4859 = vmatprep.subr.mxu0 0.0
      %4860 = vmatpush2.msra.mxu0 0.0
      %4861 = vmatprep.subr.mxu0 0.0
      %4862 = vmatpush2.msra.mxu0 0.0
      %4863 = vmatprep.subr.mxu0 0.0
      %4864 = vmatpush2.msra.mxu0 0.0
      %4865 = vmatprep.subr.mxu0 0.0
      %4866 = vmatpush2.msra.mxu0 0.0
      %4867 = vmatprep.subr.mxu0 0.0
      %4868 = vmatpush2.msra.mxu0 0.0
      %4869 = vmatprep.subr.mxu0 0.0
      %4870 = vmatpush2.msra.mxu0 0.0
      %4871 = vmatprep.subr.mxu0 0.0
      %4872 = vmatpush2.msra.mxu0 0.0
      %4873 = vmatprep.subr.mxu0 0.0
      %4874 = vmatpush2.msra.mxu0 0.0
      %4875 = vmatprep.subr.mxu0 0.0
      %4876 = vmatpush2.msra.mxu0 0.0
      %4877 = vmatprep.subr.mxu0 0.0
      %4878 = vmatpush2.msra.mxu0 0.0
      %4879 = vmatprep.mubr.f32.mxu0 0.0
      %4880 = vmatmul.mubr.f32.gmra.mxu0 %v4742
      %v4881 = vpop.f32.mrf.mxu0
      %v4882 = vadd.f32 %v4811, %v4881
      %v4883 = vpop.f32.mrf.mxu0
      %v4884 = vadd.f32 %v4813, %v4883
      %4885 = vdwg.mxu0
      %v4886 = vmul.f32 %v4882, 0.2
      %v4887 = vmul.f32 %v4884, 0.2
      %v4888 = vadd.f32 %v4886, %v3627
      %v4889 = vadd.f32 %v4887, %v3628
      %v4890 = vmul.f32 %v4888, 0.2
      %v4891 = vmul.f32 %v4889, 0.2
      %v4892 = vadd.f32 %v4890, %v1002
      %v4893 = vadd.f32 %v4891, %v1003
      %4894 = vst [vmem:[%s986] sm:$0xff] %v4892
      %4895 = vst [vmem:[%s986 + $0x8] sm:$0xff] %v4893
      %p4896 = scmp.lt.s32.totalorder %s76, 1
      %s4897 = scalar_select %p4896, %s76, 1
      %s4898 = smul.addr %s4897, 2
      %s4899 = smul.addr %s4898, 8
      %s4900 = scalar_lea.vmem %s65, %s4899
      // Predicated region
      $region149: #{rrdb_forward_nchw.1} parent=147 // pred_check
        %p4901 = pneg %p771
      $region150: #{rrdb_forward_nchw.1} parent=147 // pred_check_branch
        %4903 = sbr.rel (%p4901) target = $region152
      $region151: #{rrdb_forward_nchw.1} parent=147 // pred_region
        _
      $region152: #{rrdb_forward_nchw.1} parent=147 // pred_fallthru
        _
    $region148: #{rrdb_forward_nchw.1} parent=5 // pred_fallthru
      _
    %p4904 = scmp.le.s32.totalorder 2, %s71
    // Predicated region
    $region153: #{rrdb_forward_nchw.1} parent=5 // pred_check
      %p4905 = pneg %p4904
    $region154: #{rrdb_forward_nchw.1} parent=5 // pred_check_branch
      %4907 = sbr.rel (%p4905) target = $region156
    $region155: #{rrdb_forward_nchw.1} parent=5 // pred_region
      %s4908 = ssub.s32 %s71, 2
      // Predicated region
      $region157: #{rrdb_forward_nchw.1} parent=155 // pred_check
        %p4909 = pneg %p777
      $region158: #{rrdb_forward_nchw.1} parent=155 // pred_check_branch
        %4911 = sbr.rel (%p4909) target = $region160
      $region159: #{rrdb_forward_nchw.1} parent=155 // pred_region
        %p4912 = scmp.lt.s32.totalorder %s77, 1
        %s4913 = scalar_select %p4912, %s77, 1
        %s4914 = smul.addr %s4913, 2
        %s4915 = smul.addr %s4914, 8
        %s4916 = scalar_lea.vmem %s65, %s4915
      $region160: #{rrdb_forward_nchw.1} parent=155 // pred_fallthru
        _
    $region156: #{rrdb_forward_nchw.1} parent=5 // pred_fallthru
      _
  $region6: #{rrdb_forward_nchw.1} parent=0 // loop_footer
    %s75 = sadd.s32 1, %s71
  $region7: #{rrdb_forward_nchw.1} parent=0 // loop_footer_branch
    %70 = sbr.rel target = $region3
  $region8: #{rrdb_forward_nchw.1} parent=0 // loop_exit
    _

</llo_original>
